<compile_context>
chip_gen: v7x
topology: tpu7x:2x2x1
jax: 0.10.0
libtpu: 0.0.40
codegen_flags: <defaults>
</compile_context>

<pallas_src>
import jax
import jax.numpy as jnp
import numpy as np
from jax.experimental import pallas as pl
from jax.experimental.pallas import tpu as pltpu

BN_EPS = 1e-5
C1, C2, C3 = 64, 128, 256        # conv channel widths
FC1, NCLS = 128, 10              # fc1 width, number of classes


# ----------------------------------------------------------------------------
# In-kernel helpers (traced inside the Pallas kernel)
# ----------------------------------------------------------------------------
def _store_padded(a_ref, y):
    """Write y (m, C) into the interior of the zero-padded (bn, h+2, w+2, C) slab.

    Only the 1-wide halo is zeroed (every step, so the kernel is correct when the
    batch grid is sharded across TensorCores); the interior is written exactly
    once — no redundant full-slab zero store.
    """
    bn, hp, wp, c = a_ref.shape
    h, w = hp - 2, wp - 2
    zr = jnp.zeros((bn, 1, wp, c), a_ref.dtype)
    zc = jnp.zeros((bn, h, 1, c), a_ref.dtype)
    a_ref[:, 0:1, :, :] = zr                      # top halo row (incl. corners)
    a_ref[:, h + 1:h + 2, :, :] = zr              # bottom halo row
    a_ref[:, 1:h + 1, 0:1, :] = zc                # left halo col
    a_ref[:, 1:h + 1, w + 1:w + 2, :] = zc        # right halo col
    a_ref[:, 1:h + 1, 1:w + 1, :] = y.reshape(bn, h, w, c)


def _window_slab(a_ref):
    """(m, 9*C) bf16 slab of the nine 3x3-shifted windows (lane-axis concat).

    Lane order is (ki*3 + kj)*C + cin, matching the (9*Cin, Cout) weight reshape
    done in prepare_kernel_params.
    """
    bn, hp, wp, c = a_ref.shape
    h, w = hp - 2, wp - 2
    m = bn * h * w
    taps = [a_ref[:, ki:ki + h, kj:kj + w, :].reshape(m, c).astype(jnp.bfloat16)
            for ki in range(3) for kj in range(3)]
    return jnp.concatenate(taps, axis=-1)


# ----------------------------------------------------------------------------
# Fused whole-network Pallas kernel (one batch block per grid step)
# ----------------------------------------------------------------------------
def fused_net_kernel(p1_ref, w1_ref, s1_ref,          # conv1 patches / weight / (scale,shift)
                     w2_ref, s2_ref,                   # conv2 (576,128) weight / (scale,shift)
                     w3_ref, s3_ref,                   # conv3 (1152,256) weight / (scale,shift)
                     pw_ref,                           # stride-2 + avg-pool spatial weights
                     fw1_ref, fb1_ref, fw2_ref, fb2_ref,
                     o_ref,                            # (bn, 10) logits block
                     a1_ref, a2_ref):                  # padded VMEM activation slabs
    bn = a1_ref.shape[0]
    h = a1_ref.shape[1] - 2
    w = a1_ref.shape[2] - 2
    m = bn * h * w

    # ---- conv1 (bias folded into BN shift) + bn1 + relu : one GEMM, K 25->32 --
    acc1 = jnp.dot(p1_ref[...], w1_ref[...], preferred_element_type=jnp.float32)
    s1 = s1_ref[...]
    y1 = jnp.maximum(acc1 * s1[0:1, :] + s1[1:2, :], 0.0)               # (m, 64) f32
    _store_padded(a1_ref, y1)

    # ---- conv2 + bn2 + relu : ONE GEMM over the (m, 9*64) window slab ---------
    acc2 = jnp.dot(_window_slab(a1_ref), w2_ref[...],
                   preferred_element_type=jnp.float32)                  # (m, 128) f32
    s2 = s2_ref[...]
    y2 = jnp.maximum(acc2 * s2[0:1, :] + s2[1:2, :], 0.0)
    _store_padded(a2_ref, y2)

    # ---- conv3 + bn3 + relu : ONE GEMM over the (m, 9*128) window slab --------
    # Evaluated densely at stride 1; the stride-2 selection + AdaptiveAvgPool
    # ((1,1)) are folded into the masked VPU reduction below (no pooling GEMM).
    acc3 = jnp.dot(_window_slab(a2_ref), w3_ref[...],
                   preferred_element_type=jnp.float32)                  # (m, 256) f32
    s3 = s3_ref[...]
    y3 = jnp.maximum(acc3 * s3[0:1, :] + s3[1:2, :], 0.0)

    # dropout1: identity in eval mode.
    # TODO(synk): train-mode Dropout2d would need a channel mask drawn via
    # pltpu.prng_seed / pltpu.prng_random_bits; inference only here.
    pw = pw_ref[...]                                                    # (h*w, 1) f32
    pooled = jnp.sum(y3.reshape(bn, h * w, C3) * pw[None, :, :], axis=1)  # (bn, 256)

    # ---- fc1 + relu, fc2 (dropout2: identity in eval mode) --------------------
    hid = jnp.dot(pooled.astype(jnp.bfloat16), fw1_ref[...],
                  preferred_element_type=jnp.float32) + fb1_ref[...]
    hid = jnp.maximum(hid, 0.0)
    o_ref[...] = jnp.dot(hid.astype(jnp.bfloat16), fw2_ref[...],
                         preferred_element_type=jnp.float32) + fb2_ref[...]


# ----------------------------------------------------------------------------
# Wrapper-side prep (one-time weight layout) + forward
# ----------------------------------------------------------------------------
def prepare_kernel_params(p):
    """One-time weight layout / precision prep (outside the per-call trace)."""
    def bn_scale_shift(conv_b, bn):
        scale = bn["gamma"] / jnp.sqrt(bn["var"] + BN_EPS)
        shift = (conv_b - bn["mean"]) * scale + bn["beta"]
        return jnp.stack([scale, shift], axis=0).astype(jnp.float32)     # (2, C)

    # conv1 (64,1,5,5) -> (25,64), K padded to 32 (one clean MXU GEMM).
    w1 = jnp.transpose(p["conv1_w"], (2, 3, 1, 0)).reshape(25, C1)
    w1 = jnp.pad(w1, ((0, 7), (0, 0))).astype(jnp.bfloat16)              # (32, 64)
    # conv2 (128,64,3,3) -> (9*64, 128); row index = (ki*3+kj)*64 + cin matches
    # the lane order of the in-kernel window slab.
    w2 = jnp.transpose(p["conv2_w"], (2, 3, 1, 0)).reshape(9 * C1, C2).astype(jnp.bfloat16)
    # conv3 (256,128,3,3) -> (9*128, 256).
    w3 = jnp.transpose(p["conv3_w"], (2, 3, 1, 0)).reshape(9 * C2, C3).astype(jnp.bfloat16)

    return dict(
        w1=w1, s1=bn_scale_shift(p["conv1_b"], p["bn1"]),
        w2=w2, s2=bn_scale_shift(p["conv2_b"], p["bn2"]),
        w3=w3, s3=bn_scale_shift(p["conv3_b"], p["bn3"]),
        fw1=jnp.transpose(p["fc1_w"]).astype(jnp.bfloat16),              # (256, 128)
        fb1=p["fc1_b"].reshape(1, -1).astype(jnp.float32),
        fw2=jnp.transpose(p["fc2_w"]).astype(jnp.bfloat16),              # (128, 10)
        fb2=p["fc2_b"].reshape(1, -1).astype(jnp.float32),
    )


def _conv1_patches(x_nchw, h, w):
    """5x5 / pad 2 im2col of the 1-channel input (tiny: N*h*w x 32 bf16)."""
    n = x_nchw.shape[0]
    x = x_nchw[:, 0, :, :].astype(jnp.float32)               # Cin == 1
    xp = jnp.pad(x, ((0, 0), (2, 2), (2, 2)))
    cols = [xp[:, i:i + h, j:j + w] for i in range(5) for j in range(5)]
    patches = jnp.stack(cols, axis=-1).reshape(n * h * w, 25)   # row = b*h*w + y*w + x
    patches = jnp.pad(patches, ((0, 0), (0, 7)))                # K 25 -> 32
    return patches.astype(jnp.bfloat16)


def _pool_weights(h, w):
    """Stride-2 selection + AdaptiveAvgPool((1,1)) as per-spatial-position weights.

    Static in (h, w) only; constant-folds at trace time (no per-batch retrace)."""
    oh, ow = h // 2, w // 2
    pw = np.zeros((h * w, 1), np.float32)
    idx = [y * w + x for y in range(0, h, 2) for x in range(0, w, 2)]
    pw[idx, 0] = 1.0 / (oh * ow)
    return jnp.asarray(pw)


@jax.jit
def net_forward(x_nchw, kp):
    n, _, h, w = x_nchw.shape
    p1 = _conv1_patches(x_nchw, h, w)
    pool_w = _pool_weights(h, w)

    # Batch grid: blocks of 8 images (whole batch if small / not a multiple of 8).
    # Weights use constant index_maps so they stay resident in VMEM across steps.
    bn = n if (n <= 8 or n % 8 != 0) else 8
    grid = (n // bn,)
    const2 = lambda i: (0, 0)

    return pl.pallas_call(
        fused_net_kernel,
        out_shape=jax.ShapeDtypeStruct((n, NCLS), jnp.float32),
        grid=grid,
        in_specs=[
            pl.BlockSpec((bn * h * w, 32), lambda i: (i, 0)),     # conv1 patches
            pl.BlockSpec((32, C1), const2),                       # w1
            pl.BlockSpec((2, C1), const2),                        # bn1 (scale, shift)
            pl.BlockSpec((9 * C1, C2), const2),                   # w2 (576, 128)
            pl.BlockSpec((2, C2), const2),                        # bn2
            pl.BlockSpec((9 * C2, C3), const2),                   # w3 (1152, 256)
            pl.BlockSpec((2, C3), const2),                        # bn3
            pl.BlockSpec((h * w, 1), const2),                     # pooling weights
            pl.BlockSpec((C3, FC1), const2),                      # fc1 weight
            pl.BlockSpec((1, FC1), const2),                       # fc1 bias
            pl.BlockSpec((FC1, NCLS), const2),                    # fc2 weight
            pl.BlockSpec((1, NCLS), const2),                      # fc2 bias
        ],
        out_specs=pl.BlockSpec((bn, NCLS), lambda i: (i, 0)),
        scratch_shapes=[
            pltpu.VMEM((bn, h + 2, w + 2, C1), jnp.float32),      # padded conv1 act
            pltpu.VMEM((bn, h + 2, w + 2, C2), jnp.float32),      # padded conv2 act
        ],
        compiler_params=pltpu.CompilerParams(
            dimension_semantics=("parallel",),
            vmem_limit_bytes=32 * 1024 * 1024,
        ),
    )(p1, kp["w1"], kp["s1"], kp["w2"], kp["s2"], kp["w3"], kp["s3"],
      pool_w, kp["fw1"], kp["fb1"], kp["fw2"], kp["fb2"])


# ----------------------------------------------------------------------------
# Deterministic synthetic parameters + pure-JAX reference
# ----------------------------------------------------------------------------
def make_params():
    key = jax.random.PRNGKey(0)
    ks = jax.random.split(key, 16)

    def conv_w(k, cout, cin, kh, kw):
        fan_in = cin * kh * kw
        return jax.random.normal(k, (cout, cin, kh, kw), jnp.float32) / jnp.sqrt(fan_in)

    def bn(k, c):
        k1, k2, k3, k4 = jax.random.split(k, 4)
        return dict(
            gamma=0.5 + jax.random.uniform(k1, (c,), jnp.float32),
            beta=0.1 * jax.random.normal(k2, (c,), jnp.float32),
            mean=0.1 * jax.random.normal(k3, (c,), jnp.float32),
            var=0.5 + jax.random.uniform(k4, (c,), jnp.float32),
        )

    p = {}
    p["conv1_w"] = conv_w(ks[0], 64, 1, 5, 5)
    p["conv1_b"] = 0.01 * jax.random.normal(ks[1], (64,), jnp.float32)
    p["bn1"] = bn(ks[2], 64)
    p["conv2_w"] = conv_w(ks[3], 128, 64, 3, 3)
    p["conv2_b"] = 0.01 * jax.random.normal(ks[4], (128,), jnp.float32)
    p["bn2"] = bn(ks[5], 128)
    p["conv3_w"] = conv_w(ks[6], 256, 128, 3, 3)
    p["conv3_b"] = 0.01 * jax.random.normal(ks[7], (256,), jnp.float32)
    p["bn3"] = bn(ks[8], 256)
    p["fc1_w"] = jax.random.normal(ks[9], (128, 256), jnp.float32) / jnp.sqrt(256.0)
    p["fc1_b"] = 0.01 * jax.random.normal(ks[10], (128,), jnp.float32)
    p["fc2_w"] = jax.random.normal(ks[11], (10, 128), jnp.float32) / jnp.sqrt(128.0)
    p["fc2_b"] = 0.01 * jax.random.normal(ks[12], (10,), jnp.float32)
    return p


def reference_forward(x_nchw, p):
    """Pure-JAX f32 reference (eval mode) for a numerics sanity check."""
    def conv_bn_relu(x, w, b, bn, stride, pad):
        y = jax.lax.conv_general_dilated(
            x, w, window_strides=(stride, stride),
            padding=((pad, pad), (pad, pad)),
            dimension_numbers=("NCHW", "OIHW", "NCHW"))
        y = y + b.reshape(1, -1, 1, 1)
        scale = bn["gamma"] / jnp.sqrt(bn["var"] + BN_EPS)
        shift = bn["beta"] - bn["mean"] * scale
        y = y * scale.reshape(1, -1, 1, 1) + shift.reshape(1, -1, 1, 1)
        return jnp.maximum(y, 0.0)

    x = x_nchw.astype(jnp.float32)
    x = conv_bn_relu(x, p["conv1_w"], p["conv1_b"], p["bn1"], 1, 2)
    x = conv_bn_relu(x, p["conv2_w"], p["conv2_b"], p["bn2"], 1, 1)
    x = conv_bn_relu(x, p["conv3_w"], p["conv3_b"], p["bn3"], 2, 1)
    feat = jnp.mean(x, axis=(2, 3))                                  # avg_pool (1,1)
    h = jnp.maximum(feat @ p["fc1_w"].T + p["fc1_b"], 0.0)
    return h @ p["fc2_w"].T + p["fc2_b"]


if __name__ == "__main__":
    params = make_params()
    kparams = prepare_kernel_params(params)

    # NCHW input mirroring PyTorch: batch=2, channels=1 (Conv2d(1, ...)), 16x16 spatial
    x = jax.random.normal(jax.random.PRNGKey(0), (2, 1, 16, 16), jnp.float32)

    logits = jax.block_until_ready(net_forward(x, kparams))
    assert logits.shape == (2, 10), logits.shape
    assert bool(jnp.all(jnp.isfinite(logits)))

    # Sanity check vs pure-JAX f32 reference (loose tol: bf16 MXU operands).
    ref = reference_forward(x, params)
    err = float(jnp.max(jnp.abs(logits - ref)))
    assert err < 0.35, f"max abs error vs reference too large: {err}"

    print("KERNEL_OK")
</pallas_src>

<mosaic_0001>
module attributes {stable_mosaic.version = 11 : i64} {
  func.func @fused_net_kernel(%arg0: i32, %arg1: memref<512x32xbf16, #tpu.memory_space<vmem>>, %arg2: memref<32x64xbf16, #tpu.memory_space<vmem>>, %arg3: memref<2x64xf32, #tpu.memory_space<vmem>>, %arg4: memref<576x128xbf16, #tpu.memory_space<vmem>>, %arg5: memref<2x128xf32, #tpu.memory_space<vmem>>, %arg6: memref<1152x256xbf16, #tpu.memory_space<vmem>>, %arg7: memref<2x256xf32, #tpu.memory_space<vmem>>, %arg8: memref<256x1xf32, #tpu.memory_space<vmem>>, %arg9: memref<256x128xbf16, #tpu.memory_space<vmem>>, %arg10: memref<1x128xf32, #tpu.memory_space<vmem>>, %arg11: memref<128x10xbf16, #tpu.memory_space<vmem>>, %arg12: memref<1x10xf32, #tpu.memory_space<vmem>>, %arg13: memref<2x10xf32, #tpu.memory_space<vmem>>, %arg14: memref<2x18x18x64xf32, #tpu.memory_space<vmem>>, %arg15: memref<2x18x18x128xf32, #tpu.memory_space<vmem>>) attributes {dimension_semantics = [#tpu.dimension_semantics<parallel>], iteration_bounds = array<i64: 1>, scalar_prefetch = 0 : i64, scratch_operands = 2 : i64, tpu.core_type = #tpu.core_type<tc>, window_params = [{transform_indices = @transform_0, window_bounds = array<i64: 512, 32>}, {pipeline_mode = #tpu.pipeline_mode<synchronous>, transform_indices = @transform_1, window_bounds = array<i64: 32, 64>}, {pipeline_mode = #tpu.pipeline_mode<synchronous>, transform_indices = @transform_2, window_bounds = array<i64: 2, 64>}, {pipeline_mode = #tpu.pipeline_mode<synchronous>, transform_indices = @transform_3, window_bounds = array<i64: 576, 128>}, {pipeline_mode = #tpu.pipeline_mode<synchronous>, transform_indices = @transform_4, window_bounds = array<i64: 2, 128>}, {pipeline_mode = #tpu.pipeline_mode<synchronous>, transform_indices = @transform_5, window_bounds = array<i64: 1152, 256>}, {pipeline_mode = #tpu.pipeline_mode<synchronous>, transform_indices = @transform_6, window_bounds = array<i64: 2, 256>}, {pipeline_mode = #tpu.pipeline_mode<synchronous>, transform_indices = @transform_7, window_bounds = array<i64: 256, 1>}, {pipeline_mode = #tpu.pipeline_mode<synchronous>, transform_indices = @transform_8, window_bounds = array<i64: 256, 128>}, {pipeline_mode = #tpu.pipeline_mode<synchronous>, transform_indices = @transform_9, window_bounds = array<i64: 1, 128>}, {pipeline_mode = #tpu.pipeline_mode<synchronous>, transform_indices = @transform_10, window_bounds = array<i64: 128, 10>}, {pipeline_mode = #tpu.pipeline_mode<synchronous>, transform_indices = @transform_11, window_bounds = array<i64: 1, 10>}, {transform_indices = @transform_12, window_bounds = array<i64: 2, 10>}]} {
    %c0 = arith.constant 0 : index
    %c0_0 = arith.constant 0 : index
    %0 = vector.load %arg1[%c0, %c0_0] : memref<512x32xbf16, #tpu.memory_space<vmem>>, vector<512x32xbf16>
    %c0_1 = arith.constant 0 : index
    %c0_2 = arith.constant 0 : index
    %1 = vector.load %arg2[%c0_1, %c0_2] : memref<32x64xbf16, #tpu.memory_space<vmem>>, vector<32x64xbf16>
    %cst = arith.constant dense<0.000000e+00> : vector<512x64xf32>
    %2 = tpu.matmul %0, %1, %cst {dimension_numbers = #tpu.dot_dimension_numbers<[1], [0], [0], [1], [0, 0, 1, 1], [], []>} : vector<512x32xbf16>, vector<32x64xbf16>, vector<512x64xf32> -> vector<512x64xf32>
    %c0_3 = arith.constant 0 : index
    %c0_4 = arith.constant 0 : index
    %3 = vector.load %arg3[%c0_3, %c0_4] : memref<2x64xf32, #tpu.memory_space<vmem>>, vector<2x64xf32>
    %4 = vector.extract_strided_slice %3 {offsets = [0, 0], sizes = [1, 64], strides = [1, 1]} : vector<2x64xf32> to vector<1x64xf32>
    %5 = vector.broadcast %4 : vector<1x64xf32> to vector<512x64xf32>
    %6 = arith.mulf %2, %5 : vector<512x64xf32>
    %7 = vector.extract_strided_slice %3 {offsets = [1, 0], sizes = [1, 64], strides = [1, 1]} : vector<2x64xf32> to vector<1x64xf32>
    %8 = vector.broadcast %7 : vector<1x64xf32> to vector<512x64xf32>
    %9 = arith.addf %6, %8 : vector<512x64xf32>
    %cst_5 = arith.constant 0.000000e+00 : f32
    %10 = vector.broadcast %cst_5 : f32 to vector<512x64xf32>
    %11 = arith.maximumf %9, %10 : vector<512x64xf32>
    %cst_6 = arith.constant 0.000000e+00 : f32
    %12 = vector.broadcast %cst_6 : f32 to vector<2x1x18x64xf32>
    %cst_7 = arith.constant 0.000000e+00 : f32
    %13 = vector.broadcast %cst_7 : f32 to vector<2x16x1x64xf32>
    %c0_8 = arith.constant 0 : index
    %c0_9 = arith.constant 0 : index
    %c0_10 = arith.constant 0 : index
    %c0_11 = arith.constant 0 : index
    %14 = vector.load %arg14[%c0_8, %c0_9, %c0_10, %c0_11] : memref<2x18x18x64xf32, #tpu.memory_space<vmem>>, vector<2x1x18x64xf32>
    tpu.vector_store %arg14[%c0_8, %c0_9, %c0_10, %c0_11], %12 {strides = array<i32>} : memref<2x18x18x64xf32, #tpu.memory_space<vmem>>, vector<2x1x18x64xf32>,
    %c0_12 = arith.constant 0 : index
    %c17 = arith.constant 17 : index
    %c0_13 = arith.constant 0 : index
    %c0_14 = arith.constant 0 : index
    %15 = vector.load %arg14[%c0_12, %c17, %c0_13, %c0_14] : memref<2x18x18x64xf32, #tpu.memory_space<vmem>>, vector<2x1x18x64xf32>
    tpu.vector_store %arg14[%c0_12, %c17, %c0_13, %c0_14], %12 {strides = array<i32>} : memref<2x18x18x64xf32, #tpu.memory_space<vmem>>, vector<2x1x18x64xf32>,
    %c0_15 = arith.constant 0 : index
    %c1 = arith.constant 1 : index
    %c0_16 = arith.constant 0 : index
    %c0_17 = arith.constant 0 : index
    %16 = vector.load %arg14[%c0_15, %c1, %c0_16, %c0_17] : memref<2x18x18x64xf32, #tpu.memory_space<vmem>>, vector<2x16x1x64xf32>
    tpu.vector_store %arg14[%c0_15, %c1, %c0_16, %c0_17], %13 {strides = array<i32>} : memref<2x18x18x64xf32, #tpu.memory_space<vmem>>, vector<2x16x1x64xf32>,
    %c0_18 = arith.constant 0 : index
    %c1_19 = arith.constant 1 : index
    %c17_20 = arith.constant 17 : index
    %c0_21 = arith.constant 0 : index
    %17 = vector.load %arg14[%c0_18, %c1_19, %c17_20, %c0_21] : memref<2x18x18x64xf32, #tpu.memory_space<vmem>>, vector<2x16x1x64xf32>
    tpu.vector_store %arg14[%c0_18, %c1_19, %c17_20, %c0_21], %13 {strides = array<i32>} : memref<2x18x18x64xf32, #tpu.memory_space<vmem>>, vector<2x16x1x64xf32>,
    %18 = vector.shape_cast %11 : vector<512x64xf32> to vector<2x16x16x64xf32>
    %c0_22 = arith.constant 0 : index
    %c1_23 = arith.constant 1 : index
    %c1_24 = arith.constant 1 : index
    %c0_25 = arith.constant 0 : index
    %19 = vector.load %arg14[%c0_22, %c1_23, %c1_24, %c0_25] : memref<2x18x18x64xf32, #tpu.memory_space<vmem>>, vector<2x16x16x64xf32>
    tpu.vector_store %arg14[%c0_22, %c1_23, %c1_24, %c0_25], %18 {strides = array<i32>} : memref<2x18x18x64xf32, #tpu.memory_space<vmem>>, vector<2x16x16x64xf32>,
    %c0_26 = arith.constant 0 : index
    %c0_27 = arith.constant 0 : index
    %c0_28 = arith.constant 0 : index
    %c0_29 = arith.constant 0 : index
    %20 = vector.load %arg14[%c0_26, %c0_27, %c0_28, %c0_29] : memref<2x18x18x64xf32, #tpu.memory_space<vmem>>, vector<2x16x16x64xf32>
    %21 = vector.shape_cast %20 : vector<2x16x16x64xf32> to vector<512x64xf32>
    %22 = arith.truncf %21 : vector<512x64xf32> to vector<512x64xbf16>
    %c0_30 = arith.constant 0 : index
    %c0_31 = arith.constant 0 : index
    %c1_32 = arith.constant 1 : index
    %c0_33 = arith.constant 0 : index
    %23 = vector.load %arg14[%c0_30, %c0_31, %c1_32, %c0_33] : memref<2x18x18x64xf32, #tpu.memory_space<vmem>>, vector<2x16x16x64xf32>
    %24 = vector.shape_cast %23 : vector<2x16x16x64xf32> to vector<512x64xf32>
    %25 = arith.truncf %24 : vector<512x64xf32> to vector<512x64xbf16>
    %c0_34 = arith.constant 0 : index
    %c0_35 = arith.constant 0 : index
    %c2 = arith.constant 2 : index
    %c0_36 = arith.constant 0 : index
    %26 = vector.load %arg14[%c0_34, %c0_35, %c2, %c0_36] : memref<2x18x18x64xf32, #tpu.memory_space<vmem>>, vector<2x16x16x64xf32>
    %27 = vector.shape_cast %26 : vector<2x16x16x64xf32> to vector<512x64xf32>
    %28 = arith.truncf %27 : vector<512x64xf32> to vector<512x64xbf16>
    %c0_37 = arith.constant 0 : index
    %c1_38 = arith.constant 1 : index
    %c0_39 = arith.constant 0 : index
    %c0_40 = arith.constant 0 : index
    %29 = vector.load %arg14[%c0_37, %c1_38, %c0_39, %c0_40] : memref<2x18x18x64xf32, #tpu.memory_space<vmem>>, vector<2x16x16x64xf32>
    %30 = vector.shape_cast %29 : vector<2x16x16x64xf32> to vector<512x64xf32>
    %31 = arith.truncf %30 : vector<512x64xf32> to vector<512x64xbf16>
    %c0_41 = arith.constant 0 : index
    %c1_42 = arith.constant 1 : index
    %c1_43 = arith.constant 1 : index
    %c0_44 = arith.constant 0 : index
    %32 = vector.load %arg14[%c0_41, %c1_42, %c1_43, %c0_44] : memref<2x18x18x64xf32, #tpu.memory_space<vmem>>, vector<2x16x16x64xf32>
    %33 = vector.shape_cast %32 : vector<2x16x16x64xf32> to vector<512x64xf32>
    %34 = arith.truncf %33 : vector<512x64xf32> to vector<512x64xbf16>
    %c0_45 = arith.constant 0 : index
    %c1_46 = arith.constant 1 : index
    %c2_47 = arith.constant 2 : index
    %c0_48 = arith.constant 0 : index
    %35 = vector.load %arg14[%c0_45, %c1_46, %c2_47, %c0_48] : memref<2x18x18x64xf32, #tpu.memory_space<vmem>>, vector<2x16x16x64xf32>
    %36 = vector.shape_cast %35 : vector<2x16x16x64xf32> to vector<512x64xf32>
    %37 = arith.truncf %36 : vector<512x64xf32> to vector<512x64xbf16>
    %c0_49 = arith.constant 0 : index
    %c2_50 = arith.constant 2 : index
    %c0_51 = arith.constant 0 : index
    %c0_52 = arith.constant 0 : index
    %38 = vector.load %arg14[%c0_49, %c2_50, %c0_51, %c0_52] : memref<2x18x18x64xf32, #tpu.memory_space<vmem>>, vector<2x16x16x64xf32>
    %39 = vector.shape_cast %38 : vector<2x16x16x64xf32> to vector<512x64xf32>
    %40 = arith.truncf %39 : vector<512x64xf32> to vector<512x64xbf16>
    %c0_53 = arith.constant 0 : index
    %c2_54 = arith.constant 2 : index
    %c1_55 = arith.constant 1 : index
    %c0_56 = arith.constant 0 : index
    %41 = vector.load %arg14[%c0_53, %c2_54, %c1_55, %c0_56] : memref<2x18x18x64xf32, #tpu.memory_space<vmem>>, vector<2x16x16x64xf32>
    %42 = vector.shape_cast %41 : vector<2x16x16x64xf32> to vector<512x64xf32>
    %43 = arith.truncf %42 : vector<512x64xf32> to vector<512x64xbf16>
    %c0_57 = arith.constant 0 : index
    %c2_58 = arith.constant 2 : index
    %c2_59 = arith.constant 2 : index
    %c0_60 = arith.constant 0 : index
    %44 = vector.load %arg14[%c0_57, %c2_58, %c2_59, %c0_60] : memref<2x18x18x64xf32, #tpu.memory_space<vmem>>, vector<2x16x16x64xf32>
    %45 = vector.shape_cast %44 : vector<2x16x16x64xf32> to vector<512x64xf32>
    %46 = arith.truncf %45 : vector<512x64xf32> to vector<512x64xbf16>
    %47 = tpu.concatenate %22, %25, %28, %31, %34, %37, %40, %43, %46 in 1 : vector<512x64xbf16>, vector<512x64xbf16>, vector<512x64xbf16>, vector<512x64xbf16>, vector<512x64xbf16>, vector<512x64xbf16>, vector<512x64xbf16>, vector<512x64xbf16>, vector<512x64xbf16> -> vector<512x576xbf16>
    %c0_61 = arith.constant 0 : index
    %c0_62 = arith.constant 0 : index
    %48 = vector.load %arg4[%c0_61, %c0_62] : memref<576x128xbf16, #tpu.memory_space<vmem>>, vector<576x128xbf16>
    %cst_63 = arith.constant dense<0.000000e+00> : vector<512x128xf32>
    %49 = tpu.matmul %47, %48, %cst_63 {dimension_numbers = #tpu.dot_dimension_numbers<[1], [0], [0], [1], [0, 0, 1, 1], [], []>} : vector<512x576xbf16>, vector<576x128xbf16>, vector<512x128xf32> -> vector<512x128xf32>
    %c0_64 = arith.constant 0 : index
    %c0_65 = arith.constant 0 : index
    %50 = vector.load %arg5[%c0_64, %c0_65] : memref<2x128xf32, #tpu.memory_space<vmem>>, vector<2x128xf32>
    %51 = vector.extract_strided_slice %50 {offsets = [0, 0], sizes = [1, 128], strides = [1, 1]} : vector<2x128xf32> to vector<1x128xf32>
    %52 = vector.broadcast %51 : vector<1x128xf32> to vector<512x128xf32>
    %53 = arith.mulf %49, %52 : vector<512x128xf32>
    %54 = vector.extract_strided_slice %50 {offsets = [1, 0], sizes = [1, 128], strides = [1, 1]} : vector<2x128xf32> to vector<1x128xf32>
    %55 = vector.broadcast %54 : vector<1x128xf32> to vector<512x128xf32>
    %56 = arith.addf %53, %55 : vector<512x128xf32>
    %cst_66 = arith.constant 0.000000e+00 : f32
    %57 = vector.broadcast %cst_66 : f32 to vector<512x128xf32>
    %58 = arith.maximumf %56, %57 : vector<512x128xf32>
    %cst_67 = arith.constant 0.000000e+00 : f32
    %59 = vector.broadcast %cst_67 : f32 to vector<2x1x18x128xf32>
    %cst_68 = arith.constant 0.000000e+00 : f32
    %60 = vector.broadcast %cst_68 : f32 to vector<2x16x1x128xf32>
    %c0_69 = arith.constant 0 : index
    %c0_70 = arith.constant 0 : index
    %c0_71 = arith.constant 0 : index
    %c0_72 = arith.constant 0 : index
    %61 = vector.load %arg15[%c0_69, %c0_70, %c0_71, %c0_72] : memref<2x18x18x128xf32, #tpu.memory_space<vmem>>, vector<2x1x18x128xf32>
    tpu.vector_store %arg15[%c0_69, %c0_70, %c0_71, %c0_72], %59 {strides = array<i32>} : memref<2x18x18x128xf32, #tpu.memory_space<vmem>>, vector<2x1x18x128xf32>,
    %c0_73 = arith.constant 0 : index
    %c17_74 = arith.constant 17 : index
    %c0_75 = arith.constant 0 : index
    %c0_76 = arith.constant 0 : index
    %62 = vector.load %arg15[%c0_73, %c17_74, %c0_75, %c0_76] : memref<2x18x18x128xf32, #tpu.memory_space<vmem>>, vector<2x1x18x128xf32>
    tpu.vector_store %arg15[%c0_73, %c17_74, %c0_75, %c0_76], %59 {strides = array<i32>} : memref<2x18x18x128xf32, #tpu.memory_space<vmem>>, vector<2x1x18x128xf32>,
    %c0_77 = arith.constant 0 : index
    %c1_78 = arith.constant 1 : index
    %c0_79 = arith.constant 0 : index
    %c0_80 = arith.constant 0 : index
    %63 = vector.load %arg15[%c0_77, %c1_78, %c0_79, %c0_80] : memref<2x18x18x128xf32, #tpu.memory_space<vmem>>, vector<2x16x1x128xf32>
    tpu.vector_store %arg15[%c0_77, %c1_78, %c0_79, %c0_80], %60 {strides = array<i32>} : memref<2x18x18x128xf32, #tpu.memory_space<vmem>>, vector<2x16x1x128xf32>,
    %c0_81 = arith.constant 0 : index
    %c1_82 = arith.constant 1 : index
    %c17_83 = arith.constant 17 : index
    %c0_84 = arith.constant 0 : index
    %64 = vector.load %arg15[%c0_81, %c1_82, %c17_83, %c0_84] : memref<2x18x18x128xf32, #tpu.memory_space<vmem>>, vector<2x16x1x128xf32>
    tpu.vector_store %arg15[%c0_81, %c1_82, %c17_83, %c0_84], %60 {strides = array<i32>} : memref<2x18x18x128xf32, #tpu.memory_space<vmem>>, vector<2x16x1x128xf32>,
    %65 = vector.shape_cast %58 : vector<512x128xf32> to vector<2x16x16x128xf32>
    %c0_85 = arith.constant 0 : index
    %c1_86 = arith.constant 1 : index
    %c1_87 = arith.constant 1 : index
    %c0_88 = arith.constant 0 : index
    %66 = vector.load %arg15[%c0_85, %c1_86, %c1_87, %c0_88] : memref<2x18x18x128xf32, #tpu.memory_space<vmem>>, vector<2x16x16x128xf32>
    tpu.vector_store %arg15[%c0_85, %c1_86, %c1_87, %c0_88], %65 {strides = array<i32>} : memref<2x18x18x128xf32, #tpu.memory_space<vmem>>, vector<2x16x16x128xf32>,
    %c0_89 = arith.constant 0 : index
    %c0_90 = arith.constant 0 : index
    %c0_91 = arith.constant 0 : index
    %c0_92 = arith.constant 0 : index
    %67 = vector.load %arg15[%c0_89, %c0_90, %c0_91, %c0_92] : memref<2x18x18x128xf32, #tpu.memory_space<vmem>>, vector<2x16x16x128xf32>
    %68 = vector.shape_cast %67 : vector<2x16x16x128xf32> to vector<512x128xf32>
    %69 = arith.truncf %68 : vector<512x128xf32> to vector<512x128xbf16>
    %c0_93 = arith.constant 0 : index
    %c0_94 = arith.constant 0 : index
    %c1_95 = arith.constant 1 : index
    %c0_96 = arith.constant 0 : index
    %70 = vector.load %arg15[%c0_93, %c0_94, %c1_95, %c0_96] : memref<2x18x18x128xf32, #tpu.memory_space<vmem>>, vector<2x16x16x128xf32>
    %71 = vector.shape_cast %70 : vector<2x16x16x128xf32> to vector<512x128xf32>
    %72 = arith.truncf %71 : vector<512x128xf32> to vector<512x128xbf16>
    %c0_97 = arith.constant 0 : index
    %c0_98 = arith.constant 0 : index
    %c2_99 = arith.constant 2 : index
    %c0_100 = arith.constant 0 : index
    %73 = vector.load %arg15[%c0_97, %c0_98, %c2_99, %c0_100] : memref<2x18x18x128xf32, #tpu.memory_space<vmem>>, vector<2x16x16x128xf32>
    %74 = vector.shape_cast %73 : vector<2x16x16x128xf32> to vector<512x128xf32>
    %75 = arith.truncf %74 : vector<512x128xf32> to vector<512x128xbf16>
    %c0_101 = arith.constant 0 : index
    %c1_102 = arith.constant 1 : index
    %c0_103 = arith.constant 0 : index
    %c0_104 = arith.constant 0 : index
    %76 = vector.load %arg15[%c0_101, %c1_102, %c0_103, %c0_104] : memref<2x18x18x128xf32, #tpu.memory_space<vmem>>, vector<2x16x16x128xf32>
    %77 = vector.shape_cast %76 : vector<2x16x16x128xf32> to vector<512x128xf32>
    %78 = arith.truncf %77 : vector<512x128xf32> to vector<512x128xbf16>
    %c0_105 = arith.constant 0 : index
    %c1_106 = arith.constant 1 : index
    %c1_107 = arith.constant 1 : index
    %c0_108 = arith.constant 0 : index
    %79 = vector.load %arg15[%c0_105, %c1_106, %c1_107, %c0_108] : memref<2x18x18x128xf32, #tpu.memory_space<vmem>>, vector<2x16x16x128xf32>
    %80 = vector.shape_cast %79 : vector<2x16x16x128xf32> to vector<512x128xf32>
    %81 = arith.truncf %80 : vector<512x128xf32> to vector<512x128xbf16>
    %c0_109 = arith.constant 0 : index
    %c1_110 = arith.constant 1 : index
    %c2_111 = arith.constant 2 : index
    %c0_112 = arith.constant 0 : index
    %82 = vector.load %arg15[%c0_109, %c1_110, %c2_111, %c0_112] : memref<2x18x18x128xf32, #tpu.memory_space<vmem>>, vector<2x16x16x128xf32>
    %83 = vector.shape_cast %82 : vector<2x16x16x128xf32> to vector<512x128xf32>
    %84 = arith.truncf %83 : vector<512x128xf32> to vector<512x128xbf16>
    %c0_113 = arith.constant 0 : index
    %c2_114 = arith.constant 2 : index
    %c0_115 = arith.constant 0 : index
    %c0_116 = arith.constant 0 : index
    %85 = vector.load %arg15[%c0_113, %c2_114, %c0_115, %c0_116] : memref<2x18x18x128xf32, #tpu.memory_space<vmem>>, vector<2x16x16x128xf32>
    %86 = vector.shape_cast %85 : vector<2x16x16x128xf32> to vector<512x128xf32>
    %87 = arith.truncf %86 : vector<512x128xf32> to vector<512x128xbf16>
    %c0_117 = arith.constant 0 : index
    %c2_118 = arith.constant 2 : index
    %c1_119 = arith.constant 1 : index
    %c0_120 = arith.constant 0 : index
    %88 = vector.load %arg15[%c0_117, %c2_118, %c1_119, %c0_120] : memref<2x18x18x128xf32, #tpu.memory_space<vmem>>, vector<2x16x16x128xf32>
    %89 = vector.shape_cast %88 : vector<2x16x16x128xf32> to vector<512x128xf32>
    %90 = arith.truncf %89 : vector<512x128xf32> to vector<512x128xbf16>
    %c0_121 = arith.constant 0 : index
    %c2_122 = arith.constant 2 : index
    %c2_123 = arith.constant 2 : index
    %c0_124 = arith.constant 0 : index
    %91 = vector.load %arg15[%c0_121, %c2_122, %c2_123, %c0_124] : memref<2x18x18x128xf32, #tpu.memory_space<vmem>>, vector<2x16x16x128xf32>
    %92 = vector.shape_cast %91 : vector<2x16x16x128xf32> to vector<512x128xf32>
    %93 = arith.truncf %92 : vector<512x128xf32> to vector<512x128xbf16>
    %94 = tpu.concatenate %69, %72, %75, %78, %81, %84, %87, %90, %93 in 1 : vector<512x128xbf16>, vector<512x128xbf16>, vector<512x128xbf16>, vector<512x128xbf16>, vector<512x128xbf16>, vector<512x128xbf16>, vector<512x128xbf16>, vector<512x128xbf16>, vector<512x128xbf16> -> vector<512x1152xbf16>
    %c0_125 = arith.constant 0 : index
    %c0_126 = arith.constant 0 : index
    %95 = vector.load %arg6[%c0_125, %c0_126] : memref<1152x256xbf16, #tpu.memory_space<vmem>>, vector<1152x256xbf16>
    %cst_127 = arith.constant dense<0.000000e+00> : vector<512x256xf32>
    %96 = tpu.matmul %94, %95, %cst_127 {dimension_numbers = #tpu.dot_dimension_numbers<[1], [0], [0], [1], [0, 0, 1, 1], [], []>} : vector<512x1152xbf16>, vector<1152x256xbf16>, vector<512x256xf32> -> vector<512x256xf32>
    %c0_128 = arith.constant 0 : index
    %c0_129 = arith.constant 0 : index
    %97 = vector.load %arg7[%c0_128, %c0_129] : memref<2x256xf32, #tpu.memory_space<vmem>>, vector<2x256xf32>
    %98 = vector.extract_strided_slice %97 {offsets = [0, 0], sizes = [1, 256], strides = [1, 1]} : vector<2x256xf32> to vector<1x256xf32>
    %99 = vector.broadcast %98 : vector<1x256xf32> to vector<512x256xf32>
    %100 = arith.mulf %96, %99 : vector<512x256xf32>
    %101 = vector.extract_strided_slice %97 {offsets = [1, 0], sizes = [1, 256], strides = [1, 1]} : vector<2x256xf32> to vector<1x256xf32>
    %102 = vector.broadcast %101 : vector<1x256xf32> to vector<512x256xf32>
    %103 = arith.addf %100, %102 : vector<512x256xf32>
    %cst_130 = arith.constant 0.000000e+00 : f32
    %104 = vector.broadcast %cst_130 : f32 to vector<512x256xf32>
    %105 = arith.maximumf %103, %104 : vector<512x256xf32>
    %c0_131 = arith.constant 0 : index
    %c0_132 = arith.constant 0 : index
    %106 = vector.load %arg8[%c0_131, %c0_132] : memref<256x1xf32, #tpu.memory_space<vmem>>, vector<256x1xf32>
    %107 = vector.shape_cast %105 : vector<512x256xf32> to vector<2x256x256xf32>
    %108 = vector.shape_cast %106 : vector<256x1xf32> to vector<1x256x1xf32>
    %109 = vector.broadcast %108 : vector<1x256x1xf32> to vector<2x256x256xf32>
    %110 = arith.mulf %107, %109 : vector<2x256x256xf32>
    %cst_133 = arith.constant dense<0.000000e+00> : vector<2x256xf32>
    %111 = vector.multi_reduction <add>, %110, %cst_133 [1] : vector<2x256x256xf32> to vector<2x256xf32>
    %112 = arith.truncf %111 : vector<2x256xf32> to vector<2x256xbf16>
    %c0_134 = arith.constant 0 : index
    %c0_135 = arith.constant 0 : index
    %113 = vector.load %arg9[%c0_134, %c0_135] : memref<256x128xbf16, #tpu.memory_space<vmem>>, vector<256x128xbf16>
    %cst_136 = arith.constant dense<0.000000e+00> : vector<2x128xf32>
    %114 = tpu.matmul %112, %113, %cst_136 {dimension_numbers = #tpu.dot_dimension_numbers<[1], [0], [0], [1], [0, 0, 1, 1], [], []>} : vector<2x256xbf16>, vector<256x128xbf16>, vector<2x128xf32> -> vector<2x128xf32>
    %c0_137 = arith.constant 0 : index
    %c0_138 = arith.constant 0 : index
    %115 = vector.load %arg10[%c0_137, %c0_138] : memref<1x128xf32, #tpu.memory_space<vmem>>, vector<1x128xf32>
    %116 = vector.broadcast %115 : vector<1x128xf32> to vector<2x128xf32>
    %117 = arith.addf %114, %116 : vector<2x128xf32>
    %cst_139 = arith.constant 0.000000e+00 : f32
    %118 = vector.broadcast %cst_139 : f32 to vector<2x128xf32>
    %119 = arith.maximumf %117, %118 : vector<2x128xf32>
    %120 = arith.truncf %119 : vector<2x128xf32> to vector<2x128xbf16>
    %c0_140 = arith.constant 0 : index
    %c0_141 = arith.constant 0 : index
    %121 = vector.load %arg11[%c0_140, %c0_141] : memref<128x10xbf16, #tpu.memory_space<vmem>>, vector<128x10xbf16>
    %cst_142 = arith.constant dense<0.000000e+00> : vector<2x10xf32>
    %122 = tpu.matmul %120, %121, %cst_142 {dimension_numbers = #tpu.dot_dimension_numbers<[1], [0], [0], [1], [0, 0, 1, 1], [], []>} : vector<2x128xbf16>, vector<128x10xbf16>, vector<2x10xf32> -> vector<2x10xf32>
    %c0_143 = arith.constant 0 : index
    %c0_144 = arith.constant 0 : index
    %123 = vector.load %arg12[%c0_143, %c0_144] : memref<1x10xf32, #tpu.memory_space<vmem>>, vector<1x10xf32>
    %124 = vector.broadcast %123 : vector<1x10xf32> to vector<2x10xf32>
    %125 = arith.addf %122, %124 : vector<2x10xf32>
    %c0_145 = arith.constant 0 : index
    %c0_146 = arith.constant 0 : index
    %126 = vector.load %arg13[%c0_145, %c0_146] : memref<2x10xf32, #tpu.memory_space<vmem>>, vector<2x10xf32>
    tpu.vector_store %arg13[%c0_145, %c0_146], %125 {strides = array<i32>} : memref<2x10xf32, #tpu.memory_space<vmem>>, vector<2x10xf32>,
    return
  }
  func.func @transform_0(%arg0: i32) -> (i32, i32) {
    %c0_i32 = arith.constant 0 : i32
    %c0_i32_0 = arith.constant 0 : i32
    return %arg0, %c0_i32 : i32, i32
  }
  func.func @transform_1(%arg0: i32) -> (i32, i32) {
    %c0_i32 = arith.constant 0 : i32
    %c0_i32_0 = arith.constant 0 : i32
    %c0_i32_1 = arith.constant 0 : i32
    return %c0_i32, %c0_i32_0 : i32, i32
  }
  func.func @transform_2(%arg0: i32) -> (i32, i32) {
    %c0_i32 = arith.constant 0 : i32
    %c0_i32_0 = arith.constant 0 : i32
    %c0_i32_1 = arith.constant 0 : i32
    return %c0_i32, %c0_i32_0 : i32, i32
  }
  func.func @transform_3(%arg0: i32) -> (i32, i32) {
    %c0_i32 = arith.constant 0 : i32
    %c0_i32_0 = arith.constant 0 : i32
    %c0_i32_1 = arith.constant 0 : i32
    return %c0_i32, %c0_i32_0 : i32, i32
  }
  func.func @transform_4(%arg0: i32) -> (i32, i32) {
    %c0_i32 = arith.constant 0 : i32
    %c0_i32_0 = arith.constant 0 : i32
    %c0_i32_1 = arith.constant 0 : i32
    return %c0_i32, %c0_i32_0 : i32, i32
  }
  func.func @transform_5(%arg0: i32) -> (i32, i32) {
    %c0_i32 = arith.constant 0 : i32
    %c0_i32_0 = arith.constant 0 : i32
    %c0_i32_1 = arith.constant 0 : i32
    return %c0_i32, %c0_i32_0 : i32, i32
  }
  func.func @transform_6(%arg0: i32) -> (i32, i32) {
    %c0_i32 = arith.constant 0 : i32
    %c0_i32_0 = arith.constant 0 : i32
    %c0_i32_1 = arith.constant 0 : i32
    return %c0_i32, %c0_i32_0 : i32, i32
  }
  func.func @transform_7(%arg0: i32) -> (i32, i32) {
    %c0_i32 = arith.constant 0 : i32
    %c0_i32_0 = arith.constant 0 : i32
    %c0_i32_1 = arith.constant 0 : i32
    return %c0_i32, %c0_i32_0 : i32, i32
  }
  func.func @transform_8(%arg0: i32) -> (i32, i32) {
    %c0_i32 = arith.constant 0 : i32
    %c0_i32_0 = arith.constant 0 : i32
    %c0_i32_1 = arith.constant 0 : i32
    return %c0_i32, %c0_i32_0 : i32, i32
  }
  func.func @transform_9(%arg0: i32) -> (i32, i32) {
    %c0_i32 = arith.constant 0 : i32
    %c0_i32_0 = arith.constant 0 : i32
    %c0_i32_1 = arith.constant 0 : i32
    return %c0_i32, %c0_i32_0 : i32, i32
  }
  func.func @transform_10(%arg0: i32) -> (i32, i32) {
    %c0_i32 = arith.constant 0 : i32
    %c0_i32_0 = arith.constant 0 : i32
    %c0_i32_1 = arith.constant 0 : i32
    return %c0_i32, %c0_i32_0 : i32, i32
  }
  func.func @transform_11(%arg0: i32) -> (i32, i32) {
    %c0_i32 = arith.constant 0 : i32
    %c0_i32_0 = arith.constant 0 : i32
    %c0_i32_1 = arith.constant 0 : i32
    return %c0_i32, %c0_i32_0 : i32, i32
  }
  func.func @transform_12(%arg0: i32) -> (i32, i32) {
    %c0_i32 = arith.constant 0 : i32
    %c0_i32_0 = arith.constant 0 : i32
    return %arg0, %c0_i32 : i32, i32
  }
}

</mosaic_0001>

<llo_original>
// kernel: net_forward.1
$region0: #{net_forward.1}
  #allocation0 [shape = 'u32[]', space=smem, size = 0x4, offset = 0x4, fixed_abs, tag = 'smem constant byte address 0x4 - core index']
  #allocation1 [shape = 'u32[144,128]{1,0:T(1,128)}', space=vmem, size = 0x12000, scoped, tag = 'internal scratch']
  #allocation2 [shape = 'f32[2,18,18,64]{3,2,1,0:T(8,128)}', space=vmem, size = 0x6c000, scoped, tag = 'scratch operand']
  #allocation3 [shape = 'f32[2,18,18,128]{3,2,1,0:T(8,128)}', space=vmem, size = 0x6c000, scoped, tag = 'scratch operand']
  %s0 = inlined_call_operand.vmem [shape: bf16[512,32], index: 0, kind: input, shape index: {}]
  %s1 = inlined_call_operand.vmem [shape: bf16[32,64], index: 1, kind: input, shape index: {}]
  %s2 = inlined_call_operand.vmem [shape: f32[2,64], index: 2, kind: input, shape index: {}]
  %s3 = inlined_call_operand.vmem [shape: bf16[576,128], index: 3, kind: input, shape index: {}]
  %s4 = inlined_call_operand.vmem [shape: f32[2,128], index: 4, kind: input, shape index: {}]
  %s5 = inlined_call_operand.vmem [shape: bf16[1152,256], index: 5, kind: input, shape index: {}]
  %s6 = inlined_call_operand.vmem [shape: f32[2,256], index: 6, kind: input, shape index: {}]
  %s7 = inlined_call_operand.vmem [shape: f32[256,1], index: 7, kind: input, shape index: {}]
  %s8 = inlined_call_operand.vmem [shape: bf16[256,128], index: 8, kind: input, shape index: {}]
  %s9 = inlined_call_operand.vmem [shape: f32[1,128], index: 9, kind: input, shape index: {}]
  %s10 = inlined_call_operand.vmem [shape: bf16[128,10], index: 10, kind: input, shape index: {}]
  %s11 = inlined_call_operand.vmem [shape: f32[1,10], index: 11, kind: input, shape index: {}]
  %s12 = inlined_call_operand.hbm [shape: f32[2,10], index: 12, kind: output, shape index: {}]
  %s13 = sld [smem:[#allocation0]]
  $region58: #{net_forward.1} parent=0
    _
  %s15 = ssub.s32 1, %s13
  %s16 = scalar_select 0, %s15, %s13
  $region1: #{net_forward.1} parent=0
    #allocation4 [shape = 'u8[1024]{0}', space=vmem, size = 0x400, scoped, tag = 'output window, operand 0, single buffered']
    #allocation5 [shape = 's32[1]{0}', space=sflag, size = 0x4, scoped, tag = 'scoped memory for net_forward.1']
    %17 = vsyncpa [#allocation5], 0
    // Predicated region
    $region2: #{net_forward.1} parent=1 // pred_check
      _
    $region3: #{net_forward.1} parent=1 // pred_check_branch
      %19 = sbr.rel (0) target = $region5
    $region4: #{net_forward.1} parent=1 // pred_region
      _
    $region5: #{net_forward.1} parent=1 // pred_fallthru
      _
    // Predicated region
    $region6: #{net_forward.1} parent=1 // pred_check
      _
    $region7: #{net_forward.1} parent=1 // pred_check_branch
      %21 = sbr.rel (0) target = $region9
    $region8: #{net_forward.1} parent=1 // pred_region
      _
    $region9: #{net_forward.1} parent=1 // pred_fallthru
      _
    // Predicated region
    $region10: #{net_forward.1} parent=1 // pred_check
      _
    $region11: #{net_forward.1} parent=1 // pred_check_branch
      %23 = sbr.rel (0) target = $region13
    $region12: #{net_forward.1} parent=1 // pred_region
      _
    $region13: #{net_forward.1} parent=1 // pred_fallthru
      _
    // Predicated region
    $region14: #{net_forward.1} parent=1 // pred_check
      _
    $region15: #{net_forward.1} parent=1 // pred_check_branch
      %25 = sbr.rel (0) target = $region17
    $region16: #{net_forward.1} parent=1 // pred_region
      _
    $region17: #{net_forward.1} parent=1 // pred_fallthru
      _
    // Predicated region
    $region18: #{net_forward.1} parent=1 // pred_check
      _
    $region19: #{net_forward.1} parent=1 // pred_check_branch
      %27 = sbr.rel (0) target = $region21
    $region20: #{net_forward.1} parent=1 // pred_region
      _
    $region21: #{net_forward.1} parent=1 // pred_fallthru
      _
    // Predicated region
    $region22: #{net_forward.1} parent=1 // pred_check
      _
    $region23: #{net_forward.1} parent=1 // pred_check_branch
      %29 = sbr.rel (0) target = $region25
    $region24: #{net_forward.1} parent=1 // pred_region
      _
    $region25: #{net_forward.1} parent=1 // pred_fallthru
      _
    // Predicated region
    $region26: #{net_forward.1} parent=1 // pred_check
      _
    $region27: #{net_forward.1} parent=1 // pred_check_branch
      %31 = sbr.rel (0) target = $region29
    $region28: #{net_forward.1} parent=1 // pred_region
      _
    $region29: #{net_forward.1} parent=1 // pred_fallthru
      _
    // Predicated region
    $region30: #{net_forward.1} parent=1 // pred_check
      _
    $region31: #{net_forward.1} parent=1 // pred_check_branch
      %33 = sbr.rel (0) target = $region33
    $region32: #{net_forward.1} parent=1 // pred_region
      _
    $region33: #{net_forward.1} parent=1 // pred_fallthru
      _
    // Predicated region
    $region34: #{net_forward.1} parent=1 // pred_check
      _
    $region35: #{net_forward.1} parent=1 // pred_check_branch
      %35 = sbr.rel (0) target = $region37
    $region36: #{net_forward.1} parent=1 // pred_region
      _
    $region37: #{net_forward.1} parent=1 // pred_fallthru
      _
    // Predicated region
    $region38: #{net_forward.1} parent=1 // pred_check
      _
    $region39: #{net_forward.1} parent=1 // pred_check_branch
      %37 = sbr.rel (0) target = $region41
    $region40: #{net_forward.1} parent=1 // pred_region
      _
    $region41: #{net_forward.1} parent=1 // pred_fallthru
      _
    // Predicated region
    $region42: #{net_forward.1} parent=1 // pred_check
      _
    $region43: #{net_forward.1} parent=1 // pred_check_branch
      %39 = sbr.rel (0) target = $region45
    $region44: #{net_forward.1} parent=1 // pred_region
      _
    $region45: #{net_forward.1} parent=1 // pred_fallthru
      _
    // Predicated region
    $region46: #{net_forward.1} parent=1 // pred_check
      _
    $region47: #{net_forward.1} parent=1 // pred_check_branch
      %41 = sbr.rel (0) target = $region49
    $region48: #{net_forward.1} parent=1 // pred_region
      _
    $region49: #{net_forward.1} parent=1 // pred_fallthru
      _
    %v43 = vld [vmem:[%s0] sm:$0xf]
    %v44 = vld [vmem:[%s0 + $0x4] sm:$0xf]
    %v45 = vld [vmem:[%s0 + $0x8] sm:$0xf]
    %v46 = vld [vmem:[%s0 + $0xc] sm:$0xf]
    %v47 = vld [vmem:[%s0 + $0x10] sm:$0xf]
    %v48 = vld [vmem:[%s0 + $0x14] sm:$0xf]
    %v49 = vld [vmem:[%s0 + $0x18] sm:$0xf]
    %v50 = vld [vmem:[%s0 + $0x1c] sm:$0xf]
    %v51 = vld [vmem:[%s0 + $0x20] sm:$0xf]
    %v52 = vld [vmem:[%s0 + $0x24] sm:$0xf]
    %v53 = vld [vmem:[%s0 + $0x28] sm:$0xf]
    %v54 = vld [vmem:[%s0 + $0x2c] sm:$0xf]
    %v55 = vld [vmem:[%s0 + $0x30] sm:$0xf]
    %v56 = vld [vmem:[%s0 + $0x34] sm:$0xf]
    %v57 = vld [vmem:[%s0 + $0x38] sm:$0xf]
    %v58 = vld [vmem:[%s0 + $0x3c] sm:$0xf]
    %v59 = vld [vmem:[%s0 + $0x40] sm:$0xf]
    %v60 = vld [vmem:[%s0 + $0x44] sm:$0xf]
    %v61 = vld [vmem:[%s0 + $0x48] sm:$0xf]
    %v62 = vld [vmem:[%s0 + $0x4c] sm:$0xf]
    %v63 = vld [vmem:[%s0 + $0x50] sm:$0xf]
    %v64 = vld [vmem:[%s0 + $0x54] sm:$0xf]
    %v65 = vld [vmem:[%s0 + $0x58] sm:$0xf]
    %v66 = vld [vmem:[%s0 + $0x5c] sm:$0xf]
    %v67 = vld [vmem:[%s0 + $0x60] sm:$0xf]
    %v68 = vld [vmem:[%s0 + $0x64] sm:$0xf]
    %v69 = vld [vmem:[%s0 + $0x68] sm:$0xf]
    %v70 = vld [vmem:[%s0 + $0x6c] sm:$0xf]
    %v71 = vld [vmem:[%s0 + $0x70] sm:$0xf]
    %v72 = vld [vmem:[%s0 + $0x74] sm:$0xf]
    %v73 = vld [vmem:[%s0 + $0x78] sm:$0xf]
    %v74 = vld [vmem:[%s0 + $0x7c] sm:$0xf]
    %v75 = vld [vmem:[%s0 + $0x80] sm:$0xf]
    %v76 = vld [vmem:[%s0 + $0x84] sm:$0xf]
    %v77 = vld [vmem:[%s0 + $0x88] sm:$0xf]
    %v78 = vld [vmem:[%s0 + $0x8c] sm:$0xf]
    %v79 = vld [vmem:[%s0 + $0x90] sm:$0xf]
    %v80 = vld [vmem:[%s0 + $0x94] sm:$0xf]
    %v81 = vld [vmem:[%s0 + $0x98] sm:$0xf]
    %v82 = vld [vmem:[%s0 + $0x9c] sm:$0xf]
    %v83 = vld [vmem:[%s0 + $0xa0] sm:$0xf]
    %v84 = vld [vmem:[%s0 + $0xa4] sm:$0xf]
    %v85 = vld [vmem:[%s0 + $0xa8] sm:$0xf]
    %v86 = vld [vmem:[%s0 + $0xac] sm:$0xf]
    %v87 = vld [vmem:[%s0 + $0xb0] sm:$0xf]
    %v88 = vld [vmem:[%s0 + $0xb4] sm:$0xf]
    %v89 = vld [vmem:[%s0 + $0xb8] sm:$0xf]
    %v90 = vld [vmem:[%s0 + $0xbc] sm:$0xf]
    %v91 = vld [vmem:[%s0 + $0xc0] sm:$0xf]
    %v92 = vld [vmem:[%s0 + $0xc4] sm:$0xf]
    %v93 = vld [vmem:[%s0 + $0xc8] sm:$0xf]
    %v94 = vld [vmem:[%s0 + $0xcc] sm:$0xf]
    %v95 = vld [vmem:[%s0 + $0xd0] sm:$0xf]
    %v96 = vld [vmem:[%s0 + $0xd4] sm:$0xf]
    %v97 = vld [vmem:[%s0 + $0xd8] sm:$0xf]
    %v98 = vld [vmem:[%s0 + $0xdc] sm:$0xf]
    %v99 = vld [vmem:[%s0 + $0xe0] sm:$0xf]
    %v100 = vld [vmem:[%s0 + $0xe4] sm:$0xf]
    %v101 = vld [vmem:[%s0 + $0xe8] sm:$0xf]
    %v102 = vld [vmem:[%s0 + $0xec] sm:$0xf]
    %v103 = vld [vmem:[%s0 + $0xf0] sm:$0xf]
    %v104 = vld [vmem:[%s0 + $0xf4] sm:$0xf]
    %v105 = vld [vmem:[%s0 + $0xf8] sm:$0xf]
    %v106 = vld [vmem:[%s0 + $0xfc] sm:$0xf]
    %v107 = vld [vmem:[%s1] sm:$0xf]
    %v108 = vld [vmem:[%s1 + $0x4] sm:$0xf]
    %v109 = vld [vmem:[%s1 + $0x8] sm:$0xf]
    %v110 = vld [vmem:[%s1 + $0xc] sm:$0xf]
    %v175 = vunpack.c.l.b16 %v43
    %v176 = vunpack.c.l.b16 %v44
    %v177 = vunpack.c.l.b16 %v45
    %v178 = vunpack.c.l.b16 %v46
    %v179 = vunpack.c.l.b16 %v47
    %v180 = vunpack.c.l.b16 %v48
    %v181 = vunpack.c.l.b16 %v49
    %v182 = vunpack.c.l.b16 %v50
    %v183 = vunpack.c.l.b16 %v51
    %v184 = vunpack.c.l.b16 %v52
    %v185 = vunpack.c.l.b16 %v53
    %v186 = vunpack.c.l.b16 %v54
    %v187 = vunpack.c.l.b16 %v55
    %v188 = vunpack.c.l.b16 %v56
    %v189 = vunpack.c.l.b16 %v57
    %v190 = vunpack.c.l.b16 %v58
    %v191 = vunpack.c.l.b16 %v59
    %v192 = vunpack.c.l.b16 %v60
    %v193 = vunpack.c.l.b16 %v61
    %v194 = vunpack.c.l.b16 %v62
    %v195 = vunpack.c.l.b16 %v63
    %v196 = vunpack.c.l.b16 %v64
    %v197 = vunpack.c.l.b16 %v65
    %v198 = vunpack.c.l.b16 %v66
    %v199 = vunpack.c.l.b16 %v67
    %v200 = vunpack.c.l.b16 %v68
    %v201 = vunpack.c.l.b16 %v69
    %v202 = vunpack.c.l.b16 %v70
    %v203 = vunpack.c.l.b16 %v71
    %v204 = vunpack.c.l.b16 %v72
    %v205 = vunpack.c.l.b16 %v73
    %v206 = vunpack.c.l.b16 %v74
    %v207 = vunpack.c.l.b16 %v75
    %v208 = vunpack.c.l.b16 %v76
    %v209 = vunpack.c.l.b16 %v77
    %v210 = vunpack.c.l.b16 %v78
    %v211 = vunpack.c.l.b16 %v79
    %v212 = vunpack.c.l.b16 %v80
    %v213 = vunpack.c.l.b16 %v81
    %v214 = vunpack.c.l.b16 %v82
    %v215 = vunpack.c.l.b16 %v83
    %v216 = vunpack.c.l.b16 %v84
    %v217 = vunpack.c.l.b16 %v85
    %v218 = vunpack.c.l.b16 %v86
    %v219 = vunpack.c.l.b16 %v87
    %v220 = vunpack.c.l.b16 %v88
    %v221 = vunpack.c.l.b16 %v89
    %v222 = vunpack.c.l.b16 %v90
    %v223 = vunpack.c.l.b16 %v91
    %v224 = vunpack.c.l.b16 %v92
    %v225 = vunpack.c.l.b16 %v93
    %v226 = vunpack.c.l.b16 %v94
    %v227 = vunpack.c.l.b16 %v95
    %v228 = vunpack.c.l.b16 %v96
    %v229 = vunpack.c.l.b16 %v97
    %v230 = vunpack.c.l.b16 %v98
    %v231 = vunpack.c.l.b16 %v99
    %v232 = vunpack.c.l.b16 %v100
    %v233 = vunpack.c.l.b16 %v101
    %v234 = vunpack.c.l.b16 %v102
    %v235 = vunpack.c.l.b16 %v103
    %v236 = vunpack.c.l.b16 %v104
    %v237 = vunpack.c.l.b16 %v105
    %v238 = vunpack.c.l.b16 %v106
    %v239 = vpack.c.b16 %v176, %v175
    %v240 = vpack.c.b16 %v178, %v177
    %v241 = vpack.c.b16 %v180, %v179
    %v242 = vpack.c.b16 %v182, %v181
    %v243 = vpack.c.b16 %v184, %v183
    %v244 = vpack.c.b16 %v186, %v185
    %v245 = vpack.c.b16 %v188, %v187
    %v246 = vpack.c.b16 %v190, %v189
    %v247 = vpack.c.b16 %v192, %v191
    %v248 = vpack.c.b16 %v194, %v193
    %v249 = vpack.c.b16 %v196, %v195
    %v250 = vpack.c.b16 %v198, %v197
    %v251 = vpack.c.b16 %v200, %v199
    %v252 = vpack.c.b16 %v202, %v201
    %v253 = vpack.c.b16 %v204, %v203
    %v254 = vpack.c.b16 %v206, %v205
    %v255 = vpack.c.b16 %v208, %v207
    %v256 = vpack.c.b16 %v210, %v209
    %v257 = vpack.c.b16 %v212, %v211
    %v258 = vpack.c.b16 %v214, %v213
    %v259 = vpack.c.b16 %v216, %v215
    %v260 = vpack.c.b16 %v218, %v217
    %v261 = vpack.c.b16 %v220, %v219
    %v262 = vpack.c.b16 %v222, %v221
    %v263 = vpack.c.b16 %v224, %v223
    %v264 = vpack.c.b16 %v226, %v225
    %v265 = vpack.c.b16 %v228, %v227
    %v266 = vpack.c.b16 %v230, %v229
    %v267 = vpack.c.b16 %v232, %v231
    %v268 = vpack.c.b16 %v234, %v233
    %v269 = vpack.c.b16 %v236, %v235
    %v270 = vpack.c.b16 %v238, %v237
    %v275 = vunpack.c.l.b16 %v107
    %v276 = vunpack.c.l.b16 %v108
    %v277 = vunpack.c.l.b16 %v109
    %v278 = vunpack.c.l.b16 %v110
    %v279 = vpack.c.b16 %v276, %v275
    %v280 = vpack.c.b16 %v278, %v277
    %vm283 = vcmask 261120
    %v285 = vsel %vm283, %v239, 0
    %v288 = vsel %vm283, %v240, 0
    %v291 = vsel %vm283, %v241, 0
    %v294 = vsel %vm283, %v242, 0
    %v297 = vsel %vm283, %v243, 0
    %v300 = vsel %vm283, %v244, 0
    %v303 = vsel %vm283, %v245, 0
    %v306 = vsel %vm283, %v246, 0
    %v309 = vsel %vm283, %v247, 0
    %v312 = vsel %vm283, %v248, 0
    %v315 = vsel %vm283, %v249, 0
    %v318 = vsel %vm283, %v250, 0
    %v321 = vsel %vm283, %v251, 0
    %v324 = vsel %vm283, %v252, 0
    %v327 = vsel %vm283, %v253, 0
    %v330 = vsel %vm283, %v254, 0
    %v333 = vsel %vm283, %v255, 0
    %v336 = vsel %vm283, %v256, 0
    %v339 = vsel %vm283, %v257, 0
    %v342 = vsel %vm283, %v258, 0
    %v345 = vsel %vm283, %v259, 0
    %v348 = vsel %vm283, %v260, 0
    %v351 = vsel %vm283, %v261, 0
    %v354 = vsel %vm283, %v262, 0
    %v357 = vsel %vm283, %v263, 0
    %v360 = vsel %vm283, %v264, 0
    %v363 = vsel %vm283, %v265, 0
    %v366 = vsel %vm283, %v266, 0
    %v369 = vsel %vm283, %v267, 0
    %v372 = vsel %vm283, %v268, 0
    %v375 = vsel %vm283, %v269, 0
    %v378 = vsel %vm283, %v270, 0
    %380 = vmatprep.subr.bf16.mxu0 0
    %381 = vmatpush1.bf16.msra.mxu0 %v279
    %382 = vmatprep.subr.bf16.mxu0 0
    %383 = vmatpush1.bf16.msra.mxu0 %v280
    %384 = vmatprep.subr.bf16.mxu0 0
    %385 = vmatpush1.bf16.msra.mxu0 0
    %386 = vmatprep.subr.bf16.mxu0 0
    %387 = vmatpush1.bf16.msra.mxu0 0
    %388 = vmatprep.subr.bf16.mxu0 0
    %389 = vmatpush1.bf16.msra.mxu0 0
    %390 = vmatprep.subr.bf16.mxu0 0
    %391 = vmatpush1.bf16.msra.mxu0 0
    %392 = vmatprep.subr.bf16.mxu0 0
    %393 = vmatpush1.bf16.msra.mxu0 0
    %394 = vmatprep.subr.bf16.mxu0 0
    %395 = vmatpush1.bf16.msra.mxu0 0
    %396 = vmatprep.subr.bf16.mxu0 0
    %397 = vmatpush1.bf16.msra.mxu0 0
    %398 = vmatprep.subr.bf16.mxu0 0
    %399 = vmatpush1.bf16.msra.mxu0 0
    %400 = vmatprep.subr.bf16.mxu0 0
    %401 = vmatpush1.bf16.msra.mxu0 0
    %402 = vmatprep.subr.bf16.mxu0 0
    %403 = vmatpush1.bf16.msra.mxu0 0
    %404 = vmatprep.subr.bf16.mxu0 0
    %405 = vmatpush1.bf16.msra.mxu0 0
    %406 = vmatprep.subr.bf16.mxu0 0
    %407 = vmatpush1.bf16.msra.mxu0 0
    %408 = vmatprep.subr.bf16.mxu0 0
    %409 = vmatpush1.bf16.msra.mxu0 0
    %410 = vmatprep.subr.bf16.mxu0 0
    %411 = vmatpush1.bf16.msra.mxu0 0
    %412 = vmatprep.mubr.bf16.mxu0 0
    %413 = vmatmul.mubr.bf16.gmra.mrb[0].mxu0 %v285
    %v414 = vpop.f32.mrb[0].mxu0
    %v415 = vadd.f32 0.0, %v414
    %v416 = vpop.f32.mrb[0].mxu0
    %v417 = vpop.f32.mrb[0].mxu0
    %v418 = vadd.f32 0.0, %v417
    %v419 = vpop.f32.mrb[0].mxu0
    %420 = vmatprep.mubr.bf16.mxu0 0
    %421 = vmatmul.mubr.bf16.gmra.mrb[0].mxu0 %v288
    %v422 = vpop.f32.mrb[0].mxu0
    %v423 = vadd.f32 0.0, %v422
    %v424 = vpop.f32.mrb[0].mxu0
    %v425 = vpop.f32.mrb[0].mxu0
    %v426 = vadd.f32 0.0, %v425
    %v427 = vpop.f32.mrb[0].mxu0
    %428 = vmatprep.mubr.bf16.mxu0 0
    %429 = vmatmul.mubr.bf16.gmra.mrb[0].mxu0 %v291
    %v430 = vpop.f32.mrb[0].mxu0
    %v431 = vadd.f32 0.0, %v430
    %v432 = vpop.f32.mrb[0].mxu0
    %v433 = vpop.f32.mrb[0].mxu0
    %v434 = vadd.f32 0.0, %v433
    %v435 = vpop.f32.mrb[0].mxu0
    %436 = vmatprep.mubr.bf16.mxu0 0
    %437 = vmatmul.mubr.bf16.gmra.mrb[0].mxu0 %v294
    %v438 = vpop.f32.mrb[0].mxu0
    %v439 = vadd.f32 0.0, %v438
    %v440 = vpop.f32.mrb[0].mxu0
    %v441 = vpop.f32.mrb[0].mxu0
    %v442 = vadd.f32 0.0, %v441
    %v443 = vpop.f32.mrb[0].mxu0
    %444 = vmatprep.mubr.bf16.mxu0 0
    %445 = vmatmul.mubr.bf16.gmra.mrb[0].mxu0 %v297
    %v446 = vpop.f32.mrb[0].mxu0
    %v447 = vadd.f32 0.0, %v446
    %v448 = vpop.f32.mrb[0].mxu0
    %v449 = vpop.f32.mrb[0].mxu0
    %v450 = vadd.f32 0.0, %v449
    %v451 = vpop.f32.mrb[0].mxu0
    %452 = vmatprep.mubr.bf16.mxu0 0
    %453 = vmatmul.mubr.bf16.gmra.mrb[0].mxu0 %v300
    %v454 = vpop.f32.mrb[0].mxu0
    %v455 = vadd.f32 0.0, %v454
    %v456 = vpop.f32.mrb[0].mxu0
    %v457 = vpop.f32.mrb[0].mxu0
    %v458 = vadd.f32 0.0, %v457
    %v459 = vpop.f32.mrb[0].mxu0
    %460 = vmatprep.mubr.bf16.mxu0 0
    %461 = vmatmul.mubr.bf16.gmra.mrb[0].mxu0 %v303
    %v462 = vpop.f32.mrb[0].mxu0
    %v463 = vadd.f32 0.0, %v462
    %v464 = vpop.f32.mrb[0].mxu0
    %v465 = vpop.f32.mrb[0].mxu0
    %v466 = vadd.f32 0.0, %v465
    %v467 = vpop.f32.mrb[0].mxu0
    %468 = vmatprep.mubr.bf16.mxu0 0
    %469 = vmatmul.mubr.bf16.gmra.mrb[0].mxu0 %v306
    %v470 = vpop.f32.mrb[0].mxu0
    %v471 = vadd.f32 0.0, %v470
    %v472 = vpop.f32.mrb[0].mxu0
    %v473 = vpop.f32.mrb[0].mxu0
    %v474 = vadd.f32 0.0, %v473
    %v475 = vpop.f32.mrb[0].mxu0
    %476 = vmatprep.mubr.bf16.mxu0 0
    %477 = vmatmul.mubr.bf16.gmra.mrb[0].mxu0 %v309
    %v478 = vpop.f32.mrb[0].mxu0
    %v479 = vadd.f32 0.0, %v478
    %v480 = vpop.f32.mrb[0].mxu0
    %v481 = vpop.f32.mrb[0].mxu0
    %v482 = vadd.f32 0.0, %v481
    %v483 = vpop.f32.mrb[0].mxu0
    %484 = vmatprep.mubr.bf16.mxu0 0
    %485 = vmatmul.mubr.bf16.gmra.mrb[0].mxu0 %v312
    %v486 = vpop.f32.mrb[0].mxu0
    %v487 = vadd.f32 0.0, %v486
    %v488 = vpop.f32.mrb[0].mxu0
    %v489 = vpop.f32.mrb[0].mxu0
    %v490 = vadd.f32 0.0, %v489
    %v491 = vpop.f32.mrb[0].mxu0
    %492 = vmatprep.mubr.bf16.mxu0 0
    %493 = vmatmul.mubr.bf16.gmra.mrb[0].mxu0 %v315
    %v494 = vpop.f32.mrb[0].mxu0
    %v495 = vadd.f32 0.0, %v494
    %v496 = vpop.f32.mrb[0].mxu0
    %v497 = vpop.f32.mrb[0].mxu0
    %v498 = vadd.f32 0.0, %v497
    %v499 = vpop.f32.mrb[0].mxu0
    %500 = vmatprep.mubr.bf16.mxu0 0
    %501 = vmatmul.mubr.bf16.gmra.mrb[0].mxu0 %v318
    %v502 = vpop.f32.mrb[0].mxu0
    %v503 = vadd.f32 0.0, %v502
    %v504 = vpop.f32.mrb[0].mxu0
    %v505 = vpop.f32.mrb[0].mxu0
    %v506 = vadd.f32 0.0, %v505
    %v507 = vpop.f32.mrb[0].mxu0
    %508 = vmatprep.mubr.bf16.mxu0 0
    %509 = vmatmul.mubr.bf16.gmra.mrb[0].mxu0 %v321
    %v510 = vpop.f32.mrb[0].mxu0
    %v511 = vadd.f32 0.0, %v510
    %v512 = vpop.f32.mrb[0].mxu0
    %v513 = vpop.f32.mrb[0].mxu0
    %v514 = vadd.f32 0.0, %v513
    %v515 = vpop.f32.mrb[0].mxu0
    %516 = vmatprep.mubr.bf16.mxu0 0
    %517 = vmatmul.mubr.bf16.gmra.mrb[0].mxu0 %v324
    %v518 = vpop.f32.mrb[0].mxu0
    %v519 = vadd.f32 0.0, %v518
    %v520 = vpop.f32.mrb[0].mxu0
    %v521 = vpop.f32.mrb[0].mxu0
    %v522 = vadd.f32 0.0, %v521
    %v523 = vpop.f32.mrb[0].mxu0
    %524 = vmatprep.mubr.bf16.mxu0 0
    %525 = vmatmul.mubr.bf16.gmra.mrb[0].mxu0 %v327
    %v526 = vpop.f32.mrb[0].mxu0
    %v527 = vadd.f32 0.0, %v526
    %v528 = vpop.f32.mrb[0].mxu0
    %v529 = vpop.f32.mrb[0].mxu0
    %v530 = vadd.f32 0.0, %v529
    %v531 = vpop.f32.mrb[0].mxu0
    %532 = vmatprep.mubr.bf16.mxu0 0
    %533 = vmatmul.mubr.bf16.gmra.mrb[0].mxu0 %v330
    %v534 = vpop.f32.mrb[0].mxu0
    %v535 = vadd.f32 0.0, %v534
    %v536 = vpop.f32.mrb[0].mxu0
    %v537 = vpop.f32.mrb[0].mxu0
    %v538 = vadd.f32 0.0, %v537
    %v539 = vpop.f32.mrb[0].mxu0
    %540 = vmatprep.mubr.bf16.mxu0 0
    %541 = vmatmul.mubr.bf16.gmra.mrb[0].mxu0 %v333
    %v542 = vpop.f32.mrb[0].mxu0
    %v543 = vadd.f32 0.0, %v542
    %v544 = vpop.f32.mrb[0].mxu0
    %v545 = vpop.f32.mrb[0].mxu0
    %v546 = vadd.f32 0.0, %v545
    %v547 = vpop.f32.mrb[0].mxu0
    %548 = vmatprep.mubr.bf16.mxu0 0
    %549 = vmatmul.mubr.bf16.gmra.mrb[0].mxu0 %v336
    %v550 = vpop.f32.mrb[0].mxu0
    %v551 = vadd.f32 0.0, %v550
    %v552 = vpop.f32.mrb[0].mxu0
    %v553 = vpop.f32.mrb[0].mxu0
    %v554 = vadd.f32 0.0, %v553
    %v555 = vpop.f32.mrb[0].mxu0
    %556 = vmatprep.mubr.bf16.mxu0 0
    %557 = vmatmul.mubr.bf16.gmra.mrb[0].mxu0 %v339
    %v558 = vpop.f32.mrb[0].mxu0
    %v559 = vadd.f32 0.0, %v558
    %v560 = vpop.f32.mrb[0].mxu0
    %v561 = vpop.f32.mrb[0].mxu0
    %v562 = vadd.f32 0.0, %v561
    %v563 = vpop.f32.mrb[0].mxu0
    %564 = vmatprep.mubr.bf16.mxu0 0
    %565 = vmatmul.mubr.bf16.gmra.mrb[0].mxu0 %v342
    %v566 = vpop.f32.mrb[0].mxu0
    %v567 = vadd.f32 0.0, %v566
    %v568 = vpop.f32.mrb[0].mxu0
    %v569 = vpop.f32.mrb[0].mxu0
    %v570 = vadd.f32 0.0, %v569
    %v571 = vpop.f32.mrb[0].mxu0
    %572 = vmatprep.mubr.bf16.mxu0 0
    %573 = vmatmul.mubr.bf16.gmra.mrb[0].mxu0 %v345
    %v574 = vpop.f32.mrb[0].mxu0
    %v575 = vadd.f32 0.0, %v574
    %v576 = vpop.f32.mrb[0].mxu0
    %v577 = vpop.f32.mrb[0].mxu0
    %v578 = vadd.f32 0.0, %v577
    %v579 = vpop.f32.mrb[0].mxu0
    %580 = vmatprep.mubr.bf16.mxu0 0
    %581 = vmatmul.mubr.bf16.gmra.mrb[0].mxu0 %v348
    %v582 = vpop.f32.mrb[0].mxu0
    %v583 = vadd.f32 0.0, %v582
    %v584 = vpop.f32.mrb[0].mxu0
    %v585 = vpop.f32.mrb[0].mxu0
    %v586 = vadd.f32 0.0, %v585
    %v587 = vpop.f32.mrb[0].mxu0
    %588 = vmatprep.mubr.bf16.mxu0 0
    %589 = vmatmul.mubr.bf16.gmra.mrb[0].mxu0 %v351
    %v590 = vpop.f32.mrb[0].mxu0
    %v591 = vadd.f32 0.0, %v590
    %v592 = vpop.f32.mrb[0].mxu0
    %v593 = vpop.f32.mrb[0].mxu0
    %v594 = vadd.f32 0.0, %v593
    %v595 = vpop.f32.mrb[0].mxu0
    %596 = vmatprep.mubr.bf16.mxu0 0
    %597 = vmatmul.mubr.bf16.gmra.mrb[0].mxu0 %v354
    %v598 = vpop.f32.mrb[0].mxu0
    %v599 = vadd.f32 0.0, %v598
    %v600 = vpop.f32.mrb[0].mxu0
    %v601 = vpop.f32.mrb[0].mxu0
    %v602 = vadd.f32 0.0, %v601
    %v603 = vpop.f32.mrb[0].mxu0
    %604 = vmatprep.mubr.bf16.mxu0 0
    %605 = vmatmul.mubr.bf16.gmra.mrb[0].mxu0 %v357
    %v606 = vpop.f32.mrb[0].mxu0
    %v607 = vadd.f32 0.0, %v606
    %v608 = vpop.f32.mrb[0].mxu0
    %v609 = vpop.f32.mrb[0].mxu0
    %v610 = vadd.f32 0.0, %v609
    %v611 = vpop.f32.mrb[0].mxu0
    %612 = vmatprep.mubr.bf16.mxu0 0
    %613 = vmatmul.mubr.bf16.gmra.mrb[0].mxu0 %v360
    %v614 = vpop.f32.mrb[0].mxu0
    %v615 = vadd.f32 0.0, %v614
    %v616 = vpop.f32.mrb[0].mxu0
    %v617 = vpop.f32.mrb[0].mxu0
    %v618 = vadd.f32 0.0, %v617
    %v619 = vpop.f32.mrb[0].mxu0
    %620 = vmatprep.mubr.bf16.mxu0 0
    %621 = vmatmul.mubr.bf16.gmra.mrb[0].mxu0 %v363
    %v622 = vpop.f32.mrb[0].mxu0
    %v623 = vadd.f32 0.0, %v622
    %v624 = vpop.f32.mrb[0].mxu0
    %v625 = vpop.f32.mrb[0].mxu0
    %v626 = vadd.f32 0.0, %v625
    %v627 = vpop.f32.mrb[0].mxu0
    %628 = vmatprep.mubr.bf16.mxu0 0
    %629 = vmatmul.mubr.bf16.gmra.mrb[0].mxu0 %v366
    %v630 = vpop.f32.mrb[0].mxu0
    %v631 = vadd.f32 0.0, %v630
    %v632 = vpop.f32.mrb[0].mxu0
    %v633 = vpop.f32.mrb[0].mxu0
    %v634 = vadd.f32 0.0, %v633
    %v635 = vpop.f32.mrb[0].mxu0
    %636 = vmatprep.mubr.bf16.mxu0 0
    %637 = vmatmul.mubr.bf16.gmra.mrb[0].mxu0 %v369
    %v638 = vpop.f32.mrb[0].mxu0
    %v639 = vadd.f32 0.0, %v638
    %v640 = vpop.f32.mrb[0].mxu0
    %v641 = vpop.f32.mrb[0].mxu0
    %v642 = vadd.f32 0.0, %v641
    %v643 = vpop.f32.mrb[0].mxu0
    %644 = vmatprep.mubr.bf16.mxu0 0
    %645 = vmatmul.mubr.bf16.gmra.mrb[0].mxu0 %v372
    %v646 = vpop.f32.mrb[0].mxu0
    %v647 = vadd.f32 0.0, %v646
    %v648 = vpop.f32.mrb[0].mxu0
    %v649 = vpop.f32.mrb[0].mxu0
    %v650 = vadd.f32 0.0, %v649
    %v651 = vpop.f32.mrb[0].mxu0
    %652 = vmatprep.mubr.bf16.mxu0 0
    %653 = vmatmul.mubr.bf16.gmra.mrb[0].mxu0 %v375
    %v654 = vpop.f32.mrb[0].mxu0
    %v655 = vadd.f32 0.0, %v654
    %v656 = vpop.f32.mrb[0].mxu0
    %v657 = vpop.f32.mrb[0].mxu0
    %v658 = vadd.f32 0.0, %v657
    %v659 = vpop.f32.mrb[0].mxu0
    %660 = vmatprep.mubr.bf16.mxu0 0
    %661 = vmatmul.mubr.bf16.gmra.mrb[0].mxu0 %v378
    %v662 = vpop.f32.mrb[0].mxu0
    %v663 = vadd.f32 0.0, %v662
    %v664 = vpop.f32.mrb[0].mxu0
    %v665 = vpop.f32.mrb[0].mxu0
    %v666 = vadd.f32 0.0, %v665
    %v667 = vpop.f32.mrb[0].mxu0
    %668 = vdwg.mxu0
    %v669 = vld [vmem:[%s2] sm:$0x3]
    %v670 = vlaneseq
    %v671 = vshrl.u32 %v670, 7
    %v672 = vsub.s32 0, %v671
    %v673 = vrot.slane %v669, %v672
    %v674 = vmul.f32 %v415, %v673
    %v675 = vmul.f32 %v418, %v673
    %v676 = vmul.f32 %v423, %v673
    %v677 = vmul.f32 %v426, %v673
    %v678 = vmul.f32 %v431, %v673
    %v679 = vmul.f32 %v434, %v673
    %v680 = vmul.f32 %v439, %v673
    %v681 = vmul.f32 %v442, %v673
    %v682 = vmul.f32 %v447, %v673
    %v683 = vmul.f32 %v450, %v673
    %v684 = vmul.f32 %v455, %v673
    %v685 = vmul.f32 %v458, %v673
    %v686 = vmul.f32 %v463, %v673
    %v687 = vmul.f32 %v466, %v673
    %v688 = vmul.f32 %v471, %v673
    %v689 = vmul.f32 %v474, %v673
    %v690 = vmul.f32 %v479, %v673
    %v691 = vmul.f32 %v482, %v673
    %v692 = vmul.f32 %v487, %v673
    %v693 = vmul.f32 %v490, %v673
    %v694 = vmul.f32 %v495, %v673
    %v695 = vmul.f32 %v498, %v673
    %v696 = vmul.f32 %v503, %v673
    %v697 = vmul.f32 %v506, %v673
    %v698 = vmul.f32 %v511, %v673
    %v699 = vmul.f32 %v514, %v673
    %v700 = vmul.f32 %v519, %v673
    %v701 = vmul.f32 %v522, %v673
    %v702 = vmul.f32 %v527, %v673
    %v703 = vmul.f32 %v530, %v673
    %v704 = vmul.f32 %v535, %v673
    %v705 = vmul.f32 %v538, %v673
    %v706 = vmul.f32 %v543, %v673
    %v707 = vmul.f32 %v546, %v673
    %v708 = vmul.f32 %v551, %v673
    %v709 = vmul.f32 %v554, %v673
    %v710 = vmul.f32 %v559, %v673
    %v711 = vmul.f32 %v562, %v673
    %v712 = vmul.f32 %v567, %v673
    %v713 = vmul.f32 %v570, %v673
    %v714 = vmul.f32 %v575, %v673
    %v715 = vmul.f32 %v578, %v673
    %v716 = vmul.f32 %v583, %v673
    %v717 = vmul.f32 %v586, %v673
    %v718 = vmul.f32 %v591, %v673
    %v719 = vmul.f32 %v594, %v673
    %v720 = vmul.f32 %v599, %v673
    %v721 = vmul.f32 %v602, %v673
    %v722 = vmul.f32 %v607, %v673
    %v723 = vmul.f32 %v610, %v673
    %v724 = vmul.f32 %v615, %v673
    %v725 = vmul.f32 %v618, %v673
    %v726 = vmul.f32 %v623, %v673
    %v727 = vmul.f32 %v626, %v673
    %v728 = vmul.f32 %v631, %v673
    %v729 = vmul.f32 %v634, %v673
    %v730 = vmul.f32 %v639, %v673
    %v731 = vmul.f32 %v642, %v673
    %v732 = vmul.f32 %v647, %v673
    %v733 = vmul.f32 %v650, %v673
    %v734 = vmul.f32 %v655, %v673
    %v735 = vmul.f32 %v658, %v673
    %v736 = vmul.f32 %v663, %v673
    %v737 = vmul.f32 %v666, %v673
    %v738 = vlaneseq
    %v739 = vshrl.u32 %v738, 7
    %v740 = vsub.s32 1, %v739
    %v741 = vrot.slane %v669, %v740
    %v742 = vadd.f32 %v674, %v741
    %v743 = vadd.f32 %v675, %v741
    %v744 = vadd.f32 %v676, %v741
    %v745 = vadd.f32 %v677, %v741
    %v746 = vadd.f32 %v678, %v741
    %v747 = vadd.f32 %v679, %v741
    %v748 = vadd.f32 %v680, %v741
    %v749 = vadd.f32 %v681, %v741
    %v750 = vadd.f32 %v682, %v741
    %v751 = vadd.f32 %v683, %v741
    %v752 = vadd.f32 %v684, %v741
    %v753 = vadd.f32 %v685, %v741
    %v754 = vadd.f32 %v686, %v741
    %v755 = vadd.f32 %v687, %v741
    %v756 = vadd.f32 %v688, %v741
    %v757 = vadd.f32 %v689, %v741
    %v758 = vadd.f32 %v690, %v741
    %v759 = vadd.f32 %v691, %v741
    %v760 = vadd.f32 %v692, %v741
    %v761 = vadd.f32 %v693, %v741
    %v762 = vadd.f32 %v694, %v741
    %v763 = vadd.f32 %v695, %v741
    %v764 = vadd.f32 %v696, %v741
    %v765 = vadd.f32 %v697, %v741
    %v766 = vadd.f32 %v698, %v741
    %v767 = vadd.f32 %v699, %v741
    %v768 = vadd.f32 %v700, %v741
    %v769 = vadd.f32 %v701, %v741
    %v770 = vadd.f32 %v702, %v741
    %v771 = vadd.f32 %v703, %v741
    %v772 = vadd.f32 %v704, %v741
    %v773 = vadd.f32 %v705, %v741
    %v774 = vadd.f32 %v706, %v741
    %v775 = vadd.f32 %v707, %v741
    %v776 = vadd.f32 %v708, %v741
    %v777 = vadd.f32 %v709, %v741
    %v778 = vadd.f32 %v710, %v741
    %v779 = vadd.f32 %v711, %v741
    %v780 = vadd.f32 %v712, %v741
    %v781 = vadd.f32 %v713, %v741
    %v782 = vadd.f32 %v714, %v741
    %v783 = vadd.f32 %v715, %v741
    %v784 = vadd.f32 %v716, %v741
    %v785 = vadd.f32 %v717, %v741
    %v786 = vadd.f32 %v718, %v741
    %v787 = vadd.f32 %v719, %v741
    %v788 = vadd.f32 %v720, %v741
    %v789 = vadd.f32 %v721, %v741
    %v790 = vadd.f32 %v722, %v741
    %v791 = vadd.f32 %v723, %v741
    %v792 = vadd.f32 %v724, %v741
    %v793 = vadd.f32 %v725, %v741
    %v794 = vadd.f32 %v726, %v741
    %v795 = vadd.f32 %v727, %v741
    %v796 = vadd.f32 %v728, %v741
    %v797 = vadd.f32 %v729, %v741
    %v798 = vadd.f32 %v730, %v741
    %v799 = vadd.f32 %v731, %v741
    %v800 = vadd.f32 %v732, %v741
    %v801 = vadd.f32 %v733, %v741
    %v802 = vadd.f32 %v734, %v741
    %v803 = vadd.f32 %v735, %v741
    %v804 = vadd.f32 %v736, %v741
    %v805 = vadd.f32 %v737, %v741
    %v806 = vmax.f32 %v742, 0.0
    %v807 = vmax.f32 %v743, 0.0
    %v808 = vmax.f32 %v744, 0.0
    %v809 = vmax.f32 %v745, 0.0
    %v810 = vmax.f32 %v746, 0.0
    %v811 = vmax.f32 %v747, 0.0
    %v812 = vmax.f32 %v748, 0.0
    %v813 = vmax.f32 %v749, 0.0
    %v814 = vmax.f32 %v750, 0.0
    %v815 = vmax.f32 %v751, 0.0
    %v816 = vmax.f32 %v752, 0.0
    %v817 = vmax.f32 %v753, 0.0
    %v818 = vmax.f32 %v754, 0.0
    %v819 = vmax.f32 %v755, 0.0
    %v820 = vmax.f32 %v756, 0.0
    %v821 = vmax.f32 %v757, 0.0
    %v822 = vmax.f32 %v758, 0.0
    %v823 = vmax.f32 %v759, 0.0
    %v824 = vmax.f32 %v760, 0.0
    %v825 = vmax.f32 %v761, 0.0
    %v826 = vmax.f32 %v762, 0.0
    %v827 = vmax.f32 %v763, 0.0
    %v828 = vmax.f32 %v764, 0.0
    %v829 = vmax.f32 %v765, 0.0
    %v830 = vmax.f32 %v766, 0.0
    %v831 = vmax.f32 %v767, 0.0
    %v832 = vmax.f32 %v768, 0.0
    %v833 = vmax.f32 %v769, 0.0
    %v834 = vmax.f32 %v770, 0.0
    %v835 = vmax.f32 %v771, 0.0
    %v836 = vmax.f32 %v772, 0.0
    %v837 = vmax.f32 %v773, 0.0
    %v838 = vmax.f32 %v774, 0.0
    %v839 = vmax.f32 %v775, 0.0
    %v840 = vmax.f32 %v776, 0.0
    %v841 = vmax.f32 %v777, 0.0
    %v842 = vmax.f32 %v778, 0.0
    %v843 = vmax.f32 %v779, 0.0
    %v844 = vmax.f32 %v780, 0.0
    %v845 = vmax.f32 %v781, 0.0
    %v846 = vmax.f32 %v782, 0.0
    %v847 = vmax.f32 %v783, 0.0
    %v848 = vmax.f32 %v784, 0.0
    %v849 = vmax.f32 %v785, 0.0
    %v850 = vmax.f32 %v786, 0.0
    %v851 = vmax.f32 %v787, 0.0
    %v852 = vmax.f32 %v788, 0.0
    %v853 = vmax.f32 %v789, 0.0
    %v854 = vmax.f32 %v790, 0.0
    %v855 = vmax.f32 %v791, 0.0
    %v856 = vmax.f32 %v792, 0.0
    %v857 = vmax.f32 %v793, 0.0
    %v858 = vmax.f32 %v794, 0.0
    %v859 = vmax.f32 %v795, 0.0
    %v860 = vmax.f32 %v796, 0.0
    %v861 = vmax.f32 %v797, 0.0
    %v862 = vmax.f32 %v798, 0.0
    %v863 = vmax.f32 %v799, 0.0
    %v864 = vmax.f32 %v800, 0.0
    %v865 = vmax.f32 %v801, 0.0
    %v866 = vmax.f32 %v802, 0.0
    %v867 = vmax.f32 %v803, 0.0
    %v868 = vmax.f32 %v804, 0.0
    %v869 = vmax.f32 %v805, 0.0
    %vm870 = vcmask 523264
    %871 = vst.msk [vmem:[#allocation2] sm:$0xff] %vm870, 0.0
    %872 = vst.msk [vmem:[#allocation2 + $0x8] sm:$0xff] %vm870, 0.0
    %vm873 = vcmask 517120
    %874 = vst.msk [vmem:[#allocation2 + $0x10] sm:$0x3] %vm873, 0.0
    %875 = vst.msk [vmem:[#allocation2 + $0x1b0] sm:$0xff] %vm870, 0.0
    %876 = vst.msk [vmem:[#allocation2 + $0x1b8] sm:$0xff] %vm870, 0.0
    %877 = vst.msk [vmem:[#allocation2 + $0x1c0] sm:$0x3] %vm873, 0.0
    %s878 = scalar_lea.vmem [#allocation2], 408
    %879 = vst.msk [vmem:[%s878] sm:$0xff] %vm870, 0.0
    %880 = vst.msk [vmem:[%s878 + $0x8] sm:$0xff] %vm870, 0.0
    %881 = vst.msk [vmem:[%s878 + $0x10] sm:$0x3] %vm873, 0.0
    %882 = vst.msk [vmem:[%s878 + $0x1b0] sm:$0xff] %vm870, 0.0
    %883 = vst.msk [vmem:[%s878 + $0x1b8] sm:$0xff] %vm870, 0.0
    %884 = vst.msk [vmem:[%s878 + $0x1c0] sm:$0x3] %vm873, 0.0
    %s885 = scalar_lea.vmem [#allocation2], 24
    %vm886 = vcmask 516096
    %887 = vst.msk [vmem:[%s885] sm:$0x1] %vm886, 0.0
    %888 = vst.msk [vmem:[%s885 + $0x18] sm:$0x1] %vm886, 0.0
    %889 = vst.msk [vmem:[%s885 + $0x30] sm:$0x1] %vm886, 0.0
    %890 = vst.msk [vmem:[%s885 + $0x48] sm:$0x1] %vm886, 0.0
    %891 = vst.msk [vmem:[%s885 + $0x60] sm:$0x1] %vm886, 0.0
    %892 = vst.msk [vmem:[%s885 + $0x78] sm:$0x1] %vm886, 0.0
    %893 = vst.msk [vmem:[%s885 + $0x90] sm:$0x1] %vm886, 0.0
    %894 = vst.msk [vmem:[%s885 + $0xa8] sm:$0x1] %vm886, 0.0
    %895 = vst.msk [vmem:[%s885 + $0xc0] sm:$0x1] %vm886, 0.0
    %896 = vst.msk [vmem:[%s885 + $0xd8] sm:$0x1] %vm886, 0.0
    %897 = vst.msk [vmem:[%s885 + $0xf0] sm:$0x1] %vm886, 0.0
    %898 = vst.msk [vmem:[%s885 + $0x108] sm:$0x1] %vm886, 0.0
    %899 = vst.msk [vmem:[%s885 + $0x120] sm:$0x1] %vm886, 0.0
    %900 = vst.msk [vmem:[%s885 + $0x138] sm:$0x1] %vm886, 0.0
    %901 = vst.msk [vmem:[%s885 + $0x150] sm:$0x1] %vm886, 0.0
    %902 = vst.msk [vmem:[%s885 + $0x168] sm:$0x1] %vm886, 0.0
    %903 = vst.msk [vmem:[%s885 + $0x1b0] sm:$0x1] %vm886, 0.0
    %904 = vst.msk [vmem:[%s885 + $0x1c8] sm:$0x1] %vm886, 0.0
    %905 = vst.msk [vmem:[%s885 + $0x1e0] sm:$0x1] %vm886, 0.0
    %906 = vst.msk [vmem:[%s885 + $0x1f8] sm:$0x1] %vm886, 0.0
    %907 = vst.msk [vmem:[%s885 + $0x210] sm:$0x1] %vm886, 0.0
    %908 = vst.msk [vmem:[%s885 + $0x228] sm:$0x1] %vm886, 0.0
    %909 = vst.msk [vmem:[%s885 + $0x240] sm:$0x1] %vm886, 0.0
    %910 = vst.msk [vmem:[%s885 + $0x258] sm:$0x1] %vm886, 0.0
    %911 = vst.msk [vmem:[%s885 + $0x270] sm:$0x1] %vm886, 0.0
    %912 = vst.msk [vmem:[%s885 + $0x288] sm:$0x1] %vm886, 0.0
    %913 = vst.msk [vmem:[%s885 + $0x2a0] sm:$0x1] %vm886, 0.0
    %914 = vst.msk [vmem:[%s885 + $0x2b8] sm:$0x1] %vm886, 0.0
    %915 = vst.msk [vmem:[%s885 + $0x2d0] sm:$0x1] %vm886, 0.0
    %916 = vst.msk [vmem:[%s885 + $0x2e8] sm:$0x1] %vm886, 0.0
    %917 = vst.msk [vmem:[%s885 + $0x300] sm:$0x1] %vm886, 0.0
    %918 = vst.msk [vmem:[%s885 + $0x318] sm:$0x1] %vm886, 0.0
    %919 = vst.msk [vmem:[%s885 + $0x11] sm:$0x1] %vm886, 0.0
    %920 = vst.msk [vmem:[%s885 + $0x29] sm:$0x1] %vm886, 0.0
    %921 = vst.msk [vmem:[%s885 + $0x41] sm:$0x1] %vm886, 0.0
    %922 = vst.msk [vmem:[%s885 + $0x59] sm:$0x1] %vm886, 0.0
    %923 = vst.msk [vmem:[%s885 + $0x71] sm:$0x1] %vm886, 0.0
    %924 = vst.msk [vmem:[%s885 + $0x89] sm:$0x1] %vm886, 0.0
    %925 = vst.msk [vmem:[%s885 + $0xa1] sm:$0x1] %vm886, 0.0
    %926 = vst.msk [vmem:[%s885 + $0xb9] sm:$0x1] %vm886, 0.0
    %927 = vst.msk [vmem:[%s885 + $0xd1] sm:$0x1] %vm886, 0.0
    %928 = vst.msk [vmem:[%s885 + $0xe9] sm:$0x1] %vm886, 0.0
    %929 = vst.msk [vmem:[%s885 + $0x101] sm:$0x1] %vm886, 0.0
    %930 = vst.msk [vmem:[%s885 + $0x119] sm:$0x1] %vm886, 0.0
    %931 = vst.msk [vmem:[%s885 + $0x131] sm:$0x1] %vm886, 0.0
    %932 = vst.msk [vmem:[%s885 + $0x149] sm:$0x1] %vm886, 0.0
    %933 = vst.msk [vmem:[%s885 + $0x161] sm:$0x1] %vm886, 0.0
    %934 = vst.msk [vmem:[%s885 + $0x179] sm:$0x1] %vm886, 0.0
    %935 = vst.msk [vmem:[%s885 + $0x1c1] sm:$0x1] %vm886, 0.0
    %936 = vst.msk [vmem:[%s885 + $0x1d9] sm:$0x1] %vm886, 0.0
    %937 = vst.msk [vmem:[%s885 + $0x1f1] sm:$0x1] %vm886, 0.0
    %938 = vst.msk [vmem:[%s885 + $0x209] sm:$0x1] %vm886, 0.0
    %939 = vst.msk [vmem:[%s885 + $0x221] sm:$0x1] %vm886, 0.0
    %940 = vst.msk [vmem:[%s885 + $0x239] sm:$0x1] %vm886, 0.0
    %941 = vst.msk [vmem:[%s885 + $0x251] sm:$0x1] %vm886, 0.0
    %942 = vst.msk [vmem:[%s885 + $0x269] sm:$0x1] %vm886, 0.0
    %943 = vst.msk [vmem:[%s885 + $0x281] sm:$0x1] %vm886, 0.0
    %944 = vst.msk [vmem:[%s885 + $0x299] sm:$0x1] %vm886, 0.0
    %945 = vst.msk [vmem:[%s885 + $0x2b1] sm:$0x1] %vm886, 0.0
    %946 = vst.msk [vmem:[%s885 + $0x2c9] sm:$0x1] %vm886, 0.0
    %947 = vst.msk [vmem:[%s885 + $0x2e1] sm:$0x1] %vm886, 0.0
    %948 = vst.msk [vmem:[%s885 + $0x2f9] sm:$0x1] %vm886, 0.0
    %949 = vst.msk [vmem:[%s885 + $0x311] sm:$0x1] %vm886, 0.0
    %950 = vst.msk [vmem:[%s885 + $0x329] sm:$0x1] %vm886, 0.0
    %951 = vst.msk [vmem:[%s885 + $0x1] sm:$0xff] %vm870, %v806
    %952 = vst.msk [vmem:[%s885 + $0x9] sm:$0xff] %vm870, %v807
    %953 = vst.msk [vmem:[%s885 + $0x19] sm:$0xff] %vm870, %v808
    %954 = vst.msk [vmem:[%s885 + $0x21] sm:$0xff] %vm870, %v809
    %955 = vst.msk [vmem:[%s885 + $0x31] sm:$0xff] %vm870, %v810
    %956 = vst.msk [vmem:[%s885 + $0x39] sm:$0xff] %vm870, %v811
    %957 = vst.msk [vmem:[%s885 + $0x49] sm:$0xff] %vm870, %v812
    %958 = vst.msk [vmem:[%s885 + $0x51] sm:$0xff] %vm870, %v813
    %959 = vst.msk [vmem:[%s885 + $0x61] sm:$0xff] %vm870, %v814
    %960 = vst.msk [vmem:[%s885 + $0x69] sm:$0xff] %vm870, %v815
    %961 = vst.msk [vmem:[%s885 + $0x79] sm:$0xff] %vm870, %v816
    %962 = vst.msk [vmem:[%s885 + $0x81] sm:$0xff] %vm870, %v817
    %963 = vst.msk [vmem:[%s885 + $0x91] sm:$0xff] %vm870, %v818
    %964 = vst.msk [vmem:[%s885 + $0x99] sm:$0xff] %vm870, %v819
    %965 = vst.msk [vmem:[%s885 + $0xa9] sm:$0xff] %vm870, %v820
    %966 = vst.msk [vmem:[%s885 + $0xb1] sm:$0xff] %vm870, %v821
    %967 = vst.msk [vmem:[%s885 + $0xc1] sm:$0xff] %vm870, %v822
    %968 = vst.msk [vmem:[%s885 + $0xc9] sm:$0xff] %vm870, %v823
    %969 = vst.msk [vmem:[%s885 + $0xd9] sm:$0xff] %vm870, %v824
    %970 = vst.msk [vmem:[%s885 + $0xe1] sm:$0xff] %vm870, %v825
    %971 = vst.msk [vmem:[%s885 + $0xf1] sm:$0xff] %vm870, %v826
    %972 = vst.msk [vmem:[%s885 + $0xf9] sm:$0xff] %vm870, %v827
    %973 = vst.msk [vmem:[%s885 + $0x109] sm:$0xff] %vm870, %v828
    %974 = vst.msk [vmem:[%s885 + $0x111] sm:$0xff] %vm870, %v829
    %975 = vst.msk [vmem:[%s885 + $0x121] sm:$0xff] %vm870, %v830
    %976 = vst.msk [vmem:[%s885 + $0x129] sm:$0xff] %vm870, %v831
    %977 = vst.msk [vmem:[%s885 + $0x139] sm:$0xff] %vm870, %v832
    %978 = vst.msk [vmem:[%s885 + $0x141] sm:$0xff] %vm870, %v833
    %979 = vst.msk [vmem:[%s885 + $0x151] sm:$0xff] %vm870, %v834
    %980 = vst.msk [vmem:[%s885 + $0x159] sm:$0xff] %vm870, %v835
    %981 = vst.msk [vmem:[%s885 + $0x169] sm:$0xff] %vm870, %v836
    %982 = vst.msk [vmem:[%s885 + $0x171] sm:$0xff] %vm870, %v837
    %983 = vst.msk [vmem:[%s885 + $0x1b1] sm:$0xff] %vm870, %v838
    %984 = vst.msk [vmem:[%s885 + $0x1b9] sm:$0xff] %vm870, %v839
    %985 = vst.msk [vmem:[%s885 + $0x1c9] sm:$0xff] %vm870, %v840
    %986 = vst.msk [vmem:[%s885 + $0x1d1] sm:$0xff] %vm870, %v841
    %987 = vst.msk [vmem:[%s885 + $0x1e1] sm:$0xff] %vm870, %v842
    %988 = vst.msk [vmem:[%s885 + $0x1e9] sm:$0xff] %vm870, %v843
    %989 = vst.msk [vmem:[%s885 + $0x1f9] sm:$0xff] %vm870, %v844
    %990 = vst.msk [vmem:[%s885 + $0x201] sm:$0xff] %vm870, %v845
    %991 = vst.msk [vmem:[%s885 + $0x211] sm:$0xff] %vm870, %v846
    %992 = vst.msk [vmem:[%s885 + $0x219] sm:$0xff] %vm870, %v847
    %993 = vst.msk [vmem:[%s885 + $0x229] sm:$0xff] %vm870, %v848
    %994 = vst.msk [vmem:[%s885 + $0x231] sm:$0xff] %vm870, %v849
    %995 = vst.msk [vmem:[%s885 + $0x241] sm:$0xff] %vm870, %v850
    %996 = vst.msk [vmem:[%s885 + $0x249] sm:$0xff] %vm870, %v851
    %997 = vst.msk [vmem:[%s885 + $0x259] sm:$0xff] %vm870, %v852
    %998 = vst.msk [vmem:[%s885 + $0x261] sm:$0xff] %vm870, %v853
    %999 = vst.msk [vmem:[%s885 + $0x271] sm:$0xff] %vm870, %v854
    %1000 = vst.msk [vmem:[%s885 + $0x279] sm:$0xff] %vm870, %v855
    %1001 = vst.msk [vmem:[%s885 + $0x289] sm:$0xff] %vm870, %v856
    %1002 = vst.msk [vmem:[%s885 + $0x291] sm:$0xff] %vm870, %v857
    %1003 = vst.msk [vmem:[%s885 + $0x2a1] sm:$0xff] %vm870, %v858
    %1004 = vst.msk [vmem:[%s885 + $0x2a9] sm:$0xff] %vm870, %v859
    %1005 = vst.msk [vmem:[%s885 + $0x2b9] sm:$0xff] %vm870, %v860
    %1006 = vst.msk [vmem:[%s885 + $0x2c1] sm:$0xff] %vm870, %v861
    %1007 = vst.msk [vmem:[%s885 + $0x2d1] sm:$0xff] %vm870, %v862
    %1008 = vst.msk [vmem:[%s885 + $0x2d9] sm:$0xff] %vm870, %v863
    %1009 = vst.msk [vmem:[%s885 + $0x2e9] sm:$0xff] %vm870, %v864
    %1010 = vst.msk [vmem:[%s885 + $0x2f1] sm:$0xff] %vm870, %v865
    %1011 = vst.msk [vmem:[%s885 + $0x301] sm:$0xff] %vm870, %v866
    %1012 = vst.msk [vmem:[%s885 + $0x309] sm:$0xff] %vm870, %v867
    %1013 = vst.msk [vmem:[%s885 + $0x319] sm:$0xff] %vm870, %v868
    %1014 = vst.msk [vmem:[%s885 + $0x321] sm:$0xff] %vm870, %v869
    %v1015 = vld [vmem:[#allocation2] sm:$0xff]
    %v1016 = vld [vmem:[#allocation2 + $0x8] sm:$0xff]
    %v1017 = vld [vmem:[#allocation2 + $0x18] sm:$0xff]
    %v1018 = vld [vmem:[#allocation2 + $0x20] sm:$0xff]
    %v1019 = vld [vmem:[#allocation2 + $0x30] sm:$0xff]
    %v1020 = vld [vmem:[#allocation2 + $0x38] sm:$0xff]
    %v1021 = vld [vmem:[#allocation2 + $0x48] sm:$0xff]
    %v1022 = vld [vmem:[#allocation2 + $0x50] sm:$0xff]
    %v1023 = vld [vmem:[#allocation2 + $0x60] sm:$0xff]
    %v1024 = vld [vmem:[#allocation2 + $0x68] sm:$0xff]
    %v1025 = vld [vmem:[#allocation2 + $0x78] sm:$0xff]
    %v1026 = vld [vmem:[#allocation2 + $0x80] sm:$0xff]
    %v1027 = vld [vmem:[#allocation2 + $0x90] sm:$0xff]
    %v1028 = vld [vmem:[#allocation2 + $0x98] sm:$0xff]
    %v1029 = vld [vmem:[#allocation2 + $0xa8] sm:$0xff]
    %v1030 = vld [vmem:[#allocation2 + $0xb0] sm:$0xff]
    %v1031 = vld [vmem:[#allocation2 + $0xc0] sm:$0xff]
    %v1032 = vld [vmem:[#allocation2 + $0xc8] sm:$0xff]
    %v1033 = vld [vmem:[#allocation2 + $0xd8] sm:$0xff]
    %v1034 = vld [vmem:[#allocation2 + $0xe0] sm:$0xff]
    %v1035 = vld [vmem:[#allocation2 + $0xf0] sm:$0xff]
    %v1036 = vld [vmem:[#allocation2 + $0xf8] sm:$0xff]
    %v1037 = vld [vmem:[#allocation2 + $0x108] sm:$0xff]
    %v1038 = vld [vmem:[#allocation2 + $0x110] sm:$0xff]
    %v1039 = vld [vmem:[#allocation2 + $0x120] sm:$0xff]
    %v1040 = vld [vmem:[#allocation2 + $0x128] sm:$0xff]
    %v1041 = vld [vmem:[#allocation2 + $0x138] sm:$0xff]
    %v1042 = vld [vmem:[#allocation2 + $0x140] sm:$0xff]
    %v1043 = vld [vmem:[#allocation2 + $0x150] sm:$0xff]
    %v1044 = vld [vmem:[#allocation2 + $0x158] sm:$0xff]
    %v1045 = vld [vmem:[#allocation2 + $0x168] sm:$0xff]
    %v1046 = vld [vmem:[#allocation2 + $0x170] sm:$0xff]
    %v1047 = vld [vmem:[#allocation2 + $0x1b0] sm:$0xff]
    %v1048 = vld [vmem:[#allocation2 + $0x1b8] sm:$0xff]
    %v1049 = vld [vmem:[#allocation2 + $0x1c8] sm:$0xff]
    %v1050 = vld [vmem:[#allocation2 + $0x1d0] sm:$0xff]
    %v1051 = vld [vmem:[#allocation2 + $0x1e0] sm:$0xff]
    %v1052 = vld [vmem:[#allocation2 + $0x1e8] sm:$0xff]
    %v1053 = vld [vmem:[#allocation2 + $0x1f8] sm:$0xff]
    %v1054 = vld [vmem:[#allocation2 + $0x200] sm:$0xff]
    %v1055 = vld [vmem:[#allocation2 + $0x210] sm:$0xff]
    %v1056 = vld [vmem:[#allocation2 + $0x218] sm:$0xff]
    %v1057 = vld [vmem:[#allocation2 + $0x228] sm:$0xff]
    %v1058 = vld [vmem:[#allocation2 + $0x230] sm:$0xff]
    %v1059 = vld [vmem:[#allocation2 + $0x240] sm:$0xff]
    %v1060 = vld [vmem:[#allocation2 + $0x248] sm:$0xff]
    %v1061 = vld [vmem:[#allocation2 + $0x258] sm:$0xff]
    %v1062 = vld [vmem:[#allocation2 + $0x260] sm:$0xff]
    %v1063 = vld [vmem:[#allocation2 + $0x270] sm:$0xff]
    %v1064 = vld [vmem:[#allocation2 + $0x278] sm:$0xff]
    %v1065 = vld [vmem:[#allocation2 + $0x288] sm:$0xff]
    %v1066 = vld [vmem:[#allocation2 + $0x290] sm:$0xff]
    %v1067 = vld [vmem:[#allocation2 + $0x2a0] sm:$0xff]
    %v1068 = vld [vmem:[#allocation2 + $0x2a8] sm:$0xff]
    %v1069 = vld [vmem:[#allocation2 + $0x2b8] sm:$0xff]
    %v1070 = vld [vmem:[#allocation2 + $0x2c0] sm:$0xff]
    %v1071 = vld [vmem:[#allocation2 + $0x2d0] sm:$0xff]
    %v1072 = vld [vmem:[#allocation2 + $0x2d8] sm:$0xff]
    %v1073 = vld [vmem:[#allocation2 + $0x2e8] sm:$0xff]
    %v1074 = vld [vmem:[#allocation2 + $0x2f0] sm:$0xff]
    %v1075 = vld [vmem:[#allocation2 + $0x300] sm:$0xff]
    %v1076 = vld [vmem:[#allocation2 + $0x308] sm:$0xff]
    %v1077 = vld [vmem:[#allocation2 + $0x318] sm:$0xff]
    %v1078 = vld [vmem:[#allocation2 + $0x320] sm:$0xff]
    %v1079 = vpack.c.bf16 %v1016, %v1015
    %v1080 = vpack.c.bf16 %v1018, %v1017
    %v1081 = vpack.c.bf16 %v1020, %v1019
    %v1082 = vpack.c.bf16 %v1022, %v1021
    %v1083 = vpack.c.bf16 %v1024, %v1023
    %v1084 = vpack.c.bf16 %v1026, %v1025
    %v1085 = vpack.c.bf16 %v1028, %v1027
    %v1086 = vpack.c.bf16 %v1030, %v1029
    %v1087 = vpack.c.bf16 %v1032, %v1031
    %v1088 = vpack.c.bf16 %v1034, %v1033
    %v1089 = vpack.c.bf16 %v1036, %v1035
    %v1090 = vpack.c.bf16 %v1038, %v1037
    %v1091 = vpack.c.bf16 %v1040, %v1039
    %v1092 = vpack.c.bf16 %v1042, %v1041
    %v1093 = vpack.c.bf16 %v1044, %v1043
    %v1094 = vpack.c.bf16 %v1046, %v1045
    %v1095 = vpack.c.bf16 %v1048, %v1047
    %v1096 = vpack.c.bf16 %v1050, %v1049
    %v1097 = vpack.c.bf16 %v1052, %v1051
    %v1098 = vpack.c.bf16 %v1054, %v1053
    %v1099 = vpack.c.bf16 %v1056, %v1055
    %v1100 = vpack.c.bf16 %v1058, %v1057
    %v1101 = vpack.c.bf16 %v1060, %v1059
    %v1102 = vpack.c.bf16 %v1062, %v1061
    %v1103 = vpack.c.bf16 %v1064, %v1063
    %v1104 = vpack.c.bf16 %v1066, %v1065
    %v1105 = vpack.c.bf16 %v1068, %v1067
    %v1106 = vpack.c.bf16 %v1070, %v1069
    %v1107 = vpack.c.bf16 %v1072, %v1071
    %v1108 = vpack.c.bf16 %v1074, %v1073
    %v1109 = vpack.c.bf16 %v1076, %v1075
    %v1110 = vpack.c.bf16 %v1078, %v1077
    %v1111 = vld [vmem:[#allocation2 + $0x1] sm:$0xff]
    %v1112 = vld [vmem:[#allocation2 + $0x9] sm:$0xff]
    %v1113 = vld [vmem:[#allocation2 + $0x19] sm:$0xff]
    %v1114 = vld [vmem:[#allocation2 + $0x21] sm:$0xff]
    %v1115 = vld [vmem:[#allocation2 + $0x31] sm:$0xff]
    %v1116 = vld [vmem:[#allocation2 + $0x39] sm:$0xff]
    %v1117 = vld [vmem:[#allocation2 + $0x49] sm:$0xff]
    %v1118 = vld [vmem:[#allocation2 + $0x51] sm:$0xff]
    %v1119 = vld [vmem:[#allocation2 + $0x61] sm:$0xff]
    %v1120 = vld [vmem:[#allocation2 + $0x69] sm:$0xff]
    %v1121 = vld [vmem:[#allocation2 + $0x79] sm:$0xff]
    %v1122 = vld [vmem:[#allocation2 + $0x81] sm:$0xff]
    %v1123 = vld [vmem:[#allocation2 + $0x91] sm:$0xff]
    %v1124 = vld [vmem:[#allocation2 + $0x99] sm:$0xff]
    %v1125 = vld [vmem:[#allocation2 + $0xa9] sm:$0xff]
    %v1126 = vld [vmem:[#allocation2 + $0xb1] sm:$0xff]
    %v1127 = vld [vmem:[#allocation2 + $0xc1] sm:$0xff]
    %v1128 = vld [vmem:[#allocation2 + $0xc9] sm:$0xff]
    %v1129 = vld [vmem:[#allocation2 + $0xd9] sm:$0xff]
    %v1130 = vld [vmem:[#allocation2 + $0xe1] sm:$0xff]
    %v1131 = vld [vmem:[#allocation2 + $0xf1] sm:$0xff]
    %v1132 = vld [vmem:[#allocation2 + $0xf9] sm:$0xff]
    %v1133 = vld [vmem:[#allocation2 + $0x109] sm:$0xff]
    %v1134 = vld [vmem:[#allocation2 + $0x111] sm:$0xff]
    %v1135 = vld [vmem:[#allocation2 + $0x121] sm:$0xff]
    %v1136 = vld [vmem:[#allocation2 + $0x129] sm:$0xff]
    %v1137 = vld [vmem:[#allocation2 + $0x139] sm:$0xff]
    %v1138 = vld [vmem:[#allocation2 + $0x141] sm:$0xff]
    %v1139 = vld [vmem:[#allocation2 + $0x151] sm:$0xff]
    %v1140 = vld [vmem:[#allocation2 + $0x159] sm:$0xff]
    %v1141 = vld [vmem:[#allocation2 + $0x169] sm:$0xff]
    %v1142 = vld [vmem:[#allocation2 + $0x171] sm:$0xff]
    %v1143 = vld [vmem:[#allocation2 + $0x1b1] sm:$0xff]
    %v1144 = vld [vmem:[#allocation2 + $0x1b9] sm:$0xff]
    %v1145 = vld [vmem:[#allocation2 + $0x1c9] sm:$0xff]
    %v1146 = vld [vmem:[#allocation2 + $0x1d1] sm:$0xff]
    %v1147 = vld [vmem:[#allocation2 + $0x1e1] sm:$0xff]
    %v1148 = vld [vmem:[#allocation2 + $0x1e9] sm:$0xff]
    %v1149 = vld [vmem:[#allocation2 + $0x1f9] sm:$0xff]
    %v1150 = vld [vmem:[#allocation2 + $0x201] sm:$0xff]
    %v1151 = vld [vmem:[#allocation2 + $0x211] sm:$0xff]
    %v1152 = vld [vmem:[#allocation2 + $0x219] sm:$0xff]
    %v1153 = vld [vmem:[#allocation2 + $0x229] sm:$0xff]
    %v1154 = vld [vmem:[#allocation2 + $0x231] sm:$0xff]
    %v1155 = vld [vmem:[#allocation2 + $0x241] sm:$0xff]
    %v1156 = vld [vmem:[#allocation2 + $0x249] sm:$0xff]
    %v1157 = vld [vmem:[#allocation2 + $0x259] sm:$0xff]
    %v1158 = vld [vmem:[#allocation2 + $0x261] sm:$0xff]
    %v1159 = vld [vmem:[#allocation2 + $0x271] sm:$0xff]
    %v1160 = vld [vmem:[#allocation2 + $0x279] sm:$0xff]
    %v1161 = vld [vmem:[#allocation2 + $0x289] sm:$0xff]
    %v1162 = vld [vmem:[#allocation2 + $0x291] sm:$0xff]
    %v1163 = vld [vmem:[#allocation2 + $0x2a1] sm:$0xff]
    %v1164 = vld [vmem:[#allocation2 + $0x2a9] sm:$0xff]
    %v1165 = vld [vmem:[#allocation2 + $0x2b9] sm:$0xff]
    %v1166 = vld [vmem:[#allocation2 + $0x2c1] sm:$0xff]
    %v1167 = vld [vmem:[#allocation2 + $0x2d1] sm:$0xff]
    %v1168 = vld [vmem:[#allocation2 + $0x2d9] sm:$0xff]
    %v1169 = vld [vmem:[#allocation2 + $0x2e9] sm:$0xff]
    %v1170 = vld [vmem:[#allocation2 + $0x2f1] sm:$0xff]
    %v1171 = vld [vmem:[#allocation2 + $0x301] sm:$0xff]
    %v1172 = vld [vmem:[#allocation2 + $0x309] sm:$0xff]
    %v1173 = vld [vmem:[#allocation2 + $0x319] sm:$0xff]
    %v1174 = vld [vmem:[#allocation2 + $0x321] sm:$0xff]
    %v1175 = vpack.c.bf16 %v1112, %v1111
    %v1176 = vpack.c.bf16 %v1114, %v1113
    %v1177 = vpack.c.bf16 %v1116, %v1115
    %v1178 = vpack.c.bf16 %v1118, %v1117
    %v1179 = vpack.c.bf16 %v1120, %v1119
    %v1180 = vpack.c.bf16 %v1122, %v1121
    %v1181 = vpack.c.bf16 %v1124, %v1123
    %v1182 = vpack.c.bf16 %v1126, %v1125
    %v1183 = vpack.c.bf16 %v1128, %v1127
    %v1184 = vpack.c.bf16 %v1130, %v1129
    %v1185 = vpack.c.bf16 %v1132, %v1131
    %v1186 = vpack.c.bf16 %v1134, %v1133
    %v1187 = vpack.c.bf16 %v1136, %v1135
    %v1188 = vpack.c.bf16 %v1138, %v1137
    %v1189 = vpack.c.bf16 %v1140, %v1139
    %v1190 = vpack.c.bf16 %v1142, %v1141
    %v1191 = vpack.c.bf16 %v1144, %v1143
    %v1192 = vpack.c.bf16 %v1146, %v1145
    %v1193 = vpack.c.bf16 %v1148, %v1147
    %v1194 = vpack.c.bf16 %v1150, %v1149
    %v1195 = vpack.c.bf16 %v1152, %v1151
    %v1196 = vpack.c.bf16 %v1154, %v1153
    %v1197 = vpack.c.bf16 %v1156, %v1155
    %v1198 = vpack.c.bf16 %v1158, %v1157
    %v1199 = vpack.c.bf16 %v1160, %v1159
    %v1200 = vpack.c.bf16 %v1162, %v1161
    %v1201 = vpack.c.bf16 %v1164, %v1163
    %v1202 = vpack.c.bf16 %v1166, %v1165
    %v1203 = vpack.c.bf16 %v1168, %v1167
    %v1204 = vpack.c.bf16 %v1170, %v1169
    %v1205 = vpack.c.bf16 %v1172, %v1171
    %v1206 = vpack.c.bf16 %v1174, %v1173
    %v1207 = vld [vmem:[#allocation2 + $0x2] sm:$0xff]
    %v1208 = vld [vmem:[#allocation2 + $0xa] sm:$0xff]
    %v1209 = vld [vmem:[#allocation2 + $0x1a] sm:$0xff]
    %v1210 = vld [vmem:[#allocation2 + $0x22] sm:$0xff]
    %v1211 = vld [vmem:[#allocation2 + $0x32] sm:$0xff]
    %v1212 = vld [vmem:[#allocation2 + $0x3a] sm:$0xff]
    %v1213 = vld [vmem:[#allocation2 + $0x4a] sm:$0xff]
    %v1214 = vld [vmem:[#allocation2 + $0x52] sm:$0xff]
    %v1215 = vld [vmem:[#allocation2 + $0x62] sm:$0xff]
    %v1216 = vld [vmem:[#allocation2 + $0x6a] sm:$0xff]
    %v1217 = vld [vmem:[#allocation2 + $0x7a] sm:$0xff]
    %v1218 = vld [vmem:[#allocation2 + $0x82] sm:$0xff]
    %v1219 = vld [vmem:[#allocation2 + $0x92] sm:$0xff]
    %v1220 = vld [vmem:[#allocation2 + $0x9a] sm:$0xff]
    %v1221 = vld [vmem:[#allocation2 + $0xaa] sm:$0xff]
    %v1222 = vld [vmem:[#allocation2 + $0xb2] sm:$0xff]
    %v1223 = vld [vmem:[#allocation2 + $0xc2] sm:$0xff]
    %v1224 = vld [vmem:[#allocation2 + $0xca] sm:$0xff]
    %v1225 = vld [vmem:[#allocation2 + $0xda] sm:$0xff]
    %v1226 = vld [vmem:[#allocation2 + $0xe2] sm:$0xff]
    %v1227 = vld [vmem:[#allocation2 + $0xf2] sm:$0xff]
    %v1228 = vld [vmem:[#allocation2 + $0xfa] sm:$0xff]
    %v1229 = vld [vmem:[#allocation2 + $0x10a] sm:$0xff]
    %v1230 = vld [vmem:[#allocation2 + $0x112] sm:$0xff]
    %v1231 = vld [vmem:[#allocation2 + $0x122] sm:$0xff]
    %v1232 = vld [vmem:[#allocation2 + $0x12a] sm:$0xff]
    %v1233 = vld [vmem:[#allocation2 + $0x13a] sm:$0xff]
    %v1234 = vld [vmem:[#allocation2 + $0x142] sm:$0xff]
    %v1235 = vld [vmem:[#allocation2 + $0x152] sm:$0xff]
    %v1236 = vld [vmem:[#allocation2 + $0x15a] sm:$0xff]
    %v1237 = vld [vmem:[#allocation2 + $0x16a] sm:$0xff]
    %v1238 = vld [vmem:[#allocation2 + $0x172] sm:$0xff]
    %v1239 = vld [vmem:[#allocation2 + $0x1b2] sm:$0xff]
    %v1240 = vld [vmem:[#allocation2 + $0x1ba] sm:$0xff]
    %v1241 = vld [vmem:[#allocation2 + $0x1ca] sm:$0xff]
    %v1242 = vld [vmem:[#allocation2 + $0x1d2] sm:$0xff]
    %v1243 = vld [vmem:[#allocation2 + $0x1e2] sm:$0xff]
    %v1244 = vld [vmem:[#allocation2 + $0x1ea] sm:$0xff]
    %v1245 = vld [vmem:[#allocation2 + $0x1fa] sm:$0xff]
    %v1246 = vld [vmem:[#allocation2 + $0x202] sm:$0xff]
    %v1247 = vld [vmem:[#allocation2 + $0x212] sm:$0xff]
    %v1248 = vld [vmem:[#allocation2 + $0x21a] sm:$0xff]
    %v1249 = vld [vmem:[#allocation2 + $0x22a] sm:$0xff]
    %v1250 = vld [vmem:[#allocation2 + $0x232] sm:$0xff]
    %v1251 = vld [vmem:[#allocation2 + $0x242] sm:$0xff]
    %v1252 = vld [vmem:[#allocation2 + $0x24a] sm:$0xff]
    %v1253 = vld [vmem:[#allocation2 + $0x25a] sm:$0xff]
    %v1254 = vld [vmem:[#allocation2 + $0x262] sm:$0xff]
    %v1255 = vld [vmem:[#allocation2 + $0x272] sm:$0xff]
    %v1256 = vld [vmem:[#allocation2 + $0x27a] sm:$0xff]
    %v1257 = vld [vmem:[#allocation2 + $0x28a] sm:$0xff]
    %v1258 = vld [vmem:[#allocation2 + $0x292] sm:$0xff]
    %v1259 = vld [vmem:[#allocation2 + $0x2a2] sm:$0xff]
    %v1260 = vld [vmem:[#allocation2 + $0x2aa] sm:$0xff]
    %v1261 = vld [vmem:[#allocation2 + $0x2ba] sm:$0xff]
    %v1262 = vld [vmem:[#allocation2 + $0x2c2] sm:$0xff]
    %v1263 = vld [vmem:[#allocation2 + $0x2d2] sm:$0xff]
    %v1264 = vld [vmem:[#allocation2 + $0x2da] sm:$0xff]
    %v1265 = vld [vmem:[#allocation2 + $0x2ea] sm:$0xff]
    %v1266 = vld [vmem:[#allocation2 + $0x2f2] sm:$0xff]
    %v1267 = vld [vmem:[#allocation2 + $0x302] sm:$0xff]
    %v1268 = vld [vmem:[#allocation2 + $0x30a] sm:$0xff]
    %v1269 = vld [vmem:[#allocation2 + $0x31a] sm:$0xff]
    %v1270 = vld [vmem:[#allocation2 + $0x322] sm:$0xff]
    %v1271 = vpack.c.bf16 %v1208, %v1207
    %v1272 = vpack.c.bf16 %v1210, %v1209
    %v1273 = vpack.c.bf16 %v1212, %v1211
    %v1274 = vpack.c.bf16 %v1214, %v1213
    %v1275 = vpack.c.bf16 %v1216, %v1215
    %v1276 = vpack.c.bf16 %v1218, %v1217
    %v1277 = vpack.c.bf16 %v1220, %v1219
    %v1278 = vpack.c.bf16 %v1222, %v1221
    %v1279 = vpack.c.bf16 %v1224, %v1223
    %v1280 = vpack.c.bf16 %v1226, %v1225
    %v1281 = vpack.c.bf16 %v1228, %v1227
    %v1282 = vpack.c.bf16 %v1230, %v1229
    %v1283 = vpack.c.bf16 %v1232, %v1231
    %v1284 = vpack.c.bf16 %v1234, %v1233
    %v1285 = vpack.c.bf16 %v1236, %v1235
    %v1286 = vpack.c.bf16 %v1238, %v1237
    %v1287 = vpack.c.bf16 %v1240, %v1239
    %v1288 = vpack.c.bf16 %v1242, %v1241
    %v1289 = vpack.c.bf16 %v1244, %v1243
    %v1290 = vpack.c.bf16 %v1246, %v1245
    %v1291 = vpack.c.bf16 %v1248, %v1247
    %v1292 = vpack.c.bf16 %v1250, %v1249
    %v1293 = vpack.c.bf16 %v1252, %v1251
    %v1294 = vpack.c.bf16 %v1254, %v1253
    %v1295 = vpack.c.bf16 %v1256, %v1255
    %v1296 = vpack.c.bf16 %v1258, %v1257
    %v1297 = vpack.c.bf16 %v1260, %v1259
    %v1298 = vpack.c.bf16 %v1262, %v1261
    %v1299 = vpack.c.bf16 %v1264, %v1263
    %v1300 = vpack.c.bf16 %v1266, %v1265
    %v1301 = vpack.c.bf16 %v1268, %v1267
    %v1302 = vpack.c.bf16 %v1270, %v1269
    %v1303 = vld [vmem:[%s885] sm:$0xff]
    %v1304 = vld [vmem:[%s885 + $0x8] sm:$0xff]
    %v1305 = vld [vmem:[%s885 + $0x18] sm:$0xff]
    %v1306 = vld [vmem:[%s885 + $0x20] sm:$0xff]
    %v1307 = vld [vmem:[%s885 + $0x30] sm:$0xff]
    %v1308 = vld [vmem:[%s885 + $0x38] sm:$0xff]
    %v1309 = vld [vmem:[%s885 + $0x48] sm:$0xff]
    %v1310 = vld [vmem:[%s885 + $0x50] sm:$0xff]
    %v1311 = vld [vmem:[%s885 + $0x60] sm:$0xff]
    %v1312 = vld [vmem:[%s885 + $0x68] sm:$0xff]
    %v1313 = vld [vmem:[%s885 + $0x78] sm:$0xff]
    %v1314 = vld [vmem:[%s885 + $0x80] sm:$0xff]
    %v1315 = vld [vmem:[%s885 + $0x90] sm:$0xff]
    %v1316 = vld [vmem:[%s885 + $0x98] sm:$0xff]
    %v1317 = vld [vmem:[%s885 + $0xa8] sm:$0xff]
    %v1318 = vld [vmem:[%s885 + $0xb0] sm:$0xff]
    %v1319 = vld [vmem:[%s885 + $0xc0] sm:$0xff]
    %v1320 = vld [vmem:[%s885 + $0xc8] sm:$0xff]
    %v1321 = vld [vmem:[%s885 + $0xd8] sm:$0xff]
    %v1322 = vld [vmem:[%s885 + $0xe0] sm:$0xff]
    %v1323 = vld [vmem:[%s885 + $0xf0] sm:$0xff]
    %v1324 = vld [vmem:[%s885 + $0xf8] sm:$0xff]
    %v1325 = vld [vmem:[%s885 + $0x108] sm:$0xff]
    %v1326 = vld [vmem:[%s885 + $0x110] sm:$0xff]
    %v1327 = vld [vmem:[%s885 + $0x120] sm:$0xff]
    %v1328 = vld [vmem:[%s885 + $0x128] sm:$0xff]
    %v1329 = vld [vmem:[%s885 + $0x138] sm:$0xff]
    %v1330 = vld [vmem:[%s885 + $0x140] sm:$0xff]
    %v1331 = vld [vmem:[%s885 + $0x150] sm:$0xff]
    %v1332 = vld [vmem:[%s885 + $0x158] sm:$0xff]
    %v1333 = vld [vmem:[%s885 + $0x168] sm:$0xff]
    %v1334 = vld [vmem:[%s885 + $0x170] sm:$0xff]
    %v1335 = vld [vmem:[%s885 + $0x1b0] sm:$0xff]
    %v1336 = vld [vmem:[%s885 + $0x1b8] sm:$0xff]
    %v1337 = vld [vmem:[%s885 + $0x1c8] sm:$0xff]
    %v1338 = vld [vmem:[%s885 + $0x1d0] sm:$0xff]
    %v1339 = vld [vmem:[%s885 + $0x1e0] sm:$0xff]
    %v1340 = vld [vmem:[%s885 + $0x1e8] sm:$0xff]
    %v1341 = vld [vmem:[%s885 + $0x1f8] sm:$0xff]
    %v1342 = vld [vmem:[%s885 + $0x200] sm:$0xff]
    %v1343 = vld [vmem:[%s885 + $0x210] sm:$0xff]
    %v1344 = vld [vmem:[%s885 + $0x218] sm:$0xff]
    %v1345 = vld [vmem:[%s885 + $0x228] sm:$0xff]
    %v1346 = vld [vmem:[%s885 + $0x230] sm:$0xff]
    %v1347 = vld [vmem:[%s885 + $0x240] sm:$0xff]
    %v1348 = vld [vmem:[%s885 + $0x248] sm:$0xff]
    %v1349 = vld [vmem:[%s885 + $0x258] sm:$0xff]
    %v1350 = vld [vmem:[%s885 + $0x260] sm:$0xff]
    %v1351 = vld [vmem:[%s885 + $0x270] sm:$0xff]
    %v1352 = vld [vmem:[%s885 + $0x278] sm:$0xff]
    %v1353 = vld [vmem:[%s885 + $0x288] sm:$0xff]
    %v1354 = vld [vmem:[%s885 + $0x290] sm:$0xff]
    %v1355 = vld [vmem:[%s885 + $0x2a0] sm:$0xff]
    %v1356 = vld [vmem:[%s885 + $0x2a8] sm:$0xff]
    %v1357 = vld [vmem:[%s885 + $0x2b8] sm:$0xff]
    %v1358 = vld [vmem:[%s885 + $0x2c0] sm:$0xff]
    %v1359 = vld [vmem:[%s885 + $0x2d0] sm:$0xff]
    %v1360 = vld [vmem:[%s885 + $0x2d8] sm:$0xff]
    %v1361 = vld [vmem:[%s885 + $0x2e8] sm:$0xff]
    %v1362 = vld [vmem:[%s885 + $0x2f0] sm:$0xff]
    %v1363 = vld [vmem:[%s885 + $0x300] sm:$0xff]
    %v1364 = vld [vmem:[%s885 + $0x308] sm:$0xff]
    %v1365 = vld [vmem:[%s885 + $0x318] sm:$0xff]
    %v1366 = vld [vmem:[%s885 + $0x320] sm:$0xff]
    %v1367 = vpack.c.bf16 %v1304, %v1303
    %v1368 = vpack.c.bf16 %v1306, %v1305
    %v1369 = vpack.c.bf16 %v1308, %v1307
    %v1370 = vpack.c.bf16 %v1310, %v1309
    %v1371 = vpack.c.bf16 %v1312, %v1311
    %v1372 = vpack.c.bf16 %v1314, %v1313
    %v1373 = vpack.c.bf16 %v1316, %v1315
    %v1374 = vpack.c.bf16 %v1318, %v1317
    %v1375 = vpack.c.bf16 %v1320, %v1319
    %v1376 = vpack.c.bf16 %v1322, %v1321
    %v1377 = vpack.c.bf16 %v1324, %v1323
    %v1378 = vpack.c.bf16 %v1326, %v1325
    %v1379 = vpack.c.bf16 %v1328, %v1327
    %v1380 = vpack.c.bf16 %v1330, %v1329
    %v1381 = vpack.c.bf16 %v1332, %v1331
    %v1382 = vpack.c.bf16 %v1334, %v1333
    %v1383 = vpack.c.bf16 %v1336, %v1335
    %v1384 = vpack.c.bf16 %v1338, %v1337
    %v1385 = vpack.c.bf16 %v1340, %v1339
    %v1386 = vpack.c.bf16 %v1342, %v1341
    %v1387 = vpack.c.bf16 %v1344, %v1343
    %v1388 = vpack.c.bf16 %v1346, %v1345
    %v1389 = vpack.c.bf16 %v1348, %v1347
    %v1390 = vpack.c.bf16 %v1350, %v1349
    %v1391 = vpack.c.bf16 %v1352, %v1351
    %v1392 = vpack.c.bf16 %v1354, %v1353
    %v1393 = vpack.c.bf16 %v1356, %v1355
    %v1394 = vpack.c.bf16 %v1358, %v1357
    %v1395 = vpack.c.bf16 %v1360, %v1359
    %v1396 = vpack.c.bf16 %v1362, %v1361
    %v1397 = vpack.c.bf16 %v1364, %v1363
    %v1398 = vpack.c.bf16 %v1366, %v1365
    %v1399 = vld [vmem:[%s885 + $0x1] sm:$0xff]
    %v1400 = vld [vmem:[%s885 + $0x9] sm:$0xff]
    %v1401 = vld [vmem:[%s885 + $0x19] sm:$0xff]
    %v1402 = vld [vmem:[%s885 + $0x21] sm:$0xff]
    %v1403 = vld [vmem:[%s885 + $0x31] sm:$0xff]
    %v1404 = vld [vmem:[%s885 + $0x39] sm:$0xff]
    %v1405 = vld [vmem:[%s885 + $0x49] sm:$0xff]
    %v1406 = vld [vmem:[%s885 + $0x51] sm:$0xff]
    %v1407 = vld [vmem:[%s885 + $0x61] sm:$0xff]
    %v1408 = vld [vmem:[%s885 + $0x69] sm:$0xff]
    %v1409 = vld [vmem:[%s885 + $0x79] sm:$0xff]
    %v1410 = vld [vmem:[%s885 + $0x81] sm:$0xff]
    %v1411 = vld [vmem:[%s885 + $0x91] sm:$0xff]
    %v1412 = vld [vmem:[%s885 + $0x99] sm:$0xff]
    %v1413 = vld [vmem:[%s885 + $0xa9] sm:$0xff]
    %v1414 = vld [vmem:[%s885 + $0xb1] sm:$0xff]
    %v1415 = vld [vmem:[%s885 + $0xc1] sm:$0xff]
    %v1416 = vld [vmem:[%s885 + $0xc9] sm:$0xff]
    %v1417 = vld [vmem:[%s885 + $0xd9] sm:$0xff]
    %v1418 = vld [vmem:[%s885 + $0xe1] sm:$0xff]
    %v1419 = vld [vmem:[%s885 + $0xf1] sm:$0xff]
    %v1420 = vld [vmem:[%s885 + $0xf9] sm:$0xff]
    %v1421 = vld [vmem:[%s885 + $0x109] sm:$0xff]
    %v1422 = vld [vmem:[%s885 + $0x111] sm:$0xff]
    %v1423 = vld [vmem:[%s885 + $0x121] sm:$0xff]
    %v1424 = vld [vmem:[%s885 + $0x129] sm:$0xff]
    %v1425 = vld [vmem:[%s885 + $0x139] sm:$0xff]
    %v1426 = vld [vmem:[%s885 + $0x141] sm:$0xff]
    %v1427 = vld [vmem:[%s885 + $0x151] sm:$0xff]
    %v1428 = vld [vmem:[%s885 + $0x159] sm:$0xff]
    %v1429 = vld [vmem:[%s885 + $0x169] sm:$0xff]
    %v1430 = vld [vmem:[%s885 + $0x171] sm:$0xff]
    %v1431 = vld [vmem:[%s885 + $0x1b1] sm:$0xff]
    %v1432 = vld [vmem:[%s885 + $0x1b9] sm:$0xff]
    %v1433 = vld [vmem:[%s885 + $0x1c9] sm:$0xff]
    %v1434 = vld [vmem:[%s885 + $0x1d1] sm:$0xff]
    %v1435 = vld [vmem:[%s885 + $0x1e1] sm:$0xff]
    %v1436 = vld [vmem:[%s885 + $0x1e9] sm:$0xff]
    %v1437 = vld [vmem:[%s885 + $0x1f9] sm:$0xff]
    %v1438 = vld [vmem:[%s885 + $0x201] sm:$0xff]
    %v1439 = vld [vmem:[%s885 + $0x211] sm:$0xff]
    %v1440 = vld [vmem:[%s885 + $0x219] sm:$0xff]
    %v1441 = vld [vmem:[%s885 + $0x229] sm:$0xff]
    %v1442 = vld [vmem:[%s885 + $0x231] sm:$0xff]
    %v1443 = vld [vmem:[%s885 + $0x241] sm:$0xff]
    %v1444 = vld [vmem:[%s885 + $0x249] sm:$0xff]
    %v1445 = vld [vmem:[%s885 + $0x259] sm:$0xff]
    %v1446 = vld [vmem:[%s885 + $0x261] sm:$0xff]
    %v1447 = vld [vmem:[%s885 + $0x271] sm:$0xff]
    %v1448 = vld [vmem:[%s885 + $0x279] sm:$0xff]
    %v1449 = vld [vmem:[%s885 + $0x289] sm:$0xff]
    %v1450 = vld [vmem:[%s885 + $0x291] sm:$0xff]
    %v1451 = vld [vmem:[%s885 + $0x2a1] sm:$0xff]
    %v1452 = vld [vmem:[%s885 + $0x2a9] sm:$0xff]
    %v1453 = vld [vmem:[%s885 + $0x2b9] sm:$0xff]
    %v1454 = vld [vmem:[%s885 + $0x2c1] sm:$0xff]
    %v1455 = vld [vmem:[%s885 + $0x2d1] sm:$0xff]
    %v1456 = vld [vmem:[%s885 + $0x2d9] sm:$0xff]
    %v1457 = vld [vmem:[%s885 + $0x2e9] sm:$0xff]
    %v1458 = vld [vmem:[%s885 + $0x2f1] sm:$0xff]
    %v1459 = vld [vmem:[%s885 + $0x301] sm:$0xff]
    %v1460 = vld [vmem:[%s885 + $0x309] sm:$0xff]
    %v1461 = vld [vmem:[%s885 + $0x319] sm:$0xff]
    %v1462 = vld [vmem:[%s885 + $0x321] sm:$0xff]
    %v1463 = vpack.c.bf16 %v1400, %v1399
    %v1464 = vpack.c.bf16 %v1402, %v1401
    %v1465 = vpack.c.bf16 %v1404, %v1403
    %v1466 = vpack.c.bf16 %v1406, %v1405
    %v1467 = vpack.c.bf16 %v1408, %v1407
    %v1468 = vpack.c.bf16 %v1410, %v1409
    %v1469 = vpack.c.bf16 %v1412, %v1411
    %v1470 = vpack.c.bf16 %v1414, %v1413
    %v1471 = vpack.c.bf16 %v1416, %v1415
    %v1472 = vpack.c.bf16 %v1418, %v1417
    %v1473 = vpack.c.bf16 %v1420, %v1419
    %v1474 = vpack.c.bf16 %v1422, %v1421
    %v1475 = vpack.c.bf16 %v1424, %v1423
    %v1476 = vpack.c.bf16 %v1426, %v1425
    %v1477 = vpack.c.bf16 %v1428, %v1427
    %v1478 = vpack.c.bf16 %v1430, %v1429
    %v1479 = vpack.c.bf16 %v1432, %v1431
    %v1480 = vpack.c.bf16 %v1434, %v1433
    %v1481 = vpack.c.bf16 %v1436, %v1435
    %v1482 = vpack.c.bf16 %v1438, %v1437
    %v1483 = vpack.c.bf16 %v1440, %v1439
    %v1484 = vpack.c.bf16 %v1442, %v1441
    %v1485 = vpack.c.bf16 %v1444, %v1443
    %v1486 = vpack.c.bf16 %v1446, %v1445
    %v1487 = vpack.c.bf16 %v1448, %v1447
    %v1488 = vpack.c.bf16 %v1450, %v1449
    %v1489 = vpack.c.bf16 %v1452, %v1451
    %v1490 = vpack.c.bf16 %v1454, %v1453
    %v1491 = vpack.c.bf16 %v1456, %v1455
    %v1492 = vpack.c.bf16 %v1458, %v1457
    %v1493 = vpack.c.bf16 %v1460, %v1459
    %v1494 = vpack.c.bf16 %v1462, %v1461
    %v1495 = vld [vmem:[%s885 + $0x2] sm:$0xff]
    %v1496 = vld [vmem:[%s885 + $0xa] sm:$0xff]
    %v1497 = vld [vmem:[%s885 + $0x1a] sm:$0xff]
    %v1498 = vld [vmem:[%s885 + $0x22] sm:$0xff]
    %v1499 = vld [vmem:[%s885 + $0x32] sm:$0xff]
    %v1500 = vld [vmem:[%s885 + $0x3a] sm:$0xff]
    %v1501 = vld [vmem:[%s885 + $0x4a] sm:$0xff]
    %v1502 = vld [vmem:[%s885 + $0x52] sm:$0xff]
    %v1503 = vld [vmem:[%s885 + $0x62] sm:$0xff]
    %v1504 = vld [vmem:[%s885 + $0x6a] sm:$0xff]
    %v1505 = vld [vmem:[%s885 + $0x7a] sm:$0xff]
    %v1506 = vld [vmem:[%s885 + $0x82] sm:$0xff]
    %v1507 = vld [vmem:[%s885 + $0x92] sm:$0xff]
    %v1508 = vld [vmem:[%s885 + $0x9a] sm:$0xff]
    %v1509 = vld [vmem:[%s885 + $0xaa] sm:$0xff]
    %v1510 = vld [vmem:[%s885 + $0xb2] sm:$0xff]
    %v1511 = vld [vmem:[%s885 + $0xc2] sm:$0xff]
    %v1512 = vld [vmem:[%s885 + $0xca] sm:$0xff]
    %v1513 = vld [vmem:[%s885 + $0xda] sm:$0xff]
    %v1514 = vld [vmem:[%s885 + $0xe2] sm:$0xff]
    %v1515 = vld [vmem:[%s885 + $0xf2] sm:$0xff]
    %v1516 = vld [vmem:[%s885 + $0xfa] sm:$0xff]
    %v1517 = vld [vmem:[%s885 + $0x10a] sm:$0xff]
    %v1518 = vld [vmem:[%s885 + $0x112] sm:$0xff]
    %v1519 = vld [vmem:[%s885 + $0x122] sm:$0xff]
    %v1520 = vld [vmem:[%s885 + $0x12a] sm:$0xff]
    %v1521 = vld [vmem:[%s885 + $0x13a] sm:$0xff]
    %v1522 = vld [vmem:[%s885 + $0x142] sm:$0xff]
    %v1523 = vld [vmem:[%s885 + $0x152] sm:$0xff]
    %v1524 = vld [vmem:[%s885 + $0x15a] sm:$0xff]
    %v1525 = vld [vmem:[%s885 + $0x16a] sm:$0xff]
    %v1526 = vld [vmem:[%s885 + $0x172] sm:$0xff]
    %v1527 = vld [vmem:[%s885 + $0x1b2] sm:$0xff]
    %v1528 = vld [vmem:[%s885 + $0x1ba] sm:$0xff]
    %v1529 = vld [vmem:[%s885 + $0x1ca] sm:$0xff]
    %v1530 = vld [vmem:[%s885 + $0x1d2] sm:$0xff]
    %v1531 = vld [vmem:[%s885 + $0x1e2] sm:$0xff]
    %v1532 = vld [vmem:[%s885 + $0x1ea] sm:$0xff]
    %v1533 = vld [vmem:[%s885 + $0x1fa] sm:$0xff]
    %v1534 = vld [vmem:[%s885 + $0x202] sm:$0xff]
    %v1535 = vld [vmem:[%s885 + $0x212] sm:$0xff]
    %v1536 = vld [vmem:[%s885 + $0x21a] sm:$0xff]
    %v1537 = vld [vmem:[%s885 + $0x22a] sm:$0xff]
    %v1538 = vld [vmem:[%s885 + $0x232] sm:$0xff]
    %v1539 = vld [vmem:[%s885 + $0x242] sm:$0xff]
    %v1540 = vld [vmem:[%s885 + $0x24a] sm:$0xff]
    %v1541 = vld [vmem:[%s885 + $0x25a] sm:$0xff]
    %v1542 = vld [vmem:[%s885 + $0x262] sm:$0xff]
    %v1543 = vld [vmem:[%s885 + $0x272] sm:$0xff]
    %v1544 = vld [vmem:[%s885 + $0x27a] sm:$0xff]
    %v1545 = vld [vmem:[%s885 + $0x28a] sm:$0xff]
    %v1546 = vld [vmem:[%s885 + $0x292] sm:$0xff]
    %v1547 = vld [vmem:[%s885 + $0x2a2] sm:$0xff]
    %v1548 = vld [vmem:[%s885 + $0x2aa] sm:$0xff]
    %v1549 = vld [vmem:[%s885 + $0x2ba] sm:$0xff]
    %v1550 = vld [vmem:[%s885 + $0x2c2] sm:$0xff]
    %v1551 = vld [vmem:[%s885 + $0x2d2] sm:$0xff]
    %v1552 = vld [vmem:[%s885 + $0x2da] sm:$0xff]
    %v1553 = vld [vmem:[%s885 + $0x2ea] sm:$0xff]
    %v1554 = vld [vmem:[%s885 + $0x2f2] sm:$0xff]
    %v1555 = vld [vmem:[%s885 + $0x302] sm:$0xff]
    %v1556 = vld [vmem:[%s885 + $0x30a] sm:$0xff]
    %v1557 = vld [vmem:[%s885 + $0x31a] sm:$0xff]
    %v1558 = vld [vmem:[%s885 + $0x322] sm:$0xff]
    %v1559 = vpack.c.bf16 %v1496, %v1495
    %v1560 = vpack.c.bf16 %v1498, %v1497
    %v1561 = vpack.c.bf16 %v1500, %v1499
    %v1562 = vpack.c.bf16 %v1502, %v1501
    %v1563 = vpack.c.bf16 %v1504, %v1503
    %v1564 = vpack.c.bf16 %v1506, %v1505
    %v1565 = vpack.c.bf16 %v1508, %v1507
    %v1566 = vpack.c.bf16 %v1510, %v1509
    %v1567 = vpack.c.bf16 %v1512, %v1511
    %v1568 = vpack.c.bf16 %v1514, %v1513
    %v1569 = vpack.c.bf16 %v1516, %v1515
    %v1570 = vpack.c.bf16 %v1518, %v1517
    %v1571 = vpack.c.bf16 %v1520, %v1519
    %v1572 = vpack.c.bf16 %v1522, %v1521
    %v1573 = vpack.c.bf16 %v1524, %v1523
    %v1574 = vpack.c.bf16 %v1526, %v1525
    %v1575 = vpack.c.bf16 %v1528, %v1527
    %v1576 = vpack.c.bf16 %v1530, %v1529
    %v1577 = vpack.c.bf16 %v1532, %v1531
    %v1578 = vpack.c.bf16 %v1534, %v1533
    %v1579 = vpack.c.bf16 %v1536, %v1535
    %v1580 = vpack.c.bf16 %v1538, %v1537
    %v1581 = vpack.c.bf16 %v1540, %v1539
    %v1582 = vpack.c.bf16 %v1542, %v1541
    %v1583 = vpack.c.bf16 %v1544, %v1543
    %v1584 = vpack.c.bf16 %v1546, %v1545
    %v1585 = vpack.c.bf16 %v1548, %v1547
    %v1586 = vpack.c.bf16 %v1550, %v1549
    %v1587 = vpack.c.bf16 %v1552, %v1551
    %v1588 = vpack.c.bf16 %v1554, %v1553
    %v1589 = vpack.c.bf16 %v1556, %v1555
    %v1590 = vpack.c.bf16 %v1558, %v1557
    %s1591 = scalar_lea.vmem [#allocation2], 48
    %v1592 = vld [vmem:[%s1591] sm:$0xff]
    %v1593 = vld [vmem:[%s1591 + $0x8] sm:$0xff]
    %v1594 = vld [vmem:[%s1591 + $0x18] sm:$0xff]
    %v1595 = vld [vmem:[%s1591 + $0x20] sm:$0xff]
    %v1596 = vld [vmem:[%s1591 + $0x30] sm:$0xff]
    %v1597 = vld [vmem:[%s1591 + $0x38] sm:$0xff]
    %v1598 = vld [vmem:[%s1591 + $0x48] sm:$0xff]
    %v1599 = vld [vmem:[%s1591 + $0x50] sm:$0xff]
    %v1600 = vld [vmem:[%s1591 + $0x60] sm:$0xff]
    %v1601 = vld [vmem:[%s1591 + $0x68] sm:$0xff]
    %v1602 = vld [vmem:[%s1591 + $0x78] sm:$0xff]
    %v1603 = vld [vmem:[%s1591 + $0x80] sm:$0xff]
    %v1604 = vld [vmem:[%s1591 + $0x90] sm:$0xff]
    %v1605 = vld [vmem:[%s1591 + $0x98] sm:$0xff]
    %v1606 = vld [vmem:[%s1591 + $0xa8] sm:$0xff]
    %v1607 = vld [vmem:[%s1591 + $0xb0] sm:$0xff]
    %v1608 = vld [vmem:[%s1591 + $0xc0] sm:$0xff]
    %v1609 = vld [vmem:[%s1591 + $0xc8] sm:$0xff]
    %v1610 = vld [vmem:[%s1591 + $0xd8] sm:$0xff]
    %v1611 = vld [vmem:[%s1591 + $0xe0] sm:$0xff]
    %v1612 = vld [vmem:[%s1591 + $0xf0] sm:$0xff]
    %v1613 = vld [vmem:[%s1591 + $0xf8] sm:$0xff]
    %v1614 = vld [vmem:[%s1591 + $0x108] sm:$0xff]
    %v1615 = vld [vmem:[%s1591 + $0x110] sm:$0xff]
    %v1616 = vld [vmem:[%s1591 + $0x120] sm:$0xff]
    %v1617 = vld [vmem:[%s1591 + $0x128] sm:$0xff]
    %v1618 = vld [vmem:[%s1591 + $0x138] sm:$0xff]
    %v1619 = vld [vmem:[%s1591 + $0x140] sm:$0xff]
    %v1620 = vld [vmem:[%s1591 + $0x150] sm:$0xff]
    %v1621 = vld [vmem:[%s1591 + $0x158] sm:$0xff]
    %v1622 = vld [vmem:[%s1591 + $0x168] sm:$0xff]
    %v1623 = vld [vmem:[%s1591 + $0x170] sm:$0xff]
    %v1624 = vld [vmem:[%s1591 + $0x1b0] sm:$0xff]
    %v1625 = vld [vmem:[%s1591 + $0x1b8] sm:$0xff]
    %v1626 = vld [vmem:[%s1591 + $0x1c8] sm:$0xff]
    %v1627 = vld [vmem:[%s1591 + $0x1d0] sm:$0xff]
    %v1628 = vld [vmem:[%s1591 + $0x1e0] sm:$0xff]
    %v1629 = vld [vmem:[%s1591 + $0x1e8] sm:$0xff]
    %v1630 = vld [vmem:[%s1591 + $0x1f8] sm:$0xff]
    %v1631 = vld [vmem:[%s1591 + $0x200] sm:$0xff]
    %v1632 = vld [vmem:[%s1591 + $0x210] sm:$0xff]
    %v1633 = vld [vmem:[%s1591 + $0x218] sm:$0xff]
    %v1634 = vld [vmem:[%s1591 + $0x228] sm:$0xff]
    %v1635 = vld [vmem:[%s1591 + $0x230] sm:$0xff]
    %v1636 = vld [vmem:[%s1591 + $0x240] sm:$0xff]
    %v1637 = vld [vmem:[%s1591 + $0x248] sm:$0xff]
    %v1638 = vld [vmem:[%s1591 + $0x258] sm:$0xff]
    %v1639 = vld [vmem:[%s1591 + $0x260] sm:$0xff]
    %v1640 = vld [vmem:[%s1591 + $0x270] sm:$0xff]
    %v1641 = vld [vmem:[%s1591 + $0x278] sm:$0xff]
    %v1642 = vld [vmem:[%s1591 + $0x288] sm:$0xff]
    %v1643 = vld [vmem:[%s1591 + $0x290] sm:$0xff]
    %v1644 = vld [vmem:[%s1591 + $0x2a0] sm:$0xff]
    %v1645 = vld [vmem:[%s1591 + $0x2a8] sm:$0xff]
    %v1646 = vld [vmem:[%s1591 + $0x2b8] sm:$0xff]
    %v1647 = vld [vmem:[%s1591 + $0x2c0] sm:$0xff]
    %v1648 = vld [vmem:[%s1591 + $0x2d0] sm:$0xff]
    %v1649 = vld [vmem:[%s1591 + $0x2d8] sm:$0xff]
    %v1650 = vld [vmem:[%s1591 + $0x2e8] sm:$0xff]
    %v1651 = vld [vmem:[%s1591 + $0x2f0] sm:$0xff]
    %v1652 = vld [vmem:[%s1591 + $0x300] sm:$0xff]
    %v1653 = vld [vmem:[%s1591 + $0x308] sm:$0xff]
    %v1654 = vld [vmem:[%s1591 + $0x318] sm:$0xff]
    %v1655 = vld [vmem:[%s1591 + $0x320] sm:$0xff]
    %v1656 = vpack.c.bf16 %v1593, %v1592
    %v1657 = vpack.c.bf16 %v1595, %v1594
    %v1658 = vpack.c.bf16 %v1597, %v1596
    %v1659 = vpack.c.bf16 %v1599, %v1598
    %v1660 = vpack.c.bf16 %v1601, %v1600
    %v1661 = vpack.c.bf16 %v1603, %v1602
    %v1662 = vpack.c.bf16 %v1605, %v1604
    %v1663 = vpack.c.bf16 %v1607, %v1606
    %v1664 = vpack.c.bf16 %v1609, %v1608
    %v1665 = vpack.c.bf16 %v1611, %v1610
    %v1666 = vpack.c.bf16 %v1613, %v1612
    %v1667 = vpack.c.bf16 %v1615, %v1614
    %v1668 = vpack.c.bf16 %v1617, %v1616
    %v1669 = vpack.c.bf16 %v1619, %v1618
    %v1670 = vpack.c.bf16 %v1621, %v1620
    %v1671 = vpack.c.bf16 %v1623, %v1622
    %v1672 = vpack.c.bf16 %v1625, %v1624
    %v1673 = vpack.c.bf16 %v1627, %v1626
    %v1674 = vpack.c.bf16 %v1629, %v1628
    %v1675 = vpack.c.bf16 %v1631, %v1630
    %v1676 = vpack.c.bf16 %v1633, %v1632
    %v1677 = vpack.c.bf16 %v1635, %v1634
    %v1678 = vpack.c.bf16 %v1637, %v1636
    %v1679 = vpack.c.bf16 %v1639, %v1638
    %v1680 = vpack.c.bf16 %v1641, %v1640
    %v1681 = vpack.c.bf16 %v1643, %v1642
    %v1682 = vpack.c.bf16 %v1645, %v1644
    %v1683 = vpack.c.bf16 %v1647, %v1646
    %v1684 = vpack.c.bf16 %v1649, %v1648
    %v1685 = vpack.c.bf16 %v1651, %v1650
    %v1686 = vpack.c.bf16 %v1653, %v1652
    %v1687 = vpack.c.bf16 %v1655, %v1654
    %v1688 = vld [vmem:[%s1591 + $0x1] sm:$0xff]
    %v1689 = vld [vmem:[%s1591 + $0x9] sm:$0xff]
    %v1690 = vld [vmem:[%s1591 + $0x19] sm:$0xff]
    %v1691 = vld [vmem:[%s1591 + $0x21] sm:$0xff]
    %v1692 = vld [vmem:[%s1591 + $0x31] sm:$0xff]
    %v1693 = vld [vmem:[%s1591 + $0x39] sm:$0xff]
    %v1694 = vld [vmem:[%s1591 + $0x49] sm:$0xff]
    %v1695 = vld [vmem:[%s1591 + $0x51] sm:$0xff]
    %v1696 = vld [vmem:[%s1591 + $0x61] sm:$0xff]
    %v1697 = vld [vmem:[%s1591 + $0x69] sm:$0xff]
    %v1698 = vld [vmem:[%s1591 + $0x79] sm:$0xff]
    %v1699 = vld [vmem:[%s1591 + $0x81] sm:$0xff]
    %v1700 = vld [vmem:[%s1591 + $0x91] sm:$0xff]
    %v1701 = vld [vmem:[%s1591 + $0x99] sm:$0xff]
    %v1702 = vld [vmem:[%s1591 + $0xa9] sm:$0xff]
    %v1703 = vld [vmem:[%s1591 + $0xb1] sm:$0xff]
    %v1704 = vld [vmem:[%s1591 + $0xc1] sm:$0xff]
    %v1705 = vld [vmem:[%s1591 + $0xc9] sm:$0xff]
    %v1706 = vld [vmem:[%s1591 + $0xd9] sm:$0xff]
    %v1707 = vld [vmem:[%s1591 + $0xe1] sm:$0xff]
    %v1708 = vld [vmem:[%s1591 + $0xf1] sm:$0xff]
    %v1709 = vld [vmem:[%s1591 + $0xf9] sm:$0xff]
    %v1710 = vld [vmem:[%s1591 + $0x109] sm:$0xff]
    %v1711 = vld [vmem:[%s1591 + $0x111] sm:$0xff]
    %v1712 = vld [vmem:[%s1591 + $0x121] sm:$0xff]
    %v1713 = vld [vmem:[%s1591 + $0x129] sm:$0xff]
    %v1714 = vld [vmem:[%s1591 + $0x139] sm:$0xff]
    %v1715 = vld [vmem:[%s1591 + $0x141] sm:$0xff]
    %v1716 = vld [vmem:[%s1591 + $0x151] sm:$0xff]
    %v1717 = vld [vmem:[%s1591 + $0x159] sm:$0xff]
    %v1718 = vld [vmem:[%s1591 + $0x169] sm:$0xff]
    %v1719 = vld [vmem:[%s1591 + $0x171] sm:$0xff]
    %v1720 = vld [vmem:[%s1591 + $0x1b1] sm:$0xff]
    %v1721 = vld [vmem:[%s1591 + $0x1b9] sm:$0xff]
    %v1722 = vld [vmem:[%s1591 + $0x1c9] sm:$0xff]
    %v1723 = vld [vmem:[%s1591 + $0x1d1] sm:$0xff]
    %v1724 = vld [vmem:[%s1591 + $0x1e1] sm:$0xff]
    %v1725 = vld [vmem:[%s1591 + $0x1e9] sm:$0xff]
    %v1726 = vld [vmem:[%s1591 + $0x1f9] sm:$0xff]
    %v1727 = vld [vmem:[%s1591 + $0x201] sm:$0xff]
    %v1728 = vld [vmem:[%s1591 + $0x211] sm:$0xff]
    %v1729 = vld [vmem:[%s1591 + $0x219] sm:$0xff]
    %v1730 = vld [vmem:[%s1591 + $0x229] sm:$0xff]
    %v1731 = vld [vmem:[%s1591 + $0x231] sm:$0xff]
    %v1732 = vld [vmem:[%s1591 + $0x241] sm:$0xff]
    %v1733 = vld [vmem:[%s1591 + $0x249] sm:$0xff]
    %v1734 = vld [vmem:[%s1591 + $0x259] sm:$0xff]
    %v1735 = vld [vmem:[%s1591 + $0x261] sm:$0xff]
    %v1736 = vld [vmem:[%s1591 + $0x271] sm:$0xff]
    %v1737 = vld [vmem:[%s1591 + $0x279] sm:$0xff]
    %v1738 = vld [vmem:[%s1591 + $0x289] sm:$0xff]
    %v1739 = vld [vmem:[%s1591 + $0x291] sm:$0xff]
    %v1740 = vld [vmem:[%s1591 + $0x2a1] sm:$0xff]
    %v1741 = vld [vmem:[%s1591 + $0x2a9] sm:$0xff]
    %v1742 = vld [vmem:[%s1591 + $0x2b9] sm:$0xff]
    %v1743 = vld [vmem:[%s1591 + $0x2c1] sm:$0xff]
    %v1744 = vld [vmem:[%s1591 + $0x2d1] sm:$0xff]
    %v1745 = vld [vmem:[%s1591 + $0x2d9] sm:$0xff]
    %v1746 = vld [vmem:[%s1591 + $0x2e9] sm:$0xff]
    %v1747 = vld [vmem:[%s1591 + $0x2f1] sm:$0xff]
    %v1748 = vld [vmem:[%s1591 + $0x301] sm:$0xff]
    %v1749 = vld [vmem:[%s1591 + $0x309] sm:$0xff]
    %v1750 = vld [vmem:[%s1591 + $0x319] sm:$0xff]
    %v1751 = vld [vmem:[%s1591 + $0x321] sm:$0xff]
    %v1752 = vpack.c.bf16 %v1689, %v1688
    %v1753 = vpack.c.bf16 %v1691, %v1690
    %v1754 = vpack.c.bf16 %v1693, %v1692
    %v1755 = vpack.c.bf16 %v1695, %v1694
    %v1756 = vpack.c.bf16 %v1697, %v1696
    %v1757 = vpack.c.bf16 %v1699, %v1698
    %v1758 = vpack.c.bf16 %v1701, %v1700
    %v1759 = vpack.c.bf16 %v1703, %v1702
    %v1760 = vpack.c.bf16 %v1705, %v1704
    %v1761 = vpack.c.bf16 %v1707, %v1706
    %v1762 = vpack.c.bf16 %v1709, %v1708
    %v1763 = vpack.c.bf16 %v1711, %v1710
    %v1764 = vpack.c.bf16 %v1713, %v1712
    %v1765 = vpack.c.bf16 %v1715, %v1714
    %v1766 = vpack.c.bf16 %v1717, %v1716
    %v1767 = vpack.c.bf16 %v1719, %v1718
    %v1768 = vpack.c.bf16 %v1721, %v1720
    %v1769 = vpack.c.bf16 %v1723, %v1722
    %v1770 = vpack.c.bf16 %v1725, %v1724
    %v1771 = vpack.c.bf16 %v1727, %v1726
    %v1772 = vpack.c.bf16 %v1729, %v1728
    %v1773 = vpack.c.bf16 %v1731, %v1730
    %v1774 = vpack.c.bf16 %v1733, %v1732
    %v1775 = vpack.c.bf16 %v1735, %v1734
    %v1776 = vpack.c.bf16 %v1737, %v1736
    %v1777 = vpack.c.bf16 %v1739, %v1738
    %v1778 = vpack.c.bf16 %v1741, %v1740
    %v1779 = vpack.c.bf16 %v1743, %v1742
    %v1780 = vpack.c.bf16 %v1745, %v1744
    %v1781 = vpack.c.bf16 %v1747, %v1746
    %v1782 = vpack.c.bf16 %v1749, %v1748
    %v1783 = vpack.c.bf16 %v1751, %v1750
    %v1784 = vld [vmem:[%s1591 + $0x2] sm:$0xff]
    %v1785 = vld [vmem:[%s1591 + $0xa] sm:$0xff]
    %v1786 = vld [vmem:[%s1591 + $0x1a] sm:$0xff]
    %v1787 = vld [vmem:[%s1591 + $0x22] sm:$0xff]
    %v1788 = vld [vmem:[%s1591 + $0x32] sm:$0xff]
    %v1789 = vld [vmem:[%s1591 + $0x3a] sm:$0xff]
    %v1790 = vld [vmem:[%s1591 + $0x4a] sm:$0xff]
    %v1791 = vld [vmem:[%s1591 + $0x52] sm:$0xff]
    %v1792 = vld [vmem:[%s1591 + $0x62] sm:$0xff]
    %v1793 = vld [vmem:[%s1591 + $0x6a] sm:$0xff]
    %v1794 = vld [vmem:[%s1591 + $0x7a] sm:$0xff]
    %v1795 = vld [vmem:[%s1591 + $0x82] sm:$0xff]
    %v1796 = vld [vmem:[%s1591 + $0x92] sm:$0xff]
    %v1797 = vld [vmem:[%s1591 + $0x9a] sm:$0xff]
    %v1798 = vld [vmem:[%s1591 + $0xaa] sm:$0xff]
    %v1799 = vld [vmem:[%s1591 + $0xb2] sm:$0xff]
    %v1800 = vld [vmem:[%s1591 + $0xc2] sm:$0xff]
    %v1801 = vld [vmem:[%s1591 + $0xca] sm:$0xff]
    %v1802 = vld [vmem:[%s1591 + $0xda] sm:$0xff]
    %v1803 = vld [vmem:[%s1591 + $0xe2] sm:$0xff]
    %v1804 = vld [vmem:[%s1591 + $0xf2] sm:$0xff]
    %v1805 = vld [vmem:[%s1591 + $0xfa] sm:$0xff]
    %v1806 = vld [vmem:[%s1591 + $0x10a] sm:$0xff]
    %v1807 = vld [vmem:[%s1591 + $0x112] sm:$0xff]
    %v1808 = vld [vmem:[%s1591 + $0x122] sm:$0xff]
    %v1809 = vld [vmem:[%s1591 + $0x12a] sm:$0xff]
    %v1810 = vld [vmem:[%s1591 + $0x13a] sm:$0xff]
    %v1811 = vld [vmem:[%s1591 + $0x142] sm:$0xff]
    %v1812 = vld [vmem:[%s1591 + $0x152] sm:$0xff]
    %v1813 = vld [vmem:[%s1591 + $0x15a] sm:$0xff]
    %v1814 = vld [vmem:[%s1591 + $0x16a] sm:$0xff]
    %v1815 = vld [vmem:[%s1591 + $0x172] sm:$0xff]
    %v1816 = vld [vmem:[%s1591 + $0x1b2] sm:$0xff]
    %v1817 = vld [vmem:[%s1591 + $0x1ba] sm:$0xff]
    %v1818 = vld [vmem:[%s1591 + $0x1ca] sm:$0xff]
    %v1819 = vld [vmem:[%s1591 + $0x1d2] sm:$0xff]
    %v1820 = vld [vmem:[%s1591 + $0x1e2] sm:$0xff]
    %v1821 = vld [vmem:[%s1591 + $0x1ea] sm:$0xff]
    %v1822 = vld [vmem:[%s1591 + $0x1fa] sm:$0xff]
    %v1823 = vld [vmem:[%s1591 + $0x202] sm:$0xff]
    %v1824 = vld [vmem:[%s1591 + $0x212] sm:$0xff]
    %v1825 = vld [vmem:[%s1591 + $0x21a] sm:$0xff]
    %v1826 = vld [vmem:[%s1591 + $0x22a] sm:$0xff]
    %v1827 = vld [vmem:[%s1591 + $0x232] sm:$0xff]
    %v1828 = vld [vmem:[%s1591 + $0x242] sm:$0xff]
    %v1829 = vld [vmem:[%s1591 + $0x24a] sm:$0xff]
    %v1830 = vld [vmem:[%s1591 + $0x25a] sm:$0xff]
    %v1831 = vld [vmem:[%s1591 + $0x262] sm:$0xff]
    %v1832 = vld [vmem:[%s1591 + $0x272] sm:$0xff]
    %v1833 = vld [vmem:[%s1591 + $0x27a] sm:$0xff]
    %v1834 = vld [vmem:[%s1591 + $0x28a] sm:$0xff]
    %v1835 = vld [vmem:[%s1591 + $0x292] sm:$0xff]
    %v1836 = vld [vmem:[%s1591 + $0x2a2] sm:$0xff]
    %v1837 = vld [vmem:[%s1591 + $0x2aa] sm:$0xff]
    %v1838 = vld [vmem:[%s1591 + $0x2ba] sm:$0xff]
    %v1839 = vld [vmem:[%s1591 + $0x2c2] sm:$0xff]
    %v1840 = vld [vmem:[%s1591 + $0x2d2] sm:$0xff]
    %v1841 = vld [vmem:[%s1591 + $0x2da] sm:$0xff]
    %v1842 = vld [vmem:[%s1591 + $0x2ea] sm:$0xff]
    %v1843 = vld [vmem:[%s1591 + $0x2f2] sm:$0xff]
    %v1844 = vld [vmem:[%s1591 + $0x302] sm:$0xff]
    %v1845 = vld [vmem:[%s1591 + $0x30a] sm:$0xff]
    %v1846 = vld [vmem:[%s1591 + $0x31a] sm:$0xff]
    %v1847 = vld [vmem:[%s1591 + $0x322] sm:$0xff]
    %v1848 = vpack.c.bf16 %v1785, %v1784
    %v1849 = vpack.c.bf16 %v1787, %v1786
    %v1850 = vpack.c.bf16 %v1789, %v1788
    %v1851 = vpack.c.bf16 %v1791, %v1790
    %v1852 = vpack.c.bf16 %v1793, %v1792
    %v1853 = vpack.c.bf16 %v1795, %v1794
    %v1854 = vpack.c.bf16 %v1797, %v1796
    %v1855 = vpack.c.bf16 %v1799, %v1798
    %v1856 = vpack.c.bf16 %v1801, %v1800
    %v1857 = vpack.c.bf16 %v1803, %v1802
    %v1858 = vpack.c.bf16 %v1805, %v1804
    %v1859 = vpack.c.bf16 %v1807, %v1806
    %v1860 = vpack.c.bf16 %v1809, %v1808
    %v1861 = vpack.c.bf16 %v1811, %v1810
    %v1862 = vpack.c.bf16 %v1813, %v1812
    %v1863 = vpack.c.bf16 %v1815, %v1814
    %v1864 = vpack.c.bf16 %v1817, %v1816
    %v1865 = vpack.c.bf16 %v1819, %v1818
    %v1866 = vpack.c.bf16 %v1821, %v1820
    %v1867 = vpack.c.bf16 %v1823, %v1822
    %v1868 = vpack.c.bf16 %v1825, %v1824
    %v1869 = vpack.c.bf16 %v1827, %v1826
    %v1870 = vpack.c.bf16 %v1829, %v1828
    %v1871 = vpack.c.bf16 %v1831, %v1830
    %v1872 = vpack.c.bf16 %v1833, %v1832
    %v1873 = vpack.c.bf16 %v1835, %v1834
    %v1874 = vpack.c.bf16 %v1837, %v1836
    %v1875 = vpack.c.bf16 %v1839, %v1838
    %v1876 = vpack.c.bf16 %v1841, %v1840
    %v1877 = vpack.c.bf16 %v1843, %v1842
    %v1878 = vpack.c.bf16 %v1845, %v1844
    %v1879 = vpack.c.bf16 %v1847, %v1846
    %1912 = vrot.lane.b32.xlu0 %v1175, 64
    %v1913 = vpop.permute.xlu0 %1912
    %1914 = vrot.lane.b32.xlu0 %v1176, 64
    %v1915 = vpop.permute.xlu0 %1914
    %1916 = vrot.lane.b32.xlu0 %v1177, 64
    %v1917 = vpop.permute.xlu0 %1916
    %1918 = vrot.lane.b32.xlu0 %v1178, 64
    %v1919 = vpop.permute.xlu0 %1918
    %1920 = vrot.lane.b32.xlu0 %v1179, 64
    %v1921 = vpop.permute.xlu0 %1920
    %1922 = vrot.lane.b32.xlu0 %v1180, 64
    %v1923 = vpop.permute.xlu0 %1922
    %1924 = vrot.lane.b32.xlu0 %v1181, 64
    %v1925 = vpop.permute.xlu0 %1924
    %1926 = vrot.lane.b32.xlu0 %v1182, 64
    %v1927 = vpop.permute.xlu0 %1926
    %1928 = vrot.lane.b32.xlu0 %v1183, 64
    %v1929 = vpop.permute.xlu0 %1928
    %1930 = vrot.lane.b32.xlu0 %v1184, 64
    %v1931 = vpop.permute.xlu0 %1930
    %1932 = vrot.lane.b32.xlu0 %v1185, 64
    %v1933 = vpop.permute.xlu0 %1932
    %1934 = vrot.lane.b32.xlu0 %v1186, 64
    %v1935 = vpop.permute.xlu0 %1934
    %1936 = vrot.lane.b32.xlu0 %v1187, 64
    %v1937 = vpop.permute.xlu0 %1936
    %1938 = vrot.lane.b32.xlu0 %v1188, 64
    %v1939 = vpop.permute.xlu0 %1938
    %1940 = vrot.lane.b32.xlu0 %v1189, 64
    %v1941 = vpop.permute.xlu0 %1940
    %1942 = vrot.lane.b32.xlu0 %v1190, 64
    %v1943 = vpop.permute.xlu0 %1942
    %1944 = vrot.lane.b32.xlu0 %v1191, 64
    %v1945 = vpop.permute.xlu0 %1944
    %1946 = vrot.lane.b32.xlu0 %v1192, 64
    %v1947 = vpop.permute.xlu0 %1946
    %1948 = vrot.lane.b32.xlu0 %v1193, 64
    %v1949 = vpop.permute.xlu0 %1948
    %1950 = vrot.lane.b32.xlu0 %v1194, 64
    %v1951 = vpop.permute.xlu0 %1950
    %1952 = vrot.lane.b32.xlu0 %v1195, 64
    %v1953 = vpop.permute.xlu0 %1952
    %1954 = vrot.lane.b32.xlu0 %v1196, 64
    %v1955 = vpop.permute.xlu0 %1954
    %1956 = vrot.lane.b32.xlu0 %v1197, 64
    %v1957 = vpop.permute.xlu0 %1956
    %1958 = vrot.lane.b32.xlu0 %v1198, 64
    %v1959 = vpop.permute.xlu0 %1958
    %1960 = vrot.lane.b32.xlu0 %v1199, 64
    %v1961 = vpop.permute.xlu0 %1960
    %1962 = vrot.lane.b32.xlu0 %v1200, 64
    %v1963 = vpop.permute.xlu0 %1962
    %1964 = vrot.lane.b32.xlu0 %v1201, 64
    %v1965 = vpop.permute.xlu0 %1964
    %1966 = vrot.lane.b32.xlu0 %v1202, 64
    %v1967 = vpop.permute.xlu0 %1966
    %1968 = vrot.lane.b32.xlu0 %v1203, 64
    %v1969 = vpop.permute.xlu0 %1968
    %1970 = vrot.lane.b32.xlu0 %v1204, 64
    %v1971 = vpop.permute.xlu0 %1970
    %1972 = vrot.lane.b32.xlu0 %v1205, 64
    %v1973 = vpop.permute.xlu0 %1972
    %1974 = vrot.lane.b32.xlu0 %v1206, 64
    %v1975 = vpop.permute.xlu0 %1974
    %2008 = vrot.lane.b32.xlu0 %v1367, 64
    %v2009 = vpop.permute.xlu0 %2008
    %2010 = vrot.lane.b32.xlu0 %v1368, 64
    %v2011 = vpop.permute.xlu0 %2010
    %2012 = vrot.lane.b32.xlu0 %v1369, 64
    %v2013 = vpop.permute.xlu0 %2012
    %2014 = vrot.lane.b32.xlu0 %v1370, 64
    %v2015 = vpop.permute.xlu0 %2014
    %2016 = vrot.lane.b32.xlu0 %v1371, 64
    %v2017 = vpop.permute.xlu0 %2016
    %2018 = vrot.lane.b32.xlu0 %v1372, 64
    %v2019 = vpop.permute.xlu0 %2018
    %2020 = vrot.lane.b32.xlu0 %v1373, 64
    %v2021 = vpop.permute.xlu0 %2020
    %2022 = vrot.lane.b32.xlu0 %v1374, 64
    %v2023 = vpop.permute.xlu0 %2022
    %2024 = vrot.lane.b32.xlu0 %v1375, 64
    %v2025 = vpop.permute.xlu0 %2024
    %2026 = vrot.lane.b32.xlu0 %v1376, 64
    %v2027 = vpop.permute.xlu0 %2026
    %2028 = vrot.lane.b32.xlu0 %v1377, 64
    %v2029 = vpop.permute.xlu0 %2028
    %2030 = vrot.lane.b32.xlu0 %v1378, 64
    %v2031 = vpop.permute.xlu0 %2030
    %2032 = vrot.lane.b32.xlu0 %v1379, 64
    %v2033 = vpop.permute.xlu0 %2032
    %2034 = vrot.lane.b32.xlu0 %v1380, 64
    %v2035 = vpop.permute.xlu0 %2034
    %2036 = vrot.lane.b32.xlu0 %v1381, 64
    %v2037 = vpop.permute.xlu0 %2036
    %2038 = vrot.lane.b32.xlu0 %v1382, 64
    %v2039 = vpop.permute.xlu0 %2038
    %2040 = vrot.lane.b32.xlu0 %v1383, 64
    %v2041 = vpop.permute.xlu0 %2040
    %2042 = vrot.lane.b32.xlu0 %v1384, 64
    %v2043 = vpop.permute.xlu0 %2042
    %2044 = vrot.lane.b32.xlu0 %v1385, 64
    %v2045 = vpop.permute.xlu0 %2044
    %2046 = vrot.lane.b32.xlu0 %v1386, 64
    %v2047 = vpop.permute.xlu0 %2046
    %2048 = vrot.lane.b32.xlu0 %v1387, 64
    %v2049 = vpop.permute.xlu0 %2048
    %2050 = vrot.lane.b32.xlu0 %v1388, 64
    %v2051 = vpop.permute.xlu0 %2050
    %2052 = vrot.lane.b32.xlu0 %v1389, 64
    %v2053 = vpop.permute.xlu0 %2052
    %2054 = vrot.lane.b32.xlu0 %v1390, 64
    %v2055 = vpop.permute.xlu0 %2054
    %2056 = vrot.lane.b32.xlu0 %v1391, 64
    %v2057 = vpop.permute.xlu0 %2056
    %2058 = vrot.lane.b32.xlu0 %v1392, 64
    %v2059 = vpop.permute.xlu0 %2058
    %2060 = vrot.lane.b32.xlu0 %v1393, 64
    %v2061 = vpop.permute.xlu0 %2060
    %2062 = vrot.lane.b32.xlu0 %v1394, 64
    %v2063 = vpop.permute.xlu0 %2062
    %2064 = vrot.lane.b32.xlu0 %v1395, 64
    %v2065 = vpop.permute.xlu0 %2064
    %2066 = vrot.lane.b32.xlu0 %v1396, 64
    %v2067 = vpop.permute.xlu0 %2066
    %2068 = vrot.lane.b32.xlu0 %v1397, 64
    %v2069 = vpop.permute.xlu0 %2068
    %2070 = vrot.lane.b32.xlu0 %v1398, 64
    %v2071 = vpop.permute.xlu0 %2070
    %2104 = vrot.lane.b32.xlu0 %v1559, 64
    %v2105 = vpop.permute.xlu0 %2104
    %2106 = vrot.lane.b32.xlu0 %v1560, 64
    %v2107 = vpop.permute.xlu0 %2106
    %2108 = vrot.lane.b32.xlu0 %v1561, 64
    %v2109 = vpop.permute.xlu0 %2108
    %2110 = vrot.lane.b32.xlu0 %v1562, 64
    %v2111 = vpop.permute.xlu0 %2110
    %2112 = vrot.lane.b32.xlu0 %v1563, 64
    %v2113 = vpop.permute.xlu0 %2112
    %2114 = vrot.lane.b32.xlu0 %v1564, 64
    %v2115 = vpop.permute.xlu0 %2114
    %2116 = vrot.lane.b32.xlu0 %v1565, 64
    %v2117 = vpop.permute.xlu0 %2116
    %2118 = vrot.lane.b32.xlu0 %v1566, 64
    %v2119 = vpop.permute.xlu0 %2118
    %2120 = vrot.lane.b32.xlu0 %v1567, 64
    %v2121 = vpop.permute.xlu0 %2120
    %2122 = vrot.lane.b32.xlu0 %v1568, 64
    %v2123 = vpop.permute.xlu0 %2122
    %2124 = vrot.lane.b32.xlu0 %v1569, 64
    %v2125 = vpop.permute.xlu0 %2124
    %2126 = vrot.lane.b32.xlu0 %v1570, 64
    %v2127 = vpop.permute.xlu0 %2126
    %2128 = vrot.lane.b32.xlu0 %v1571, 64
    %v2129 = vpop.permute.xlu0 %2128
    %2130 = vrot.lane.b32.xlu0 %v1572, 64
    %v2131 = vpop.permute.xlu0 %2130
    %2132 = vrot.lane.b32.xlu0 %v1573, 64
    %v2133 = vpop.permute.xlu0 %2132
    %2134 = vrot.lane.b32.xlu0 %v1574, 64
    %v2135 = vpop.permute.xlu0 %2134
    %2136 = vrot.lane.b32.xlu0 %v1575, 64
    %v2137 = vpop.permute.xlu0 %2136
    %2138 = vrot.lane.b32.xlu0 %v1576, 64
    %v2139 = vpop.permute.xlu0 %2138
    %2140 = vrot.lane.b32.xlu0 %v1577, 64
    %v2141 = vpop.permute.xlu0 %2140
    %2142 = vrot.lane.b32.xlu0 %v1578, 64
    %v2143 = vpop.permute.xlu0 %2142
    %2144 = vrot.lane.b32.xlu0 %v1579, 64
    %v2145 = vpop.permute.xlu0 %2144
    %2146 = vrot.lane.b32.xlu0 %v1580, 64
    %v2147 = vpop.permute.xlu0 %2146
    %2148 = vrot.lane.b32.xlu0 %v1581, 64
    %v2149 = vpop.permute.xlu0 %2148
    %2150 = vrot.lane.b32.xlu0 %v1582, 64
    %v2151 = vpop.permute.xlu0 %2150
    %2152 = vrot.lane.b32.xlu0 %v1583, 64
    %v2153 = vpop.permute.xlu0 %2152
    %2154 = vrot.lane.b32.xlu0 %v1584, 64
    %v2155 = vpop.permute.xlu0 %2154
    %2156 = vrot.lane.b32.xlu0 %v1585, 64
    %v2157 = vpop.permute.xlu0 %2156
    %2158 = vrot.lane.b32.xlu0 %v1586, 64
    %v2159 = vpop.permute.xlu0 %2158
    %2160 = vrot.lane.b32.xlu0 %v1587, 64
    %v2161 = vpop.permute.xlu0 %2160
    %2162 = vrot.lane.b32.xlu0 %v1588, 64
    %v2163 = vpop.permute.xlu0 %2162
    %2164 = vrot.lane.b32.xlu0 %v1589, 64
    %v2165 = vpop.permute.xlu0 %2164
    %2166 = vrot.lane.b32.xlu0 %v1590, 64
    %v2167 = vpop.permute.xlu0 %2166
    %2200 = vrot.lane.b32.xlu0 %v1752, 64
    %v2201 = vpop.permute.xlu0 %2200
    %2202 = vrot.lane.b32.xlu0 %v1753, 64
    %v2203 = vpop.permute.xlu0 %2202
    %2204 = vrot.lane.b32.xlu0 %v1754, 64
    %v2205 = vpop.permute.xlu0 %2204
    %2206 = vrot.lane.b32.xlu0 %v1755, 64
    %v2207 = vpop.permute.xlu0 %2206
    %2208 = vrot.lane.b32.xlu0 %v1756, 64
    %v2209 = vpop.permute.xlu0 %2208
    %2210 = vrot.lane.b32.xlu0 %v1757, 64
    %v2211 = vpop.permute.xlu0 %2210
    %2212 = vrot.lane.b32.xlu0 %v1758, 64
    %v2213 = vpop.permute.xlu0 %2212
    %2214 = vrot.lane.b32.xlu0 %v1759, 64
    %v2215 = vpop.permute.xlu0 %2214
    %2216 = vrot.lane.b32.xlu0 %v1760, 64
    %v2217 = vpop.permute.xlu0 %2216
    %2218 = vrot.lane.b32.xlu0 %v1761, 64
    %v2219 = vpop.permute.xlu0 %2218
    %2220 = vrot.lane.b32.xlu0 %v1762, 64
    %v2221 = vpop.permute.xlu0 %2220
    %2222 = vrot.lane.b32.xlu0 %v1763, 64
    %v2223 = vpop.permute.xlu0 %2222
    %2224 = vrot.lane.b32.xlu0 %v1764, 64
    %v2225 = vpop.permute.xlu0 %2224
    %2226 = vrot.lane.b32.xlu0 %v1765, 64
    %v2227 = vpop.permute.xlu0 %2226
    %2228 = vrot.lane.b32.xlu0 %v1766, 64
    %v2229 = vpop.permute.xlu0 %2228
    %2230 = vrot.lane.b32.xlu0 %v1767, 64
    %v2231 = vpop.permute.xlu0 %2230
    %2232 = vrot.lane.b32.xlu0 %v1768, 64
    %v2233 = vpop.permute.xlu0 %2232
    %2234 = vrot.lane.b32.xlu0 %v1769, 64
    %v2235 = vpop.permute.xlu0 %2234
    %2236 = vrot.lane.b32.xlu0 %v1770, 64
    %v2237 = vpop.permute.xlu0 %2236
    %2238 = vrot.lane.b32.xlu0 %v1771, 64
    %v2239 = vpop.permute.xlu0 %2238
    %2240 = vrot.lane.b32.xlu0 %v1772, 64
    %v2241 = vpop.permute.xlu0 %2240
    %2242 = vrot.lane.b32.xlu0 %v1773, 64
    %v2243 = vpop.permute.xlu0 %2242
    %2244 = vrot.lane.b32.xlu0 %v1774, 64
    %v2245 = vpop.permute.xlu0 %2244
    %2246 = vrot.lane.b32.xlu0 %v1775, 64
    %v2247 = vpop.permute.xlu0 %2246
    %2248 = vrot.lane.b32.xlu0 %v1776, 64
    %v2249 = vpop.permute.xlu0 %2248
    %2250 = vrot.lane.b32.xlu0 %v1777, 64
    %v2251 = vpop.permute.xlu0 %2250
    %2252 = vrot.lane.b32.xlu0 %v1778, 64
    %v2253 = vpop.permute.xlu0 %2252
    %2254 = vrot.lane.b32.xlu0 %v1779, 64
    %v2255 = vpop.permute.xlu0 %2254
    %2256 = vrot.lane.b32.xlu0 %v1780, 64
    %v2257 = vpop.permute.xlu0 %2256
    %2258 = vrot.lane.b32.xlu0 %v1781, 64
    %v2259 = vpop.permute.xlu0 %2258
    %2260 = vrot.lane.b32.xlu0 %v1782, 64
    %v2261 = vpop.permute.xlu0 %2260
    %2262 = vrot.lane.b32.xlu0 %v1783, 64
    %v2263 = vpop.permute.xlu0 %2262
    %v2266 = vsel %vm870, %v1079, %v1913
    %v2270 = vsel %vm870, %v1080, %v1915
    %v2274 = vsel %vm870, %v1081, %v1917
    %v2278 = vsel %vm870, %v1082, %v1919
    %v2282 = vsel %vm870, %v1083, %v1921
    %v2286 = vsel %vm870, %v1084, %v1923
    %v2290 = vsel %vm870, %v1085, %v1925
    %v2294 = vsel %vm870, %v1086, %v1927
    %v2298 = vsel %vm870, %v1087, %v1929
    %v2302 = vsel %vm870, %v1088, %v1931
    %v2306 = vsel %vm870, %v1089, %v1933
    %v2310 = vsel %vm870, %v1090, %v1935
    %v2314 = vsel %vm870, %v1091, %v1937
    %v2318 = vsel %vm870, %v1092, %v1939
    %v2322 = vsel %vm870, %v1093, %v1941
    %v2326 = vsel %vm870, %v1094, %v1943
    %v2330 = vsel %vm870, %v1095, %v1945
    %v2334 = vsel %vm870, %v1096, %v1947
    %v2338 = vsel %vm870, %v1097, %v1949
    %v2342 = vsel %vm870, %v1098, %v1951
    %v2346 = vsel %vm870, %v1099, %v1953
    %v2350 = vsel %vm870, %v1100, %v1955
    %v2354 = vsel %vm870, %v1101, %v1957
    %v2358 = vsel %vm870, %v1102, %v1959
    %v2362 = vsel %vm870, %v1103, %v1961
    %v2366 = vsel %vm870, %v1104, %v1963
    %v2370 = vsel %vm870, %v1105, %v1965
    %v2374 = vsel %vm870, %v1106, %v1967
    %v2378 = vsel %vm870, %v1107, %v1969
    %v2382 = vsel %vm870, %v1108, %v1971
    %v2386 = vsel %vm870, %v1109, %v1973
    %v2390 = vsel %vm870, %v1110, %v1975
    %v2394 = vsel %vm870, %v1271, %v2009
    %v2398 = vsel %vm870, %v1272, %v2011
    %v2402 = vsel %vm870, %v1273, %v2013
    %v2406 = vsel %vm870, %v1274, %v2015
    %v2410 = vsel %vm870, %v1275, %v2017
    %v2414 = vsel %vm870, %v1276, %v2019
    %v2418 = vsel %vm870, %v1277, %v2021
    %v2422 = vsel %vm870, %v1278, %v2023
    %v2426 = vsel %vm870, %v1279, %v2025
    %v2430 = vsel %vm870, %v1280, %v2027
    %v2434 = vsel %vm870, %v1281, %v2029
    %v2438 = vsel %vm870, %v1282, %v2031
    %v2442 = vsel %vm870, %v1283, %v2033
    %v2446 = vsel %vm870, %v1284, %v2035
    %v2450 = vsel %vm870, %v1285, %v2037
    %v2454 = vsel %vm870, %v1286, %v2039
    %v2458 = vsel %vm870, %v1287, %v2041
    %v2462 = vsel %vm870, %v1288, %v2043
    %v2466 = vsel %vm870, %v1289, %v2045
    %v2470 = vsel %vm870, %v1290, %v2047
    %v2474 = vsel %vm870, %v1291, %v2049
    %v2478 = vsel %vm870, %v1292, %v2051
    %v2482 = vsel %vm870, %v1293, %v2053
    %v2486 = vsel %vm870, %v1294, %v2055
    %v2490 = vsel %vm870, %v1295, %v2057
    %v2494 = vsel %vm870, %v1296, %v2059
    %v2498 = vsel %vm870, %v1297, %v2061
    %v2502 = vsel %vm870, %v1298, %v2063
    %v2506 = vsel %vm870, %v1299, %v2065
    %v2510 = vsel %vm870, %v1300, %v2067
    %v2514 = vsel %vm870, %v1301, %v2069
    %v2518 = vsel %vm870, %v1302, %v2071
    %v2522 = vsel %vm870, %v1463, %v2105
    %v2526 = vsel %vm870, %v1464, %v2107
    %v2530 = vsel %vm870, %v1465, %v2109
    %v2534 = vsel %vm870, %v1466, %v2111
    %v2538 = vsel %vm870, %v1467, %v2113
    %v2542 = vsel %vm870, %v1468, %v2115
    %v2546 = vsel %vm870, %v1469, %v2117
    %v2550 = vsel %vm870, %v1470, %v2119
    %v2554 = vsel %vm870, %v1471, %v2121
    %v2558 = vsel %vm870, %v1472, %v2123
    %v2562 = vsel %vm870, %v1473, %v2125
    %v2566 = vsel %vm870, %v1474, %v2127
    %v2570 = vsel %vm870, %v1475, %v2129
    %v2574 = vsel %vm870, %v1476, %v2131
    %v2578 = vsel %vm870, %v1477, %v2133
    %v2582 = vsel %vm870, %v1478, %v2135
    %v2586 = vsel %vm870, %v1479, %v2137
    %v2590 = vsel %vm870, %v1480, %v2139
    %v2594 = vsel %vm870, %v1481, %v2141
    %v2598 = vsel %vm870, %v1482, %v2143
    %v2602 = vsel %vm870, %v1483, %v2145
    %v2606 = vsel %vm870, %v1484, %v2147
    %v2610 = vsel %vm870, %v1485, %v2149
    %v2614 = vsel %vm870, %v1486, %v2151
    %v2618 = vsel %vm870, %v1487, %v2153
    %v2622 = vsel %vm870, %v1488, %v2155
    %v2626 = vsel %vm870, %v1489, %v2157
    %v2630 = vsel %vm870, %v1490, %v2159
    %v2634 = vsel %vm870, %v1491, %v2161
    %v2638 = vsel %vm870, %v1492, %v2163
    %v2642 = vsel %vm870, %v1493, %v2165
    %v2646 = vsel %vm870, %v1494, %v2167
    %v2650 = vsel %vm870, %v1656, %v2201
    %v2654 = vsel %vm870, %v1657, %v2203
    %v2658 = vsel %vm870, %v1658, %v2205
    %v2662 = vsel %vm870, %v1659, %v2207
    %v2666 = vsel %vm870, %v1660, %v2209
    %v2670 = vsel %vm870, %v1661, %v2211
    %v2674 = vsel %vm870, %v1662, %v2213
    %v2678 = vsel %vm870, %v1663, %v2215
    %v2682 = vsel %vm870, %v1664, %v2217
    %v2686 = vsel %vm870, %v1665, %v2219
    %v2690 = vsel %vm870, %v1666, %v2221
    %v2694 = vsel %vm870, %v1667, %v2223
    %v2698 = vsel %vm870, %v1668, %v2225
    %v2702 = vsel %vm870, %v1669, %v2227
    %v2706 = vsel %vm870, %v1670, %v2229
    %v2710 = vsel %vm870, %v1671, %v2231
    %v2714 = vsel %vm870, %v1672, %v2233
    %v2718 = vsel %vm870, %v1673, %v2235
    %v2722 = vsel %vm870, %v1674, %v2237
    %v2726 = vsel %vm870, %v1675, %v2239
    %v2730 = vsel %vm870, %v1676, %v2241
    %v2734 = vsel %vm870, %v1677, %v2243
    %v2738 = vsel %vm870, %v1678, %v2245
    %v2742 = vsel %vm870, %v1679, %v2247
    %v2746 = vsel %vm870, %v1680, %v2249
    %v2750 = vsel %vm870, %v1681, %v2251
    %v2754 = vsel %vm870, %v1682, %v2253
    %v2758 = vsel %vm870, %v1683, %v2255
    %v2762 = vsel %vm870, %v1684, %v2257
    %v2766 = vsel %vm870, %v1685, %v2259
    %v2770 = vsel %vm870, %v1686, %v2261
    %v2774 = vsel %vm870, %v1687, %v2263
    %v2776 = vld [vmem:[%s3] sm:$0xf]
    %v2777 = vld [vmem:[%s3 + $0x4] sm:$0xf]
    %v2778 = vld [vmem:[%s3 + $0x8] sm:$0xf]
    %v2779 = vld [vmem:[%s3 + $0xc] sm:$0xf]
    %v2780 = vld [vmem:[%s3 + $0x10] sm:$0xf]
    %v2781 = vld [vmem:[%s3 + $0x14] sm:$0xf]
    %v2782 = vld [vmem:[%s3 + $0x18] sm:$0xf]
    %v2783 = vld [vmem:[%s3 + $0x1c] sm:$0xf]
    %v2784 = vld [vmem:[%s3 + $0x20] sm:$0xf]
    %v2785 = vld [vmem:[%s3 + $0x24] sm:$0xf]
    %v2786 = vld [vmem:[%s3 + $0x28] sm:$0xf]
    %v2787 = vld [vmem:[%s3 + $0x2c] sm:$0xf]
    %v2788 = vld [vmem:[%s3 + $0x30] sm:$0xf]
    %v2789 = vld [vmem:[%s3 + $0x34] sm:$0xf]
    %v2790 = vld [vmem:[%s3 + $0x38] sm:$0xf]
    %v2791 = vld [vmem:[%s3 + $0x3c] sm:$0xf]
    %v2792 = vld [vmem:[%s3 + $0x40] sm:$0xf]
    %v2793 = vld [vmem:[%s3 + $0x44] sm:$0xf]
    %v2794 = vld [vmem:[%s3 + $0x48] sm:$0xf]
    %v2795 = vld [vmem:[%s3 + $0x4c] sm:$0xf]
    %v2796 = vld [vmem:[%s3 + $0x50] sm:$0xf]
    %v2797 = vld [vmem:[%s3 + $0x54] sm:$0xf]
    %v2798 = vld [vmem:[%s3 + $0x58] sm:$0xf]
    %v2799 = vld [vmem:[%s3 + $0x5c] sm:$0xf]
    %v2800 = vld [vmem:[%s3 + $0x60] sm:$0xf]
    %v2801 = vld [vmem:[%s3 + $0x64] sm:$0xf]
    %v2802 = vld [vmem:[%s3 + $0x68] sm:$0xf]
    %v2803 = vld [vmem:[%s3 + $0x6c] sm:$0xf]
    %v2804 = vld [vmem:[%s3 + $0x70] sm:$0xf]
    %v2805 = vld [vmem:[%s3 + $0x74] sm:$0xf]
    %v2806 = vld [vmem:[%s3 + $0x78] sm:$0xf]
    %v2807 = vld [vmem:[%s3 + $0x7c] sm:$0xf]
    %v2808 = vld [vmem:[%s3 + $0x80] sm:$0xf]
    %v2809 = vld [vmem:[%s3 + $0x84] sm:$0xf]
    %v2810 = vld [vmem:[%s3 + $0x88] sm:$0xf]
    %v2811 = vld [vmem:[%s3 + $0x8c] sm:$0xf]
    %v2812 = vld [vmem:[%s3 + $0x90] sm:$0xf]
    %v2813 = vld [vmem:[%s3 + $0x94] sm:$0xf]
    %v2814 = vld [vmem:[%s3 + $0x98] sm:$0xf]
    %v2815 = vld [vmem:[%s3 + $0x9c] sm:$0xf]
    %v2816 = vld [vmem:[%s3 + $0xa0] sm:$0xf]
    %v2817 = vld [vmem:[%s3 + $0xa4] sm:$0xf]
    %v2818 = vld [vmem:[%s3 + $0xa8] sm:$0xf]
    %v2819 = vld [vmem:[%s3 + $0xac] sm:$0xf]
    %v2820 = vld [vmem:[%s3 + $0xb0] sm:$0xf]
    %v2821 = vld [vmem:[%s3 + $0xb4] sm:$0xf]
    %v2822 = vld [vmem:[%s3 + $0xb8] sm:$0xf]
    %v2823 = vld [vmem:[%s3 + $0xbc] sm:$0xf]
    %v2824 = vld [vmem:[%s3 + $0xc0] sm:$0xf]
    %v2825 = vld [vmem:[%s3 + $0xc4] sm:$0xf]
    %v2826 = vld [vmem:[%s3 + $0xc8] sm:$0xf]
    %v2827 = vld [vmem:[%s3 + $0xcc] sm:$0xf]
    %v2828 = vld [vmem:[%s3 + $0xd0] sm:$0xf]
    %v2829 = vld [vmem:[%s3 + $0xd4] sm:$0xf]
    %v2830 = vld [vmem:[%s3 + $0xd8] sm:$0xf]
    %v2831 = vld [vmem:[%s3 + $0xdc] sm:$0xf]
    %v2832 = vld [vmem:[%s3 + $0xe0] sm:$0xf]
    %v2833 = vld [vmem:[%s3 + $0xe4] sm:$0xf]
    %v2834 = vld [vmem:[%s3 + $0xe8] sm:$0xf]
    %v2835 = vld [vmem:[%s3 + $0xec] sm:$0xf]
    %v2836 = vld [vmem:[%s3 + $0xf0] sm:$0xf]
    %v2837 = vld [vmem:[%s3 + $0xf4] sm:$0xf]
    %v2838 = vld [vmem:[%s3 + $0xf8] sm:$0xf]
    %v2839 = vld [vmem:[%s3 + $0xfc] sm:$0xf]
    %v2840 = vld [vmem:[%s3 + $0x100] sm:$0xf]
    %v2841 = vld [vmem:[%s3 + $0x104] sm:$0xf]
    %v2842 = vld [vmem:[%s3 + $0x108] sm:$0xf]
    %v2843 = vld [vmem:[%s3 + $0x10c] sm:$0xf]
    %v2844 = vld [vmem:[%s3 + $0x110] sm:$0xf]
    %v2845 = vld [vmem:[%s3 + $0x114] sm:$0xf]
    %v2846 = vld [vmem:[%s3 + $0x118] sm:$0xf]
    %v2847 = vld [vmem:[%s3 + $0x11c] sm:$0xf]
    %v2920 = vunpack.c.l.b16 %v2776
    %v2921 = vunpack.c.l.b16 %v2777
    %v2922 = vunpack.c.l.b16 %v2778
    %v2923 = vunpack.c.l.b16 %v2779
    %v2924 = vunpack.c.l.b16 %v2780
    %v2925 = vunpack.c.l.b16 %v2781
    %v2926 = vunpack.c.l.b16 %v2782
    %v2927 = vunpack.c.l.b16 %v2783
    %v2928 = vunpack.c.l.b16 %v2784
    %v2929 = vunpack.c.l.b16 %v2785
    %v2930 = vunpack.c.l.b16 %v2786
    %v2931 = vunpack.c.l.b16 %v2787
    %v2932 = vunpack.c.l.b16 %v2788
    %v2933 = vunpack.c.l.b16 %v2789
    %v2934 = vunpack.c.l.b16 %v2790
    %v2935 = vunpack.c.l.b16 %v2791
    %v2936 = vunpack.c.l.b16 %v2792
    %v2937 = vunpack.c.l.b16 %v2793
    %v2938 = vunpack.c.l.b16 %v2794
    %v2939 = vunpack.c.l.b16 %v2795
    %v2940 = vunpack.c.l.b16 %v2796
    %v2941 = vunpack.c.l.b16 %v2797
    %v2942 = vunpack.c.l.b16 %v2798
    %v2943 = vunpack.c.l.b16 %v2799
    %v2944 = vunpack.c.l.b16 %v2800
    %v2945 = vunpack.c.l.b16 %v2801
    %v2946 = vunpack.c.l.b16 %v2802
    %v2947 = vunpack.c.l.b16 %v2803
    %v2948 = vunpack.c.l.b16 %v2804
    %v2949 = vunpack.c.l.b16 %v2805
    %v2950 = vunpack.c.l.b16 %v2806
    %v2951 = vunpack.c.l.b16 %v2807
    %v2952 = vunpack.c.l.b16 %v2808
    %v2953 = vunpack.c.l.b16 %v2809
    %v2954 = vunpack.c.l.b16 %v2810
    %v2955 = vunpack.c.l.b16 %v2811
    %v2956 = vunpack.c.l.b16 %v2812
    %v2957 = vunpack.c.l.b16 %v2813
    %v2958 = vunpack.c.l.b16 %v2814
    %v2959 = vunpack.c.l.b16 %v2815
    %v2960 = vunpack.c.l.b16 %v2816
    %v2961 = vunpack.c.l.b16 %v2817
    %v2962 = vunpack.c.l.b16 %v2818
    %v2963 = vunpack.c.l.b16 %v2819
    %v2964 = vunpack.c.l.b16 %v2820
    %v2965 = vunpack.c.l.b16 %v2821
    %v2966 = vunpack.c.l.b16 %v2822
    %v2967 = vunpack.c.l.b16 %v2823
    %v2968 = vunpack.c.l.b16 %v2824
    %v2969 = vunpack.c.l.b16 %v2825
    %v2970 = vunpack.c.l.b16 %v2826
    %v2971 = vunpack.c.l.b16 %v2827
    %v2972 = vunpack.c.l.b16 %v2828
    %v2973 = vunpack.c.l.b16 %v2829
    %v2974 = vunpack.c.l.b16 %v2830
    %v2975 = vunpack.c.l.b16 %v2831
    %v2976 = vunpack.c.l.b16 %v2832
    %v2977 = vunpack.c.l.b16 %v2833
    %v2978 = vunpack.c.l.b16 %v2834
    %v2979 = vunpack.c.l.b16 %v2835
    %v2980 = vunpack.c.l.b16 %v2836
    %v2981 = vunpack.c.l.b16 %v2837
    %v2982 = vunpack.c.l.b16 %v2838
    %v2983 = vunpack.c.l.b16 %v2839
    %v2984 = vunpack.c.l.b16 %v2840
    %v2985 = vunpack.c.l.b16 %v2841
    %v2986 = vunpack.c.l.b16 %v2842
    %v2987 = vunpack.c.l.b16 %v2843
    %v2988 = vunpack.c.l.b16 %v2844
    %v2989 = vunpack.c.l.b16 %v2845
    %v2990 = vunpack.c.l.b16 %v2846
    %v2991 = vunpack.c.l.b16 %v2847
    %v2992 = vpack.c.b16 %v2921, %v2920
    %v2993 = vpack.c.b16 %v2923, %v2922
    %v2994 = vpack.c.b16 %v2925, %v2924
    %v2995 = vpack.c.b16 %v2927, %v2926
    %v2996 = vpack.c.b16 %v2929, %v2928
    %v2997 = vpack.c.b16 %v2931, %v2930
    %v2998 = vpack.c.b16 %v2933, %v2932
    %v2999 = vpack.c.b16 %v2935, %v2934
    %v3000 = vpack.c.b16 %v2937, %v2936
    %v3001 = vpack.c.b16 %v2939, %v2938
    %v3002 = vpack.c.b16 %v2941, %v2940
    %v3003 = vpack.c.b16 %v2943, %v2942
    %v3004 = vpack.c.b16 %v2945, %v2944
    %v3005 = vpack.c.b16 %v2947, %v2946
    %v3006 = vpack.c.b16 %v2949, %v2948
    %v3007 = vpack.c.b16 %v2951, %v2950
    %v3008 = vpack.c.b16 %v2953, %v2952
    %v3009 = vpack.c.b16 %v2955, %v2954
    %v3010 = vpack.c.b16 %v2957, %v2956
    %v3011 = vpack.c.b16 %v2959, %v2958
    %v3012 = vpack.c.b16 %v2961, %v2960
    %v3013 = vpack.c.b16 %v2963, %v2962
    %v3014 = vpack.c.b16 %v2965, %v2964
    %v3015 = vpack.c.b16 %v2967, %v2966
    %v3016 = vpack.c.b16 %v2969, %v2968
    %v3017 = vpack.c.b16 %v2971, %v2970
    %v3018 = vpack.c.b16 %v2973, %v2972
    %v3019 = vpack.c.b16 %v2975, %v2974
    %v3020 = vpack.c.b16 %v2977, %v2976
    %v3021 = vpack.c.b16 %v2979, %v2978
    %v3022 = vpack.c.b16 %v2981, %v2980
    %v3023 = vpack.c.b16 %v2983, %v2982
    %v3024 = vpack.c.b16 %v2985, %v2984
    %v3025 = vpack.c.b16 %v2987, %v2986
    %v3026 = vpack.c.b16 %v2989, %v2988
    %v3027 = vpack.c.b16 %v2991, %v2990
    %v3065 = vsel %vm870, %v1848, 0
    %v3068 = vsel %vm870, %v1849, 0
    %v3071 = vsel %vm870, %v1850, 0
    %v3074 = vsel %vm870, %v1851, 0
    %v3077 = vsel %vm870, %v1852, 0
    %v3080 = vsel %vm870, %v1853, 0
    %v3083 = vsel %vm870, %v1854, 0
    %v3086 = vsel %vm870, %v1855, 0
    %v3089 = vsel %vm870, %v1856, 0
    %v3092 = vsel %vm870, %v1857, 0
    %v3095 = vsel %vm870, %v1858, 0
    %v3098 = vsel %vm870, %v1859, 0
    %v3101 = vsel %vm870, %v1860, 0
    %v3104 = vsel %vm870, %v1861, 0
    %v3107 = vsel %vm870, %v1862, 0
    %v3110 = vsel %vm870, %v1863, 0
    %v3113 = vsel %vm870, %v1864, 0
    %v3116 = vsel %vm870, %v1865, 0
    %v3119 = vsel %vm870, %v1866, 0
    %v3122 = vsel %vm870, %v1867, 0
    %v3125 = vsel %vm870, %v1868, 0
    %v3128 = vsel %vm870, %v1869, 0
    %v3131 = vsel %vm870, %v1870, 0
    %v3134 = vsel %vm870, %v1871, 0
    %v3137 = vsel %vm870, %v1872, 0
    %v3140 = vsel %vm870, %v1873, 0
    %v3143 = vsel %vm870, %v1874, 0
    %v3146 = vsel %vm870, %v1875, 0
    %v3149 = vsel %vm870, %v1876, 0
    %v3152 = vsel %vm870, %v1877, 0
    %v3155 = vsel %vm870, %v1878, 0
    %v3158 = vsel %vm870, %v1879, 0
    %3160 = vmatprep.subr.bf16.mxu0 0
    %3161 = vmatpush1.bf16.msra.mxu0 %v2992
    %3162 = vmatprep.subr.bf16.mxu0 0
    %3163 = vmatpush1.bf16.msra.mxu0 %v2993
    %3164 = vmatprep.subr.bf16.mxu0 0
    %3165 = vmatpush1.bf16.msra.mxu0 %v2994
    %3166 = vmatprep.subr.bf16.mxu0 0
    %3167 = vmatpush1.bf16.msra.mxu0 %v2995
    %3168 = vmatprep.subr.bf16.mxu0 0
    %3169 = vmatpush1.bf16.msra.mxu0 %v2996
    %3170 = vmatprep.subr.bf16.mxu0 0
    %3171 = vmatpush1.bf16.msra.mxu0 %v2997
    %3172 = vmatprep.subr.bf16.mxu0 0
    %3173 = vmatpush1.bf16.msra.mxu0 %v2998
    %3174 = vmatprep.subr.bf16.mxu0 0
    %3175 = vmatpush1.bf16.msra.mxu0 %v2999
    %3176 = vmatprep.subr.bf16.mxu0 0
    %3177 = vmatpush1.bf16.msra.mxu0 %v3000
    %3178 = vmatprep.subr.bf16.mxu0 0
    %3179 = vmatpush1.bf16.msra.mxu0 %v3001
    %3180 = vmatprep.subr.bf16.mxu0 0
    %3181 = vmatpush1.bf16.msra.mxu0 %v3002
    %3182 = vmatprep.subr.bf16.mxu0 0
    %3183 = vmatpush1.bf16.msra.mxu0 %v3003
    %3184 = vmatprep.subr.bf16.mxu0 0
    %3185 = vmatpush1.bf16.msra.mxu0 %v3004
    %3186 = vmatprep.subr.bf16.mxu0 0
    %3187 = vmatpush1.bf16.msra.mxu0 %v3005
    %3188 = vmatprep.subr.bf16.mxu0 0
    %3189 = vmatpush1.bf16.msra.mxu0 %v3006
    %3190 = vmatprep.subr.bf16.mxu0 0
    %3191 = vmatpush1.bf16.msra.mxu0 %v3007
    %3192 = vmatprep.mubr.bf16.mxu0 %v2394
    %3193 = vmatmul.mubr.bf16.gmra.mrb[0].mxu0 %v2266
    %v3194 = vpop.f32.mrb[0].mxu0
    %v3195 = vadd.f32 0.0, %v3194
    %v3196 = vpop.f32.mrb[0].mxu0
    %v3197 = vpop.f32.mrb[0].mxu0
    %v3198 = vadd.f32 0.0, %v3197
    %v3199 = vpop.f32.mrb[0].mxu0
    %3200 = vmatprep.mubr.bf16.mxu0 %v2398
    %3201 = vmatmul.mubr.bf16.gmra.mrb[0].mxu0 %v2270
    %v3202 = vpop.f32.mrb[0].mxu0
    %v3203 = vadd.f32 0.0, %v3202
    %v3204 = vpop.f32.mrb[0].mxu0
    %v3205 = vpop.f32.mrb[0].mxu0
    %v3206 = vadd.f32 0.0, %v3205
    %v3207 = vpop.f32.mrb[0].mxu0
    %3208 = vmatprep.mubr.bf16.mxu0 %v2402
    %3209 = vmatmul.mubr.bf16.gmra.mrb[0].mxu0 %v2274
    %v3210 = vpop.f32.mrb[0].mxu0
    %v3211 = vadd.f32 0.0, %v3210
    %v3212 = vpop.f32.mrb[0].mxu0
    %v3213 = vpop.f32.mrb[0].mxu0
    %v3214 = vadd.f32 0.0, %v3213
    %v3215 = vpop.f32.mrb[0].mxu0
    %3216 = vmatprep.mubr.bf16.mxu0 %v2406
    %3217 = vmatmul.mubr.bf16.gmra.mrb[0].mxu0 %v2278
    %v3218 = vpop.f32.mrb[0].mxu0
    %v3219 = vadd.f32 0.0, %v3218
    %v3220 = vpop.f32.mrb[0].mxu0
    %v3221 = vpop.f32.mrb[0].mxu0
    %v3222 = vadd.f32 0.0, %v3221
    %v3223 = vpop.f32.mrb[0].mxu0
    %3224 = vmatprep.mubr.bf16.mxu0 %v2410
    %3225 = vmatmul.mubr.bf16.gmra.mrb[0].mxu0 %v2282
    %v3226 = vpop.f32.mrb[0].mxu0
    %v3227 = vadd.f32 0.0, %v3226
    %v3228 = vpop.f32.mrb[0].mxu0
    %v3229 = vpop.f32.mrb[0].mxu0
    %v3230 = vadd.f32 0.0, %v3229
    %v3231 = vpop.f32.mrb[0].mxu0
    %3232 = vmatprep.mubr.bf16.mxu0 %v2414
    %3233 = vmatmul.mubr.bf16.gmra.mrb[0].mxu0 %v2286
    %v3234 = vpop.f32.mrb[0].mxu0
    %v3235 = vadd.f32 0.0, %v3234
    %v3236 = vpop.f32.mrb[0].mxu0
    %v3237 = vpop.f32.mrb[0].mxu0
    %v3238 = vadd.f32 0.0, %v3237
    %v3239 = vpop.f32.mrb[0].mxu0
    %3240 = vmatprep.mubr.bf16.mxu0 %v2418
    %3241 = vmatmul.mubr.bf16.gmra.mrb[0].mxu0 %v2290
    %v3242 = vpop.f32.mrb[0].mxu0
    %v3243 = vadd.f32 0.0, %v3242
    %v3244 = vpop.f32.mrb[0].mxu0
    %v3245 = vpop.f32.mrb[0].mxu0
    %v3246 = vadd.f32 0.0, %v3245
    %v3247 = vpop.f32.mrb[0].mxu0
    %3248 = vmatprep.mubr.bf16.mxu0 %v2422
    %3249 = vmatmul.mubr.bf16.gmra.mrb[0].mxu0 %v2294
    %v3250 = vpop.f32.mrb[0].mxu0
    %v3251 = vadd.f32 0.0, %v3250
    %v3252 = vpop.f32.mrb[0].mxu0
    %v3253 = vpop.f32.mrb[0].mxu0
    %v3254 = vadd.f32 0.0, %v3253
    %v3255 = vpop.f32.mrb[0].mxu0
    %3256 = vmatprep.mubr.bf16.mxu0 %v2426
    %3257 = vmatmul.mubr.bf16.gmra.mrb[0].mxu0 %v2298
    %v3258 = vpop.f32.mrb[0].mxu0
    %v3259 = vadd.f32 0.0, %v3258
    %v3260 = vpop.f32.mrb[0].mxu0
    %v3261 = vpop.f32.mrb[0].mxu0
    %v3262 = vadd.f32 0.0, %v3261
    %v3263 = vpop.f32.mrb[0].mxu0
    %3264 = vmatprep.mubr.bf16.mxu0 %v2430
    %3265 = vmatmul.mubr.bf16.gmra.mrb[0].mxu0 %v2302
    %v3266 = vpop.f32.mrb[0].mxu0
    %v3267 = vadd.f32 0.0, %v3266
    %v3268 = vpop.f32.mrb[0].mxu0
    %v3269 = vpop.f32.mrb[0].mxu0
    %v3270 = vadd.f32 0.0, %v3269
    %v3271 = vpop.f32.mrb[0].mxu0
    %3272 = vmatprep.mubr.bf16.mxu0 %v2434
    %3273 = vmatmul.mubr.bf16.gmra.mrb[0].mxu0 %v2306
    %v3274 = vpop.f32.mrb[0].mxu0
    %v3275 = vadd.f32 0.0, %v3274
    %v3276 = vpop.f32.mrb[0].mxu0
    %v3277 = vpop.f32.mrb[0].mxu0
    %v3278 = vadd.f32 0.0, %v3277
    %v3279 = vpop.f32.mrb[0].mxu0
    %3280 = vmatprep.mubr.bf16.mxu0 %v2438
    %3281 = vmatmul.mubr.bf16.gmra.mrb[0].mxu0 %v2310
    %v3282 = vpop.f32.mrb[0].mxu0
    %v3283 = vadd.f32 0.0, %v3282
    %v3284 = vpop.f32.mrb[0].mxu0
    %v3285 = vpop.f32.mrb[0].mxu0
    %v3286 = vadd.f32 0.0, %v3285
    %v3287 = vpop.f32.mrb[0].mxu0
    %3288 = vmatprep.mubr.bf16.mxu0 %v2442
    %3289 = vmatmul.mubr.bf16.gmra.mrb[0].mxu0 %v2314
    %v3290 = vpop.f32.mrb[0].mxu0
    %v3291 = vadd.f32 0.0, %v3290
    %v3292 = vpop.f32.mrb[0].mxu0
    %v3293 = vpop.f32.mrb[0].mxu0
    %v3294 = vadd.f32 0.0, %v3293
    %v3295 = vpop.f32.mrb[0].mxu0
    %3296 = vmatprep.mubr.bf16.mxu0 %v2446
    %3297 = vmatmul.mubr.bf16.gmra.mrb[0].mxu0 %v2318
    %v3298 = vpop.f32.mrb[0].mxu0
    %v3299 = vadd.f32 0.0, %v3298
    %v3300 = vpop.f32.mrb[0].mxu0
    %v3301 = vpop.f32.mrb[0].mxu0
    %v3302 = vadd.f32 0.0, %v3301
    %v3303 = vpop.f32.mrb[0].mxu0
    %3304 = vmatprep.mubr.bf16.mxu0 %v2450
    %3305 = vmatmul.mubr.bf16.gmra.mrb[0].mxu0 %v2322
    %v3306 = vpop.f32.mrb[0].mxu0
    %v3307 = vadd.f32 0.0, %v3306
    %v3308 = vpop.f32.mrb[0].mxu0
    %v3309 = vpop.f32.mrb[0].mxu0
    %v3310 = vadd.f32 0.0, %v3309
    %v3311 = vpop.f32.mrb[0].mxu0
    %3312 = vmatprep.mubr.bf16.mxu0 %v2454
    %3313 = vmatmul.mubr.bf16.gmra.mrb[0].mxu0 %v2326
    %v3314 = vpop.f32.mrb[0].mxu0
    %v3315 = vadd.f32 0.0, %v3314
    %v3316 = vpop.f32.mrb[0].mxu0
    %v3317 = vpop.f32.mrb[0].mxu0
    %v3318 = vadd.f32 0.0, %v3317
    %v3319 = vpop.f32.mrb[0].mxu0
    %3320 = vmatprep.mubr.bf16.mxu0 %v2458
    %3321 = vmatmul.mubr.bf16.gmra.mrb[0].mxu0 %v2330
    %v3322 = vpop.f32.mrb[0].mxu0
    %v3323 = vadd.f32 0.0, %v3322
    %v3324 = vpop.f32.mrb[0].mxu0
    %v3325 = vpop.f32.mrb[0].mxu0
    %v3326 = vadd.f32 0.0, %v3325
    %v3327 = vpop.f32.mrb[0].mxu0
    %3328 = vmatprep.mubr.bf16.mxu0 %v2462
    %3329 = vmatmul.mubr.bf16.gmra.mrb[0].mxu0 %v2334
    %v3330 = vpop.f32.mrb[0].mxu0
    %v3331 = vadd.f32 0.0, %v3330
    %v3332 = vpop.f32.mrb[0].mxu0
    %v3333 = vpop.f32.mrb[0].mxu0
    %v3334 = vadd.f32 0.0, %v3333
    %v3335 = vpop.f32.mrb[0].mxu0
    %3336 = vmatprep.mubr.bf16.mxu0 %v2466
    %3337 = vmatmul.mubr.bf16.gmra.mrb[0].mxu0 %v2338
    %v3338 = vpop.f32.mrb[0].mxu0
    %v3339 = vadd.f32 0.0, %v3338
    %v3340 = vpop.f32.mrb[0].mxu0
    %v3341 = vpop.f32.mrb[0].mxu0
    %v3342 = vadd.f32 0.0, %v3341
    %v3343 = vpop.f32.mrb[0].mxu0
    %3344 = vmatprep.mubr.bf16.mxu0 %v2470
    %3345 = vmatmul.mubr.bf16.gmra.mrb[0].mxu0 %v2342
    %v3346 = vpop.f32.mrb[0].mxu0
    %v3347 = vadd.f32 0.0, %v3346
    %v3348 = vpop.f32.mrb[0].mxu0
    %v3349 = vpop.f32.mrb[0].mxu0
    %v3350 = vadd.f32 0.0, %v3349
    %v3351 = vpop.f32.mrb[0].mxu0
    %3352 = vmatprep.mubr.bf16.mxu0 %v2474
    %3353 = vmatmul.mubr.bf16.gmra.mrb[0].mxu0 %v2346
    %v3354 = vpop.f32.mrb[0].mxu0
    %v3355 = vadd.f32 0.0, %v3354
    %v3356 = vpop.f32.mrb[0].mxu0
    %v3357 = vpop.f32.mrb[0].mxu0
    %v3358 = vadd.f32 0.0, %v3357
    %v3359 = vpop.f32.mrb[0].mxu0
    %3360 = vmatprep.mubr.bf16.mxu0 %v2478
    %3361 = vmatmul.mubr.bf16.gmra.mrb[0].mxu0 %v2350
    %v3362 = vpop.f32.mrb[0].mxu0
    %v3363 = vadd.f32 0.0, %v3362
    %v3364 = vpop.f32.mrb[0].mxu0
    %v3365 = vpop.f32.mrb[0].mxu0
    %v3366 = vadd.f32 0.0, %v3365
    %v3367 = vpop.f32.mrb[0].mxu0
    %3368 = vmatprep.mubr.bf16.mxu0 %v2482
    %3369 = vmatmul.mubr.bf16.gmra.mrb[0].mxu0 %v2354
    %v3370 = vpop.f32.mrb[0].mxu0
    %v3371 = vadd.f32 0.0, %v3370
    %v3372 = vpop.f32.mrb[0].mxu0
    %v3373 = vpop.f32.mrb[0].mxu0
    %v3374 = vadd.f32 0.0, %v3373
    %v3375 = vpop.f32.mrb[0].mxu0
    %3376 = vmatprep.mubr.bf16.mxu0 %v2486
    %3377 = vmatmul.mubr.bf16.gmra.mrb[0].mxu0 %v2358
    %v3378 = vpop.f32.mrb[0].mxu0
    %v3379 = vadd.f32 0.0, %v3378
    %v3380 = vpop.f32.mrb[0].mxu0
    %v3381 = vpop.f32.mrb[0].mxu0
    %v3382 = vadd.f32 0.0, %v3381
    %v3383 = vpop.f32.mrb[0].mxu0
    %3384 = vmatprep.mubr.bf16.mxu0 %v2490
    %3385 = vmatmul.mubr.bf16.gmra.mrb[0].mxu0 %v2362
    %v3386 = vpop.f32.mrb[0].mxu0
    %v3387 = vadd.f32 0.0, %v3386
    %v3388 = vpop.f32.mrb[0].mxu0
    %v3389 = vpop.f32.mrb[0].mxu0
    %v3390 = vadd.f32 0.0, %v3389
    %v3391 = vpop.f32.mrb[0].mxu0
    %3392 = vmatprep.mubr.bf16.mxu0 %v2494
    %3393 = vmatmul.mubr.bf16.gmra.mrb[0].mxu0 %v2366
    %v3394 = vpop.f32.mrb[0].mxu0
    %v3395 = vadd.f32 0.0, %v3394
    %v3396 = vpop.f32.mrb[0].mxu0
    %v3397 = vpop.f32.mrb[0].mxu0
    %v3398 = vadd.f32 0.0, %v3397
    %v3399 = vpop.f32.mrb[0].mxu0
    %3400 = vmatprep.mubr.bf16.mxu0 %v2498
    %3401 = vmatmul.mubr.bf16.gmra.mrb[0].mxu0 %v2370
    %v3402 = vpop.f32.mrb[0].mxu0
    %v3403 = vadd.f32 0.0, %v3402
    %v3404 = vpop.f32.mrb[0].mxu0
    %v3405 = vpop.f32.mrb[0].mxu0
    %v3406 = vadd.f32 0.0, %v3405
    %v3407 = vpop.f32.mrb[0].mxu0
    %3408 = vmatprep.mubr.bf16.mxu0 %v2502
    %3409 = vmatmul.mubr.bf16.gmra.mrb[0].mxu0 %v2374
    %v3410 = vpop.f32.mrb[0].mxu0
    %v3411 = vadd.f32 0.0, %v3410
    %v3412 = vpop.f32.mrb[0].mxu0
    %v3413 = vpop.f32.mrb[0].mxu0
    %v3414 = vadd.f32 0.0, %v3413
    %v3415 = vpop.f32.mrb[0].mxu0
    %3416 = vmatprep.mubr.bf16.mxu0 %v2506
    %3417 = vmatmul.mubr.bf16.gmra.mrb[0].mxu0 %v2378
    %v3418 = vpop.f32.mrb[0].mxu0
    %v3419 = vadd.f32 0.0, %v3418
    %v3420 = vpop.f32.mrb[0].mxu0
    %v3421 = vpop.f32.mrb[0].mxu0
    %v3422 = vadd.f32 0.0, %v3421
    %v3423 = vpop.f32.mrb[0].mxu0
    %3424 = vmatprep.mubr.bf16.mxu0 %v2510
    %3425 = vmatmul.mubr.bf16.gmra.mrb[0].mxu0 %v2382
    %v3426 = vpop.f32.mrb[0].mxu0
    %v3427 = vadd.f32 0.0, %v3426
    %v3428 = vpop.f32.mrb[0].mxu0
    %v3429 = vpop.f32.mrb[0].mxu0
    %v3430 = vadd.f32 0.0, %v3429
    %v3431 = vpop.f32.mrb[0].mxu0
    %3432 = vmatprep.mubr.bf16.mxu0 %v2514
    %3433 = vmatmul.mubr.bf16.gmra.mrb[0].mxu0 %v2386
    %v3434 = vpop.f32.mrb[0].mxu0
    %v3435 = vadd.f32 0.0, %v3434
    %v3436 = vpop.f32.mrb[0].mxu0
    %v3437 = vpop.f32.mrb[0].mxu0
    %v3438 = vadd.f32 0.0, %v3437
    %v3439 = vpop.f32.mrb[0].mxu0
    %3440 = vmatprep.mubr.bf16.mxu0 %v2518
    %3441 = vmatmul.mubr.bf16.gmra.mrb[0].mxu0 %v2390
    %v3442 = vpop.f32.mrb[0].mxu0
    %v3443 = vadd.f32 0.0, %v3442
    %v3444 = vpop.f32.mrb[0].mxu0
    %v3445 = vpop.f32.mrb[0].mxu0
    %v3446 = vadd.f32 0.0, %v3445
    %v3447 = vpop.f32.mrb[0].mxu0
    %3448 = vdwg.mxu0
    %3449 = vmatprep.subr.bf16.mxu0 0
    %3450 = vmatpush1.bf16.msra.mxu0 %v3008
    %3451 = vmatprep.subr.bf16.mxu0 0
    %3452 = vmatpush1.bf16.msra.mxu0 %v3009
    %3453 = vmatprep.subr.bf16.mxu0 0
    %3454 = vmatpush1.bf16.msra.mxu0 %v3010
    %3455 = vmatprep.subr.bf16.mxu0 0
    %3456 = vmatpush1.bf16.msra.mxu0 %v3011
    %3457 = vmatprep.subr.bf16.mxu0 0
    %3458 = vmatpush1.bf16.msra.mxu0 %v3012
    %3459 = vmatprep.subr.bf16.mxu0 0
    %3460 = vmatpush1.bf16.msra.mxu0 %v3013
    %3461 = vmatprep.subr.bf16.mxu0 0
    %3462 = vmatpush1.bf16.msra.mxu0 %v3014
    %3463 = vmatprep.subr.bf16.mxu0 0
    %3464 = vmatpush1.bf16.msra.mxu0 %v3015
    %3465 = vmatprep.subr.bf16.mxu0 0
    %3466 = vmatpush1.bf16.msra.mxu0 %v3016
    %3467 = vmatprep.subr.bf16.mxu0 0
    %3468 = vmatpush1.bf16.msra.mxu0 %v3017
    %3469 = vmatprep.subr.bf16.mxu0 0
    %3470 = vmatpush1.bf16.msra.mxu0 %v3018
    %3471 = vmatprep.subr.bf16.mxu0 0
    %3472 = vmatpush1.bf16.msra.mxu0 %v3019
    %3473 = vmatprep.subr.bf16.mxu0 0
    %3474 = vmatpush1.bf16.msra.mxu0 %v3020
    %3475 = vmatprep.subr.bf16.mxu0 0
    %3476 = vmatpush1.bf16.msra.mxu0 %v3021
    %3477 = vmatprep.subr.bf16.mxu0 0
    %3478 = vmatpush1.bf16.msra.mxu0 %v3022
    %3479 = vmatprep.subr.bf16.mxu0 0
    %3480 = vmatpush1.bf16.msra.mxu0 %v3023
    %3481 = vmatprep.mubr.bf16.mxu0 %v2650
    %3482 = vmatmul.mubr.bf16.gmra.mrb[0].mxu0 %v2522
    %v3483 = vpop.f32.mrb[0].mxu0
    %v3484 = vadd.f32 %v3195, %v3483
    %v3485 = vpop.f32.mrb[0].mxu0
    %v3486 = vpop.f32.mrb[0].mxu0
    %v3487 = vadd.f32 %v3198, %v3486
    %v3488 = vpop.f32.mrb[0].mxu0
    %3489 = vmatprep.mubr.bf16.mxu0 %v2654
    %3490 = vmatmul.mubr.bf16.gmra.mrb[0].mxu0 %v2526
    %v3491 = vpop.f32.mrb[0].mxu0
    %v3492 = vadd.f32 %v3203, %v3491
    %v3493 = vpop.f32.mrb[0].mxu0
    %v3494 = vpop.f32.mrb[0].mxu0
    %v3495 = vadd.f32 %v3206, %v3494
    %v3496 = vpop.f32.mrb[0].mxu0
    %3497 = vmatprep.mubr.bf16.mxu0 %v2658
    %3498 = vmatmul.mubr.bf16.gmra.mrb[0].mxu0 %v2530
    %v3499 = vpop.f32.mrb[0].mxu0
    %v3500 = vadd.f32 %v3211, %v3499
    %v3501 = vpop.f32.mrb[0].mxu0
    %v3502 = vpop.f32.mrb[0].mxu0
    %v3503 = vadd.f32 %v3214, %v3502
    %v3504 = vpop.f32.mrb[0].mxu0
    %3505 = vmatprep.mubr.bf16.mxu0 %v2662
    %3506 = vmatmul.mubr.bf16.gmra.mrb[0].mxu0 %v2534
    %v3507 = vpop.f32.mrb[0].mxu0
    %v3508 = vadd.f32 %v3219, %v3507
    %v3509 = vpop.f32.mrb[0].mxu0
    %v3510 = vpop.f32.mrb[0].mxu0
    %v3511 = vadd.f32 %v3222, %v3510
    %v3512 = vpop.f32.mrb[0].mxu0
    %3513 = vmatprep.mubr.bf16.mxu0 %v2666
    %3514 = vmatmul.mubr.bf16.gmra.mrb[0].mxu0 %v2538
    %v3515 = vpop.f32.mrb[0].mxu0
    %v3516 = vadd.f32 %v3227, %v3515
    %v3517 = vpop.f32.mrb[0].mxu0
    %v3518 = vpop.f32.mrb[0].mxu0
    %v3519 = vadd.f32 %v3230, %v3518
    %v3520 = vpop.f32.mrb[0].mxu0
    %3521 = vmatprep.mubr.bf16.mxu0 %v2670
    %3522 = vmatmul.mubr.bf16.gmra.mrb[0].mxu0 %v2542
    %v3523 = vpop.f32.mrb[0].mxu0
    %v3524 = vadd.f32 %v3235, %v3523
    %v3525 = vpop.f32.mrb[0].mxu0
    %v3526 = vpop.f32.mrb[0].mxu0
    %v3527 = vadd.f32 %v3238, %v3526
    %v3528 = vpop.f32.mrb[0].mxu0
    %3529 = vmatprep.mubr.bf16.mxu0 %v2674
    %3530 = vmatmul.mubr.bf16.gmra.mrb[0].mxu0 %v2546
    %v3531 = vpop.f32.mrb[0].mxu0
    %v3532 = vadd.f32 %v3243, %v3531
    %v3533 = vpop.f32.mrb[0].mxu0
    %v3534 = vpop.f32.mrb[0].mxu0
    %v3535 = vadd.f32 %v3246, %v3534
    %v3536 = vpop.f32.mrb[0].mxu0
    %3537 = vmatprep.mubr.bf16.mxu0 %v2678
    %3538 = vmatmul.mubr.bf16.gmra.mrb[0].mxu0 %v2550
    %v3539 = vpop.f32.mrb[0].mxu0
    %v3540 = vadd.f32 %v3251, %v3539
    %v3541 = vpop.f32.mrb[0].mxu0
    %v3542 = vpop.f32.mrb[0].mxu0
    %v3543 = vadd.f32 %v3254, %v3542
    %v3544 = vpop.f32.mrb[0].mxu0
    %3545 = vmatprep.mubr.bf16.mxu0 %v2682
    %3546 = vmatmul.mubr.bf16.gmra.mrb[0].mxu0 %v2554
    %v3547 = vpop.f32.mrb[0].mxu0
    %v3548 = vadd.f32 %v3259, %v3547
    %v3549 = vpop.f32.mrb[0].mxu0
    %v3550 = vpop.f32.mrb[0].mxu0
    %v3551 = vadd.f32 %v3262, %v3550
    %v3552 = vpop.f32.mrb[0].mxu0
    %3553 = vmatprep.mubr.bf16.mxu0 %v2686
    %3554 = vmatmul.mubr.bf16.gmra.mrb[0].mxu0 %v2558
    %v3555 = vpop.f32.mrb[0].mxu0
    %v3556 = vadd.f32 %v3267, %v3555
    %v3557 = vpop.f32.mrb[0].mxu0
    %v3558 = vpop.f32.mrb[0].mxu0
    %v3559 = vadd.f32 %v3270, %v3558
    %v3560 = vpop.f32.mrb[0].mxu0
    %3561 = vmatprep.mubr.bf16.mxu0 %v2690
    %3562 = vmatmul.mubr.bf16.gmra.mrb[0].mxu0 %v2562
    %v3563 = vpop.f32.mrb[0].mxu0
    %v3564 = vadd.f32 %v3275, %v3563
    %v3565 = vpop.f32.mrb[0].mxu0
    %v3566 = vpop.f32.mrb[0].mxu0
    %v3567 = vadd.f32 %v3278, %v3566
    %v3568 = vpop.f32.mrb[0].mxu0
    %3569 = vmatprep.mubr.bf16.mxu0 %v2694
    %3570 = vmatmul.mubr.bf16.gmra.mrb[0].mxu0 %v2566
    %v3571 = vpop.f32.mrb[0].mxu0
    %v3572 = vadd.f32 %v3283, %v3571
    %v3573 = vpop.f32.mrb[0].mxu0
    %v3574 = vpop.f32.mrb[0].mxu0
    %v3575 = vadd.f32 %v3286, %v3574
    %v3576 = vpop.f32.mrb[0].mxu0
    %3577 = vmatprep.mubr.bf16.mxu0 %v2698
    %3578 = vmatmul.mubr.bf16.gmra.mrb[0].mxu0 %v2570
    %v3579 = vpop.f32.mrb[0].mxu0
    %v3580 = vadd.f32 %v3291, %v3579
    %v3581 = vpop.f32.mrb[0].mxu0
    %v3582 = vpop.f32.mrb[0].mxu0
    %v3583 = vadd.f32 %v3294, %v3582
    %v3584 = vpop.f32.mrb[0].mxu0
    %3585 = vmatprep.mubr.bf16.mxu0 %v2702
    %3586 = vmatmul.mubr.bf16.gmra.mrb[0].mxu0 %v2574
    %v3587 = vpop.f32.mrb[0].mxu0
    %v3588 = vadd.f32 %v3299, %v3587
    %v3589 = vpop.f32.mrb[0].mxu0
    %v3590 = vpop.f32.mrb[0].mxu0
    %v3591 = vadd.f32 %v3302, %v3590
    %v3592 = vpop.f32.mrb[0].mxu0
    %3593 = vmatprep.mubr.bf16.mxu0 %v2706
    %3594 = vmatmul.mubr.bf16.gmra.mrb[0].mxu0 %v2578
    %v3595 = vpop.f32.mrb[0].mxu0
    %v3596 = vadd.f32 %v3307, %v3595
    %v3597 = vpop.f32.mrb[0].mxu0
    %v3598 = vpop.f32.mrb[0].mxu0
    %v3599 = vadd.f32 %v3310, %v3598
    %v3600 = vpop.f32.mrb[0].mxu0
    %3601 = vmatprep.mubr.bf16.mxu0 %v2710
    %3602 = vmatmul.mubr.bf16.gmra.mrb[0].mxu0 %v2582
    %v3603 = vpop.f32.mrb[0].mxu0
    %v3604 = vadd.f32 %v3315, %v3603
    %v3605 = vpop.f32.mrb[0].mxu0
    %v3606 = vpop.f32.mrb[0].mxu0
    %v3607 = vadd.f32 %v3318, %v3606
    %v3608 = vpop.f32.mrb[0].mxu0
    %3609 = vmatprep.mubr.bf16.mxu0 %v2714
    %3610 = vmatmul.mubr.bf16.gmra.mrb[0].mxu0 %v2586
    %v3611 = vpop.f32.mrb[0].mxu0
    %v3612 = vadd.f32 %v3323, %v3611
    %v3613 = vpop.f32.mrb[0].mxu0
    %v3614 = vpop.f32.mrb[0].mxu0
    %v3615 = vadd.f32 %v3326, %v3614
    %v3616 = vpop.f32.mrb[0].mxu0
    %3617 = vmatprep.mubr.bf16.mxu0 %v2718
    %3618 = vmatmul.mubr.bf16.gmra.mrb[0].mxu0 %v2590
    %v3619 = vpop.f32.mrb[0].mxu0
    %v3620 = vadd.f32 %v3331, %v3619
    %v3621 = vpop.f32.mrb[0].mxu0
    %v3622 = vpop.f32.mrb[0].mxu0
    %v3623 = vadd.f32 %v3334, %v3622
    %v3624 = vpop.f32.mrb[0].mxu0
    %3625 = vmatprep.mubr.bf16.mxu0 %v2722
    %3626 = vmatmul.mubr.bf16.gmra.mrb[0].mxu0 %v2594
    %v3627 = vpop.f32.mrb[0].mxu0
    %v3628 = vadd.f32 %v3339, %v3627
    %v3629 = vpop.f32.mrb[0].mxu0
    %v3630 = vpop.f32.mrb[0].mxu0
    %v3631 = vadd.f32 %v3342, %v3630
    %v3632 = vpop.f32.mrb[0].mxu0
    %3633 = vmatprep.mubr.bf16.mxu0 %v2726
    %3634 = vmatmul.mubr.bf16.gmra.mrb[0].mxu0 %v2598
    %v3635 = vpop.f32.mrb[0].mxu0
    %v3636 = vadd.f32 %v3347, %v3635
    %v3637 = vpop.f32.mrb[0].mxu0
    %v3638 = vpop.f32.mrb[0].mxu0
    %v3639 = vadd.f32 %v3350, %v3638
    %v3640 = vpop.f32.mrb[0].mxu0
    %3641 = vmatprep.mubr.bf16.mxu0 %v2730
    %3642 = vmatmul.mubr.bf16.gmra.mrb[0].mxu0 %v2602
    %v3643 = vpop.f32.mrb[0].mxu0
    %v3644 = vadd.f32 %v3355, %v3643
    %v3645 = vpop.f32.mrb[0].mxu0
    %v3646 = vpop.f32.mrb[0].mxu0
    %v3647 = vadd.f32 %v3358, %v3646
    %v3648 = vpop.f32.mrb[0].mxu0
    %3649 = vmatprep.mubr.bf16.mxu0 %v2734
    %3650 = vmatmul.mubr.bf16.gmra.mrb[0].mxu0 %v2606
    %v3651 = vpop.f32.mrb[0].mxu0
    %v3652 = vadd.f32 %v3363, %v3651
    %v3653 = vpop.f32.mrb[0].mxu0
    %v3654 = vpop.f32.mrb[0].mxu0
    %v3655 = vadd.f32 %v3366, %v3654
    %v3656 = vpop.f32.mrb[0].mxu0
    %3657 = vmatprep.mubr.bf16.mxu0 %v2738
    %3658 = vmatmul.mubr.bf16.gmra.mrb[0].mxu0 %v2610
    %v3659 = vpop.f32.mrb[0].mxu0
    %v3660 = vadd.f32 %v3371, %v3659
    %v3661 = vpop.f32.mrb[0].mxu0
    %v3662 = vpop.f32.mrb[0].mxu0
    %v3663 = vadd.f32 %v3374, %v3662
    %v3664 = vpop.f32.mrb[0].mxu0
    %3665 = vmatprep.mubr.bf16.mxu0 %v2742
    %3666 = vmatmul.mubr.bf16.gmra.mrb[0].mxu0 %v2614
    %v3667 = vpop.f32.mrb[0].mxu0
    %v3668 = vadd.f32 %v3379, %v3667
    %v3669 = vpop.f32.mrb[0].mxu0
    %v3670 = vpop.f32.mrb[0].mxu0
    %v3671 = vadd.f32 %v3382, %v3670
    %v3672 = vpop.f32.mrb[0].mxu0
    %3673 = vmatprep.mubr.bf16.mxu0 %v2746
    %3674 = vmatmul.mubr.bf16.gmra.mrb[0].mxu0 %v2618
    %v3675 = vpop.f32.mrb[0].mxu0
    %v3676 = vadd.f32 %v3387, %v3675
    %v3677 = vpop.f32.mrb[0].mxu0
    %v3678 = vpop.f32.mrb[0].mxu0
    %v3679 = vadd.f32 %v3390, %v3678
    %v3680 = vpop.f32.mrb[0].mxu0
    %3681 = vmatprep.mubr.bf16.mxu0 %v2750
    %3682 = vmatmul.mubr.bf16.gmra.mrb[0].mxu0 %v2622
    %v3683 = vpop.f32.mrb[0].mxu0
    %v3684 = vadd.f32 %v3395, %v3683
    %v3685 = vpop.f32.mrb[0].mxu0
    %v3686 = vpop.f32.mrb[0].mxu0
    %v3687 = vadd.f32 %v3398, %v3686
    %v3688 = vpop.f32.mrb[0].mxu0
    %3689 = vmatprep.mubr.bf16.mxu0 %v2754
    %3690 = vmatmul.mubr.bf16.gmra.mrb[0].mxu0 %v2626
    %v3691 = vpop.f32.mrb[0].mxu0
    %v3692 = vadd.f32 %v3403, %v3691
    %v3693 = vpop.f32.mrb[0].mxu0
    %v3694 = vpop.f32.mrb[0].mxu0
    %v3695 = vadd.f32 %v3406, %v3694
    %v3696 = vpop.f32.mrb[0].mxu0
    %3697 = vmatprep.mubr.bf16.mxu0 %v2758
    %3698 = vmatmul.mubr.bf16.gmra.mrb[0].mxu0 %v2630
    %v3699 = vpop.f32.mrb[0].mxu0
    %v3700 = vadd.f32 %v3411, %v3699
    %v3701 = vpop.f32.mrb[0].mxu0
    %v3702 = vpop.f32.mrb[0].mxu0
    %v3703 = vadd.f32 %v3414, %v3702
    %v3704 = vpop.f32.mrb[0].mxu0
    %3705 = vmatprep.mubr.bf16.mxu0 %v2762
    %3706 = vmatmul.mubr.bf16.gmra.mrb[0].mxu0 %v2634
    %v3707 = vpop.f32.mrb[0].mxu0
    %v3708 = vadd.f32 %v3419, %v3707
    %v3709 = vpop.f32.mrb[0].mxu0
    %v3710 = vpop.f32.mrb[0].mxu0
    %v3711 = vadd.f32 %v3422, %v3710
    %v3712 = vpop.f32.mrb[0].mxu0
    %3713 = vmatprep.mubr.bf16.mxu0 %v2766
    %3714 = vmatmul.mubr.bf16.gmra.mrb[0].mxu0 %v2638
    %v3715 = vpop.f32.mrb[0].mxu0
    %v3716 = vadd.f32 %v3427, %v3715
    %v3717 = vpop.f32.mrb[0].mxu0
    %v3718 = vpop.f32.mrb[0].mxu0
    %v3719 = vadd.f32 %v3430, %v3718
    %v3720 = vpop.f32.mrb[0].mxu0
    %3721 = vmatprep.mubr.bf16.mxu0 %v2770
    %3722 = vmatmul.mubr.bf16.gmra.mrb[0].mxu0 %v2642
    %v3723 = vpop.f32.mrb[0].mxu0
    %v3724 = vadd.f32 %v3435, %v3723
    %v3725 = vpop.f32.mrb[0].mxu0
    %v3726 = vpop.f32.mrb[0].mxu0
    %v3727 = vadd.f32 %v3438, %v3726
    %v3728 = vpop.f32.mrb[0].mxu0
    %3729 = vmatprep.mubr.bf16.mxu0 %v2774
    %3730 = vmatmul.mubr.bf16.gmra.mrb[0].mxu0 %v2646
    %v3731 = vpop.f32.mrb[0].mxu0
    %v3732 = vadd.f32 %v3443, %v3731
    %v3733 = vpop.f32.mrb[0].mxu0
    %v3734 = vpop.f32.mrb[0].mxu0
    %v3735 = vadd.f32 %v3446, %v3734
    %v3736 = vpop.f32.mrb[0].mxu0
    %3737 = vdwg.mxu0
    %3738 = vmatprep.subr.bf16.mxu0 0
    %3739 = vmatpush1.bf16.msra.mxu0 %v3024
    %3740 = vmatprep.subr.bf16.mxu0 0
    %3741 = vmatpush1.bf16.msra.mxu0 %v3025
    %3742 = vmatprep.subr.bf16.mxu0 0
    %3743 = vmatpush1.bf16.msra.mxu0 %v3026
    %3744 = vmatprep.subr.bf16.mxu0 0
    %3745 = vmatpush1.bf16.msra.mxu0 %v3027
    %3746 = vmatprep.subr.bf16.mxu0 0
    %3747 = vmatpush1.bf16.msra.mxu0 0
    %3748 = vmatprep.subr.bf16.mxu0 0
    %3749 = vmatpush1.bf16.msra.mxu0 0
    %3750 = vmatprep.subr.bf16.mxu0 0
    %3751 = vmatpush1.bf16.msra.mxu0 0
    %3752 = vmatprep.subr.bf16.mxu0 0
    %3753 = vmatpush1.bf16.msra.mxu0 0
    %3754 = vmatprep.subr.bf16.mxu0 0
    %3755 = vmatpush1.bf16.msra.mxu0 0
    %3756 = vmatprep.subr.bf16.mxu0 0
    %3757 = vmatpush1.bf16.msra.mxu0 0
    %3758 = vmatprep.subr.bf16.mxu0 0
    %3759 = vmatpush1.bf16.msra.mxu0 0
    %3760 = vmatprep.subr.bf16.mxu0 0
    %3761 = vmatpush1.bf16.msra.mxu0 0
    %3762 = vmatprep.subr.bf16.mxu0 0
    %3763 = vmatpush1.bf16.msra.mxu0 0
    %3764 = vmatprep.subr.bf16.mxu0 0
    %3765 = vmatpush1.bf16.msra.mxu0 0
    %3766 = vmatprep.subr.bf16.mxu0 0
    %3767 = vmatpush1.bf16.msra.mxu0 0
    %3768 = vmatprep.subr.bf16.mxu0 0
    %3769 = vmatpush1.bf16.msra.mxu0 0
    %3770 = vmatprep.mubr.bf16.mxu0 0
    %3771 = vmatmul.mubr.bf16.gmra.mrb[0].mxu0 %v3065
    %v3772 = vpop.f32.mrb[0].mxu0
    %v3773 = vadd.f32 %v3484, %v3772
    %v3774 = vpop.f32.mrb[0].mxu0
    %v3775 = vpop.f32.mrb[0].mxu0
    %v3776 = vadd.f32 %v3487, %v3775
    %v3777 = vpop.f32.mrb[0].mxu0
    %3778 = vmatprep.mubr.bf16.mxu0 0
    %3779 = vmatmul.mubr.bf16.gmra.mrb[0].mxu0 %v3068
    %v3780 = vpop.f32.mrb[0].mxu0
    %v3781 = vadd.f32 %v3492, %v3780
    %v3782 = vpop.f32.mrb[0].mxu0
    %v3783 = vpop.f32.mrb[0].mxu0
    %v3784 = vadd.f32 %v3495, %v3783
    %v3785 = vpop.f32.mrb[0].mxu0
    %3786 = vmatprep.mubr.bf16.mxu0 0
    %3787 = vmatmul.mubr.bf16.gmra.mrb[0].mxu0 %v3071
    %v3788 = vpop.f32.mrb[0].mxu0
    %v3789 = vadd.f32 %v3500, %v3788
    %v3790 = vpop.f32.mrb[0].mxu0
    %v3791 = vpop.f32.mrb[0].mxu0
    %v3792 = vadd.f32 %v3503, %v3791
    %v3793 = vpop.f32.mrb[0].mxu0
    %3794 = vmatprep.mubr.bf16.mxu0 0
    %3795 = vmatmul.mubr.bf16.gmra.mrb[0].mxu0 %v3074
    %v3796 = vpop.f32.mrb[0].mxu0
    %v3797 = vadd.f32 %v3508, %v3796
    %v3798 = vpop.f32.mrb[0].mxu0
    %v3799 = vpop.f32.mrb[0].mxu0
    %v3800 = vadd.f32 %v3511, %v3799
    %v3801 = vpop.f32.mrb[0].mxu0
    %3802 = vmatprep.mubr.bf16.mxu0 0
    %3803 = vmatmul.mubr.bf16.gmra.mrb[0].mxu0 %v3077
    %v3804 = vpop.f32.mrb[0].mxu0
    %v3805 = vadd.f32 %v3516, %v3804
    %v3806 = vpop.f32.mrb[0].mxu0
    %v3807 = vpop.f32.mrb[0].mxu0
    %v3808 = vadd.f32 %v3519, %v3807
    %v3809 = vpop.f32.mrb[0].mxu0
    %3810 = vmatprep.mubr.bf16.mxu0 0
    %3811 = vmatmul.mubr.bf16.gmra.mrb[0].mxu0 %v3080
    %v3812 = vpop.f32.mrb[0].mxu0
    %v3813 = vadd.f32 %v3524, %v3812
    %v3814 = vpop.f32.mrb[0].mxu0
    %v3815 = vpop.f32.mrb[0].mxu0
    %v3816 = vadd.f32 %v3527, %v3815
    %v3817 = vpop.f32.mrb[0].mxu0
    %3818 = vmatprep.mubr.bf16.mxu0 0
    %3819 = vmatmul.mubr.bf16.gmra.mrb[0].mxu0 %v3083
    %v3820 = vpop.f32.mrb[0].mxu0
    %v3821 = vadd.f32 %v3532, %v3820
    %v3822 = vpop.f32.mrb[0].mxu0
    %v3823 = vpop.f32.mrb[0].mxu0
    %v3824 = vadd.f32 %v3535, %v3823
    %v3825 = vpop.f32.mrb[0].mxu0
    %3826 = vmatprep.mubr.bf16.mxu0 0
    %3827 = vmatmul.mubr.bf16.gmra.mrb[0].mxu0 %v3086
    %v3828 = vpop.f32.mrb[0].mxu0
    %v3829 = vadd.f32 %v3540, %v3828
    %v3830 = vpop.f32.mrb[0].mxu0
    %v3831 = vpop.f32.mrb[0].mxu0
    %v3832 = vadd.f32 %v3543, %v3831
    %v3833 = vpop.f32.mrb[0].mxu0
    %3834 = vmatprep.mubr.bf16.mxu0 0
    %3835 = vmatmul.mubr.bf16.gmra.mrb[0].mxu0 %v3089
    %v3836 = vpop.f32.mrb[0].mxu0
    %v3837 = vadd.f32 %v3548, %v3836
    %v3838 = vpop.f32.mrb[0].mxu0
    %v3839 = vpop.f32.mrb[0].mxu0
    %v3840 = vadd.f32 %v3551, %v3839
    %v3841 = vpop.f32.mrb[0].mxu0
    %3842 = vmatprep.mubr.bf16.mxu0 0
    %3843 = vmatmul.mubr.bf16.gmra.mrb[0].mxu0 %v3092
    %v3844 = vpop.f32.mrb[0].mxu0
    %v3845 = vadd.f32 %v3556, %v3844
    %v3846 = vpop.f32.mrb[0].mxu0
    %v3847 = vpop.f32.mrb[0].mxu0
    %v3848 = vadd.f32 %v3559, %v3847
    %v3849 = vpop.f32.mrb[0].mxu0
    %3850 = vmatprep.mubr.bf16.mxu0 0
    %3851 = vmatmul.mubr.bf16.gmra.mrb[0].mxu0 %v3095
    %v3852 = vpop.f32.mrb[0].mxu0
    %v3853 = vadd.f32 %v3564, %v3852
    %v3854 = vpop.f32.mrb[0].mxu0
    %v3855 = vpop.f32.mrb[0].mxu0
    %v3856 = vadd.f32 %v3567, %v3855
    %v3857 = vpop.f32.mrb[0].mxu0
    %3858 = vmatprep.mubr.bf16.mxu0 0
    %3859 = vmatmul.mubr.bf16.gmra.mrb[0].mxu0 %v3098
    %v3860 = vpop.f32.mrb[0].mxu0
    %v3861 = vadd.f32 %v3572, %v3860
    %v3862 = vpop.f32.mrb[0].mxu0
    %v3863 = vpop.f32.mrb[0].mxu0
    %v3864 = vadd.f32 %v3575, %v3863
    %v3865 = vpop.f32.mrb[0].mxu0
    %3866 = vmatprep.mubr.bf16.mxu0 0
    %3867 = vmatmul.mubr.bf16.gmra.mrb[0].mxu0 %v3101
    %v3868 = vpop.f32.mrb[0].mxu0
    %v3869 = vadd.f32 %v3580, %v3868
    %v3870 = vpop.f32.mrb[0].mxu0
    %v3871 = vpop.f32.mrb[0].mxu0
    %v3872 = vadd.f32 %v3583, %v3871
    %v3873 = vpop.f32.mrb[0].mxu0
    %3874 = vmatprep.mubr.bf16.mxu0 0
    %3875 = vmatmul.mubr.bf16.gmra.mrb[0].mxu0 %v3104
    %v3876 = vpop.f32.mrb[0].mxu0
    %v3877 = vadd.f32 %v3588, %v3876
    %v3878 = vpop.f32.mrb[0].mxu0
    %v3879 = vpop.f32.mrb[0].mxu0
    %v3880 = vadd.f32 %v3591, %v3879
    %v3881 = vpop.f32.mrb[0].mxu0
    %3882 = vmatprep.mubr.bf16.mxu0 0
    %3883 = vmatmul.mubr.bf16.gmra.mrb[0].mxu0 %v3107
    %v3884 = vpop.f32.mrb[0].mxu0
    %v3885 = vadd.f32 %v3596, %v3884
    %v3886 = vpop.f32.mrb[0].mxu0
    %v3887 = vpop.f32.mrb[0].mxu0
    %v3888 = vadd.f32 %v3599, %v3887
    %v3889 = vpop.f32.mrb[0].mxu0
    %3890 = vmatprep.mubr.bf16.mxu0 0
    %3891 = vmatmul.mubr.bf16.gmra.mrb[0].mxu0 %v3110
    %v3892 = vpop.f32.mrb[0].mxu0
    %v3893 = vadd.f32 %v3604, %v3892
    %v3894 = vpop.f32.mrb[0].mxu0
    %v3895 = vpop.f32.mrb[0].mxu0
    %v3896 = vadd.f32 %v3607, %v3895
    %v3897 = vpop.f32.mrb[0].mxu0
    %3898 = vmatprep.mubr.bf16.mxu0 0
    %3899 = vmatmul.mubr.bf16.gmra.mrb[0].mxu0 %v3113
    %v3900 = vpop.f32.mrb[0].mxu0
    %v3901 = vadd.f32 %v3612, %v3900
    %v3902 = vpop.f32.mrb[0].mxu0
    %v3903 = vpop.f32.mrb[0].mxu0
    %v3904 = vadd.f32 %v3615, %v3903
    %v3905 = vpop.f32.mrb[0].mxu0
    %3906 = vmatprep.mubr.bf16.mxu0 0
    %3907 = vmatmul.mubr.bf16.gmra.mrb[0].mxu0 %v3116
    %v3908 = vpop.f32.mrb[0].mxu0
    %v3909 = vadd.f32 %v3620, %v3908
    %v3910 = vpop.f32.mrb[0].mxu0
    %v3911 = vpop.f32.mrb[0].mxu0
    %v3912 = vadd.f32 %v3623, %v3911
    %v3913 = vpop.f32.mrb[0].mxu0
    %3914 = vmatprep.mubr.bf16.mxu0 0
    %3915 = vmatmul.mubr.bf16.gmra.mrb[0].mxu0 %v3119
    %v3916 = vpop.f32.mrb[0].mxu0
    %v3917 = vadd.f32 %v3628, %v3916
    %v3918 = vpop.f32.mrb[0].mxu0
    %v3919 = vpop.f32.mrb[0].mxu0
    %v3920 = vadd.f32 %v3631, %v3919
    %v3921 = vpop.f32.mrb[0].mxu0
    %3922 = vmatprep.mubr.bf16.mxu0 0
    %3923 = vmatmul.mubr.bf16.gmra.mrb[0].mxu0 %v3122
    %v3924 = vpop.f32.mrb[0].mxu0
    %v3925 = vadd.f32 %v3636, %v3924
    %v3926 = vpop.f32.mrb[0].mxu0
    %v3927 = vpop.f32.mrb[0].mxu0
    %v3928 = vadd.f32 %v3639, %v3927
    %v3929 = vpop.f32.mrb[0].mxu0
    %3930 = vmatprep.mubr.bf16.mxu0 0
    %3931 = vmatmul.mubr.bf16.gmra.mrb[0].mxu0 %v3125
    %v3932 = vpop.f32.mrb[0].mxu0
    %v3933 = vadd.f32 %v3644, %v3932
    %v3934 = vpop.f32.mrb[0].mxu0
    %v3935 = vpop.f32.mrb[0].mxu0
    %v3936 = vadd.f32 %v3647, %v3935
    %v3937 = vpop.f32.mrb[0].mxu0
    %3938 = vmatprep.mubr.bf16.mxu0 0
    %3939 = vmatmul.mubr.bf16.gmra.mrb[0].mxu0 %v3128
    %v3940 = vpop.f32.mrb[0].mxu0
    %v3941 = vadd.f32 %v3652, %v3940
    %v3942 = vpop.f32.mrb[0].mxu0
    %v3943 = vpop.f32.mrb[0].mxu0
    %v3944 = vadd.f32 %v3655, %v3943
    %v3945 = vpop.f32.mrb[0].mxu0
    %3946 = vmatprep.mubr.bf16.mxu0 0
    %3947 = vmatmul.mubr.bf16.gmra.mrb[0].mxu0 %v3131
    %v3948 = vpop.f32.mrb[0].mxu0
    %v3949 = vadd.f32 %v3660, %v3948
    %v3950 = vpop.f32.mrb[0].mxu0
    %v3951 = vpop.f32.mrb[0].mxu0
    %v3952 = vadd.f32 %v3663, %v3951
    %v3953 = vpop.f32.mrb[0].mxu0
    %3954 = vmatprep.mubr.bf16.mxu0 0
    %3955 = vmatmul.mubr.bf16.gmra.mrb[0].mxu0 %v3134
    %v3956 = vpop.f32.mrb[0].mxu0
    %v3957 = vadd.f32 %v3668, %v3956
    %v3958 = vpop.f32.mrb[0].mxu0
    %v3959 = vpop.f32.mrb[0].mxu0
    %v3960 = vadd.f32 %v3671, %v3959
    %v3961 = vpop.f32.mrb[0].mxu0
    %3962 = vmatprep.mubr.bf16.mxu0 0
    %3963 = vmatmul.mubr.bf16.gmra.mrb[0].mxu0 %v3137
    %v3964 = vpop.f32.mrb[0].mxu0
    %v3965 = vadd.f32 %v3676, %v3964
    %v3966 = vpop.f32.mrb[0].mxu0
    %v3967 = vpop.f32.mrb[0].mxu0
    %v3968 = vadd.f32 %v3679, %v3967
    %v3969 = vpop.f32.mrb[0].mxu0
    %3970 = vmatprep.mubr.bf16.mxu0 0
    %3971 = vmatmul.mubr.bf16.gmra.mrb[0].mxu0 %v3140
    %v3972 = vpop.f32.mrb[0].mxu0
    %v3973 = vadd.f32 %v3684, %v3972
    %v3974 = vpop.f32.mrb[0].mxu0
    %v3975 = vpop.f32.mrb[0].mxu0
    %v3976 = vadd.f32 %v3687, %v3975
    %v3977 = vpop.f32.mrb[0].mxu0
    %3978 = vmatprep.mubr.bf16.mxu0 0
    %3979 = vmatmul.mubr.bf16.gmra.mrb[0].mxu0 %v3143
    %v3980 = vpop.f32.mrb[0].mxu0
    %v3981 = vadd.f32 %v3692, %v3980
    %v3982 = vpop.f32.mrb[0].mxu0
    %v3983 = vpop.f32.mrb[0].mxu0
    %v3984 = vadd.f32 %v3695, %v3983
    %v3985 = vpop.f32.mrb[0].mxu0
    %3986 = vmatprep.mubr.bf16.mxu0 0
    %3987 = vmatmul.mubr.bf16.gmra.mrb[0].mxu0 %v3146
    %v3988 = vpop.f32.mrb[0].mxu0
    %v3989 = vadd.f32 %v3700, %v3988
    %v3990 = vpop.f32.mrb[0].mxu0
    %v3991 = vpop.f32.mrb[0].mxu0
    %v3992 = vadd.f32 %v3703, %v3991
    %v3993 = vpop.f32.mrb[0].mxu0
    %3994 = vmatprep.mubr.bf16.mxu0 0
    %3995 = vmatmul.mubr.bf16.gmra.mrb[0].mxu0 %v3149
    %v3996 = vpop.f32.mrb[0].mxu0
    %v3997 = vadd.f32 %v3708, %v3996
    %v3998 = vpop.f32.mrb[0].mxu0
    %v3999 = vpop.f32.mrb[0].mxu0
    %v4000 = vadd.f32 %v3711, %v3999
    %v4001 = vpop.f32.mrb[0].mxu0
    %4002 = vmatprep.mubr.bf16.mxu0 0
    %4003 = vmatmul.mubr.bf16.gmra.mrb[0].mxu0 %v3152
    %v4004 = vpop.f32.mrb[0].mxu0
    %v4005 = vadd.f32 %v3716, %v4004
    %v4006 = vpop.f32.mrb[0].mxu0
    %v4007 = vpop.f32.mrb[0].mxu0
    %v4008 = vadd.f32 %v3719, %v4007
    %v4009 = vpop.f32.mrb[0].mxu0
    %4010 = vmatprep.mubr.bf16.mxu0 0
    %4011 = vmatmul.mubr.bf16.gmra.mrb[0].mxu0 %v3155
    %v4012 = vpop.f32.mrb[0].mxu0
    %v4013 = vadd.f32 %v3724, %v4012
    %v4014 = vpop.f32.mrb[0].mxu0
    %v4015 = vpop.f32.mrb[0].mxu0
    %v4016 = vadd.f32 %v3727, %v4015
    %v4017 = vpop.f32.mrb[0].mxu0
    %4018 = vmatprep.mubr.bf16.mxu0 0
    %4019 = vmatmul.mubr.bf16.gmra.mrb[0].mxu0 %v3158
    %v4020 = vpop.f32.mrb[0].mxu0
    %v4021 = vadd.f32 %v3732, %v4020
    %v4022 = vpop.f32.mrb[0].mxu0
    %v4023 = vpop.f32.mrb[0].mxu0
    %v4024 = vadd.f32 %v3735, %v4023
    %v4025 = vpop.f32.mrb[0].mxu0
    %4026 = vdwg.mxu0
    %v4027 = vld [vmem:[%s4] sm:$0x3]
    %v4028 = vlaneseq
    %v4029 = vshrl.u32 %v4028, 7
    %v4030 = vsub.s32 0, %v4029
    %v4031 = vrot.slane %v4027, %v4030
    %v4032 = vmul.f32 %v3773, %v4031
    %v4033 = vmul.f32 %v3776, %v4031
    %v4034 = vmul.f32 %v3781, %v4031
    %v4035 = vmul.f32 %v3784, %v4031
    %v4036 = vmul.f32 %v3789, %v4031
    %v4037 = vmul.f32 %v3792, %v4031
    %v4038 = vmul.f32 %v3797, %v4031
    %v4039 = vmul.f32 %v3800, %v4031
    %v4040 = vmul.f32 %v3805, %v4031
    %v4041 = vmul.f32 %v3808, %v4031
    %v4042 = vmul.f32 %v3813, %v4031
    %v4043 = vmul.f32 %v3816, %v4031
    %v4044 = vmul.f32 %v3821, %v4031
    %v4045 = vmul.f32 %v3824, %v4031
    %v4046 = vmul.f32 %v3829, %v4031
    %v4047 = vmul.f32 %v3832, %v4031
    %v4048 = vmul.f32 %v3837, %v4031
    %v4049 = vmul.f32 %v3840, %v4031
    %v4050 = vmul.f32 %v3845, %v4031
    %v4051 = vmul.f32 %v3848, %v4031
    %v4052 = vmul.f32 %v3853, %v4031
    %v4053 = vmul.f32 %v3856, %v4031
    %v4054 = vmul.f32 %v3861, %v4031
    %v4055 = vmul.f32 %v3864, %v4031
    %v4056 = vmul.f32 %v3869, %v4031
    %v4057 = vmul.f32 %v3872, %v4031
    %v4058 = vmul.f32 %v3877, %v4031
    %v4059 = vmul.f32 %v3880, %v4031
    %v4060 = vmul.f32 %v3885, %v4031
    %v4061 = vmul.f32 %v3888, %v4031
    %v4062 = vmul.f32 %v3893, %v4031
    %v4063 = vmul.f32 %v3896, %v4031
    %v4064 = vmul.f32 %v3901, %v4031
    %v4065 = vmul.f32 %v3904, %v4031
    %v4066 = vmul.f32 %v3909, %v4031
    %v4067 = vmul.f32 %v3912, %v4031
    %v4068 = vmul.f32 %v3917, %v4031
    %v4069 = vmul.f32 %v3920, %v4031
    %v4070 = vmul.f32 %v3925, %v4031
    %v4071 = vmul.f32 %v3928, %v4031
    %v4072 = vmul.f32 %v3933, %v4031
    %v4073 = vmul.f32 %v3936, %v4031
    %v4074 = vmul.f32 %v3941, %v4031
    %v4075 = vmul.f32 %v3944, %v4031
    %v4076 = vmul.f32 %v3949, %v4031
    %v4077 = vmul.f32 %v3952, %v4031
    %v4078 = vmul.f32 %v3957, %v4031
    %v4079 = vmul.f32 %v3960, %v4031
    %v4080 = vmul.f32 %v3965, %v4031
    %v4081 = vmul.f32 %v3968, %v4031
    %v4082 = vmul.f32 %v3973, %v4031
    %v4083 = vmul.f32 %v3976, %v4031
    %v4084 = vmul.f32 %v3981, %v4031
    %v4085 = vmul.f32 %v3984, %v4031
    %v4086 = vmul.f32 %v3989, %v4031
    %v4087 = vmul.f32 %v3992, %v4031
    %v4088 = vmul.f32 %v3997, %v4031
    %v4089 = vmul.f32 %v4000, %v4031
    %v4090 = vmul.f32 %v4005, %v4031
    %v4091 = vmul.f32 %v4008, %v4031
    %v4092 = vmul.f32 %v4013, %v4031
    %v4093 = vmul.f32 %v4016, %v4031
    %v4094 = vmul.f32 %v4021, %v4031
    %v4095 = vmul.f32 %v4024, %v4031
    %v4096 = vlaneseq
    %v4097 = vshrl.u32 %v4096, 7
    %v4098 = vsub.s32 1, %v4097
    %v4099 = vrot.slane %v4027, %v4098
    %v4100 = vadd.f32 %v4032, %v4099
    %v4101 = vadd.f32 %v4033, %v4099
    %v4102 = vadd.f32 %v4034, %v4099
    %v4103 = vadd.f32 %v4035, %v4099
    %v4104 = vadd.f32 %v4036, %v4099
    %v4105 = vadd.f32 %v4037, %v4099
    %v4106 = vadd.f32 %v4038, %v4099
    %v4107 = vadd.f32 %v4039, %v4099
    %v4108 = vadd.f32 %v4040, %v4099
    %v4109 = vadd.f32 %v4041, %v4099
    %v4110 = vadd.f32 %v4042, %v4099
    %v4111 = vadd.f32 %v4043, %v4099
    %v4112 = vadd.f32 %v4044, %v4099
    %v4113 = vadd.f32 %v4045, %v4099
    %v4114 = vadd.f32 %v4046, %v4099
    %v4115 = vadd.f32 %v4047, %v4099
    %v4116 = vadd.f32 %v4048, %v4099
    %v4117 = vadd.f32 %v4049, %v4099
    %v4118 = vadd.f32 %v4050, %v4099
    %v4119 = vadd.f32 %v4051, %v4099
    %v4120 = vadd.f32 %v4052, %v4099
    %v4121 = vadd.f32 %v4053, %v4099
    %v4122 = vadd.f32 %v4054, %v4099
    %v4123 = vadd.f32 %v4055, %v4099
    %v4124 = vadd.f32 %v4056, %v4099
    %v4125 = vadd.f32 %v4057, %v4099
    %v4126 = vadd.f32 %v4058, %v4099
    %v4127 = vadd.f32 %v4059, %v4099
    %v4128 = vadd.f32 %v4060, %v4099
    %v4129 = vadd.f32 %v4061, %v4099
    %v4130 = vadd.f32 %v4062, %v4099
    %v4131 = vadd.f32 %v4063, %v4099
    %v4132 = vadd.f32 %v4064, %v4099
    %v4133 = vadd.f32 %v4065, %v4099
    %v4134 = vadd.f32 %v4066, %v4099
    %v4135 = vadd.f32 %v4067, %v4099
    %v4136 = vadd.f32 %v4068, %v4099
    %v4137 = vadd.f32 %v4069, %v4099
    %v4138 = vadd.f32 %v4070, %v4099
    %v4139 = vadd.f32 %v4071, %v4099
    %v4140 = vadd.f32 %v4072, %v4099
    %v4141 = vadd.f32 %v4073, %v4099
    %v4142 = vadd.f32 %v4074, %v4099
    %v4143 = vadd.f32 %v4075, %v4099
    %v4144 = vadd.f32 %v4076, %v4099
    %v4145 = vadd.f32 %v4077, %v4099
    %v4146 = vadd.f32 %v4078, %v4099
    %v4147 = vadd.f32 %v4079, %v4099
    %v4148 = vadd.f32 %v4080, %v4099
    %v4149 = vadd.f32 %v4081, %v4099
    %v4150 = vadd.f32 %v4082, %v4099
    %v4151 = vadd.f32 %v4083, %v4099
    %v4152 = vadd.f32 %v4084, %v4099
    %v4153 = vadd.f32 %v4085, %v4099
    %v4154 = vadd.f32 %v4086, %v4099
    %v4155 = vadd.f32 %v4087, %v4099
    %v4156 = vadd.f32 %v4088, %v4099
    %v4157 = vadd.f32 %v4089, %v4099
    %v4158 = vadd.f32 %v4090, %v4099
    %v4159 = vadd.f32 %v4091, %v4099
    %v4160 = vadd.f32 %v4092, %v4099
    %v4161 = vadd.f32 %v4093, %v4099
    %v4162 = vadd.f32 %v4094, %v4099
    %v4163 = vadd.f32 %v4095, %v4099
    %v4164 = vmax.f32 %v4100, 0.0
    %v4165 = vmax.f32 %v4101, 0.0
    %v4166 = vmax.f32 %v4102, 0.0
    %v4167 = vmax.f32 %v4103, 0.0
    %v4168 = vmax.f32 %v4104, 0.0
    %v4169 = vmax.f32 %v4105, 0.0
    %v4170 = vmax.f32 %v4106, 0.0
    %v4171 = vmax.f32 %v4107, 0.0
    %v4172 = vmax.f32 %v4108, 0.0
    %v4173 = vmax.f32 %v4109, 0.0
    %v4174 = vmax.f32 %v4110, 0.0
    %v4175 = vmax.f32 %v4111, 0.0
    %v4176 = vmax.f32 %v4112, 0.0
    %v4177 = vmax.f32 %v4113, 0.0
    %v4178 = vmax.f32 %v4114, 0.0
    %v4179 = vmax.f32 %v4115, 0.0
    %v4180 = vmax.f32 %v4116, 0.0
    %v4181 = vmax.f32 %v4117, 0.0
    %v4182 = vmax.f32 %v4118, 0.0
    %v4183 = vmax.f32 %v4119, 0.0
    %v4184 = vmax.f32 %v4120, 0.0
    %v4185 = vmax.f32 %v4121, 0.0
    %v4186 = vmax.f32 %v4122, 0.0
    %v4187 = vmax.f32 %v4123, 0.0
    %v4188 = vmax.f32 %v4124, 0.0
    %v4189 = vmax.f32 %v4125, 0.0
    %v4190 = vmax.f32 %v4126, 0.0
    %v4191 = vmax.f32 %v4127, 0.0
    %v4192 = vmax.f32 %v4128, 0.0
    %v4193 = vmax.f32 %v4129, 0.0
    %v4194 = vmax.f32 %v4130, 0.0
    %v4195 = vmax.f32 %v4131, 0.0
    %v4196 = vmax.f32 %v4132, 0.0
    %v4197 = vmax.f32 %v4133, 0.0
    %v4198 = vmax.f32 %v4134, 0.0
    %v4199 = vmax.f32 %v4135, 0.0
    %v4200 = vmax.f32 %v4136, 0.0
    %v4201 = vmax.f32 %v4137, 0.0
    %v4202 = vmax.f32 %v4138, 0.0
    %v4203 = vmax.f32 %v4139, 0.0
    %v4204 = vmax.f32 %v4140, 0.0
    %v4205 = vmax.f32 %v4141, 0.0
    %v4206 = vmax.f32 %v4142, 0.0
    %v4207 = vmax.f32 %v4143, 0.0
    %v4208 = vmax.f32 %v4144, 0.0
    %v4209 = vmax.f32 %v4145, 0.0
    %v4210 = vmax.f32 %v4146, 0.0
    %v4211 = vmax.f32 %v4147, 0.0
    %v4212 = vmax.f32 %v4148, 0.0
    %v4213 = vmax.f32 %v4149, 0.0
    %v4214 = vmax.f32 %v4150, 0.0
    %v4215 = vmax.f32 %v4151, 0.0
    %v4216 = vmax.f32 %v4152, 0.0
    %v4217 = vmax.f32 %v4153, 0.0
    %v4218 = vmax.f32 %v4154, 0.0
    %v4219 = vmax.f32 %v4155, 0.0
    %v4220 = vmax.f32 %v4156, 0.0
    %v4221 = vmax.f32 %v4157, 0.0
    %v4222 = vmax.f32 %v4158, 0.0
    %v4223 = vmax.f32 %v4159, 0.0
    %v4224 = vmax.f32 %v4160, 0.0
    %v4225 = vmax.f32 %v4161, 0.0
    %v4226 = vmax.f32 %v4162, 0.0
    %v4227 = vmax.f32 %v4163, 0.0
    %4228 = vst [vmem:[#allocation3] sm:$0xff] 0.0
    %4229 = vst [vmem:[#allocation3 + $0x8] sm:$0xff] 0.0
    %4230 = vst [vmem:[#allocation3 + $0x10] sm:$0x3] 0.0
    %4231 = vst [vmem:[#allocation3 + $0x1b0] sm:$0xff] 0.0
    %4232 = vst [vmem:[#allocation3 + $0x1b8] sm:$0xff] 0.0
    %4233 = vst [vmem:[#allocation3 + $0x1c0] sm:$0x3] 0.0
    %s4234 = scalar_lea.vmem [#allocation3], 408
    %4235 = vst [vmem:[%s4234] sm:$0xff] 0.0
    %4236 = vst [vmem:[%s4234 + $0x8] sm:$0xff] 0.0
    %4237 = vst [vmem:[%s4234 + $0x10] sm:$0x3] 0.0
    %4238 = vst [vmem:[%s4234 + $0x1b0] sm:$0xff] 0.0
    %4239 = vst [vmem:[%s4234 + $0x1b8] sm:$0xff] 0.0
    %4240 = vst [vmem:[%s4234 + $0x1c0] sm:$0x3] 0.0
    %s4241 = scalar_lea.vmem [#allocation3], 24
    %4242 = vst [vmem:[%s4241] sm:$0x1] 0.0
    %4243 = vst [vmem:[%s4241 + $0x18] sm:$0x1] 0.0
    %4244 = vst [vmem:[%s4241 + $0x30] sm:$0x1] 0.0
    %4245 = vst [vmem:[%s4241 + $0x48] sm:$0x1] 0.0
    %4246 = vst [vmem:[%s4241 + $0x60] sm:$0x1] 0.0
    %4247 = vst [vmem:[%s4241 + $0x78] sm:$0x1] 0.0
    %4248 = vst [vmem:[%s4241 + $0x90] sm:$0x1] 0.0
    %4249 = vst [vmem:[%s4241 + $0xa8] sm:$0x1] 0.0
    %4250 = vst [vmem:[%s4241 + $0xc0] sm:$0x1] 0.0
    %4251 = vst [vmem:[%s4241 + $0xd8] sm:$0x1] 0.0
    %4252 = vst [vmem:[%s4241 + $0xf0] sm:$0x1] 0.0
    %4253 = vst [vmem:[%s4241 + $0x108] sm:$0x1] 0.0
    %4254 = vst [vmem:[%s4241 + $0x120] sm:$0x1] 0.0
    %4255 = vst [vmem:[%s4241 + $0x138] sm:$0x1] 0.0
    %4256 = vst [vmem:[%s4241 + $0x150] sm:$0x1] 0.0
    %4257 = vst [vmem:[%s4241 + $0x168] sm:$0x1] 0.0
    %4258 = vst [vmem:[%s4241 + $0x1b0] sm:$0x1] 0.0
    %4259 = vst [vmem:[%s4241 + $0x1c8] sm:$0x1] 0.0
    %4260 = vst [vmem:[%s4241 + $0x1e0] sm:$0x1] 0.0
    %4261 = vst [vmem:[%s4241 + $0x1f8] sm:$0x1] 0.0
    %4262 = vst [vmem:[%s4241 + $0x210] sm:$0x1] 0.0
    %4263 = vst [vmem:[%s4241 + $0x228] sm:$0x1] 0.0
    %4264 = vst [vmem:[%s4241 + $0x240] sm:$0x1] 0.0
    %4265 = vst [vmem:[%s4241 + $0x258] sm:$0x1] 0.0
    %4266 = vst [vmem:[%s4241 + $0x270] sm:$0x1] 0.0
    %4267 = vst [vmem:[%s4241 + $0x288] sm:$0x1] 0.0
    %4268 = vst [vmem:[%s4241 + $0x2a0] sm:$0x1] 0.0
    %4269 = vst [vmem:[%s4241 + $0x2b8] sm:$0x1] 0.0
    %4270 = vst [vmem:[%s4241 + $0x2d0] sm:$0x1] 0.0
    %4271 = vst [vmem:[%s4241 + $0x2e8] sm:$0x1] 0.0
    %4272 = vst [vmem:[%s4241 + $0x300] sm:$0x1] 0.0
    %4273 = vst [vmem:[%s4241 + $0x318] sm:$0x1] 0.0
    %4274 = vst [vmem:[%s4241 + $0x11] sm:$0x1] 0.0
    %4275 = vst [vmem:[%s4241 + $0x29] sm:$0x1] 0.0
    %4276 = vst [vmem:[%s4241 + $0x41] sm:$0x1] 0.0
    %4277 = vst [vmem:[%s4241 + $0x59] sm:$0x1] 0.0
    %4278 = vst [vmem:[%s4241 + $0x71] sm:$0x1] 0.0
    %4279 = vst [vmem:[%s4241 + $0x89] sm:$0x1] 0.0
    %4280 = vst [vmem:[%s4241 + $0xa1] sm:$0x1] 0.0
    %4281 = vst [vmem:[%s4241 + $0xb9] sm:$0x1] 0.0
    %4282 = vst [vmem:[%s4241 + $0xd1] sm:$0x1] 0.0
    %4283 = vst [vmem:[%s4241 + $0xe9] sm:$0x1] 0.0
    %4284 = vst [vmem:[%s4241 + $0x101] sm:$0x1] 0.0
    %4285 = vst [vmem:[%s4241 + $0x119] sm:$0x1] 0.0
    %4286 = vst [vmem:[%s4241 + $0x131] sm:$0x1] 0.0
    %4287 = vst [vmem:[%s4241 + $0x149] sm:$0x1] 0.0
    %4288 = vst [vmem:[%s4241 + $0x161] sm:$0x1] 0.0
    %4289 = vst [vmem:[%s4241 + $0x179] sm:$0x1] 0.0
    %4290 = vst [vmem:[%s4241 + $0x1c1] sm:$0x1] 0.0
    %4291 = vst [vmem:[%s4241 + $0x1d9] sm:$0x1] 0.0
    %4292 = vst [vmem:[%s4241 + $0x1f1] sm:$0x1] 0.0
    %4293 = vst [vmem:[%s4241 + $0x209] sm:$0x1] 0.0
    %4294 = vst [vmem:[%s4241 + $0x221] sm:$0x1] 0.0
    %4295 = vst [vmem:[%s4241 + $0x239] sm:$0x1] 0.0
    %4296 = vst [vmem:[%s4241 + $0x251] sm:$0x1] 0.0
    %4297 = vst [vmem:[%s4241 + $0x269] sm:$0x1] 0.0
    %4298 = vst [vmem:[%s4241 + $0x281] sm:$0x1] 0.0
    %4299 = vst [vmem:[%s4241 + $0x299] sm:$0x1] 0.0
    %4300 = vst [vmem:[%s4241 + $0x2b1] sm:$0x1] 0.0
    %4301 = vst [vmem:[%s4241 + $0x2c9] sm:$0x1] 0.0
    %4302 = vst [vmem:[%s4241 + $0x2e1] sm:$0x1] 0.0
    %4303 = vst [vmem:[%s4241 + $0x2f9] sm:$0x1] 0.0
    %4304 = vst [vmem:[%s4241 + $0x311] sm:$0x1] 0.0
    %4305 = vst [vmem:[%s4241 + $0x329] sm:$0x1] 0.0
    %4306 = vst [vmem:[%s4241 + $0x1] sm:$0xff] %v4164
    %4307 = vst [vmem:[%s4241 + $0x9] sm:$0xff] %v4165
    %4308 = vst [vmem:[%s4241 + $0x19] sm:$0xff] %v4166
    %4309 = vst [vmem:[%s4241 + $0x21] sm:$0xff] %v4167
    %4310 = vst [vmem:[%s4241 + $0x31] sm:$0xff] %v4168
    %4311 = vst [vmem:[%s4241 + $0x39] sm:$0xff] %v4169
    %4312 = vst [vmem:[%s4241 + $0x49] sm:$0xff] %v4170
    %4313 = vst [vmem:[%s4241 + $0x51] sm:$0xff] %v4171
    %4314 = vst [vmem:[%s4241 + $0x61] sm:$0xff] %v4172
    %4315 = vst [vmem:[%s4241 + $0x69] sm:$0xff] %v4173
    %4316 = vst [vmem:[%s4241 + $0x79] sm:$0xff] %v4174
    %4317 = vst [vmem:[%s4241 + $0x81] sm:$0xff] %v4175
    %4318 = vst [vmem:[%s4241 + $0x91] sm:$0xff] %v4176
    %4319 = vst [vmem:[%s4241 + $0x99] sm:$0xff] %v4177
    %4320 = vst [vmem:[%s4241 + $0xa9] sm:$0xff] %v4178
    %4321 = vst [vmem:[%s4241 + $0xb1] sm:$0xff] %v4179
    %4322 = vst [vmem:[%s4241 + $0xc1] sm:$0xff] %v4180
    %4323 = vst [vmem:[%s4241 + $0xc9] sm:$0xff] %v4181
    %4324 = vst [vmem:[%s4241 + $0xd9] sm:$0xff] %v4182
    %4325 = vst [vmem:[%s4241 + $0xe1] sm:$0xff] %v4183
    %4326 = vst [vmem:[%s4241 + $0xf1] sm:$0xff] %v4184
    %4327 = vst [vmem:[%s4241 + $0xf9] sm:$0xff] %v4185
    %4328 = vst [vmem:[%s4241 + $0x109] sm:$0xff] %v4186
    %4329 = vst [vmem:[%s4241 + $0x111] sm:$0xff] %v4187
    %4330 = vst [vmem:[%s4241 + $0x121] sm:$0xff] %v4188
    %4331 = vst [vmem:[%s4241 + $0x129] sm:$0xff] %v4189
    %4332 = vst [vmem:[%s4241 + $0x139] sm:$0xff] %v4190
    %4333 = vst [vmem:[%s4241 + $0x141] sm:$0xff] %v4191
    %4334 = vst [vmem:[%s4241 + $0x151] sm:$0xff] %v4192
    %4335 = vst [vmem:[%s4241 + $0x159] sm:$0xff] %v4193
    %4336 = vst [vmem:[%s4241 + $0x169] sm:$0xff] %v4194
    %4337 = vst [vmem:[%s4241 + $0x171] sm:$0xff] %v4195
    %4338 = vst [vmem:[%s4241 + $0x1b1] sm:$0xff] %v4196
    %4339 = vst [vmem:[%s4241 + $0x1b9] sm:$0xff] %v4197
    %4340 = vst [vmem:[%s4241 + $0x1c9] sm:$0xff] %v4198
    %4341 = vst [vmem:[%s4241 + $0x1d1] sm:$0xff] %v4199
    %4342 = vst [vmem:[%s4241 + $0x1e1] sm:$0xff] %v4200
    %4343 = vst [vmem:[%s4241 + $0x1e9] sm:$0xff] %v4201
    %4344 = vst [vmem:[%s4241 + $0x1f9] sm:$0xff] %v4202
    %4345 = vst [vmem:[%s4241 + $0x201] sm:$0xff] %v4203
    %4346 = vst [vmem:[%s4241 + $0x211] sm:$0xff] %v4204
    %4347 = vst [vmem:[%s4241 + $0x219] sm:$0xff] %v4205
    %4348 = vst [vmem:[%s4241 + $0x229] sm:$0xff] %v4206
    %4349 = vst [vmem:[%s4241 + $0x231] sm:$0xff] %v4207
    %4350 = vst [vmem:[%s4241 + $0x241] sm:$0xff] %v4208
    %4351 = vst [vmem:[%s4241 + $0x249] sm:$0xff] %v4209
    %4352 = vst [vmem:[%s4241 + $0x259] sm:$0xff] %v4210
    %4353 = vst [vmem:[%s4241 + $0x261] sm:$0xff] %v4211
    %4354 = vst [vmem:[%s4241 + $0x271] sm:$0xff] %v4212
    %4355 = vst [vmem:[%s4241 + $0x279] sm:$0xff] %v4213
    %4356 = vst [vmem:[%s4241 + $0x289] sm:$0xff] %v4214
    %4357 = vst [vmem:[%s4241 + $0x291] sm:$0xff] %v4215
    %4358 = vst [vmem:[%s4241 + $0x2a1] sm:$0xff] %v4216
    %4359 = vst [vmem:[%s4241 + $0x2a9] sm:$0xff] %v4217
    %4360 = vst [vmem:[%s4241 + $0x2b9] sm:$0xff] %v4218
    %4361 = vst [vmem:[%s4241 + $0x2c1] sm:$0xff] %v4219
    %4362 = vst [vmem:[%s4241 + $0x2d1] sm:$0xff] %v4220
    %4363 = vst [vmem:[%s4241 + $0x2d9] sm:$0xff] %v4221
    %4364 = vst [vmem:[%s4241 + $0x2e9] sm:$0xff] %v4222
    %4365 = vst [vmem:[%s4241 + $0x2f1] sm:$0xff] %v4223
    %4366 = vst [vmem:[%s4241 + $0x301] sm:$0xff] %v4224
    %4367 = vst [vmem:[%s4241 + $0x309] sm:$0xff] %v4225
    %4368 = vst [vmem:[%s4241 + $0x319] sm:$0xff] %v4226
    %4369 = vst [vmem:[%s4241 + $0x321] sm:$0xff] %v4227
    %v4370 = vld [vmem:[#allocation3] sm:$0xff]
    %v4371 = vld [vmem:[#allocation3 + $0x8] sm:$0xff]
    %v4372 = vld [vmem:[#allocation3 + $0x18] sm:$0xff]
    %v4373 = vld [vmem:[#allocation3 + $0x20] sm:$0xff]
    %v4374 = vld [vmem:[#allocation3 + $0x30] sm:$0xff]
    %v4375 = vld [vmem:[#allocation3 + $0x38] sm:$0xff]
    %v4376 = vld [vmem:[#allocation3 + $0x48] sm:$0xff]
    %v4377 = vld [vmem:[#allocation3 + $0x50] sm:$0xff]
    %v4378 = vld [vmem:[#allocation3 + $0x60] sm:$0xff]
    %v4379 = vld [vmem:[#allocation3 + $0x68] sm:$0xff]
    %v4380 = vld [vmem:[#allocation3 + $0x78] sm:$0xff]
    %v4381 = vld [vmem:[#allocation3 + $0x80] sm:$0xff]
    %v4382 = vld [vmem:[#allocation3 + $0x90] sm:$0xff]
    %v4383 = vld [vmem:[#allocation3 + $0x98] sm:$0xff]
    %v4384 = vld [vmem:[#allocation3 + $0xa8] sm:$0xff]
    %v4385 = vld [vmem:[#allocation3 + $0xb0] sm:$0xff]
    %v4386 = vld [vmem:[#allocation3 + $0xc0] sm:$0xff]
    %v4387 = vld [vmem:[#allocation3 + $0xc8] sm:$0xff]
    %v4388 = vld [vmem:[#allocation3 + $0xd8] sm:$0xff]
    %v4389 = vld [vmem:[#allocation3 + $0xe0] sm:$0xff]
    %v4390 = vld [vmem:[#allocation3 + $0xf0] sm:$0xff]
    %v4391 = vld [vmem:[#allocation3 + $0xf8] sm:$0xff]
    %v4392 = vld [vmem:[#allocation3 + $0x108] sm:$0xff]
    %v4393 = vld [vmem:[#allocation3 + $0x110] sm:$0xff]
    %v4394 = vld [vmem:[#allocation3 + $0x120] sm:$0xff]
    %v4395 = vld [vmem:[#allocation3 + $0x128] sm:$0xff]
    %v4396 = vld [vmem:[#allocation3 + $0x138] sm:$0xff]
    %v4397 = vld [vmem:[#allocation3 + $0x140] sm:$0xff]
    %v4398 = vld [vmem:[#allocation3 + $0x150] sm:$0xff]
    %v4399 = vld [vmem:[#allocation3 + $0x158] sm:$0xff]
    %v4400 = vld [vmem:[#allocation3 + $0x168] sm:$0xff]
    %v4401 = vld [vmem:[#allocation3 + $0x170] sm:$0xff]
    %v4402 = vld [vmem:[#allocation3 + $0x1b0] sm:$0xff]
    %v4403 = vld [vmem:[#allocation3 + $0x1b8] sm:$0xff]
    %v4404 = vld [vmem:[#allocation3 + $0x1c8] sm:$0xff]
    %v4405 = vld [vmem:[#allocation3 + $0x1d0] sm:$0xff]
    %v4406 = vld [vmem:[#allocation3 + $0x1e0] sm:$0xff]
    %v4407 = vld [vmem:[#allocation3 + $0x1e8] sm:$0xff]
    %v4408 = vld [vmem:[#allocation3 + $0x1f8] sm:$0xff]
    %v4409 = vld [vmem:[#allocation3 + $0x200] sm:$0xff]
    %v4410 = vld [vmem:[#allocation3 + $0x210] sm:$0xff]
    %v4411 = vld [vmem:[#allocation3 + $0x218] sm:$0xff]
    %v4412 = vld [vmem:[#allocation3 + $0x228] sm:$0xff]
    %v4413 = vld [vmem:[#allocation3 + $0x230] sm:$0xff]
    %v4414 = vld [vmem:[#allocation3 + $0x240] sm:$0xff]
    %v4415 = vld [vmem:[#allocation3 + $0x248] sm:$0xff]
    %v4416 = vld [vmem:[#allocation3 + $0x258] sm:$0xff]
    %v4417 = vld [vmem:[#allocation3 + $0x260] sm:$0xff]
    %v4418 = vld [vmem:[#allocation3 + $0x270] sm:$0xff]
    %v4419 = vld [vmem:[#allocation3 + $0x278] sm:$0xff]
    %v4420 = vld [vmem:[#allocation3 + $0x288] sm:$0xff]
    %v4421 = vld [vmem:[#allocation3 + $0x290] sm:$0xff]
    %v4422 = vld [vmem:[#allocation3 + $0x2a0] sm:$0xff]
    %v4423 = vld [vmem:[#allocation3 + $0x2a8] sm:$0xff]
    %v4424 = vld [vmem:[#allocation3 + $0x2b8] sm:$0xff]
    %v4425 = vld [vmem:[#allocation3 + $0x2c0] sm:$0xff]
    %v4426 = vld [vmem:[#allocation3 + $0x2d0] sm:$0xff]
    %v4427 = vld [vmem:[#allocation3 + $0x2d8] sm:$0xff]
    %v4428 = vld [vmem:[#allocation3 + $0x2e8] sm:$0xff]
    %v4429 = vld [vmem:[#allocation3 + $0x2f0] sm:$0xff]
    %v4430 = vld [vmem:[#allocation3 + $0x300] sm:$0xff]
    %v4431 = vld [vmem:[#allocation3 + $0x308] sm:$0xff]
    %v4432 = vld [vmem:[#allocation3 + $0x318] sm:$0xff]
    %v4433 = vld [vmem:[#allocation3 + $0x320] sm:$0xff]
    %v4434 = vpack.c.bf16 %v4371, %v4370
    %v4435 = vpack.c.bf16 %v4373, %v4372
    %v4436 = vpack.c.bf16 %v4375, %v4374
    %v4437 = vpack.c.bf16 %v4377, %v4376
    %v4438 = vpack.c.bf16 %v4379, %v4378
    %v4439 = vpack.c.bf16 %v4381, %v4380
    %v4440 = vpack.c.bf16 %v4383, %v4382
    %v4441 = vpack.c.bf16 %v4385, %v4384
    %v4442 = vpack.c.bf16 %v4387, %v4386
    %v4443 = vpack.c.bf16 %v4389, %v4388
    %v4444 = vpack.c.bf16 %v4391, %v4390
    %v4445 = vpack.c.bf16 %v4393, %v4392
    %v4446 = vpack.c.bf16 %v4395, %v4394
    %v4447 = vpack.c.bf16 %v4397, %v4396
    %v4448 = vpack.c.bf16 %v4399, %v4398
    %v4449 = vpack.c.bf16 %v4401, %v4400
    %v4450 = vpack.c.bf16 %v4403, %v4402
    %v4451 = vpack.c.bf16 %v4405, %v4404
    %v4452 = vpack.c.bf16 %v4407, %v4406
    %v4453 = vpack.c.bf16 %v4409, %v4408
    %v4454 = vpack.c.bf16 %v4411, %v4410
    %v4455 = vpack.c.bf16 %v4413, %v4412
    %v4456 = vpack.c.bf16 %v4415, %v4414
    %v4457 = vpack.c.bf16 %v4417, %v4416
    %v4458 = vpack.c.bf16 %v4419, %v4418
    %v4459 = vpack.c.bf16 %v4421, %v4420
    %v4460 = vpack.c.bf16 %v4423, %v4422
    %v4461 = vpack.c.bf16 %v4425, %v4424
    %v4462 = vpack.c.bf16 %v4427, %v4426
    %v4463 = vpack.c.bf16 %v4429, %v4428
    %v4464 = vpack.c.bf16 %v4431, %v4430
    %v4465 = vpack.c.bf16 %v4433, %v4432
    %v4466 = vld [vmem:[#allocation3 + $0x1] sm:$0xff]
    %v4467 = vld [vmem:[#allocation3 + $0x9] sm:$0xff]
    %v4468 = vld [vmem:[#allocation3 + $0x19] sm:$0xff]
    %v4469 = vld [vmem:[#allocation3 + $0x21] sm:$0xff]
    %v4470 = vld [vmem:[#allocation3 + $0x31] sm:$0xff]
    %v4471 = vld [vmem:[#allocation3 + $0x39] sm:$0xff]
    %v4472 = vld [vmem:[#allocation3 + $0x49] sm:$0xff]
    %v4473 = vld [vmem:[#allocation3 + $0x51] sm:$0xff]
    %v4474 = vld [vmem:[#allocation3 + $0x61] sm:$0xff]
    %v4475 = vld [vmem:[#allocation3 + $0x69] sm:$0xff]
    %v4476 = vld [vmem:[#allocation3 + $0x79] sm:$0xff]
    %v4477 = vld [vmem:[#allocation3 + $0x81] sm:$0xff]
    %v4478 = vld [vmem:[#allocation3 + $0x91] sm:$0xff]
    %v4479 = vld [vmem:[#allocation3 + $0x99] sm:$0xff]
    %v4480 = vld [vmem:[#allocation3 + $0xa9] sm:$0xff]
    %v4481 = vld [vmem:[#allocation3 + $0xb1] sm:$0xff]
    %v4482 = vld [vmem:[#allocation3 + $0xc1] sm:$0xff]
    %v4483 = vld [vmem:[#allocation3 + $0xc9] sm:$0xff]
    %v4484 = vld [vmem:[#allocation3 + $0xd9] sm:$0xff]
    %v4485 = vld [vmem:[#allocation3 + $0xe1] sm:$0xff]
    %v4486 = vld [vmem:[#allocation3 + $0xf1] sm:$0xff]
    %v4487 = vld [vmem:[#allocation3 + $0xf9] sm:$0xff]
    %v4488 = vld [vmem:[#allocation3 + $0x109] sm:$0xff]
    %v4489 = vld [vmem:[#allocation3 + $0x111] sm:$0xff]
    %v4490 = vld [vmem:[#allocation3 + $0x121] sm:$0xff]
    %v4491 = vld [vmem:[#allocation3 + $0x129] sm:$0xff]
    %v4492 = vld [vmem:[#allocation3 + $0x139] sm:$0xff]
    %v4493 = vld [vmem:[#allocation3 + $0x141] sm:$0xff]
    %v4494 = vld [vmem:[#allocation3 + $0x151] sm:$0xff]
    %v4495 = vld [vmem:[#allocation3 + $0x159] sm:$0xff]
    %v4496 = vld [vmem:[#allocation3 + $0x169] sm:$0xff]
    %v4497 = vld [vmem:[#allocation3 + $0x171] sm:$0xff]
    %v4498 = vld [vmem:[#allocation3 + $0x1b1] sm:$0xff]
    %v4499 = vld [vmem:[#allocation3 + $0x1b9] sm:$0xff]
    %v4500 = vld [vmem:[#allocation3 + $0x1c9] sm:$0xff]
    %v4501 = vld [vmem:[#allocation3 + $0x1d1] sm:$0xff]
    %v4502 = vld [vmem:[#allocation3 + $0x1e1] sm:$0xff]
    %v4503 = vld [vmem:[#allocation3 + $0x1e9] sm:$0xff]
    %v4504 = vld [vmem:[#allocation3 + $0x1f9] sm:$0xff]
    %v4505 = vld [vmem:[#allocation3 + $0x201] sm:$0xff]
    %v4506 = vld [vmem:[#allocation3 + $0x211] sm:$0xff]
    %v4507 = vld [vmem:[#allocation3 + $0x219] sm:$0xff]
    %v4508 = vld [vmem:[#allocation3 + $0x229] sm:$0xff]
    %v4509 = vld [vmem:[#allocation3 + $0x231] sm:$0xff]
    %v4510 = vld [vmem:[#allocation3 + $0x241] sm:$0xff]
    %v4511 = vld [vmem:[#allocation3 + $0x249] sm:$0xff]
    %v4512 = vld [vmem:[#allocation3 + $0x259] sm:$0xff]
    %v4513 = vld [vmem:[#allocation3 + $0x261] sm:$0xff]
    %v4514 = vld [vmem:[#allocation3 + $0x271] sm:$0xff]
    %v4515 = vld [vmem:[#allocation3 + $0x279] sm:$0xff]
    %v4516 = vld [vmem:[#allocation3 + $0x289] sm:$0xff]
    %v4517 = vld [vmem:[#allocation3 + $0x291] sm:$0xff]
    %v4518 = vld [vmem:[#allocation3 + $0x2a1] sm:$0xff]
    %v4519 = vld [vmem:[#allocation3 + $0x2a9] sm:$0xff]
    %v4520 = vld [vmem:[#allocation3 + $0x2b9] sm:$0xff]
    %v4521 = vld [vmem:[#allocation3 + $0x2c1] sm:$0xff]
    %v4522 = vld [vmem:[#allocation3 + $0x2d1] sm:$0xff]
    %v4523 = vld [vmem:[#allocation3 + $0x2d9] sm:$0xff]
    %v4524 = vld [vmem:[#allocation3 + $0x2e9] sm:$0xff]
    %v4525 = vld [vmem:[#allocation3 + $0x2f1] sm:$0xff]
    %v4526 = vld [vmem:[#allocation3 + $0x301] sm:$0xff]
    %v4527 = vld [vmem:[#allocation3 + $0x309] sm:$0xff]
    %v4528 = vld [vmem:[#allocation3 + $0x319] sm:$0xff]
    %v4529 = vld [vmem:[#allocation3 + $0x321] sm:$0xff]
    %v4530 = vpack.c.bf16 %v4467, %v4466
    %v4531 = vpack.c.bf16 %v4469, %v4468
    %v4532 = vpack.c.bf16 %v4471, %v4470
    %v4533 = vpack.c.bf16 %v4473, %v4472
    %v4534 = vpack.c.bf16 %v4475, %v4474
    %v4535 = vpack.c.bf16 %v4477, %v4476
    %v4536 = vpack.c.bf16 %v4479, %v4478
    %v4537 = vpack.c.bf16 %v4481, %v4480
    %v4538 = vpack.c.bf16 %v4483, %v4482
    %v4539 = vpack.c.bf16 %v4485, %v4484
    %v4540 = vpack.c.bf16 %v4487, %v4486
    %v4541 = vpack.c.bf16 %v4489, %v4488
    %v4542 = vpack.c.bf16 %v4491, %v4490
    %v4543 = vpack.c.bf16 %v4493, %v4492
    %v4544 = vpack.c.bf16 %v4495, %v4494
    %v4545 = vpack.c.bf16 %v4497, %v4496
    %v4546 = vpack.c.bf16 %v4499, %v4498
    %v4547 = vpack.c.bf16 %v4501, %v4500
    %v4548 = vpack.c.bf16 %v4503, %v4502
    %v4549 = vpack.c.bf16 %v4505, %v4504
    %v4550 = vpack.c.bf16 %v4507, %v4506
    %v4551 = vpack.c.bf16 %v4509, %v4508
    %v4552 = vpack.c.bf16 %v4511, %v4510
    %v4553 = vpack.c.bf16 %v4513, %v4512
    %v4554 = vpack.c.bf16 %v4515, %v4514
    %v4555 = vpack.c.bf16 %v4517, %v4516
    %v4556 = vpack.c.bf16 %v4519, %v4518
    %v4557 = vpack.c.bf16 %v4521, %v4520
    %v4558 = vpack.c.bf16 %v4523, %v4522
    %v4559 = vpack.c.bf16 %v4525, %v4524
    %v4560 = vpack.c.bf16 %v4527, %v4526
    %v4561 = vpack.c.bf16 %v4529, %v4528
    %v4562 = vld [vmem:[#allocation3 + $0x2] sm:$0xff]
    %v4563 = vld [vmem:[#allocation3 + $0xa] sm:$0xff]
    %v4564 = vld [vmem:[#allocation3 + $0x1a] sm:$0xff]
    %v4565 = vld [vmem:[#allocation3 + $0x22] sm:$0xff]
    %v4566 = vld [vmem:[#allocation3 + $0x32] sm:$0xff]
    %v4567 = vld [vmem:[#allocation3 + $0x3a] sm:$0xff]
    %v4568 = vld [vmem:[#allocation3 + $0x4a] sm:$0xff]
    %v4569 = vld [vmem:[#allocation3 + $0x52] sm:$0xff]
    %v4570 = vld [vmem:[#allocation3 + $0x62] sm:$0xff]
    %v4571 = vld [vmem:[#allocation3 + $0x6a] sm:$0xff]
    %v4572 = vld [vmem:[#allocation3 + $0x7a] sm:$0xff]
    %v4573 = vld [vmem:[#allocation3 + $0x82] sm:$0xff]
    %v4574 = vld [vmem:[#allocation3 + $0x92] sm:$0xff]
    %v4575 = vld [vmem:[#allocation3 + $0x9a] sm:$0xff]
    %v4576 = vld [vmem:[#allocation3 + $0xaa] sm:$0xff]
    %v4577 = vld [vmem:[#allocation3 + $0xb2] sm:$0xff]
    %v4578 = vld [vmem:[#allocation3 + $0xc2] sm:$0xff]
    %v4579 = vld [vmem:[#allocation3 + $0xca] sm:$0xff]
    %v4580 = vld [vmem:[#allocation3 + $0xda] sm:$0xff]
    %v4581 = vld [vmem:[#allocation3 + $0xe2] sm:$0xff]
    %v4582 = vld [vmem:[#allocation3 + $0xf2] sm:$0xff]
    %v4583 = vld [vmem:[#allocation3 + $0xfa] sm:$0xff]
    %v4584 = vld [vmem:[#allocation3 + $0x10a] sm:$0xff]
    %v4585 = vld [vmem:[#allocation3 + $0x112] sm:$0xff]
    %v4586 = vld [vmem:[#allocation3 + $0x122] sm:$0xff]
    %v4587 = vld [vmem:[#allocation3 + $0x12a] sm:$0xff]
    %v4588 = vld [vmem:[#allocation3 + $0x13a] sm:$0xff]
    %v4589 = vld [vmem:[#allocation3 + $0x142] sm:$0xff]
    %v4590 = vld [vmem:[#allocation3 + $0x152] sm:$0xff]
    %v4591 = vld [vmem:[#allocation3 + $0x15a] sm:$0xff]
    %v4592 = vld [vmem:[#allocation3 + $0x16a] sm:$0xff]
    %v4593 = vld [vmem:[#allocation3 + $0x172] sm:$0xff]
    %v4594 = vld [vmem:[#allocation3 + $0x1b2] sm:$0xff]
    %v4595 = vld [vmem:[#allocation3 + $0x1ba] sm:$0xff]
    %v4596 = vld [vmem:[#allocation3 + $0x1ca] sm:$0xff]
    %v4597 = vld [vmem:[#allocation3 + $0x1d2] sm:$0xff]
    %v4598 = vld [vmem:[#allocation3 + $0x1e2] sm:$0xff]
    %v4599 = vld [vmem:[#allocation3 + $0x1ea] sm:$0xff]
    %v4600 = vld [vmem:[#allocation3 + $0x1fa] sm:$0xff]
    %v4601 = vld [vmem:[#allocation3 + $0x202] sm:$0xff]
    %v4602 = vld [vmem:[#allocation3 + $0x212] sm:$0xff]
    %v4603 = vld [vmem:[#allocation3 + $0x21a] sm:$0xff]
    %v4604 = vld [vmem:[#allocation3 + $0x22a] sm:$0xff]
    %v4605 = vld [vmem:[#allocation3 + $0x232] sm:$0xff]
    %v4606 = vld [vmem:[#allocation3 + $0x242] sm:$0xff]
    %v4607 = vld [vmem:[#allocation3 + $0x24a] sm:$0xff]
    %v4608 = vld [vmem:[#allocation3 + $0x25a] sm:$0xff]
    %v4609 = vld [vmem:[#allocation3 + $0x262] sm:$0xff]
    %v4610 = vld [vmem:[#allocation3 + $0x272] sm:$0xff]
    %v4611 = vld [vmem:[#allocation3 + $0x27a] sm:$0xff]
    %v4612 = vld [vmem:[#allocation3 + $0x28a] sm:$0xff]
    %v4613 = vld [vmem:[#allocation3 + $0x292] sm:$0xff]
    %v4614 = vld [vmem:[#allocation3 + $0x2a2] sm:$0xff]
    %v4615 = vld [vmem:[#allocation3 + $0x2aa] sm:$0xff]
    %v4616 = vld [vmem:[#allocation3 + $0x2ba] sm:$0xff]
    %v4617 = vld [vmem:[#allocation3 + $0x2c2] sm:$0xff]
    %v4618 = vld [vmem:[#allocation3 + $0x2d2] sm:$0xff]
    %v4619 = vld [vmem:[#allocation3 + $0x2da] sm:$0xff]
    %v4620 = vld [vmem:[#allocation3 + $0x2ea] sm:$0xff]
    %v4621 = vld [vmem:[#allocation3 + $0x2f2] sm:$0xff]
    %v4622 = vld [vmem:[#allocation3 + $0x302] sm:$0xff]
    %v4623 = vld [vmem:[#allocation3 + $0x30a] sm:$0xff]
    %v4624 = vld [vmem:[#allocation3 + $0x31a] sm:$0xff]
    %v4625 = vld [vmem:[#allocation3 + $0x322] sm:$0xff]
    %v4626 = vpack.c.bf16 %v4563, %v4562
    %v4627 = vpack.c.bf16 %v4565, %v4564
    %v4628 = vpack.c.bf16 %v4567, %v4566
    %v4629 = vpack.c.bf16 %v4569, %v4568
    %v4630 = vpack.c.bf16 %v4571, %v4570
    %v4631 = vpack.c.bf16 %v4573, %v4572
    %v4632 = vpack.c.bf16 %v4575, %v4574
    %v4633 = vpack.c.bf16 %v4577, %v4576
    %v4634 = vpack.c.bf16 %v4579, %v4578
    %v4635 = vpack.c.bf16 %v4581, %v4580
    %v4636 = vpack.c.bf16 %v4583, %v4582
    %v4637 = vpack.c.bf16 %v4585, %v4584
    %v4638 = vpack.c.bf16 %v4587, %v4586
    %v4639 = vpack.c.bf16 %v4589, %v4588
    %v4640 = vpack.c.bf16 %v4591, %v4590
    %v4641 = vpack.c.bf16 %v4593, %v4592
    %v4642 = vpack.c.bf16 %v4595, %v4594
    %v4643 = vpack.c.bf16 %v4597, %v4596
    %v4644 = vpack.c.bf16 %v4599, %v4598
    %v4645 = vpack.c.bf16 %v4601, %v4600
    %v4646 = vpack.c.bf16 %v4603, %v4602
    %v4647 = vpack.c.bf16 %v4605, %v4604
    %v4648 = vpack.c.bf16 %v4607, %v4606
    %v4649 = vpack.c.bf16 %v4609, %v4608
    %v4650 = vpack.c.bf16 %v4611, %v4610
    %v4651 = vpack.c.bf16 %v4613, %v4612
    %v4652 = vpack.c.bf16 %v4615, %v4614
    %v4653 = vpack.c.bf16 %v4617, %v4616
    %v4654 = vpack.c.bf16 %v4619, %v4618
    %v4655 = vpack.c.bf16 %v4621, %v4620
    %v4656 = vpack.c.bf16 %v4623, %v4622
    %v4657 = vpack.c.bf16 %v4625, %v4624
    %v4658 = vld [vmem:[%s4241] sm:$0xff]
    %v4659 = vld [vmem:[%s4241 + $0x8] sm:$0xff]
    %v4660 = vld [vmem:[%s4241 + $0x18] sm:$0xff]
    %v4661 = vld [vmem:[%s4241 + $0x20] sm:$0xff]
    %v4662 = vld [vmem:[%s4241 + $0x30] sm:$0xff]
    %v4663 = vld [vmem:[%s4241 + $0x38] sm:$0xff]
    %v4664 = vld [vmem:[%s4241 + $0x48] sm:$0xff]
    %v4665 = vld [vmem:[%s4241 + $0x50] sm:$0xff]
    %v4666 = vld [vmem:[%s4241 + $0x60] sm:$0xff]
    %v4667 = vld [vmem:[%s4241 + $0x68] sm:$0xff]
    %v4668 = vld [vmem:[%s4241 + $0x78] sm:$0xff]
    %v4669 = vld [vmem:[%s4241 + $0x80] sm:$0xff]
    %v4670 = vld [vmem:[%s4241 + $0x90] sm:$0xff]
    %v4671 = vld [vmem:[%s4241 + $0x98] sm:$0xff]
    %v4672 = vld [vmem:[%s4241 + $0xa8] sm:$0xff]
    %v4673 = vld [vmem:[%s4241 + $0xb0] sm:$0xff]
    %v4674 = vld [vmem:[%s4241 + $0xc0] sm:$0xff]
    %v4675 = vld [vmem:[%s4241 + $0xc8] sm:$0xff]
    %v4676 = vld [vmem:[%s4241 + $0xd8] sm:$0xff]
    %v4677 = vld [vmem:[%s4241 + $0xe0] sm:$0xff]
    %v4678 = vld [vmem:[%s4241 + $0xf0] sm:$0xff]
    %v4679 = vld [vmem:[%s4241 + $0xf8] sm:$0xff]
    %v4680 = vld [vmem:[%s4241 + $0x108] sm:$0xff]
    %v4681 = vld [vmem:[%s4241 + $0x110] sm:$0xff]
    %v4682 = vld [vmem:[%s4241 + $0x120] sm:$0xff]
    %v4683 = vld [vmem:[%s4241 + $0x128] sm:$0xff]
    %v4684 = vld [vmem:[%s4241 + $0x138] sm:$0xff]
    %v4685 = vld [vmem:[%s4241 + $0x140] sm:$0xff]
    %v4686 = vld [vmem:[%s4241 + $0x150] sm:$0xff]
    %v4687 = vld [vmem:[%s4241 + $0x158] sm:$0xff]
    %v4688 = vld [vmem:[%s4241 + $0x168] sm:$0xff]
    %v4689 = vld [vmem:[%s4241 + $0x170] sm:$0xff]
    %v4690 = vld [vmem:[%s4241 + $0x1b0] sm:$0xff]
    %v4691 = vld [vmem:[%s4241 + $0x1b8] sm:$0xff]
    %v4692 = vld [vmem:[%s4241 + $0x1c8] sm:$0xff]
    %v4693 = vld [vmem:[%s4241 + $0x1d0] sm:$0xff]
    %v4694 = vld [vmem:[%s4241 + $0x1e0] sm:$0xff]
    %v4695 = vld [vmem:[%s4241 + $0x1e8] sm:$0xff]
    %v4696 = vld [vmem:[%s4241 + $0x1f8] sm:$0xff]
    %v4697 = vld [vmem:[%s4241 + $0x200] sm:$0xff]
    %v4698 = vld [vmem:[%s4241 + $0x210] sm:$0xff]
    %v4699 = vld [vmem:[%s4241 + $0x218] sm:$0xff]
    %v4700 = vld [vmem:[%s4241 + $0x228] sm:$0xff]
    %v4701 = vld [vmem:[%s4241 + $0x230] sm:$0xff]
    %v4702 = vld [vmem:[%s4241 + $0x240] sm:$0xff]
    %v4703 = vld [vmem:[%s4241 + $0x248] sm:$0xff]
    %v4704 = vld [vmem:[%s4241 + $0x258] sm:$0xff]
    %v4705 = vld [vmem:[%s4241 + $0x260] sm:$0xff]
    %v4706 = vld [vmem:[%s4241 + $0x270] sm:$0xff]
    %v4707 = vld [vmem:[%s4241 + $0x278] sm:$0xff]
    %v4708 = vld [vmem:[%s4241 + $0x288] sm:$0xff]
    %v4709 = vld [vmem:[%s4241 + $0x290] sm:$0xff]
    %v4710 = vld [vmem:[%s4241 + $0x2a0] sm:$0xff]
    %v4711 = vld [vmem:[%s4241 + $0x2a8] sm:$0xff]
    %v4712 = vld [vmem:[%s4241 + $0x2b8] sm:$0xff]
    %v4713 = vld [vmem:[%s4241 + $0x2c0] sm:$0xff]
    %v4714 = vld [vmem:[%s4241 + $0x2d0] sm:$0xff]
    %v4715 = vld [vmem:[%s4241 + $0x2d8] sm:$0xff]
    %v4716 = vld [vmem:[%s4241 + $0x2e8] sm:$0xff]
    %v4717 = vld [vmem:[%s4241 + $0x2f0] sm:$0xff]
    %v4718 = vld [vmem:[%s4241 + $0x300] sm:$0xff]
    %v4719 = vld [vmem:[%s4241 + $0x308] sm:$0xff]
    %v4720 = vld [vmem:[%s4241 + $0x318] sm:$0xff]
    %v4721 = vld [vmem:[%s4241 + $0x320] sm:$0xff]
    %v4722 = vpack.c.bf16 %v4659, %v4658
    %v4723 = vpack.c.bf16 %v4661, %v4660
    %v4724 = vpack.c.bf16 %v4663, %v4662
    %v4725 = vpack.c.bf16 %v4665, %v4664
    %v4726 = vpack.c.bf16 %v4667, %v4666
    %v4727 = vpack.c.bf16 %v4669, %v4668
    %v4728 = vpack.c.bf16 %v4671, %v4670
    %v4729 = vpack.c.bf16 %v4673, %v4672
    %v4730 = vpack.c.bf16 %v4675, %v4674
    %v4731 = vpack.c.bf16 %v4677, %v4676
    %v4732 = vpack.c.bf16 %v4679, %v4678
    %v4733 = vpack.c.bf16 %v4681, %v4680
    %v4734 = vpack.c.bf16 %v4683, %v4682
    %v4735 = vpack.c.bf16 %v4685, %v4684
    %v4736 = vpack.c.bf16 %v4687, %v4686
    %v4737 = vpack.c.bf16 %v4689, %v4688
    %v4738 = vpack.c.bf16 %v4691, %v4690
    %v4739 = vpack.c.bf16 %v4693, %v4692
    %v4740 = vpack.c.bf16 %v4695, %v4694
    %v4741 = vpack.c.bf16 %v4697, %v4696
    %v4742 = vpack.c.bf16 %v4699, %v4698
    %v4743 = vpack.c.bf16 %v4701, %v4700
    %v4744 = vpack.c.bf16 %v4703, %v4702
    %v4745 = vpack.c.bf16 %v4705, %v4704
    %v4746 = vpack.c.bf16 %v4707, %v4706
    %v4747 = vpack.c.bf16 %v4709, %v4708
    %v4748 = vpack.c.bf16 %v4711, %v4710
    %v4749 = vpack.c.bf16 %v4713, %v4712
    %v4750 = vpack.c.bf16 %v4715, %v4714
    %v4751 = vpack.c.bf16 %v4717, %v4716
    %v4752 = vpack.c.bf16 %v4719, %v4718
    %v4753 = vpack.c.bf16 %v4721, %v4720
    %v4754 = vld [vmem:[%s4241 + $0x1] sm:$0xff]
    %v4755 = vld [vmem:[%s4241 + $0x9] sm:$0xff]
    %v4756 = vld [vmem:[%s4241 + $0x19] sm:$0xff]
    %v4757 = vld [vmem:[%s4241 + $0x21] sm:$0xff]
    %v4758 = vld [vmem:[%s4241 + $0x31] sm:$0xff]
    %v4759 = vld [vmem:[%s4241 + $0x39] sm:$0xff]
    %v4760 = vld [vmem:[%s4241 + $0x49] sm:$0xff]
    %v4761 = vld [vmem:[%s4241 + $0x51] sm:$0xff]
    %v4762 = vld [vmem:[%s4241 + $0x61] sm:$0xff]
    %v4763 = vld [vmem:[%s4241 + $0x69] sm:$0xff]
    %v4764 = vld [vmem:[%s4241 + $0x79] sm:$0xff]
    %v4765 = vld [vmem:[%s4241 + $0x81] sm:$0xff]
    %v4766 = vld [vmem:[%s4241 + $0x91] sm:$0xff]
    %v4767 = vld [vmem:[%s4241 + $0x99] sm:$0xff]
    %v4768 = vld [vmem:[%s4241 + $0xa9] sm:$0xff]
    %v4769 = vld [vmem:[%s4241 + $0xb1] sm:$0xff]
    %v4770 = vld [vmem:[%s4241 + $0xc1] sm:$0xff]
    %v4771 = vld [vmem:[%s4241 + $0xc9] sm:$0xff]
    %v4772 = vld [vmem:[%s4241 + $0xd9] sm:$0xff]
    %v4773 = vld [vmem:[%s4241 + $0xe1] sm:$0xff]
    %v4774 = vld [vmem:[%s4241 + $0xf1] sm:$0xff]
    %v4775 = vld [vmem:[%s4241 + $0xf9] sm:$0xff]
    %v4776 = vld [vmem:[%s4241 + $0x109] sm:$0xff]
    %v4777 = vld [vmem:[%s4241 + $0x111] sm:$0xff]
    %v4778 = vld [vmem:[%s4241 + $0x121] sm:$0xff]
    %v4779 = vld [vmem:[%s4241 + $0x129] sm:$0xff]
    %v4780 = vld [vmem:[%s4241 + $0x139] sm:$0xff]
    %v4781 = vld [vmem:[%s4241 + $0x141] sm:$0xff]
    %v4782 = vld [vmem:[%s4241 + $0x151] sm:$0xff]
    %v4783 = vld [vmem:[%s4241 + $0x159] sm:$0xff]
    %v4784 = vld [vmem:[%s4241 + $0x169] sm:$0xff]
    %v4785 = vld [vmem:[%s4241 + $0x171] sm:$0xff]
    %v4786 = vld [vmem:[%s4241 + $0x1b1] sm:$0xff]
    %v4787 = vld [vmem:[%s4241 + $0x1b9] sm:$0xff]
    %v4788 = vld [vmem:[%s4241 + $0x1c9] sm:$0xff]
    %v4789 = vld [vmem:[%s4241 + $0x1d1] sm:$0xff]
    %v4790 = vld [vmem:[%s4241 + $0x1e1] sm:$0xff]
    %v4791 = vld [vmem:[%s4241 + $0x1e9] sm:$0xff]
    %v4792 = vld [vmem:[%s4241 + $0x1f9] sm:$0xff]
    %v4793 = vld [vmem:[%s4241 + $0x201] sm:$0xff]
    %v4794 = vld [vmem:[%s4241 + $0x211] sm:$0xff]
    %v4795 = vld [vmem:[%s4241 + $0x219] sm:$0xff]
    %v4796 = vld [vmem:[%s4241 + $0x229] sm:$0xff]
    %v4797 = vld [vmem:[%s4241 + $0x231] sm:$0xff]
    %v4798 = vld [vmem:[%s4241 + $0x241] sm:$0xff]
    %v4799 = vld [vmem:[%s4241 + $0x249] sm:$0xff]
    %v4800 = vld [vmem:[%s4241 + $0x259] sm:$0xff]
    %v4801 = vld [vmem:[%s4241 + $0x261] sm:$0xff]
    %v4802 = vld [vmem:[%s4241 + $0x271] sm:$0xff]
    %v4803 = vld [vmem:[%s4241 + $0x279] sm:$0xff]
    %v4804 = vld [vmem:[%s4241 + $0x289] sm:$0xff]
    %v4805 = vld [vmem:[%s4241 + $0x291] sm:$0xff]
    %v4806 = vld [vmem:[%s4241 + $0x2a1] sm:$0xff]
    %v4807 = vld [vmem:[%s4241 + $0x2a9] sm:$0xff]
    %v4808 = vld [vmem:[%s4241 + $0x2b9] sm:$0xff]
    %v4809 = vld [vmem:[%s4241 + $0x2c1] sm:$0xff]
    %v4810 = vld [vmem:[%s4241 + $0x2d1] sm:$0xff]
    %v4811 = vld [vmem:[%s4241 + $0x2d9] sm:$0xff]
    %v4812 = vld [vmem:[%s4241 + $0x2e9] sm:$0xff]
    %v4813 = vld [vmem:[%s4241 + $0x2f1] sm:$0xff]
    %v4814 = vld [vmem:[%s4241 + $0x301] sm:$0xff]
    %v4815 = vld [vmem:[%s4241 + $0x309] sm:$0xff]
    %v4816 = vld [vmem:[%s4241 + $0x319] sm:$0xff]
    %v4817 = vld [vmem:[%s4241 + $0x321] sm:$0xff]
    %v4818 = vpack.c.bf16 %v4755, %v4754
    %v4819 = vpack.c.bf16 %v4757, %v4756
    %v4820 = vpack.c.bf16 %v4759, %v4758
    %v4821 = vpack.c.bf16 %v4761, %v4760
    %v4822 = vpack.c.bf16 %v4763, %v4762
    %v4823 = vpack.c.bf16 %v4765, %v4764
    %v4824 = vpack.c.bf16 %v4767, %v4766
    %v4825 = vpack.c.bf16 %v4769, %v4768
    %v4826 = vpack.c.bf16 %v4771, %v4770
    %v4827 = vpack.c.bf16 %v4773, %v4772
    %v4828 = vpack.c.bf16 %v4775, %v4774
    %v4829 = vpack.c.bf16 %v4777, %v4776
    %v4830 = vpack.c.bf16 %v4779, %v4778
    %v4831 = vpack.c.bf16 %v4781, %v4780
    %v4832 = vpack.c.bf16 %v4783, %v4782
    %v4833 = vpack.c.bf16 %v4785, %v4784
    %v4834 = vpack.c.bf16 %v4787, %v4786
    %v4835 = vpack.c.bf16 %v4789, %v4788
    %v4836 = vpack.c.bf16 %v4791, %v4790
    %v4837 = vpack.c.bf16 %v4793, %v4792
    %v4838 = vpack.c.bf16 %v4795, %v4794
    %v4839 = vpack.c.bf16 %v4797, %v4796
    %v4840 = vpack.c.bf16 %v4799, %v4798
    %v4841 = vpack.c.bf16 %v4801, %v4800
    %v4842 = vpack.c.bf16 %v4803, %v4802
    %v4843 = vpack.c.bf16 %v4805, %v4804
    %v4844 = vpack.c.bf16 %v4807, %v4806
    %v4845 = vpack.c.bf16 %v4809, %v4808
    %v4846 = vpack.c.bf16 %v4811, %v4810
    %v4847 = vpack.c.bf16 %v4813, %v4812
    %v4848 = vpack.c.bf16 %v4815, %v4814
    %v4849 = vpack.c.bf16 %v4817, %v4816
    %v4850 = vld [vmem:[%s4241 + $0x2] sm:$0xff]
    %v4851 = vld [vmem:[%s4241 + $0xa] sm:$0xff]
    %v4852 = vld [vmem:[%s4241 + $0x1a] sm:$0xff]
    %v4853 = vld [vmem:[%s4241 + $0x22] sm:$0xff]
    %v4854 = vld [vmem:[%s4241 + $0x32] sm:$0xff]
    %v4855 = vld [vmem:[%s4241 + $0x3a] sm:$0xff]
    %v4856 = vld [vmem:[%s4241 + $0x4a] sm:$0xff]
    %v4857 = vld [vmem:[%s4241 + $0x52] sm:$0xff]
    %v4858 = vld [vmem:[%s4241 + $0x62] sm:$0xff]
    %v4859 = vld [vmem:[%s4241 + $0x6a] sm:$0xff]
    %v4860 = vld [vmem:[%s4241 + $0x7a] sm:$0xff]
    %v4861 = vld [vmem:[%s4241 + $0x82] sm:$0xff]
    %v4862 = vld [vmem:[%s4241 + $0x92] sm:$0xff]
    %v4863 = vld [vmem:[%s4241 + $0x9a] sm:$0xff]
    %v4864 = vld [vmem:[%s4241 + $0xaa] sm:$0xff]
    %v4865 = vld [vmem:[%s4241 + $0xb2] sm:$0xff]
    %v4866 = vld [vmem:[%s4241 + $0xc2] sm:$0xff]
    %v4867 = vld [vmem:[%s4241 + $0xca] sm:$0xff]
    %v4868 = vld [vmem:[%s4241 + $0xda] sm:$0xff]
    %v4869 = vld [vmem:[%s4241 + $0xe2] sm:$0xff]
    %v4870 = vld [vmem:[%s4241 + $0xf2] sm:$0xff]
    %v4871 = vld [vmem:[%s4241 + $0xfa] sm:$0xff]
    %v4872 = vld [vmem:[%s4241 + $0x10a] sm:$0xff]
    %v4873 = vld [vmem:[%s4241 + $0x112] sm:$0xff]
    %v4874 = vld [vmem:[%s4241 + $0x122] sm:$0xff]
    %v4875 = vld [vmem:[%s4241 + $0x12a] sm:$0xff]
    %v4876 = vld [vmem:[%s4241 + $0x13a] sm:$0xff]
    %v4877 = vld [vmem:[%s4241 + $0x142] sm:$0xff]
    %v4878 = vld [vmem:[%s4241 + $0x152] sm:$0xff]
    %v4879 = vld [vmem:[%s4241 + $0x15a] sm:$0xff]
    %v4880 = vld [vmem:[%s4241 + $0x16a] sm:$0xff]
    %v4881 = vld [vmem:[%s4241 + $0x172] sm:$0xff]
    %v4882 = vld [vmem:[%s4241 + $0x1b2] sm:$0xff]
    %v4883 = vld [vmem:[%s4241 + $0x1ba] sm:$0xff]
    %v4884 = vld [vmem:[%s4241 + $0x1ca] sm:$0xff]
    %v4885 = vld [vmem:[%s4241 + $0x1d2] sm:$0xff]
    %v4886 = vld [vmem:[%s4241 + $0x1e2] sm:$0xff]
    %v4887 = vld [vmem:[%s4241 + $0x1ea] sm:$0xff]
    %v4888 = vld [vmem:[%s4241 + $0x1fa] sm:$0xff]
    %v4889 = vld [vmem:[%s4241 + $0x202] sm:$0xff]
    %v4890 = vld [vmem:[%s4241 + $0x212] sm:$0xff]
    %v4891 = vld [vmem:[%s4241 + $0x21a] sm:$0xff]
    %v4892 = vld [vmem:[%s4241 + $0x22a] sm:$0xff]
    %v4893 = vld [vmem:[%s4241 + $0x232] sm:$0xff]
    %v4894 = vld [vmem:[%s4241 + $0x242] sm:$0xff]
    %v4895 = vld [vmem:[%s4241 + $0x24a] sm:$0xff]
    %v4896 = vld [vmem:[%s4241 + $0x25a] sm:$0xff]
    %v4897 = vld [vmem:[%s4241 + $0x262] sm:$0xff]
    %v4898 = vld [vmem:[%s4241 + $0x272] sm:$0xff]
    %v4899 = vld [vmem:[%s4241 + $0x27a] sm:$0xff]
    %v4900 = vld [vmem:[%s4241 + $0x28a] sm:$0xff]
    %v4901 = vld [vmem:[%s4241 + $0x292] sm:$0xff]
    %v4902 = vld [vmem:[%s4241 + $0x2a2] sm:$0xff]
    %v4903 = vld [vmem:[%s4241 + $0x2aa] sm:$0xff]
    %v4904 = vld [vmem:[%s4241 + $0x2ba] sm:$0xff]
    %v4905 = vld [vmem:[%s4241 + $0x2c2] sm:$0xff]
    %v4906 = vld [vmem:[%s4241 + $0x2d2] sm:$0xff]
    %v4907 = vld [vmem:[%s4241 + $0x2da] sm:$0xff]
    %v4908 = vld [vmem:[%s4241 + $0x2ea] sm:$0xff]
    %v4909 = vld [vmem:[%s4241 + $0x2f2] sm:$0xff]
    %v4910 = vld [vmem:[%s4241 + $0x302] sm:$0xff]
    %v4911 = vld [vmem:[%s4241 + $0x30a] sm:$0xff]
    %v4912 = vld [vmem:[%s4241 + $0x31a] sm:$0xff]
    %v4913 = vld [vmem:[%s4241 + $0x322] sm:$0xff]
    %v4914 = vpack.c.bf16 %v4851, %v4850
    %v4915 = vpack.c.bf16 %v4853, %v4852
    %v4916 = vpack.c.bf16 %v4855, %v4854
    %v4917 = vpack.c.bf16 %v4857, %v4856
    %v4918 = vpack.c.bf16 %v4859, %v4858
    %v4919 = vpack.c.bf16 %v4861, %v4860
    %v4920 = vpack.c.bf16 %v4863, %v4862
    %v4921 = vpack.c.bf16 %v4865, %v4864
    %v4922 = vpack.c.bf16 %v4867, %v4866
    %v4923 = vpack.c.bf16 %v4869, %v4868
    %v4924 = vpack.c.bf16 %v4871, %v4870
    %v4925 = vpack.c.bf16 %v4873, %v4872
    %v4926 = vpack.c.bf16 %v4875, %v4874
    %v4927 = vpack.c.bf16 %v4877, %v4876
    %v4928 = vpack.c.bf16 %v4879, %v4878
    %v4929 = vpack.c.bf16 %v4881, %v4880
    %v4930 = vpack.c.bf16 %v4883, %v4882
    %v4931 = vpack.c.bf16 %v4885, %v4884
    %v4932 = vpack.c.bf16 %v4887, %v4886
    %v4933 = vpack.c.bf16 %v4889, %v4888
    %v4934 = vpack.c.bf16 %v4891, %v4890
    %v4935 = vpack.c.bf16 %v4893, %v4892
    %v4936 = vpack.c.bf16 %v4895, %v4894
    %v4937 = vpack.c.bf16 %v4897, %v4896
    %v4938 = vpack.c.bf16 %v4899, %v4898
    %v4939 = vpack.c.bf16 %v4901, %v4900
    %v4940 = vpack.c.bf16 %v4903, %v4902
    %v4941 = vpack.c.bf16 %v4905, %v4904
    %v4942 = vpack.c.bf16 %v4907, %v4906
    %v4943 = vpack.c.bf16 %v4909, %v4908
    %v4944 = vpack.c.bf16 %v4911, %v4910
    %v4945 = vpack.c.bf16 %v4913, %v4912
    %s4946 = scalar_lea.vmem [#allocation3], 48
    %v4947 = vld [vmem:[%s4946] sm:$0xff]
    %v4948 = vld [vmem:[%s4946 + $0x8] sm:$0xff]
    %v4949 = vld [vmem:[%s4946 + $0x18] sm:$0xff]
    %v4950 = vld [vmem:[%s4946 + $0x20] sm:$0xff]
    %v4951 = vld [vmem:[%s4946 + $0x30] sm:$0xff]
    %v4952 = vld [vmem:[%s4946 + $0x38] sm:$0xff]
    %v4953 = vld [vmem:[%s4946 + $0x48] sm:$0xff]
    %v4954 = vld [vmem:[%s4946 + $0x50] sm:$0xff]
    %v4955 = vld [vmem:[%s4946 + $0x60] sm:$0xff]
    %v4956 = vld [vmem:[%s4946 + $0x68] sm:$0xff]
    %v4957 = vld [vmem:[%s4946 + $0x78] sm:$0xff]
    %v4958 = vld [vmem:[%s4946 + $0x80] sm:$0xff]
    %v4959 = vld [vmem:[%s4946 + $0x90] sm:$0xff]
    %v4960 = vld [vmem:[%s4946 + $0x98] sm:$0xff]
    %v4961 = vld [vmem:[%s4946 + $0xa8] sm:$0xff]
    %v4962 = vld [vmem:[%s4946 + $0xb0] sm:$0xff]
    %v4963 = vld [vmem:[%s4946 + $0xc0] sm:$0xff]
    %v4964 = vld [vmem:[%s4946 + $0xc8] sm:$0xff]
    %v4965 = vld [vmem:[%s4946 + $0xd8] sm:$0xff]
    %v4966 = vld [vmem:[%s4946 + $0xe0] sm:$0xff]
    %v4967 = vld [vmem:[%s4946 + $0xf0] sm:$0xff]
    %v4968 = vld [vmem:[%s4946 + $0xf8] sm:$0xff]
    %v4969 = vld [vmem:[%s4946 + $0x108] sm:$0xff]
    %v4970 = vld [vmem:[%s4946 + $0x110] sm:$0xff]
    %v4971 = vld [vmem:[%s4946 + $0x120] sm:$0xff]
    %v4972 = vld [vmem:[%s4946 + $0x128] sm:$0xff]
    %v4973 = vld [vmem:[%s4946 + $0x138] sm:$0xff]
    %v4974 = vld [vmem:[%s4946 + $0x140] sm:$0xff]
    %v4975 = vld [vmem:[%s4946 + $0x150] sm:$0xff]
    %v4976 = vld [vmem:[%s4946 + $0x158] sm:$0xff]
    %v4977 = vld [vmem:[%s4946 + $0x168] sm:$0xff]
    %v4978 = vld [vmem:[%s4946 + $0x170] sm:$0xff]
    %v4979 = vld [vmem:[%s4946 + $0x1b0] sm:$0xff]
    %v4980 = vld [vmem:[%s4946 + $0x1b8] sm:$0xff]
    %v4981 = vld [vmem:[%s4946 + $0x1c8] sm:$0xff]
    %v4982 = vld [vmem:[%s4946 + $0x1d0] sm:$0xff]
    %v4983 = vld [vmem:[%s4946 + $0x1e0] sm:$0xff]
    %v4984 = vld [vmem:[%s4946 + $0x1e8] sm:$0xff]
    %v4985 = vld [vmem:[%s4946 + $0x1f8] sm:$0xff]
    %v4986 = vld [vmem:[%s4946 + $0x200] sm:$0xff]
    %v4987 = vld [vmem:[%s4946 + $0x210] sm:$0xff]
    %v4988 = vld [vmem:[%s4946 + $0x218] sm:$0xff]
    %v4989 = vld [vmem:[%s4946 + $0x228] sm:$0xff]
    %v4990 = vld [vmem:[%s4946 + $0x230] sm:$0xff]
    %v4991 = vld [vmem:[%s4946 + $0x240] sm:$0xff]
    %v4992 = vld [vmem:[%s4946 + $0x248] sm:$0xff]
    %v4993 = vld [vmem:[%s4946 + $0x258] sm:$0xff]
    %v4994 = vld [vmem:[%s4946 + $0x260] sm:$0xff]
    %v4995 = vld [vmem:[%s4946 + $0x270] sm:$0xff]
    %v4996 = vld [vmem:[%s4946 + $0x278] sm:$0xff]
    %v4997 = vld [vmem:[%s4946 + $0x288] sm:$0xff]
    %v4998 = vld [vmem:[%s4946 + $0x290] sm:$0xff]
    %v4999 = vld [vmem:[%s4946 + $0x2a0] sm:$0xff]
    %v5000 = vld [vmem:[%s4946 + $0x2a8] sm:$0xff]
    %v5001 = vld [vmem:[%s4946 + $0x2b8] sm:$0xff]
    %v5002 = vld [vmem:[%s4946 + $0x2c0] sm:$0xff]
    %v5003 = vld [vmem:[%s4946 + $0x2d0] sm:$0xff]
    %v5004 = vld [vmem:[%s4946 + $0x2d8] sm:$0xff]
    %v5005 = vld [vmem:[%s4946 + $0x2e8] sm:$0xff]
    %v5006 = vld [vmem:[%s4946 + $0x2f0] sm:$0xff]
    %v5007 = vld [vmem:[%s4946 + $0x300] sm:$0xff]
    %v5008 = vld [vmem:[%s4946 + $0x308] sm:$0xff]
    %v5009 = vld [vmem:[%s4946 + $0x318] sm:$0xff]
    %v5010 = vld [vmem:[%s4946 + $0x320] sm:$0xff]
    %v5011 = vpack.c.bf16 %v4948, %v4947
    %v5012 = vpack.c.bf16 %v4950, %v4949
    %v5013 = vpack.c.bf16 %v4952, %v4951
    %v5014 = vpack.c.bf16 %v4954, %v4953
    %v5015 = vpack.c.bf16 %v4956, %v4955
    %v5016 = vpack.c.bf16 %v4958, %v4957
    %v5017 = vpack.c.bf16 %v4960, %v4959
    %v5018 = vpack.c.bf16 %v4962, %v4961
    %v5019 = vpack.c.bf16 %v4964, %v4963
    %v5020 = vpack.c.bf16 %v4966, %v4965
    %v5021 = vpack.c.bf16 %v4968, %v4967
    %v5022 = vpack.c.bf16 %v4970, %v4969
    %v5023 = vpack.c.bf16 %v4972, %v4971
    %v5024 = vpack.c.bf16 %v4974, %v4973
    %v5025 = vpack.c.bf16 %v4976, %v4975
    %v5026 = vpack.c.bf16 %v4978, %v4977
    %v5027 = vpack.c.bf16 %v4980, %v4979
    %v5028 = vpack.c.bf16 %v4982, %v4981
    %v5029 = vpack.c.bf16 %v4984, %v4983
    %v5030 = vpack.c.bf16 %v4986, %v4985
    %v5031 = vpack.c.bf16 %v4988, %v4987
    %v5032 = vpack.c.bf16 %v4990, %v4989
    %v5033 = vpack.c.bf16 %v4992, %v4991
    %v5034 = vpack.c.bf16 %v4994, %v4993
    %v5035 = vpack.c.bf16 %v4996, %v4995
    %v5036 = vpack.c.bf16 %v4998, %v4997
    %v5037 = vpack.c.bf16 %v5000, %v4999
    %v5038 = vpack.c.bf16 %v5002, %v5001
    %v5039 = vpack.c.bf16 %v5004, %v5003
    %v5040 = vpack.c.bf16 %v5006, %v5005
    %v5041 = vpack.c.bf16 %v5008, %v5007
    %v5042 = vpack.c.bf16 %v5010, %v5009
    %v5043 = vld [vmem:[%s4946 + $0x1] sm:$0xff]
    %v5044 = vld [vmem:[%s4946 + $0x9] sm:$0xff]
    %v5045 = vld [vmem:[%s4946 + $0x19] sm:$0xff]
    %v5046 = vld [vmem:[%s4946 + $0x21] sm:$0xff]
    %v5047 = vld [vmem:[%s4946 + $0x31] sm:$0xff]
    %v5048 = vld [vmem:[%s4946 + $0x39] sm:$0xff]
    %v5049 = vld [vmem:[%s4946 + $0x49] sm:$0xff]
    %v5050 = vld [vmem:[%s4946 + $0x51] sm:$0xff]
    %v5051 = vld [vmem:[%s4946 + $0x61] sm:$0xff]
    %v5052 = vld [vmem:[%s4946 + $0x69] sm:$0xff]
    %v5053 = vld [vmem:[%s4946 + $0x79] sm:$0xff]
    %v5054 = vld [vmem:[%s4946 + $0x81] sm:$0xff]
    %v5055 = vld [vmem:[%s4946 + $0x91] sm:$0xff]
    %v5056 = vld [vmem:[%s4946 + $0x99] sm:$0xff]
    %v5057 = vld [vmem:[%s4946 + $0xa9] sm:$0xff]
    %v5058 = vld [vmem:[%s4946 + $0xb1] sm:$0xff]
    %v5059 = vld [vmem:[%s4946 + $0xc1] sm:$0xff]
    %v5060 = vld [vmem:[%s4946 + $0xc9] sm:$0xff]
    %v5061 = vld [vmem:[%s4946 + $0xd9] sm:$0xff]
    %v5062 = vld [vmem:[%s4946 + $0xe1] sm:$0xff]
    %v5063 = vld [vmem:[%s4946 + $0xf1] sm:$0xff]
    %v5064 = vld [vmem:[%s4946 + $0xf9] sm:$0xff]
    %v5065 = vld [vmem:[%s4946 + $0x109] sm:$0xff]
    %v5066 = vld [vmem:[%s4946 + $0x111] sm:$0xff]
    %v5067 = vld [vmem:[%s4946 + $0x121] sm:$0xff]
    %v5068 = vld [vmem:[%s4946 + $0x129] sm:$0xff]
    %v5069 = vld [vmem:[%s4946 + $0x139] sm:$0xff]
    %v5070 = vld [vmem:[%s4946 + $0x141] sm:$0xff]
    %v5071 = vld [vmem:[%s4946 + $0x151] sm:$0xff]
    %v5072 = vld [vmem:[%s4946 + $0x159] sm:$0xff]
    %v5073 = vld [vmem:[%s4946 + $0x169] sm:$0xff]
    %v5074 = vld [vmem:[%s4946 + $0x171] sm:$0xff]
    %v5075 = vld [vmem:[%s4946 + $0x1b1] sm:$0xff]
    %v5076 = vld [vmem:[%s4946 + $0x1b9] sm:$0xff]
    %v5077 = vld [vmem:[%s4946 + $0x1c9] sm:$0xff]
    %v5078 = vld [vmem:[%s4946 + $0x1d1] sm:$0xff]
    %v5079 = vld [vmem:[%s4946 + $0x1e1] sm:$0xff]
    %v5080 = vld [vmem:[%s4946 + $0x1e9] sm:$0xff]
    %v5081 = vld [vmem:[%s4946 + $0x1f9] sm:$0xff]
    %v5082 = vld [vmem:[%s4946 + $0x201] sm:$0xff]
    %v5083 = vld [vmem:[%s4946 + $0x211] sm:$0xff]
    %v5084 = vld [vmem:[%s4946 + $0x219] sm:$0xff]
    %v5085 = vld [vmem:[%s4946 + $0x229] sm:$0xff]
    %v5086 = vld [vmem:[%s4946 + $0x231] sm:$0xff]
    %v5087 = vld [vmem:[%s4946 + $0x241] sm:$0xff]
    %v5088 = vld [vmem:[%s4946 + $0x249] sm:$0xff]
    %v5089 = vld [vmem:[%s4946 + $0x259] sm:$0xff]
    %v5090 = vld [vmem:[%s4946 + $0x261] sm:$0xff]
    %v5091 = vld [vmem:[%s4946 + $0x271] sm:$0xff]
    %v5092 = vld [vmem:[%s4946 + $0x279] sm:$0xff]
    %v5093 = vld [vmem:[%s4946 + $0x289] sm:$0xff]
    %v5094 = vld [vmem:[%s4946 + $0x291] sm:$0xff]
    %v5095 = vld [vmem:[%s4946 + $0x2a1] sm:$0xff]
    %v5096 = vld [vmem:[%s4946 + $0x2a9] sm:$0xff]
    %v5097 = vld [vmem:[%s4946 + $0x2b9] sm:$0xff]
    %v5098 = vld [vmem:[%s4946 + $0x2c1] sm:$0xff]
    %v5099 = vld [vmem:[%s4946 + $0x2d1] sm:$0xff]
    %v5100 = vld [vmem:[%s4946 + $0x2d9] sm:$0xff]
    %v5101 = vld [vmem:[%s4946 + $0x2e9] sm:$0xff]
    %v5102 = vld [vmem:[%s4946 + $0x2f1] sm:$0xff]
    %v5103 = vld [vmem:[%s4946 + $0x301] sm:$0xff]
    %v5104 = vld [vmem:[%s4946 + $0x309] sm:$0xff]
    %v5105 = vld [vmem:[%s4946 + $0x319] sm:$0xff]
    %v5106 = vld [vmem:[%s4946 + $0x321] sm:$0xff]
    %v5107 = vpack.c.bf16 %v5044, %v5043
    %v5108 = vpack.c.bf16 %v5046, %v5045
    %v5109 = vpack.c.bf16 %v5048, %v5047
    %v5110 = vpack.c.bf16 %v5050, %v5049
    %v5111 = vpack.c.bf16 %v5052, %v5051
    %v5112 = vpack.c.bf16 %v5054, %v5053
    %v5113 = vpack.c.bf16 %v5056, %v5055
    %v5114 = vpack.c.bf16 %v5058, %v5057
    %v5115 = vpack.c.bf16 %v5060, %v5059
    %v5116 = vpack.c.bf16 %v5062, %v5061
    %v5117 = vpack.c.bf16 %v5064, %v5063
    %v5118 = vpack.c.bf16 %v5066, %v5065
    %v5119 = vpack.c.bf16 %v5068, %v5067
    %v5120 = vpack.c.bf16 %v5070, %v5069
    %v5121 = vpack.c.bf16 %v5072, %v5071
    %v5122 = vpack.c.bf16 %v5074, %v5073
    %v5123 = vpack.c.bf16 %v5076, %v5075
    %v5124 = vpack.c.bf16 %v5078, %v5077
    %v5125 = vpack.c.bf16 %v5080, %v5079
    %v5126 = vpack.c.bf16 %v5082, %v5081
    %v5127 = vpack.c.bf16 %v5084, %v5083
    %v5128 = vpack.c.bf16 %v5086, %v5085
    %v5129 = vpack.c.bf16 %v5088, %v5087
    %v5130 = vpack.c.bf16 %v5090, %v5089
    %v5131 = vpack.c.bf16 %v5092, %v5091
    %v5132 = vpack.c.bf16 %v5094, %v5093
    %v5133 = vpack.c.bf16 %v5096, %v5095
    %v5134 = vpack.c.bf16 %v5098, %v5097
    %v5135 = vpack.c.bf16 %v5100, %v5099
    %v5136 = vpack.c.bf16 %v5102, %v5101
    %v5137 = vpack.c.bf16 %v5104, %v5103
    %v5138 = vpack.c.bf16 %v5106, %v5105
    %v5139 = vld [vmem:[%s4946 + $0x2] sm:$0xff]
    %v5140 = vld [vmem:[%s4946 + $0xa] sm:$0xff]
    %v5141 = vld [vmem:[%s4946 + $0x1a] sm:$0xff]
    %v5142 = vld [vmem:[%s4946 + $0x22] sm:$0xff]
    %v5143 = vld [vmem:[%s4946 + $0x32] sm:$0xff]
    %v5144 = vld [vmem:[%s4946 + $0x3a] sm:$0xff]
    %v5145 = vld [vmem:[%s4946 + $0x4a] sm:$0xff]
    %v5146 = vld [vmem:[%s4946 + $0x52] sm:$0xff]
    %v5147 = vld [vmem:[%s4946 + $0x62] sm:$0xff]
    %v5148 = vld [vmem:[%s4946 + $0x6a] sm:$0xff]
    %v5149 = vld [vmem:[%s4946 + $0x7a] sm:$0xff]
    %v5150 = vld [vmem:[%s4946 + $0x82] sm:$0xff]
    %v5151 = vld [vmem:[%s4946 + $0x92] sm:$0xff]
    %v5152 = vld [vmem:[%s4946 + $0x9a] sm:$0xff]
    %v5153 = vld [vmem:[%s4946 + $0xaa] sm:$0xff]
    %v5154 = vld [vmem:[%s4946 + $0xb2] sm:$0xff]
    %v5155 = vld [vmem:[%s4946 + $0xc2] sm:$0xff]
    %v5156 = vld [vmem:[%s4946 + $0xca] sm:$0xff]
    %v5157 = vld [vmem:[%s4946 + $0xda] sm:$0xff]
    %v5158 = vld [vmem:[%s4946 + $0xe2] sm:$0xff]
    %v5159 = vld [vmem:[%s4946 + $0xf2] sm:$0xff]
    %v5160 = vld [vmem:[%s4946 + $0xfa] sm:$0xff]
    %v5161 = vld [vmem:[%s4946 + $0x10a] sm:$0xff]
    %v5162 = vld [vmem:[%s4946 + $0x112] sm:$0xff]
    %v5163 = vld [vmem:[%s4946 + $0x122] sm:$0xff]
    %v5164 = vld [vmem:[%s4946 + $0x12a] sm:$0xff]
    %v5165 = vld [vmem:[%s4946 + $0x13a] sm:$0xff]
    %v5166 = vld [vmem:[%s4946 + $0x142] sm:$0xff]
    %v5167 = vld [vmem:[%s4946 + $0x152] sm:$0xff]
    %v5168 = vld [vmem:[%s4946 + $0x15a] sm:$0xff]
    %v5169 = vld [vmem:[%s4946 + $0x16a] sm:$0xff]
    %v5170 = vld [vmem:[%s4946 + $0x172] sm:$0xff]
    %v5171 = vld [vmem:[%s4946 + $0x1b2] sm:$0xff]
    %v5172 = vld [vmem:[%s4946 + $0x1ba] sm:$0xff]
    %v5173 = vld [vmem:[%s4946 + $0x1ca] sm:$0xff]
    %v5174 = vld [vmem:[%s4946 + $0x1d2] sm:$0xff]
    %v5175 = vld [vmem:[%s4946 + $0x1e2] sm:$0xff]
    %v5176 = vld [vmem:[%s4946 + $0x1ea] sm:$0xff]
    %v5177 = vld [vmem:[%s4946 + $0x1fa] sm:$0xff]
    %v5178 = vld [vmem:[%s4946 + $0x202] sm:$0xff]
    %v5179 = vld [vmem:[%s4946 + $0x212] sm:$0xff]
    %v5180 = vld [vmem:[%s4946 + $0x21a] sm:$0xff]
    %v5181 = vld [vmem:[%s4946 + $0x22a] sm:$0xff]
    %v5182 = vld [vmem:[%s4946 + $0x232] sm:$0xff]
    %v5183 = vld [vmem:[%s4946 + $0x242] sm:$0xff]
    %v5184 = vld [vmem:[%s4946 + $0x24a] sm:$0xff]
    %v5185 = vld [vmem:[%s4946 + $0x25a] sm:$0xff]
    %v5186 = vld [vmem:[%s4946 + $0x262] sm:$0xff]
    %v5187 = vld [vmem:[%s4946 + $0x272] sm:$0xff]
    %v5188 = vld [vmem:[%s4946 + $0x27a] sm:$0xff]
    %v5189 = vld [vmem:[%s4946 + $0x28a] sm:$0xff]
    %v5190 = vld [vmem:[%s4946 + $0x292] sm:$0xff]
    %v5191 = vld [vmem:[%s4946 + $0x2a2] sm:$0xff]
    %v5192 = vld [vmem:[%s4946 + $0x2aa] sm:$0xff]
    %v5193 = vld [vmem:[%s4946 + $0x2ba] sm:$0xff]
    %v5194 = vld [vmem:[%s4946 + $0x2c2] sm:$0xff]
    %v5195 = vld [vmem:[%s4946 + $0x2d2] sm:$0xff]
    %v5196 = vld [vmem:[%s4946 + $0x2da] sm:$0xff]
    %v5197 = vld [vmem:[%s4946 + $0x2ea] sm:$0xff]
    %v5198 = vld [vmem:[%s4946 + $0x2f2] sm:$0xff]
    %v5199 = vld [vmem:[%s4946 + $0x302] sm:$0xff]
    %v5200 = vld [vmem:[%s4946 + $0x30a] sm:$0xff]
    %v5201 = vld [vmem:[%s4946 + $0x31a] sm:$0xff]
    %v5202 = vld [vmem:[%s4946 + $0x322] sm:$0xff]
    %v5203 = vpack.c.bf16 %v5140, %v5139
    %v5204 = vpack.c.bf16 %v5142, %v5141
    %v5205 = vpack.c.bf16 %v5144, %v5143
    %v5206 = vpack.c.bf16 %v5146, %v5145
    %v5207 = vpack.c.bf16 %v5148, %v5147
    %v5208 = vpack.c.bf16 %v5150, %v5149
    %v5209 = vpack.c.bf16 %v5152, %v5151
    %v5210 = vpack.c.bf16 %v5154, %v5153
    %v5211 = vpack.c.bf16 %v5156, %v5155
    %v5212 = vpack.c.bf16 %v5158, %v5157
    %v5213 = vpack.c.bf16 %v5160, %v5159
    %v5214 = vpack.c.bf16 %v5162, %v5161
    %v5215 = vpack.c.bf16 %v5164, %v5163
    %v5216 = vpack.c.bf16 %v5166, %v5165
    %v5217 = vpack.c.bf16 %v5168, %v5167
    %v5218 = vpack.c.bf16 %v5170, %v5169
    %v5219 = vpack.c.bf16 %v5172, %v5171
    %v5220 = vpack.c.bf16 %v5174, %v5173
    %v5221 = vpack.c.bf16 %v5176, %v5175
    %v5222 = vpack.c.bf16 %v5178, %v5177
    %v5223 = vpack.c.bf16 %v5180, %v5179
    %v5224 = vpack.c.bf16 %v5182, %v5181
    %v5225 = vpack.c.bf16 %v5184, %v5183
    %v5226 = vpack.c.bf16 %v5186, %v5185
    %v5227 = vpack.c.bf16 %v5188, %v5187
    %v5228 = vpack.c.bf16 %v5190, %v5189
    %v5229 = vpack.c.bf16 %v5192, %v5191
    %v5230 = vpack.c.bf16 %v5194, %v5193
    %v5231 = vpack.c.bf16 %v5196, %v5195
    %v5232 = vpack.c.bf16 %v5198, %v5197
    %v5233 = vpack.c.bf16 %v5200, %v5199
    %v5234 = vpack.c.bf16 %v5202, %v5201
    %v5235 = vld [vmem:[%s5] sm:$0xff]
    %v5236 = vld [vmem:[%s5 + $0x8] sm:$0xff]
    %v5237 = vld [vmem:[%s5 + $0x10] sm:$0xff]
    %v5238 = vld [vmem:[%s5 + $0x18] sm:$0xff]
    %v5239 = vld [vmem:[%s5 + $0x20] sm:$0xff]
    %v5240 = vld [vmem:[%s5 + $0x28] sm:$0xff]
    %v5241 = vld [vmem:[%s5 + $0x30] sm:$0xff]
    %v5242 = vld [vmem:[%s5 + $0x38] sm:$0xff]
    %v5243 = vld [vmem:[%s5 + $0x40] sm:$0xff]
    %v5244 = vld [vmem:[%s5 + $0x48] sm:$0xff]
    %v5245 = vld [vmem:[%s5 + $0x50] sm:$0xff]
    %v5246 = vld [vmem:[%s5 + $0x58] sm:$0xff]
    %v5247 = vld [vmem:[%s5 + $0x60] sm:$0xff]
    %v5248 = vld [vmem:[%s5 + $0x68] sm:$0xff]
    %v5249 = vld [vmem:[%s5 + $0x70] sm:$0xff]
    %v5250 = vld [vmem:[%s5 + $0x78] sm:$0xff]
    %v5251 = vld [vmem:[%s5 + $0x80] sm:$0xff]
    %v5252 = vld [vmem:[%s5 + $0x88] sm:$0xff]
    %v5253 = vld [vmem:[%s5 + $0x90] sm:$0xff]
    %v5254 = vld [vmem:[%s5 + $0x98] sm:$0xff]
    %v5255 = vld [vmem:[%s5 + $0xa0] sm:$0xff]
    %v5256 = vld [vmem:[%s5 + $0xa8] sm:$0xff]
    %v5257 = vld [vmem:[%s5 + $0xb0] sm:$0xff]
    %v5258 = vld [vmem:[%s5 + $0xb8] sm:$0xff]
    %v5259 = vld [vmem:[%s5 + $0xc0] sm:$0xff]
    %v5260 = vld [vmem:[%s5 + $0xc8] sm:$0xff]
    %v5261 = vld [vmem:[%s5 + $0xd0] sm:$0xff]
    %v5262 = vld [vmem:[%s5 + $0xd8] sm:$0xff]
    %v5263 = vld [vmem:[%s5 + $0xe0] sm:$0xff]
    %v5264 = vld [vmem:[%s5 + $0xe8] sm:$0xff]
    %v5265 = vld [vmem:[%s5 + $0xf0] sm:$0xff]
    %v5266 = vld [vmem:[%s5 + $0xf8] sm:$0xff]
    %v5267 = vld [vmem:[%s5 + $0x100] sm:$0xff]
    %v5268 = vld [vmem:[%s5 + $0x108] sm:$0xff]
    %v5269 = vld [vmem:[%s5 + $0x110] sm:$0xff]
    %v5270 = vld [vmem:[%s5 + $0x118] sm:$0xff]
    %v5271 = vld [vmem:[%s5 + $0x120] sm:$0xff]
    %v5272 = vld [vmem:[%s5 + $0x128] sm:$0xff]
    %v5273 = vld [vmem:[%s5 + $0x130] sm:$0xff]
    %v5274 = vld [vmem:[%s5 + $0x138] sm:$0xff]
    %v5275 = vld [vmem:[%s5 + $0x140] sm:$0xff]
    %v5276 = vld [vmem:[%s5 + $0x148] sm:$0xff]
    %v5277 = vld [vmem:[%s5 + $0x150] sm:$0xff]
    %v5278 = vld [vmem:[%s5 + $0x158] sm:$0xff]
    %v5279 = vld [vmem:[%s5 + $0x160] sm:$0xff]
    %v5280 = vld [vmem:[%s5 + $0x168] sm:$0xff]
    %v5281 = vld [vmem:[%s5 + $0x170] sm:$0xff]
    %v5282 = vld [vmem:[%s5 + $0x178] sm:$0xff]
    %v5283 = vld [vmem:[%s5 + $0x180] sm:$0xff]
    %v5284 = vld [vmem:[%s5 + $0x188] sm:$0xff]
    %v5285 = vld [vmem:[%s5 + $0x190] sm:$0xff]
    %v5286 = vld [vmem:[%s5 + $0x198] sm:$0xff]
    %v5287 = vld [vmem:[%s5 + $0x1a0] sm:$0xff]
    %v5288 = vld [vmem:[%s5 + $0x1a8] sm:$0xff]
    %v5289 = vld [vmem:[%s5 + $0x1b0] sm:$0xff]
    %v5290 = vld [vmem:[%s5 + $0x1b8] sm:$0xff]
    %v5291 = vld [vmem:[%s5 + $0x1c0] sm:$0xff]
    %v5292 = vld [vmem:[%s5 + $0x1c8] sm:$0xff]
    %v5293 = vld [vmem:[%s5 + $0x1d0] sm:$0xff]
    %v5294 = vld [vmem:[%s5 + $0x1d8] sm:$0xff]
    %v5295 = vld [vmem:[%s5 + $0x1e0] sm:$0xff]
    %v5296 = vld [vmem:[%s5 + $0x1e8] sm:$0xff]
    %v5297 = vld [vmem:[%s5 + $0x1f0] sm:$0xff]
    %v5298 = vld [vmem:[%s5 + $0x1f8] sm:$0xff]
    %v5299 = vld [vmem:[%s5 + $0x200] sm:$0xff]
    %v5300 = vld [vmem:[%s5 + $0x208] sm:$0xff]
    %v5301 = vld [vmem:[%s5 + $0x210] sm:$0xff]
    %v5302 = vld [vmem:[%s5 + $0x218] sm:$0xff]
    %v5303 = vld [vmem:[%s5 + $0x220] sm:$0xff]
    %v5304 = vld [vmem:[%s5 + $0x228] sm:$0xff]
    %v5305 = vld [vmem:[%s5 + $0x230] sm:$0xff]
    %v5306 = vld [vmem:[%s5 + $0x238] sm:$0xff]
    %v5307 = vld [vmem:[%s5 + $0x240] sm:$0xff]
    %v5308 = vld [vmem:[%s5 + $0x248] sm:$0xff]
    %v5309 = vld [vmem:[%s5 + $0x250] sm:$0xff]
    %v5310 = vld [vmem:[%s5 + $0x258] sm:$0xff]
    %v5311 = vld [vmem:[%s5 + $0x260] sm:$0xff]
    %v5312 = vld [vmem:[%s5 + $0x268] sm:$0xff]
    %v5313 = vld [vmem:[%s5 + $0x270] sm:$0xff]
    %v5314 = vld [vmem:[%s5 + $0x278] sm:$0xff]
    %v5315 = vld [vmem:[%s5 + $0x280] sm:$0xff]
    %v5316 = vld [vmem:[%s5 + $0x288] sm:$0xff]
    %v5317 = vld [vmem:[%s5 + $0x290] sm:$0xff]
    %v5318 = vld [vmem:[%s5 + $0x298] sm:$0xff]
    %v5319 = vld [vmem:[%s5 + $0x2a0] sm:$0xff]
    %v5320 = vld [vmem:[%s5 + $0x2a8] sm:$0xff]
    %v5321 = vld [vmem:[%s5 + $0x2b0] sm:$0xff]
    %v5322 = vld [vmem:[%s5 + $0x2b8] sm:$0xff]
    %v5323 = vld [vmem:[%s5 + $0x2c0] sm:$0xff]
    %v5324 = vld [vmem:[%s5 + $0x2c8] sm:$0xff]
    %v5325 = vld [vmem:[%s5 + $0x2d0] sm:$0xff]
    %v5326 = vld [vmem:[%s5 + $0x2d8] sm:$0xff]
    %v5327 = vld [vmem:[%s5 + $0x2e0] sm:$0xff]
    %v5328 = vld [vmem:[%s5 + $0x2e8] sm:$0xff]
    %v5329 = vld [vmem:[%s5 + $0x2f0] sm:$0xff]
    %v5330 = vld [vmem:[%s5 + $0x2f8] sm:$0xff]
    %v5331 = vld [vmem:[%s5 + $0x300] sm:$0xff]
    %v5332 = vld [vmem:[%s5 + $0x308] sm:$0xff]
    %v5333 = vld [vmem:[%s5 + $0x310] sm:$0xff]
    %v5334 = vld [vmem:[%s5 + $0x318] sm:$0xff]
    %v5335 = vld [vmem:[%s5 + $0x320] sm:$0xff]
    %v5336 = vld [vmem:[%s5 + $0x328] sm:$0xff]
    %v5337 = vld [vmem:[%s5 + $0x330] sm:$0xff]
    %v5338 = vld [vmem:[%s5 + $0x338] sm:$0xff]
    %v5339 = vld [vmem:[%s5 + $0x340] sm:$0xff]
    %v5340 = vld [vmem:[%s5 + $0x348] sm:$0xff]
    %v5341 = vld [vmem:[%s5 + $0x350] sm:$0xff]
    %v5342 = vld [vmem:[%s5 + $0x358] sm:$0xff]
    %v5343 = vld [vmem:[%s5 + $0x360] sm:$0xff]
    %v5344 = vld [vmem:[%s5 + $0x368] sm:$0xff]
    %v5345 = vld [vmem:[%s5 + $0x370] sm:$0xff]
    %v5346 = vld [vmem:[%s5 + $0x378] sm:$0xff]
    %v5347 = vld [vmem:[%s5 + $0x380] sm:$0xff]
    %v5348 = vld [vmem:[%s5 + $0x388] sm:$0xff]
    %v5349 = vld [vmem:[%s5 + $0x390] sm:$0xff]
    %v5350 = vld [vmem:[%s5 + $0x398] sm:$0xff]
    %v5351 = vld [vmem:[%s5 + $0x3a0] sm:$0xff]
    %v5352 = vld [vmem:[%s5 + $0x3a8] sm:$0xff]
    %v5353 = vld [vmem:[%s5 + $0x3b0] sm:$0xff]
    %v5354 = vld [vmem:[%s5 + $0x3b8] sm:$0xff]
    %v5355 = vld [vmem:[%s5 + $0x3c0] sm:$0xff]
    %v5356 = vld [vmem:[%s5 + $0x3c8] sm:$0xff]
    %v5357 = vld [vmem:[%s5 + $0x3d0] sm:$0xff]
    %v5358 = vld [vmem:[%s5 + $0x3d8] sm:$0xff]
    %v5359 = vld [vmem:[%s5 + $0x3e0] sm:$0xff]
    %v5360 = vld [vmem:[%s5 + $0x3e8] sm:$0xff]
    %v5361 = vld [vmem:[%s5 + $0x3f0] sm:$0xff]
    %v5362 = vld [vmem:[%s5 + $0x3f8] sm:$0xff]
    %v5363 = vld [vmem:[%s5 + $0x400] sm:$0xff]
    %v5364 = vld [vmem:[%s5 + $0x408] sm:$0xff]
    %v5365 = vld [vmem:[%s5 + $0x410] sm:$0xff]
    %v5366 = vld [vmem:[%s5 + $0x418] sm:$0xff]
    %v5367 = vld [vmem:[%s5 + $0x420] sm:$0xff]
    %v5368 = vld [vmem:[%s5 + $0x428] sm:$0xff]
    %v5369 = vld [vmem:[%s5 + $0x430] sm:$0xff]
    %v5370 = vld [vmem:[%s5 + $0x438] sm:$0xff]
    %v5371 = vld [vmem:[%s5 + $0x440] sm:$0xff]
    %v5372 = vld [vmem:[%s5 + $0x448] sm:$0xff]
    %v5373 = vld [vmem:[%s5 + $0x450] sm:$0xff]
    %v5374 = vld [vmem:[%s5 + $0x458] sm:$0xff]
    %v5375 = vld [vmem:[%s5 + $0x460] sm:$0xff]
    %v5376 = vld [vmem:[%s5 + $0x468] sm:$0xff]
    %v5377 = vld [vmem:[%s5 + $0x470] sm:$0xff]
    %v5378 = vld [vmem:[%s5 + $0x478] sm:$0xff]
    %v5523 = vunpack.c.l.b16 %v5235
    %v5524 = vunpack.c.h.b16 %v5235
    %v5525 = vunpack.c.l.b16 %v5236
    %v5526 = vunpack.c.h.b16 %v5236
    %v5527 = vunpack.c.l.b16 %v5237
    %v5528 = vunpack.c.h.b16 %v5237
    %v5529 = vunpack.c.l.b16 %v5238
    %v5530 = vunpack.c.h.b16 %v5238
    %v5531 = vunpack.c.l.b16 %v5239
    %v5532 = vunpack.c.h.b16 %v5239
    %v5533 = vunpack.c.l.b16 %v5240
    %v5534 = vunpack.c.h.b16 %v5240
    %v5535 = vunpack.c.l.b16 %v5241
    %v5536 = vunpack.c.h.b16 %v5241
    %v5537 = vunpack.c.l.b16 %v5242
    %v5538 = vunpack.c.h.b16 %v5242
    %v5539 = vunpack.c.l.b16 %v5243
    %v5540 = vunpack.c.h.b16 %v5243
    %v5541 = vunpack.c.l.b16 %v5244
    %v5542 = vunpack.c.h.b16 %v5244
    %v5543 = vunpack.c.l.b16 %v5245
    %v5544 = vunpack.c.h.b16 %v5245
    %v5545 = vunpack.c.l.b16 %v5246
    %v5546 = vunpack.c.h.b16 %v5246
    %v5547 = vunpack.c.l.b16 %v5247
    %v5548 = vunpack.c.h.b16 %v5247
    %v5549 = vunpack.c.l.b16 %v5248
    %v5550 = vunpack.c.h.b16 %v5248
    %v5551 = vunpack.c.l.b16 %v5249
    %v5552 = vunpack.c.h.b16 %v5249
    %v5553 = vunpack.c.l.b16 %v5250
    %v5554 = vunpack.c.h.b16 %v5250
    %v5555 = vunpack.c.l.b16 %v5251
    %v5556 = vunpack.c.h.b16 %v5251
    %v5557 = vunpack.c.l.b16 %v5252
    %v5558 = vunpack.c.h.b16 %v5252
    %v5559 = vunpack.c.l.b16 %v5253
    %v5560 = vunpack.c.h.b16 %v5253
    %v5561 = vunpack.c.l.b16 %v5254
    %v5562 = vunpack.c.h.b16 %v5254
    %v5563 = vunpack.c.l.b16 %v5255
    %v5564 = vunpack.c.h.b16 %v5255
    %v5565 = vunpack.c.l.b16 %v5256
    %v5566 = vunpack.c.h.b16 %v5256
    %v5567 = vunpack.c.l.b16 %v5257
    %v5568 = vunpack.c.h.b16 %v5257
    %v5569 = vunpack.c.l.b16 %v5258
    %v5570 = vunpack.c.h.b16 %v5258
    %v5571 = vunpack.c.l.b16 %v5259
    %v5572 = vunpack.c.h.b16 %v5259
    %v5573 = vunpack.c.l.b16 %v5260
    %v5574 = vunpack.c.h.b16 %v5260
    %v5575 = vunpack.c.l.b16 %v5261
    %v5576 = vunpack.c.h.b16 %v5261
    %v5577 = vunpack.c.l.b16 %v5262
    %v5578 = vunpack.c.h.b16 %v5262
    %v5579 = vunpack.c.l.b16 %v5263
    %v5580 = vunpack.c.h.b16 %v5263
    %v5581 = vunpack.c.l.b16 %v5264
    %v5582 = vunpack.c.h.b16 %v5264
    %v5583 = vunpack.c.l.b16 %v5265
    %v5584 = vunpack.c.h.b16 %v5265
    %v5585 = vunpack.c.l.b16 %v5266
    %v5586 = vunpack.c.h.b16 %v5266
    %v5587 = vunpack.c.l.b16 %v5267
    %v5588 = vunpack.c.h.b16 %v5267
    %v5589 = vunpack.c.l.b16 %v5268
    %v5590 = vunpack.c.h.b16 %v5268
    %v5591 = vunpack.c.l.b16 %v5269
    %v5592 = vunpack.c.h.b16 %v5269
    %v5593 = vunpack.c.l.b16 %v5270
    %v5594 = vunpack.c.h.b16 %v5270
    %v5595 = vunpack.c.l.b16 %v5271
    %v5596 = vunpack.c.h.b16 %v5271
    %v5597 = vunpack.c.l.b16 %v5272
    %v5598 = vunpack.c.h.b16 %v5272
    %v5599 = vunpack.c.l.b16 %v5273
    %v5600 = vunpack.c.h.b16 %v5273
    %v5601 = vunpack.c.l.b16 %v5274
    %v5602 = vunpack.c.h.b16 %v5274
    %v5603 = vunpack.c.l.b16 %v5275
    %v5604 = vunpack.c.h.b16 %v5275
    %v5605 = vunpack.c.l.b16 %v5276
    %v5606 = vunpack.c.h.b16 %v5276
    %v5607 = vunpack.c.l.b16 %v5277
    %v5608 = vunpack.c.h.b16 %v5277
    %v5609 = vunpack.c.l.b16 %v5278
    %v5610 = vunpack.c.h.b16 %v5278
    %v5611 = vunpack.c.l.b16 %v5279
    %v5612 = vunpack.c.h.b16 %v5279
    %v5613 = vunpack.c.l.b16 %v5280
    %v5614 = vunpack.c.h.b16 %v5280
    %v5615 = vunpack.c.l.b16 %v5281
    %v5616 = vunpack.c.h.b16 %v5281
    %v5617 = vunpack.c.l.b16 %v5282
    %v5618 = vunpack.c.h.b16 %v5282
    %v5619 = vunpack.c.l.b16 %v5283
    %v5620 = vunpack.c.h.b16 %v5283
    %v5621 = vunpack.c.l.b16 %v5284
    %v5622 = vunpack.c.h.b16 %v5284
    %v5623 = vunpack.c.l.b16 %v5285
    %v5624 = vunpack.c.h.b16 %v5285
    %v5625 = vunpack.c.l.b16 %v5286
    %v5626 = vunpack.c.h.b16 %v5286
    %v5627 = vunpack.c.l.b16 %v5287
    %v5628 = vunpack.c.h.b16 %v5287
    %v5629 = vunpack.c.l.b16 %v5288
    %v5630 = vunpack.c.h.b16 %v5288
    %v5631 = vunpack.c.l.b16 %v5289
    %v5632 = vunpack.c.h.b16 %v5289
    %v5633 = vunpack.c.l.b16 %v5290
    %v5634 = vunpack.c.h.b16 %v5290
    %v5635 = vunpack.c.l.b16 %v5291
    %v5636 = vunpack.c.h.b16 %v5291
    %v5637 = vunpack.c.l.b16 %v5292
    %v5638 = vunpack.c.h.b16 %v5292
    %v5639 = vunpack.c.l.b16 %v5293
    %v5640 = vunpack.c.h.b16 %v5293
    %v5641 = vunpack.c.l.b16 %v5294
    %v5642 = vunpack.c.h.b16 %v5294
    %v5643 = vunpack.c.l.b16 %v5295
    %v5644 = vunpack.c.h.b16 %v5295
    %v5645 = vunpack.c.l.b16 %v5296
    %v5646 = vunpack.c.h.b16 %v5296
    %v5647 = vunpack.c.l.b16 %v5297
    %v5648 = vunpack.c.h.b16 %v5297
    %v5649 = vunpack.c.l.b16 %v5298
    %v5650 = vunpack.c.h.b16 %v5298
    %v5651 = vunpack.c.l.b16 %v5299
    %v5652 = vunpack.c.h.b16 %v5299
    %v5653 = vunpack.c.l.b16 %v5300
    %v5654 = vunpack.c.h.b16 %v5300
    %v5655 = vunpack.c.l.b16 %v5301
    %v5656 = vunpack.c.h.b16 %v5301
    %v5657 = vunpack.c.l.b16 %v5302
    %v5658 = vunpack.c.h.b16 %v5302
    %v5659 = vunpack.c.l.b16 %v5303
    %v5660 = vunpack.c.h.b16 %v5303
    %v5661 = vunpack.c.l.b16 %v5304
    %v5662 = vunpack.c.h.b16 %v5304
    %v5663 = vunpack.c.l.b16 %v5305
    %v5664 = vunpack.c.h.b16 %v5305
    %v5665 = vunpack.c.l.b16 %v5306
    %v5666 = vunpack.c.h.b16 %v5306
    %v5667 = vunpack.c.l.b16 %v5307
    %v5668 = vunpack.c.h.b16 %v5307
    %v5669 = vunpack.c.l.b16 %v5308
    %v5670 = vunpack.c.h.b16 %v5308
    %v5671 = vunpack.c.l.b16 %v5309
    %v5672 = vunpack.c.h.b16 %v5309
    %v5673 = vunpack.c.l.b16 %v5310
    %v5674 = vunpack.c.h.b16 %v5310
    %v5675 = vunpack.c.l.b16 %v5311
    %v5676 = vunpack.c.h.b16 %v5311
    %v5677 = vunpack.c.l.b16 %v5312
    %v5678 = vunpack.c.h.b16 %v5312
    %v5679 = vunpack.c.l.b16 %v5313
    %v5680 = vunpack.c.h.b16 %v5313
    %v5681 = vunpack.c.l.b16 %v5314
    %v5682 = vunpack.c.h.b16 %v5314
    %v5683 = vunpack.c.l.b16 %v5315
    %v5684 = vunpack.c.h.b16 %v5315
    %v5685 = vunpack.c.l.b16 %v5316
    %v5686 = vunpack.c.h.b16 %v5316
    %v5687 = vunpack.c.l.b16 %v5317
    %v5688 = vunpack.c.h.b16 %v5317
    %v5689 = vunpack.c.l.b16 %v5318
    %v5690 = vunpack.c.h.b16 %v5318
    %v5691 = vunpack.c.l.b16 %v5319
    %v5692 = vunpack.c.h.b16 %v5319
    %v5693 = vunpack.c.l.b16 %v5320
    %v5694 = vunpack.c.h.b16 %v5320
    %v5695 = vunpack.c.l.b16 %v5321
    %v5696 = vunpack.c.h.b16 %v5321
    %v5697 = vunpack.c.l.b16 %v5322
    %v5698 = vunpack.c.h.b16 %v5322
    %v5699 = vunpack.c.l.b16 %v5323
    %v5700 = vunpack.c.h.b16 %v5323
    %v5701 = vunpack.c.l.b16 %v5324
    %v5702 = vunpack.c.h.b16 %v5324
    %v5703 = vunpack.c.l.b16 %v5325
    %v5704 = vunpack.c.h.b16 %v5325
    %v5705 = vunpack.c.l.b16 %v5326
    %v5706 = vunpack.c.h.b16 %v5326
    %v5707 = vunpack.c.l.b16 %v5327
    %v5708 = vunpack.c.h.b16 %v5327
    %v5709 = vunpack.c.l.b16 %v5328
    %v5710 = vunpack.c.h.b16 %v5328
    %v5711 = vunpack.c.l.b16 %v5329
    %v5712 = vunpack.c.h.b16 %v5329
    %v5713 = vunpack.c.l.b16 %v5330
    %v5714 = vunpack.c.h.b16 %v5330
    %v5715 = vunpack.c.l.b16 %v5331
    %v5716 = vunpack.c.h.b16 %v5331
    %v5717 = vunpack.c.l.b16 %v5332
    %v5718 = vunpack.c.h.b16 %v5332
    %v5719 = vunpack.c.l.b16 %v5333
    %v5720 = vunpack.c.h.b16 %v5333
    %v5721 = vunpack.c.l.b16 %v5334
    %v5722 = vunpack.c.h.b16 %v5334
    %v5723 = vunpack.c.l.b16 %v5335
    %v5724 = vunpack.c.h.b16 %v5335
    %v5725 = vunpack.c.l.b16 %v5336
    %v5726 = vunpack.c.h.b16 %v5336
    %v5727 = vunpack.c.l.b16 %v5337
    %v5728 = vunpack.c.h.b16 %v5337
    %v5729 = vunpack.c.l.b16 %v5338
    %v5730 = vunpack.c.h.b16 %v5338
    %v5731 = vunpack.c.l.b16 %v5339
    %v5732 = vunpack.c.h.b16 %v5339
    %v5733 = vunpack.c.l.b16 %v5340
    %v5734 = vunpack.c.h.b16 %v5340
    %v5735 = vunpack.c.l.b16 %v5341
    %v5736 = vunpack.c.h.b16 %v5341
    %v5737 = vunpack.c.l.b16 %v5342
    %v5738 = vunpack.c.h.b16 %v5342
    %v5739 = vunpack.c.l.b16 %v5343
    %v5740 = vunpack.c.h.b16 %v5343
    %v5741 = vunpack.c.l.b16 %v5344
    %v5742 = vunpack.c.h.b16 %v5344
    %v5743 = vunpack.c.l.b16 %v5345
    %v5744 = vunpack.c.h.b16 %v5345
    %v5745 = vunpack.c.l.b16 %v5346
    %v5746 = vunpack.c.h.b16 %v5346
    %v5747 = vunpack.c.l.b16 %v5347
    %v5748 = vunpack.c.h.b16 %v5347
    %v5749 = vunpack.c.l.b16 %v5348
    %v5750 = vunpack.c.h.b16 %v5348
    %v5751 = vunpack.c.l.b16 %v5349
    %v5752 = vunpack.c.h.b16 %v5349
    %v5753 = vunpack.c.l.b16 %v5350
    %v5754 = vunpack.c.h.b16 %v5350
    %v5755 = vunpack.c.l.b16 %v5351
    %v5756 = vunpack.c.h.b16 %v5351
    %v5757 = vunpack.c.l.b16 %v5352
    %v5758 = vunpack.c.h.b16 %v5352
    %v5759 = vunpack.c.l.b16 %v5353
    %v5760 = vunpack.c.h.b16 %v5353
    %v5761 = vunpack.c.l.b16 %v5354
    %v5762 = vunpack.c.h.b16 %v5354
    %v5763 = vunpack.c.l.b16 %v5355
    %v5764 = vunpack.c.h.b16 %v5355
    %v5765 = vunpack.c.l.b16 %v5356
    %v5766 = vunpack.c.h.b16 %v5356
    %v5767 = vunpack.c.l.b16 %v5357
    %v5768 = vunpack.c.h.b16 %v5357
    %v5769 = vunpack.c.l.b16 %v5358
    %v5770 = vunpack.c.h.b16 %v5358
    %v5771 = vunpack.c.l.b16 %v5359
    %v5772 = vunpack.c.h.b16 %v5359
    %v5773 = vunpack.c.l.b16 %v5360
    %v5774 = vunpack.c.h.b16 %v5360
    %v5775 = vunpack.c.l.b16 %v5361
    %v5776 = vunpack.c.h.b16 %v5361
    %v5777 = vunpack.c.l.b16 %v5362
    %v5778 = vunpack.c.h.b16 %v5362
    %v5779 = vunpack.c.l.b16 %v5363
    %v5780 = vunpack.c.h.b16 %v5363
    %v5781 = vunpack.c.l.b16 %v5364
    %v5782 = vunpack.c.h.b16 %v5364
    %v5783 = vunpack.c.l.b16 %v5365
    %v5784 = vunpack.c.h.b16 %v5365
    %v5785 = vunpack.c.l.b16 %v5366
    %v5786 = vunpack.c.h.b16 %v5366
    %v5787 = vunpack.c.l.b16 %v5367
    %v5788 = vunpack.c.h.b16 %v5367
    %v5789 = vunpack.c.l.b16 %v5368
    %v5790 = vunpack.c.h.b16 %v5368
    %v5791 = vunpack.c.l.b16 %v5369
    %v5792 = vunpack.c.h.b16 %v5369
    %v5793 = vunpack.c.l.b16 %v5370
    %v5794 = vunpack.c.h.b16 %v5370
    %v5795 = vunpack.c.l.b16 %v5371
    %v5796 = vunpack.c.h.b16 %v5371
    %v5797 = vunpack.c.l.b16 %v5372
    %v5798 = vunpack.c.h.b16 %v5372
    %v5799 = vunpack.c.l.b16 %v5373
    %v5800 = vunpack.c.h.b16 %v5373
    %v5801 = vunpack.c.l.b16 %v5374
    %v5802 = vunpack.c.h.b16 %v5374
    %v5803 = vunpack.c.l.b16 %v5375
    %v5804 = vunpack.c.h.b16 %v5375
    %v5805 = vunpack.c.l.b16 %v5376
    %v5806 = vunpack.c.h.b16 %v5376
    %v5807 = vunpack.c.l.b16 %v5377
    %v5808 = vunpack.c.h.b16 %v5377
    %v5809 = vunpack.c.l.b16 %v5378
    %v5810 = vunpack.c.h.b16 %v5378
    %v5811 = vpack.c.b16 %v5525, %v5523
    %v5812 = vpack.c.b16 %v5526, %v5524
    %v5813 = vpack.c.b16 %v5529, %v5527
    %v5814 = vpack.c.b16 %v5530, %v5528
    %v5815 = vpack.c.b16 %v5533, %v5531
    %v5816 = vpack.c.b16 %v5534, %v5532
    %v5817 = vpack.c.b16 %v5537, %v5535
    %v5818 = vpack.c.b16 %v5538, %v5536
    %v5819 = vpack.c.b16 %v5541, %v5539
    %v5820 = vpack.c.b16 %v5542, %v5540
    %v5821 = vpack.c.b16 %v5545, %v5543
    %v5822 = vpack.c.b16 %v5546, %v5544
    %v5823 = vpack.c.b16 %v5549, %v5547
    %v5824 = vpack.c.b16 %v5550, %v5548
    %v5825 = vpack.c.b16 %v5553, %v5551
    %v5826 = vpack.c.b16 %v5554, %v5552
    %v5827 = vpack.c.b16 %v5557, %v5555
    %v5828 = vpack.c.b16 %v5558, %v5556
    %v5829 = vpack.c.b16 %v5561, %v5559
    %v5830 = vpack.c.b16 %v5562, %v5560
    %v5831 = vpack.c.b16 %v5565, %v5563
    %v5832 = vpack.c.b16 %v5566, %v5564
    %v5833 = vpack.c.b16 %v5569, %v5567
    %v5834 = vpack.c.b16 %v5570, %v5568
    %v5835 = vpack.c.b16 %v5573, %v5571
    %v5836 = vpack.c.b16 %v5574, %v5572
    %v5837 = vpack.c.b16 %v5577, %v5575
    %v5838 = vpack.c.b16 %v5578, %v5576
    %v5839 = vpack.c.b16 %v5581, %v5579
    %v5840 = vpack.c.b16 %v5582, %v5580
    %v5841 = vpack.c.b16 %v5585, %v5583
    %v5842 = vpack.c.b16 %v5586, %v5584
    %v5843 = vpack.c.b16 %v5589, %v5587
    %v5844 = vpack.c.b16 %v5590, %v5588
    %v5845 = vpack.c.b16 %v5593, %v5591
    %v5846 = vpack.c.b16 %v5594, %v5592
    %v5847 = vpack.c.b16 %v5597, %v5595
    %v5848 = vpack.c.b16 %v5598, %v5596
    %v5849 = vpack.c.b16 %v5601, %v5599
    %v5850 = vpack.c.b16 %v5602, %v5600
    %v5851 = vpack.c.b16 %v5605, %v5603
    %v5852 = vpack.c.b16 %v5606, %v5604
    %v5853 = vpack.c.b16 %v5609, %v5607
    %v5854 = vpack.c.b16 %v5610, %v5608
    %v5855 = vpack.c.b16 %v5613, %v5611
    %v5856 = vpack.c.b16 %v5614, %v5612
    %v5857 = vpack.c.b16 %v5617, %v5615
    %v5858 = vpack.c.b16 %v5618, %v5616
    %v5859 = vpack.c.b16 %v5621, %v5619
    %v5860 = vpack.c.b16 %v5622, %v5620
    %v5861 = vpack.c.b16 %v5625, %v5623
    %v5862 = vpack.c.b16 %v5626, %v5624
    %v5863 = vpack.c.b16 %v5629, %v5627
    %v5864 = vpack.c.b16 %v5630, %v5628
    %v5865 = vpack.c.b16 %v5633, %v5631
    %v5866 = vpack.c.b16 %v5634, %v5632
    %v5867 = vpack.c.b16 %v5637, %v5635
    %v5868 = vpack.c.b16 %v5638, %v5636
    %v5869 = vpack.c.b16 %v5641, %v5639
    %v5870 = vpack.c.b16 %v5642, %v5640
    %v5871 = vpack.c.b16 %v5645, %v5643
    %v5872 = vpack.c.b16 %v5646, %v5644
    %v5873 = vpack.c.b16 %v5649, %v5647
    %v5874 = vpack.c.b16 %v5650, %v5648
    %v5875 = vpack.c.b16 %v5653, %v5651
    %v5876 = vpack.c.b16 %v5654, %v5652
    %v5877 = vpack.c.b16 %v5657, %v5655
    %v5878 = vpack.c.b16 %v5658, %v5656
    %v5879 = vpack.c.b16 %v5661, %v5659
    %v5880 = vpack.c.b16 %v5662, %v5660
    %v5881 = vpack.c.b16 %v5665, %v5663
    %v5882 = vpack.c.b16 %v5666, %v5664
    %v5883 = vpack.c.b16 %v5669, %v5667
    %v5884 = vpack.c.b16 %v5670, %v5668
    %v5885 = vpack.c.b16 %v5673, %v5671
    %v5886 = vpack.c.b16 %v5674, %v5672
    %v5887 = vpack.c.b16 %v5677, %v5675
    %v5888 = vpack.c.b16 %v5678, %v5676
    %v5889 = vpack.c.b16 %v5681, %v5679
    %v5890 = vpack.c.b16 %v5682, %v5680
    %v5891 = vpack.c.b16 %v5685, %v5683
    %v5892 = vpack.c.b16 %v5686, %v5684
    %v5893 = vpack.c.b16 %v5689, %v5687
    %v5894 = vpack.c.b16 %v5690, %v5688
    %v5895 = vpack.c.b16 %v5693, %v5691
    %v5896 = vpack.c.b16 %v5694, %v5692
    %v5897 = vpack.c.b16 %v5697, %v5695
    %v5898 = vpack.c.b16 %v5698, %v5696
    %v5899 = vpack.c.b16 %v5701, %v5699
    %v5900 = vpack.c.b16 %v5702, %v5700
    %v5901 = vpack.c.b16 %v5705, %v5703
    %v5902 = vpack.c.b16 %v5706, %v5704
    %v5903 = vpack.c.b16 %v5709, %v5707
    %v5904 = vpack.c.b16 %v5710, %v5708
    %v5905 = vpack.c.b16 %v5713, %v5711
    %v5906 = vpack.c.b16 %v5714, %v5712
    %v5907 = vpack.c.b16 %v5717, %v5715
    %v5908 = vpack.c.b16 %v5718, %v5716
    %v5909 = vpack.c.b16 %v5721, %v5719
    %v5910 = vpack.c.b16 %v5722, %v5720
    %v5911 = vpack.c.b16 %v5725, %v5723
    %v5912 = vpack.c.b16 %v5726, %v5724
    %v5913 = vpack.c.b16 %v5729, %v5727
    %v5914 = vpack.c.b16 %v5730, %v5728
    %v5915 = vpack.c.b16 %v5733, %v5731
    %v5916 = vpack.c.b16 %v5734, %v5732
    %v5917 = vpack.c.b16 %v5737, %v5735
    %v5918 = vpack.c.b16 %v5738, %v5736
    %v5919 = vpack.c.b16 %v5741, %v5739
    %v5920 = vpack.c.b16 %v5742, %v5740
    %v5921 = vpack.c.b16 %v5745, %v5743
    %v5922 = vpack.c.b16 %v5746, %v5744
    %v5923 = vpack.c.b16 %v5749, %v5747
    %v5924 = vpack.c.b16 %v5750, %v5748
    %v5925 = vpack.c.b16 %v5753, %v5751
    %v5926 = vpack.c.b16 %v5754, %v5752
    %v5927 = vpack.c.b16 %v5757, %v5755
    %v5928 = vpack.c.b16 %v5758, %v5756
    %v5929 = vpack.c.b16 %v5761, %v5759
    %v5930 = vpack.c.b16 %v5762, %v5760
    %v5931 = vpack.c.b16 %v5765, %v5763
    %v5932 = vpack.c.b16 %v5766, %v5764
    %v5933 = vpack.c.b16 %v5769, %v5767
    %v5934 = vpack.c.b16 %v5770, %v5768
    %v5935 = vpack.c.b16 %v5773, %v5771
    %v5936 = vpack.c.b16 %v5774, %v5772
    %v5937 = vpack.c.b16 %v5777, %v5775
    %v5938 = vpack.c.b16 %v5778, %v5776
    %v5939 = vpack.c.b16 %v5781, %v5779
    %v5940 = vpack.c.b16 %v5782, %v5780
    %v5941 = vpack.c.b16 %v5785, %v5783
    %v5942 = vpack.c.b16 %v5786, %v5784
    %v5943 = vpack.c.b16 %v5789, %v5787
    %v5944 = vpack.c.b16 %v5790, %v5788
    %v5945 = vpack.c.b16 %v5793, %v5791
    %v5946 = vpack.c.b16 %v5794, %v5792
    %v5947 = vpack.c.b16 %v5797, %v5795
    %v5948 = vpack.c.b16 %v5798, %v5796
    %v5949 = vpack.c.b16 %v5801, %v5799
    %v5950 = vpack.c.b16 %v5802, %v5800
    %v5951 = vpack.c.b16 %v5805, %v5803
    %v5952 = vpack.c.b16 %v5806, %v5804
    %v5953 = vpack.c.b16 %v5809, %v5807
    %v5954 = vpack.c.b16 %v5810, %v5808
    %6099 = vmatprep.subr.bf16.mxu0 %v5812
    %6100 = vmatpush1.bf16.msra.mxu0 %v5811
    %6101 = vmatprep.subr.bf16.mxu0 %v5814
    %6102 = vmatpush1.bf16.msra.mxu0 %v5813
    %6103 = vmatprep.subr.bf16.mxu0 %v5816
    %6104 = vmatpush1.bf16.msra.mxu0 %v5815
    %6105 = vmatprep.subr.bf16.mxu0 %v5818
    %6106 = vmatpush1.bf16.msra.mxu0 %v5817
    %6107 = vmatprep.subr.bf16.mxu0 %v5820
    %6108 = vmatpush1.bf16.msra.mxu0 %v5819
    %6109 = vmatprep.subr.bf16.mxu0 %v5822
    %6110 = vmatpush1.bf16.msra.mxu0 %v5821
    %6111 = vmatprep.subr.bf16.mxu0 %v5824
    %6112 = vmatpush1.bf16.msra.mxu0 %v5823
    %6113 = vmatprep.subr.bf16.mxu0 %v5826
    %6114 = vmatpush1.bf16.msra.mxu0 %v5825
    %6115 = vmatprep.subr.bf16.mxu0 %v5828
    %6116 = vmatpush1.bf16.msra.mxu0 %v5827
    %6117 = vmatprep.subr.bf16.mxu0 %v5830
    %6118 = vmatpush1.bf16.msra.mxu0 %v5829
    %6119 = vmatprep.subr.bf16.mxu0 %v5832
    %6120 = vmatpush1.bf16.msra.mxu0 %v5831
    %6121 = vmatprep.subr.bf16.mxu0 %v5834
    %6122 = vmatpush1.bf16.msra.mxu0 %v5833
    %6123 = vmatprep.subr.bf16.mxu0 %v5836
    %6124 = vmatpush1.bf16.msra.mxu0 %v5835
    %6125 = vmatprep.subr.bf16.mxu0 %v5838
    %6126 = vmatpush1.bf16.msra.mxu0 %v5837
    %6127 = vmatprep.subr.bf16.mxu0 %v5840
    %6128 = vmatpush1.bf16.msra.mxu0 %v5839
    %6129 = vmatprep.subr.bf16.mxu0 %v5842
    %6130 = vmatpush1.bf16.msra.mxu0 %v5841
    %6131 = vmatprep.mubr.bf16.mxu0 %v4530
    %6132 = vmatmul.mubr.bf16.gmra.mrb[0].mxu0 %v4434
    %v6133 = vpop.f32.mrb[0].mxu0
    %v6134 = vadd.f32 0.0, %v6133
    %v6135 = vpop.f32.mrb[0].mxu0
    %v6136 = vadd.f32 0.0, %v6135
    %v6137 = vpop.f32.mrb[0].mxu0
    %v6138 = vadd.f32 0.0, %v6137
    %v6139 = vpop.f32.mrb[0].mxu0
    %v6140 = vadd.f32 0.0, %v6139
    %6141 = vmatprep.mubr.bf16.mxu0 %v4531
    %6142 = vmatmul.mubr.bf16.gmra.mrb[0].mxu0 %v4435
    %v6143 = vpop.f32.mrb[0].mxu0
    %v6144 = vadd.f32 0.0, %v6143
    %v6145 = vpop.f32.mrb[0].mxu0
    %v6146 = vadd.f32 0.0, %v6145
    %v6147 = vpop.f32.mrb[0].mxu0
    %v6148 = vadd.f32 0.0, %v6147
    %v6149 = vpop.f32.mrb[0].mxu0
    %v6150 = vadd.f32 0.0, %v6149
    %6151 = vmatprep.mubr.bf16.mxu0 %v4532
    %6152 = vmatmul.mubr.bf16.gmra.mrb[0].mxu0 %v4436
    %v6153 = vpop.f32.mrb[0].mxu0
    %v6154 = vadd.f32 0.0, %v6153
    %v6155 = vpop.f32.mrb[0].mxu0
    %v6156 = vadd.f32 0.0, %v6155
    %v6157 = vpop.f32.mrb[0].mxu0
    %v6158 = vadd.f32 0.0, %v6157
    %v6159 = vpop.f32.mrb[0].mxu0
    %v6160 = vadd.f32 0.0, %v6159
    %6161 = vmatprep.mubr.bf16.mxu0 %v4533
    %6162 = vmatmul.mubr.bf16.gmra.mrb[0].mxu0 %v4437
    %v6163 = vpop.f32.mrb[0].mxu0
    %v6164 = vadd.f32 0.0, %v6163
    %v6165 = vpop.f32.mrb[0].mxu0
    %v6166 = vadd.f32 0.0, %v6165
    %v6167 = vpop.f32.mrb[0].mxu0
    %v6168 = vadd.f32 0.0, %v6167
    %v6169 = vpop.f32.mrb[0].mxu0
    %v6170 = vadd.f32 0.0, %v6169
    %6171 = vmatprep.mubr.bf16.mxu0 %v4534
    %6172 = vmatmul.mubr.bf16.gmra.mrb[0].mxu0 %v4438
    %v6173 = vpop.f32.mrb[0].mxu0
    %v6174 = vadd.f32 0.0, %v6173
    %v6175 = vpop.f32.mrb[0].mxu0
    %v6176 = vadd.f32 0.0, %v6175
    %v6177 = vpop.f32.mrb[0].mxu0
    %v6178 = vadd.f32 0.0, %v6177
    %v6179 = vpop.f32.mrb[0].mxu0
    %v6180 = vadd.f32 0.0, %v6179
    %6181 = vmatprep.mubr.bf16.mxu0 %v4535
    %6182 = vmatmul.mubr.bf16.gmra.mrb[0].mxu0 %v4439
    %v6183 = vpop.f32.mrb[0].mxu0
    %v6184 = vadd.f32 0.0, %v6183
    %v6185 = vpop.f32.mrb[0].mxu0
    %v6186 = vadd.f32 0.0, %v6185
    %v6187 = vpop.f32.mrb[0].mxu0
    %v6188 = vadd.f32 0.0, %v6187
    %v6189 = vpop.f32.mrb[0].mxu0
    %v6190 = vadd.f32 0.0, %v6189
    %6191 = vmatprep.mubr.bf16.mxu0 %v4536
    %6192 = vmatmul.mubr.bf16.gmra.mrb[0].mxu0 %v4440
    %v6193 = vpop.f32.mrb[0].mxu0
    %v6194 = vadd.f32 0.0, %v6193
    %v6195 = vpop.f32.mrb[0].mxu0
    %v6196 = vadd.f32 0.0, %v6195
    %v6197 = vpop.f32.mrb[0].mxu0
    %v6198 = vadd.f32 0.0, %v6197
    %v6199 = vpop.f32.mrb[0].mxu0
    %v6200 = vadd.f32 0.0, %v6199
    %6201 = vmatprep.mubr.bf16.mxu0 %v4537
    %6202 = vmatmul.mubr.bf16.gmra.mrb[0].mxu0 %v4441
    %v6203 = vpop.f32.mrb[0].mxu0
    %v6204 = vadd.f32 0.0, %v6203
    %v6205 = vpop.f32.mrb[0].mxu0
    %v6206 = vadd.f32 0.0, %v6205
    %v6207 = vpop.f32.mrb[0].mxu0
    %v6208 = vadd.f32 0.0, %v6207
    %v6209 = vpop.f32.mrb[0].mxu0
    %v6210 = vadd.f32 0.0, %v6209
    %6211 = vmatprep.mubr.bf16.mxu0 %v4538
    %6212 = vmatmul.mubr.bf16.gmra.mrb[0].mxu0 %v4442
    %v6213 = vpop.f32.mrb[0].mxu0
    %v6214 = vadd.f32 0.0, %v6213
    %v6215 = vpop.f32.mrb[0].mxu0
    %v6216 = vadd.f32 0.0, %v6215
    %v6217 = vpop.f32.mrb[0].mxu0
    %v6218 = vadd.f32 0.0, %v6217
    %v6219 = vpop.f32.mrb[0].mxu0
    %v6220 = vadd.f32 0.0, %v6219
    %6221 = vmatprep.mubr.bf16.mxu0 %v4539
    %6222 = vmatmul.mubr.bf16.gmra.mrb[0].mxu0 %v4443
    %v6223 = vpop.f32.mrb[0].mxu0
    %v6224 = vadd.f32 0.0, %v6223
    %v6225 = vpop.f32.mrb[0].mxu0
    %v6226 = vadd.f32 0.0, %v6225
    %v6227 = vpop.f32.mrb[0].mxu0
    %v6228 = vadd.f32 0.0, %v6227
    %v6229 = vpop.f32.mrb[0].mxu0
    %v6230 = vadd.f32 0.0, %v6229
    %6231 = vmatprep.mubr.bf16.mxu0 %v4540
    %6232 = vmatmul.mubr.bf16.gmra.mrb[0].mxu0 %v4444
    %v6233 = vpop.f32.mrb[0].mxu0
    %v6234 = vadd.f32 0.0, %v6233
    %v6235 = vpop.f32.mrb[0].mxu0
    %v6236 = vadd.f32 0.0, %v6235
    %v6237 = vpop.f32.mrb[0].mxu0
    %v6238 = vadd.f32 0.0, %v6237
    %v6239 = vpop.f32.mrb[0].mxu0
    %v6240 = vadd.f32 0.0, %v6239
    %6241 = vmatprep.mubr.bf16.mxu0 %v4541
    %6242 = vmatmul.mubr.bf16.gmra.mrb[0].mxu0 %v4445
    %v6243 = vpop.f32.mrb[0].mxu0
    %v6244 = vadd.f32 0.0, %v6243
    %v6245 = vpop.f32.mrb[0].mxu0
    %v6246 = vadd.f32 0.0, %v6245
    %v6247 = vpop.f32.mrb[0].mxu0
    %v6248 = vadd.f32 0.0, %v6247
    %v6249 = vpop.f32.mrb[0].mxu0
    %v6250 = vadd.f32 0.0, %v6249
    %6251 = vmatprep.mubr.bf16.mxu0 %v4542
    %6252 = vmatmul.mubr.bf16.gmra.mrb[0].mxu0 %v4446
    %v6253 = vpop.f32.mrb[0].mxu0
    %v6254 = vadd.f32 0.0, %v6253
    %v6255 = vpop.f32.mrb[0].mxu0
    %v6256 = vadd.f32 0.0, %v6255
    %v6257 = vpop.f32.mrb[0].mxu0
    %v6258 = vadd.f32 0.0, %v6257
    %v6259 = vpop.f32.mrb[0].mxu0
    %v6260 = vadd.f32 0.0, %v6259
    %6261 = vmatprep.mubr.bf16.mxu0 %v4543
    %6262 = vmatmul.mubr.bf16.gmra.mrb[0].mxu0 %v4447
    %v6263 = vpop.f32.mrb[0].mxu0
    %v6264 = vadd.f32 0.0, %v6263
    %v6265 = vpop.f32.mrb[0].mxu0
    %v6266 = vadd.f32 0.0, %v6265
    %v6267 = vpop.f32.mrb[0].mxu0
    %v6268 = vadd.f32 0.0, %v6267
    %v6269 = vpop.f32.mrb[0].mxu0
    %v6270 = vadd.f32 0.0, %v6269
    %6271 = vmatprep.mubr.bf16.mxu0 %v4544
    %6272 = vmatmul.mubr.bf16.gmra.mrb[0].mxu0 %v4448
    %v6273 = vpop.f32.mrb[0].mxu0
    %v6274 = vadd.f32 0.0, %v6273
    %v6275 = vpop.f32.mrb[0].mxu0
    %v6276 = vadd.f32 0.0, %v6275
    %v6277 = vpop.f32.mrb[0].mxu0
    %v6278 = vadd.f32 0.0, %v6277
    %v6279 = vpop.f32.mrb[0].mxu0
    %v6280 = vadd.f32 0.0, %v6279
    %6281 = vmatprep.mubr.bf16.mxu0 %v4545
    %6282 = vmatmul.mubr.bf16.gmra.mrb[0].mxu0 %v4449
    %v6283 = vpop.f32.mrb[0].mxu0
    %v6284 = vadd.f32 0.0, %v6283
    %v6285 = vpop.f32.mrb[0].mxu0
    %v6286 = vadd.f32 0.0, %v6285
    %v6287 = vpop.f32.mrb[0].mxu0
    %v6288 = vadd.f32 0.0, %v6287
    %v6289 = vpop.f32.mrb[0].mxu0
    %v6290 = vadd.f32 0.0, %v6289
    %6291 = vmatprep.mubr.bf16.mxu0 %v4546
    %6292 = vmatmul.mubr.bf16.gmra.mrb[0].mxu0 %v4450
    %v6293 = vpop.f32.mrb[0].mxu0
    %v6294 = vadd.f32 0.0, %v6293
    %v6295 = vpop.f32.mrb[0].mxu0
    %v6296 = vadd.f32 0.0, %v6295
    %v6297 = vpop.f32.mrb[0].mxu0
    %v6298 = vadd.f32 0.0, %v6297
    %v6299 = vpop.f32.mrb[0].mxu0
    %v6300 = vadd.f32 0.0, %v6299
    %6301 = vmatprep.mubr.bf16.mxu0 %v4547
    %6302 = vmatmul.mubr.bf16.gmra.mrb[0].mxu0 %v4451
    %v6303 = vpop.f32.mrb[0].mxu0
    %v6304 = vadd.f32 0.0, %v6303
    %v6305 = vpop.f32.mrb[0].mxu0
    %v6306 = vadd.f32 0.0, %v6305
    %v6307 = vpop.f32.mrb[0].mxu0
    %v6308 = vadd.f32 0.0, %v6307
    %v6309 = vpop.f32.mrb[0].mxu0
    %v6310 = vadd.f32 0.0, %v6309
    %6311 = vmatprep.mubr.bf16.mxu0 %v4548
    %6312 = vmatmul.mubr.bf16.gmra.mrb[0].mxu0 %v4452
    %v6313 = vpop.f32.mrb[0].mxu0
    %v6314 = vadd.f32 0.0, %v6313
    %v6315 = vpop.f32.mrb[0].mxu0
    %v6316 = vadd.f32 0.0, %v6315
    %v6317 = vpop.f32.mrb[0].mxu0
    %v6318 = vadd.f32 0.0, %v6317
    %v6319 = vpop.f32.mrb[0].mxu0
    %v6320 = vadd.f32 0.0, %v6319
    %6321 = vmatprep.mubr.bf16.mxu0 %v4549
    %6322 = vmatmul.mubr.bf16.gmra.mrb[0].mxu0 %v4453
    %v6323 = vpop.f32.mrb[0].mxu0
    %v6324 = vadd.f32 0.0, %v6323
    %v6325 = vpop.f32.mrb[0].mxu0
    %v6326 = vadd.f32 0.0, %v6325
    %v6327 = vpop.f32.mrb[0].mxu0
    %v6328 = vadd.f32 0.0, %v6327
    %v6329 = vpop.f32.mrb[0].mxu0
    %v6330 = vadd.f32 0.0, %v6329
    %6331 = vmatprep.mubr.bf16.mxu0 %v4550
    %6332 = vmatmul.mubr.bf16.gmra.mrb[0].mxu0 %v4454
    %v6333 = vpop.f32.mrb[0].mxu0
    %v6334 = vadd.f32 0.0, %v6333
    %v6335 = vpop.f32.mrb[0].mxu0
    %v6336 = vadd.f32 0.0, %v6335
    %v6337 = vpop.f32.mrb[0].mxu0
    %v6338 = vadd.f32 0.0, %v6337
    %v6339 = vpop.f32.mrb[0].mxu0
    %v6340 = vadd.f32 0.0, %v6339
    %6341 = vmatprep.mubr.bf16.mxu0 %v4551
    %6342 = vmatmul.mubr.bf16.gmra.mrb[0].mxu0 %v4455
    %v6343 = vpop.f32.mrb[0].mxu0
    %v6344 = vadd.f32 0.0, %v6343
    %v6345 = vpop.f32.mrb[0].mxu0
    %v6346 = vadd.f32 0.0, %v6345
    %v6347 = vpop.f32.mrb[0].mxu0
    %v6348 = vadd.f32 0.0, %v6347
    %v6349 = vpop.f32.mrb[0].mxu0
    %v6350 = vadd.f32 0.0, %v6349
    %6351 = vmatprep.mubr.bf16.mxu0 %v4552
    %6352 = vmatmul.mubr.bf16.gmra.mrb[0].mxu0 %v4456
    %v6353 = vpop.f32.mrb[0].mxu0
    %v6354 = vadd.f32 0.0, %v6353
    %v6355 = vpop.f32.mrb[0].mxu0
    %v6356 = vadd.f32 0.0, %v6355
    %v6357 = vpop.f32.mrb[0].mxu0
    %v6358 = vadd.f32 0.0, %v6357
    %v6359 = vpop.f32.mrb[0].mxu0
    %v6360 = vadd.f32 0.0, %v6359
    %6361 = vmatprep.mubr.bf16.mxu0 %v4553
    %6362 = vmatmul.mubr.bf16.gmra.mrb[0].mxu0 %v4457
    %v6363 = vpop.f32.mrb[0].mxu0
    %v6364 = vadd.f32 0.0, %v6363
    %v6365 = vpop.f32.mrb[0].mxu0
    %v6366 = vadd.f32 0.0, %v6365
    %v6367 = vpop.f32.mrb[0].mxu0
    %v6368 = vadd.f32 0.0, %v6367
    %v6369 = vpop.f32.mrb[0].mxu0
    %v6370 = vadd.f32 0.0, %v6369
    %6371 = vmatprep.mubr.bf16.mxu0 %v4554
    %6372 = vmatmul.mubr.bf16.gmra.mrb[0].mxu0 %v4458
    %v6373 = vpop.f32.mrb[0].mxu0
    %v6374 = vadd.f32 0.0, %v6373
    %v6375 = vpop.f32.mrb[0].mxu0
    %v6376 = vadd.f32 0.0, %v6375
    %v6377 = vpop.f32.mrb[0].mxu0
    %v6378 = vadd.f32 0.0, %v6377
    %v6379 = vpop.f32.mrb[0].mxu0
    %v6380 = vadd.f32 0.0, %v6379
    %6381 = vmatprep.mubr.bf16.mxu0 %v4555
    %6382 = vmatmul.mubr.bf16.gmra.mrb[0].mxu0 %v4459
    %v6383 = vpop.f32.mrb[0].mxu0
    %v6384 = vadd.f32 0.0, %v6383
    %v6385 = vpop.f32.mrb[0].mxu0
    %v6386 = vadd.f32 0.0, %v6385
    %v6387 = vpop.f32.mrb[0].mxu0
    %v6388 = vadd.f32 0.0, %v6387
    %v6389 = vpop.f32.mrb[0].mxu0
    %v6390 = vadd.f32 0.0, %v6389
    %6391 = vmatprep.mubr.bf16.mxu0 %v4556
    %6392 = vmatmul.mubr.bf16.gmra.mrb[0].mxu0 %v4460
    %v6393 = vpop.f32.mrb[0].mxu0
    %v6394 = vadd.f32 0.0, %v6393
    %v6395 = vpop.f32.mrb[0].mxu0
    %v6396 = vadd.f32 0.0, %v6395
    %v6397 = vpop.f32.mrb[0].mxu0
    %v6398 = vadd.f32 0.0, %v6397
    %v6399 = vpop.f32.mrb[0].mxu0
    %v6400 = vadd.f32 0.0, %v6399
    %6401 = vmatprep.mubr.bf16.mxu0 %v4557
    %6402 = vmatmul.mubr.bf16.gmra.mrb[0].mxu0 %v4461
    %v6403 = vpop.f32.mrb[0].mxu0
    %v6404 = vadd.f32 0.0, %v6403
    %v6405 = vpop.f32.mrb[0].mxu0
    %v6406 = vadd.f32 0.0, %v6405
    %v6407 = vpop.f32.mrb[0].mxu0
    %v6408 = vadd.f32 0.0, %v6407
    %v6409 = vpop.f32.mrb[0].mxu0
    %v6410 = vadd.f32 0.0, %v6409
    %6411 = vmatprep.mubr.bf16.mxu0 %v4558
    %6412 = vmatmul.mubr.bf16.gmra.mrb[0].mxu0 %v4462
    %v6413 = vpop.f32.mrb[0].mxu0
    %v6414 = vadd.f32 0.0, %v6413
    %v6415 = vpop.f32.mrb[0].mxu0
    %v6416 = vadd.f32 0.0, %v6415
    %v6417 = vpop.f32.mrb[0].mxu0
    %v6418 = vadd.f32 0.0, %v6417
    %v6419 = vpop.f32.mrb[0].mxu0
    %v6420 = vadd.f32 0.0, %v6419
    %6421 = vmatprep.mubr.bf16.mxu0 %v4559
    %6422 = vmatmul.mubr.bf16.gmra.mrb[0].mxu0 %v4463
    %v6423 = vpop.f32.mrb[0].mxu0
    %v6424 = vadd.f32 0.0, %v6423
    %v6425 = vpop.f32.mrb[0].mxu0
    %v6426 = vadd.f32 0.0, %v6425
    %v6427 = vpop.f32.mrb[0].mxu0
    %v6428 = vadd.f32 0.0, %v6427
    %v6429 = vpop.f32.mrb[0].mxu0
    %v6430 = vadd.f32 0.0, %v6429
    %6431 = vmatprep.mubr.bf16.mxu0 %v4560
    %6432 = vmatmul.mubr.bf16.gmra.mrb[0].mxu0 %v4464
    %v6433 = vpop.f32.mrb[0].mxu0
    %v6434 = vadd.f32 0.0, %v6433
    %v6435 = vpop.f32.mrb[0].mxu0
    %v6436 = vadd.f32 0.0, %v6435
    %v6437 = vpop.f32.mrb[0].mxu0
    %v6438 = vadd.f32 0.0, %v6437
    %v6439 = vpop.f32.mrb[0].mxu0
    %v6440 = vadd.f32 0.0, %v6439
    %6441 = vmatprep.mubr.bf16.mxu0 %v4561
    %6442 = vmatmul.mubr.bf16.gmra.mrb[0].mxu0 %v4465
    %v6443 = vpop.f32.mrb[0].mxu0
    %v6444 = vadd.f32 0.0, %v6443
    %v6445 = vpop.f32.mrb[0].mxu0
    %v6446 = vadd.f32 0.0, %v6445
    %v6447 = vpop.f32.mrb[0].mxu0
    %v6448 = vadd.f32 0.0, %v6447
    %v6449 = vpop.f32.mrb[0].mxu0
    %v6450 = vadd.f32 0.0, %v6449
    %6451 = vdwg.mxu0
    %6452 = vmatprep.subr.bf16.mxu0 %v5844
    %6453 = vmatpush1.bf16.msra.mxu0 %v5843
    %6454 = vmatprep.subr.bf16.mxu0 %v5846
    %6455 = vmatpush1.bf16.msra.mxu0 %v5845
    %6456 = vmatprep.subr.bf16.mxu0 %v5848
    %6457 = vmatpush1.bf16.msra.mxu0 %v5847
    %6458 = vmatprep.subr.bf16.mxu0 %v5850
    %6459 = vmatpush1.bf16.msra.mxu0 %v5849
    %6460 = vmatprep.subr.bf16.mxu0 %v5852
    %6461 = vmatpush1.bf16.msra.mxu0 %v5851
    %6462 = vmatprep.subr.bf16.mxu0 %v5854
    %6463 = vmatpush1.bf16.msra.mxu0 %v5853
    %6464 = vmatprep.subr.bf16.mxu0 %v5856
    %6465 = vmatpush1.bf16.msra.mxu0 %v5855
    %6466 = vmatprep.subr.bf16.mxu0 %v5858
    %6467 = vmatpush1.bf16.msra.mxu0 %v5857
    %6468 = vmatprep.subr.bf16.mxu0 %v5860
    %6469 = vmatpush1.bf16.msra.mxu0 %v5859
    %6470 = vmatprep.subr.bf16.mxu0 %v5862
    %6471 = vmatpush1.bf16.msra.mxu0 %v5861
    %6472 = vmatprep.subr.bf16.mxu0 %v5864
    %6473 = vmatpush1.bf16.msra.mxu0 %v5863
    %6474 = vmatprep.subr.bf16.mxu0 %v5866
    %6475 = vmatpush1.bf16.msra.mxu0 %v5865
    %6476 = vmatprep.subr.bf16.mxu0 %v5868
    %6477 = vmatpush1.bf16.msra.mxu0 %v5867
    %6478 = vmatprep.subr.bf16.mxu0 %v5870
    %6479 = vmatpush1.bf16.msra.mxu0 %v5869
    %6480 = vmatprep.subr.bf16.mxu0 %v5872
    %6481 = vmatpush1.bf16.msra.mxu0 %v5871
    %6482 = vmatprep.subr.bf16.mxu0 %v5874
    %6483 = vmatpush1.bf16.msra.mxu0 %v5873
    %6484 = vmatprep.mubr.bf16.mxu0 %v4722
    %6485 = vmatmul.mubr.bf16.gmra.mrb[0].mxu0 %v4626
    %v6486 = vpop.f32.mrb[0].mxu0
    %v6487 = vadd.f32 %v6134, %v6486
    %v6488 = vpop.f32.mrb[0].mxu0
    %v6489 = vadd.f32 %v6136, %v6488
    %v6490 = vpop.f32.mrb[0].mxu0
    %v6491 = vadd.f32 %v6138, %v6490
    %v6492 = vpop.f32.mrb[0].mxu0
    %v6493 = vadd.f32 %v6140, %v6492
    %6494 = vmatprep.mubr.bf16.mxu0 %v4723
    %6495 = vmatmul.mubr.bf16.gmra.mrb[0].mxu0 %v4627
    %v6496 = vpop.f32.mrb[0].mxu0
    %v6497 = vadd.f32 %v6144, %v6496
    %v6498 = vpop.f32.mrb[0].mxu0
    %v6499 = vadd.f32 %v6146, %v6498
    %v6500 = vpop.f32.mrb[0].mxu0
    %v6501 = vadd.f32 %v6148, %v6500
    %v6502 = vpop.f32.mrb[0].mxu0
    %v6503 = vadd.f32 %v6150, %v6502
    %6504 = vmatprep.mubr.bf16.mxu0 %v4724
    %6505 = vmatmul.mubr.bf16.gmra.mrb[0].mxu0 %v4628
    %v6506 = vpop.f32.mrb[0].mxu0
    %v6507 = vadd.f32 %v6154, %v6506
    %v6508 = vpop.f32.mrb[0].mxu0
    %v6509 = vadd.f32 %v6156, %v6508
    %v6510 = vpop.f32.mrb[0].mxu0
    %v6511 = vadd.f32 %v6158, %v6510
    %v6512 = vpop.f32.mrb[0].mxu0
    %v6513 = vadd.f32 %v6160, %v6512
    %6514 = vmatprep.mubr.bf16.mxu0 %v4725
    %6515 = vmatmul.mubr.bf16.gmra.mrb[0].mxu0 %v4629
    %v6516 = vpop.f32.mrb[0].mxu0
    %v6517 = vadd.f32 %v6164, %v6516
    %v6518 = vpop.f32.mrb[0].mxu0
    %v6519 = vadd.f32 %v6166, %v6518
    %v6520 = vpop.f32.mrb[0].mxu0
    %v6521 = vadd.f32 %v6168, %v6520
    %v6522 = vpop.f32.mrb[0].mxu0
    %v6523 = vadd.f32 %v6170, %v6522
    %6524 = vmatprep.mubr.bf16.mxu0 %v4726
    %6525 = vmatmul.mubr.bf16.gmra.mrb[0].mxu0 %v4630
    %v6526 = vpop.f32.mrb[0].mxu0
    %v6527 = vadd.f32 %v6174, %v6526
    %v6528 = vpop.f32.mrb[0].mxu0
    %v6529 = vadd.f32 %v6176, %v6528
    %v6530 = vpop.f32.mrb[0].mxu0
    %v6531 = vadd.f32 %v6178, %v6530
    %v6532 = vpop.f32.mrb[0].mxu0
    %v6533 = vadd.f32 %v6180, %v6532
    %6534 = vmatprep.mubr.bf16.mxu0 %v4727
    %6535 = vmatmul.mubr.bf16.gmra.mrb[0].mxu0 %v4631
    %v6536 = vpop.f32.mrb[0].mxu0
    %v6537 = vadd.f32 %v6184, %v6536
    %v6538 = vpop.f32.mrb[0].mxu0
    %v6539 = vadd.f32 %v6186, %v6538
    %v6540 = vpop.f32.mrb[0].mxu0
    %v6541 = vadd.f32 %v6188, %v6540
    %v6542 = vpop.f32.mrb[0].mxu0
    %v6543 = vadd.f32 %v6190, %v6542
    %6544 = vmatprep.mubr.bf16.mxu0 %v4728
    %6545 = vmatmul.mubr.bf16.gmra.mrb[0].mxu0 %v4632
    %v6546 = vpop.f32.mrb[0].mxu0
    %v6547 = vadd.f32 %v6194, %v6546
    %v6548 = vpop.f32.mrb[0].mxu0
    %v6549 = vadd.f32 %v6196, %v6548
    %v6550 = vpop.f32.mrb[0].mxu0
    %v6551 = vadd.f32 %v6198, %v6550
    %v6552 = vpop.f32.mrb[0].mxu0
    %v6553 = vadd.f32 %v6200, %v6552
    %6554 = vmatprep.mubr.bf16.mxu0 %v4729
    %6555 = vmatmul.mubr.bf16.gmra.mrb[0].mxu0 %v4633
    %v6556 = vpop.f32.mrb[0].mxu0
    %v6557 = vadd.f32 %v6204, %v6556
    %v6558 = vpop.f32.mrb[0].mxu0
    %v6559 = vadd.f32 %v6206, %v6558
    %v6560 = vpop.f32.mrb[0].mxu0
    %v6561 = vadd.f32 %v6208, %v6560
    %v6562 = vpop.f32.mrb[0].mxu0
    %v6563 = vadd.f32 %v6210, %v6562
    %6564 = vmatprep.mubr.bf16.mxu0 %v4730
    %6565 = vmatmul.mubr.bf16.gmra.mrb[0].mxu0 %v4634
    %v6566 = vpop.f32.mrb[0].mxu0
    %v6567 = vadd.f32 %v6214, %v6566
    %v6568 = vpop.f32.mrb[0].mxu0
    %v6569 = vadd.f32 %v6216, %v6568
    %v6570 = vpop.f32.mrb[0].mxu0
    %v6571 = vadd.f32 %v6218, %v6570
    %v6572 = vpop.f32.mrb[0].mxu0
    %v6573 = vadd.f32 %v6220, %v6572
    %6574 = vmatprep.mubr.bf16.mxu0 %v4731
    %6575 = vmatmul.mubr.bf16.gmra.mrb[0].mxu0 %v4635
    %v6576 = vpop.f32.mrb[0].mxu0
    %v6577 = vadd.f32 %v6224, %v6576
    %v6578 = vpop.f32.mrb[0].mxu0
    %v6579 = vadd.f32 %v6226, %v6578
    %v6580 = vpop.f32.mrb[0].mxu0
    %v6581 = vadd.f32 %v6228, %v6580
    %v6582 = vpop.f32.mrb[0].mxu0
    %v6583 = vadd.f32 %v6230, %v6582
    %6584 = vmatprep.mubr.bf16.mxu0 %v4732
    %6585 = vmatmul.mubr.bf16.gmra.mrb[0].mxu0 %v4636
    %v6586 = vpop.f32.mrb[0].mxu0
    %v6587 = vadd.f32 %v6234, %v6586
    %v6588 = vpop.f32.mrb[0].mxu0
    %v6589 = vadd.f32 %v6236, %v6588
    %v6590 = vpop.f32.mrb[0].mxu0
    %v6591 = vadd.f32 %v6238, %v6590
    %v6592 = vpop.f32.mrb[0].mxu0
    %v6593 = vadd.f32 %v6240, %v6592
    %6594 = vmatprep.mubr.bf16.mxu0 %v4733
    %6595 = vmatmul.mubr.bf16.gmra.mrb[0].mxu0 %v4637
    %v6596 = vpop.f32.mrb[0].mxu0
    %v6597 = vadd.f32 %v6244, %v6596
    %v6598 = vpop.f32.mrb[0].mxu0
    %v6599 = vadd.f32 %v6246, %v6598
    %v6600 = vpop.f32.mrb[0].mxu0
    %v6601 = vadd.f32 %v6248, %v6600
    %v6602 = vpop.f32.mrb[0].mxu0
    %v6603 = vadd.f32 %v6250, %v6602
    %6604 = vmatprep.mubr.bf16.mxu0 %v4734
    %6605 = vmatmul.mubr.bf16.gmra.mrb[0].mxu0 %v4638
    %v6606 = vpop.f32.mrb[0].mxu0
    %v6607 = vadd.f32 %v6254, %v6606
    %v6608 = vpop.f32.mrb[0].mxu0
    %v6609 = vadd.f32 %v6256, %v6608
    %v6610 = vpop.f32.mrb[0].mxu0
    %v6611 = vadd.f32 %v6258, %v6610
    %v6612 = vpop.f32.mrb[0].mxu0
    %v6613 = vadd.f32 %v6260, %v6612
    %6614 = vmatprep.mubr.bf16.mxu0 %v4735
    %6615 = vmatmul.mubr.bf16.gmra.mrb[0].mxu0 %v4639
    %v6616 = vpop.f32.mrb[0].mxu0
    %v6617 = vadd.f32 %v6264, %v6616
    %v6618 = vpop.f32.mrb[0].mxu0
    %v6619 = vadd.f32 %v6266, %v6618
    %v6620 = vpop.f32.mrb[0].mxu0
    %v6621 = vadd.f32 %v6268, %v6620
    %v6622 = vpop.f32.mrb[0].mxu0
    %v6623 = vadd.f32 %v6270, %v6622
    %6624 = vmatprep.mubr.bf16.mxu0 %v4736
    %6625 = vmatmul.mubr.bf16.gmra.mrb[0].mxu0 %v4640
    %v6626 = vpop.f32.mrb[0].mxu0
    %v6627 = vadd.f32 %v6274, %v6626
    %v6628 = vpop.f32.mrb[0].mxu0
    %v6629 = vadd.f32 %v6276, %v6628
    %v6630 = vpop.f32.mrb[0].mxu0
    %v6631 = vadd.f32 %v6278, %v6630
    %v6632 = vpop.f32.mrb[0].mxu0
    %v6633 = vadd.f32 %v6280, %v6632
    %6634 = vmatprep.mubr.bf16.mxu0 %v4737
    %6635 = vmatmul.mubr.bf16.gmra.mrb[0].mxu0 %v4641
    %v6636 = vpop.f32.mrb[0].mxu0
    %v6637 = vadd.f32 %v6284, %v6636
    %v6638 = vpop.f32.mrb[0].mxu0
    %v6639 = vadd.f32 %v6286, %v6638
    %v6640 = vpop.f32.mrb[0].mxu0
    %v6641 = vadd.f32 %v6288, %v6640
    %v6642 = vpop.f32.mrb[0].mxu0
    %v6643 = vadd.f32 %v6290, %v6642
    %6644 = vmatprep.mubr.bf16.mxu0 %v4738
    %6645 = vmatmul.mubr.bf16.gmra.mrb[0].mxu0 %v4642
    %v6646 = vpop.f32.mrb[0].mxu0
    %v6647 = vadd.f32 %v6294, %v6646
    %v6648 = vpop.f32.mrb[0].mxu0
    %v6649 = vadd.f32 %v6296, %v6648
    %v6650 = vpop.f32.mrb[0].mxu0
    %v6651 = vadd.f32 %v6298, %v6650
    %v6652 = vpop.f32.mrb[0].mxu0
    %v6653 = vadd.f32 %v6300, %v6652
    %6654 = vmatprep.mubr.bf16.mxu0 %v4739
    %6655 = vmatmul.mubr.bf16.gmra.mrb[0].mxu0 %v4643
    %v6656 = vpop.f32.mrb[0].mxu0
    %v6657 = vadd.f32 %v6304, %v6656
    %v6658 = vpop.f32.mrb[0].mxu0
    %v6659 = vadd.f32 %v6306, %v6658
    %v6660 = vpop.f32.mrb[0].mxu0
    %v6661 = vadd.f32 %v6308, %v6660
    %v6662 = vpop.f32.mrb[0].mxu0
    %v6663 = vadd.f32 %v6310, %v6662
    %6664 = vmatprep.mubr.bf16.mxu0 %v4740
    %6665 = vmatmul.mubr.bf16.gmra.mrb[0].mxu0 %v4644
    %v6666 = vpop.f32.mrb[0].mxu0
    %v6667 = vadd.f32 %v6314, %v6666
    %v6668 = vpop.f32.mrb[0].mxu0
    %v6669 = vadd.f32 %v6316, %v6668
    %v6670 = vpop.f32.mrb[0].mxu0
    %v6671 = vadd.f32 %v6318, %v6670
    %v6672 = vpop.f32.mrb[0].mxu0
    %v6673 = vadd.f32 %v6320, %v6672
    %6674 = vmatprep.mubr.bf16.mxu0 %v4741
    %6675 = vmatmul.mubr.bf16.gmra.mrb[0].mxu0 %v4645
    %v6676 = vpop.f32.mrb[0].mxu0
    %v6677 = vadd.f32 %v6324, %v6676
    %v6678 = vpop.f32.mrb[0].mxu0
    %v6679 = vadd.f32 %v6326, %v6678
    %v6680 = vpop.f32.mrb[0].mxu0
    %v6681 = vadd.f32 %v6328, %v6680
    %v6682 = vpop.f32.mrb[0].mxu0
    %v6683 = vadd.f32 %v6330, %v6682
    %6684 = vmatprep.mubr.bf16.mxu0 %v4742
    %6685 = vmatmul.mubr.bf16.gmra.mrb[0].mxu0 %v4646
    %v6686 = vpop.f32.mrb[0].mxu0
    %v6687 = vadd.f32 %v6334, %v6686
    %v6688 = vpop.f32.mrb[0].mxu0
    %v6689 = vadd.f32 %v6336, %v6688
    %v6690 = vpop.f32.mrb[0].mxu0
    %v6691 = vadd.f32 %v6338, %v6690
    %v6692 = vpop.f32.mrb[0].mxu0
    %v6693 = vadd.f32 %v6340, %v6692
    %6694 = vmatprep.mubr.bf16.mxu0 %v4743
    %6695 = vmatmul.mubr.bf16.gmra.mrb[0].mxu0 %v4647
    %v6696 = vpop.f32.mrb[0].mxu0
    %v6697 = vadd.f32 %v6344, %v6696
    %v6698 = vpop.f32.mrb[0].mxu0
    %v6699 = vadd.f32 %v6346, %v6698
    %v6700 = vpop.f32.mrb[0].mxu0
    %v6701 = vadd.f32 %v6348, %v6700
    %v6702 = vpop.f32.mrb[0].mxu0
    %v6703 = vadd.f32 %v6350, %v6702
    %6704 = vmatprep.mubr.bf16.mxu0 %v4744
    %6705 = vmatmul.mubr.bf16.gmra.mrb[0].mxu0 %v4648
    %v6706 = vpop.f32.mrb[0].mxu0
    %v6707 = vadd.f32 %v6354, %v6706
    %v6708 = vpop.f32.mrb[0].mxu0
    %v6709 = vadd.f32 %v6356, %v6708
    %v6710 = vpop.f32.mrb[0].mxu0
    %v6711 = vadd.f32 %v6358, %v6710
    %v6712 = vpop.f32.mrb[0].mxu0
    %v6713 = vadd.f32 %v6360, %v6712
    %6714 = vmatprep.mubr.bf16.mxu0 %v4745
    %6715 = vmatmul.mubr.bf16.gmra.mrb[0].mxu0 %v4649
    %v6716 = vpop.f32.mrb[0].mxu0
    %v6717 = vadd.f32 %v6364, %v6716
    %v6718 = vpop.f32.mrb[0].mxu0
    %v6719 = vadd.f32 %v6366, %v6718
    %v6720 = vpop.f32.mrb[0].mxu0
    %v6721 = vadd.f32 %v6368, %v6720
    %v6722 = vpop.f32.mrb[0].mxu0
    %v6723 = vadd.f32 %v6370, %v6722
    %6724 = vmatprep.mubr.bf16.mxu0 %v4746
    %6725 = vmatmul.mubr.bf16.gmra.mrb[0].mxu0 %v4650
    %v6726 = vpop.f32.mrb[0].mxu0
    %v6727 = vadd.f32 %v6374, %v6726
    %v6728 = vpop.f32.mrb[0].mxu0
    %v6729 = vadd.f32 %v6376, %v6728
    %v6730 = vpop.f32.mrb[0].mxu0
    %v6731 = vadd.f32 %v6378, %v6730
    %v6732 = vpop.f32.mrb[0].mxu0
    %v6733 = vadd.f32 %v6380, %v6732
    %6734 = vmatprep.mubr.bf16.mxu0 %v4747
    %6735 = vmatmul.mubr.bf16.gmra.mrb[0].mxu0 %v4651
    %v6736 = vpop.f32.mrb[0].mxu0
    %v6737 = vadd.f32 %v6384, %v6736
    %v6738 = vpop.f32.mrb[0].mxu0
    %v6739 = vadd.f32 %v6386, %v6738
    %v6740 = vpop.f32.mrb[0].mxu0
    %v6741 = vadd.f32 %v6388, %v6740
    %v6742 = vpop.f32.mrb[0].mxu0
    %v6743 = vadd.f32 %v6390, %v6742
    %6744 = vmatprep.mubr.bf16.mxu0 %v4748
    %6745 = vmatmul.mubr.bf16.gmra.mrb[0].mxu0 %v4652
    %v6746 = vpop.f32.mrb[0].mxu0
    %v6747 = vadd.f32 %v6394, %v6746
    %v6748 = vpop.f32.mrb[0].mxu0
    %v6749 = vadd.f32 %v6396, %v6748
    %v6750 = vpop.f32.mrb[0].mxu0
    %v6751 = vadd.f32 %v6398, %v6750
    %v6752 = vpop.f32.mrb[0].mxu0
    %v6753 = vadd.f32 %v6400, %v6752
    %6754 = vmatprep.mubr.bf16.mxu0 %v4749
    %6755 = vmatmul.mubr.bf16.gmra.mrb[0].mxu0 %v4653
    %v6756 = vpop.f32.mrb[0].mxu0
    %v6757 = vadd.f32 %v6404, %v6756
    %v6758 = vpop.f32.mrb[0].mxu0
    %v6759 = vadd.f32 %v6406, %v6758
    %v6760 = vpop.f32.mrb[0].mxu0
    %v6761 = vadd.f32 %v6408, %v6760
    %v6762 = vpop.f32.mrb[0].mxu0
    %v6763 = vadd.f32 %v6410, %v6762
    %6764 = vmatprep.mubr.bf16.mxu0 %v4750
    %6765 = vmatmul.mubr.bf16.gmra.mrb[0].mxu0 %v4654
    %v6766 = vpop.f32.mrb[0].mxu0
    %v6767 = vadd.f32 %v6414, %v6766
    %v6768 = vpop.f32.mrb[0].mxu0
    %v6769 = vadd.f32 %v6416, %v6768
    %v6770 = vpop.f32.mrb[0].mxu0
    %v6771 = vadd.f32 %v6418, %v6770
    %v6772 = vpop.f32.mrb[0].mxu0
    %v6773 = vadd.f32 %v6420, %v6772
    %6774 = vmatprep.mubr.bf16.mxu0 %v4751
    %6775 = vmatmul.mubr.bf16.gmra.mrb[0].mxu0 %v4655
    %v6776 = vpop.f32.mrb[0].mxu0
    %v6777 = vadd.f32 %v6424, %v6776
    %v6778 = vpop.f32.mrb[0].mxu0
    %v6779 = vadd.f32 %v6426, %v6778
    %v6780 = vpop.f32.mrb[0].mxu0
    %v6781 = vadd.f32 %v6428, %v6780
    %v6782 = vpop.f32.mrb[0].mxu0
    %v6783 = vadd.f32 %v6430, %v6782
    %6784 = vmatprep.mubr.bf16.mxu0 %v4752
    %6785 = vmatmul.mubr.bf16.gmra.mrb[0].mxu0 %v4656
    %v6786 = vpop.f32.mrb[0].mxu0
    %v6787 = vadd.f32 %v6434, %v6786
    %v6788 = vpop.f32.mrb[0].mxu0
    %v6789 = vadd.f32 %v6436, %v6788
    %v6790 = vpop.f32.mrb[0].mxu0
    %v6791 = vadd.f32 %v6438, %v6790
    %v6792 = vpop.f32.mrb[0].mxu0
    %v6793 = vadd.f32 %v6440, %v6792
    %6794 = vmatprep.mubr.bf16.mxu0 %v4753
    %6795 = vmatmul.mubr.bf16.gmra.mrb[0].mxu0 %v4657
    %v6796 = vpop.f32.mrb[0].mxu0
    %v6797 = vadd.f32 %v6444, %v6796
    %v6798 = vpop.f32.mrb[0].mxu0
    %v6799 = vadd.f32 %v6446, %v6798
    %v6800 = vpop.f32.mrb[0].mxu0
    %v6801 = vadd.f32 %v6448, %v6800
    %v6802 = vpop.f32.mrb[0].mxu0
    %v6803 = vadd.f32 %v6450, %v6802
    %6804 = vdwg.mxu0
    %6805 = vmatprep.subr.bf16.mxu0 %v5876
    %6806 = vmatpush1.bf16.msra.mxu0 %v5875
    %6807 = vmatprep.subr.bf16.mxu0 %v5878
    %6808 = vmatpush1.bf16.msra.mxu0 %v5877
    %6809 = vmatprep.subr.bf16.mxu0 %v5880
    %6810 = vmatpush1.bf16.msra.mxu0 %v5879
    %6811 = vmatprep.subr.bf16.mxu0 %v5882
    %6812 = vmatpush1.bf16.msra.mxu0 %v5881
    %6813 = vmatprep.subr.bf16.mxu0 %v5884
    %6814 = vmatpush1.bf16.msra.mxu0 %v5883
    %6815 = vmatprep.subr.bf16.mxu0 %v5886
    %6816 = vmatpush1.bf16.msra.mxu0 %v5885
    %6817 = vmatprep.subr.bf16.mxu0 %v5888
    %6818 = vmatpush1.bf16.msra.mxu0 %v5887
    %6819 = vmatprep.subr.bf16.mxu0 %v5890
    %6820 = vmatpush1.bf16.msra.mxu0 %v5889
    %6821 = vmatprep.subr.bf16.mxu0 %v5892
    %6822 = vmatpush1.bf16.msra.mxu0 %v5891
    %6823 = vmatprep.subr.bf16.mxu0 %v5894
    %6824 = vmatpush1.bf16.msra.mxu0 %v5893
    %6825 = vmatprep.subr.bf16.mxu0 %v5896
    %6826 = vmatpush1.bf16.msra.mxu0 %v5895
    %6827 = vmatprep.subr.bf16.mxu0 %v5898
    %6828 = vmatpush1.bf16.msra.mxu0 %v5897
    %6829 = vmatprep.subr.bf16.mxu0 %v5900
    %6830 = vmatpush1.bf16.msra.mxu0 %v5899
    %6831 = vmatprep.subr.bf16.mxu0 %v5902
    %6832 = vmatpush1.bf16.msra.mxu0 %v5901
    %6833 = vmatprep.subr.bf16.mxu0 %v5904
    %6834 = vmatpush1.bf16.msra.mxu0 %v5903
    %6835 = vmatprep.subr.bf16.mxu0 %v5906
    %6836 = vmatpush1.bf16.msra.mxu0 %v5905
    %6837 = vmatprep.mubr.bf16.mxu0 %v4914
    %6838 = vmatmul.mubr.bf16.gmra.mrb[0].mxu0 %v4818
    %v6839 = vpop.f32.mrb[0].mxu0
    %v6840 = vadd.f32 %v6487, %v6839
    %v6841 = vpop.f32.mrb[0].mxu0
    %v6842 = vadd.f32 %v6489, %v6841
    %v6843 = vpop.f32.mrb[0].mxu0
    %v6844 = vadd.f32 %v6491, %v6843
    %v6845 = vpop.f32.mrb[0].mxu0
    %v6846 = vadd.f32 %v6493, %v6845
    %6847 = vmatprep.mubr.bf16.mxu0 %v4915
    %6848 = vmatmul.mubr.bf16.gmra.mrb[0].mxu0 %v4819
    %v6849 = vpop.f32.mrb[0].mxu0
    %v6850 = vadd.f32 %v6497, %v6849
    %v6851 = vpop.f32.mrb[0].mxu0
    %v6852 = vadd.f32 %v6499, %v6851
    %v6853 = vpop.f32.mrb[0].mxu0
    %v6854 = vadd.f32 %v6501, %v6853
    %v6855 = vpop.f32.mrb[0].mxu0
    %v6856 = vadd.f32 %v6503, %v6855
    %6857 = vmatprep.mubr.bf16.mxu0 %v4916
    %6858 = vmatmul.mubr.bf16.gmra.mrb[0].mxu0 %v4820
    %v6859 = vpop.f32.mrb[0].mxu0
    %v6860 = vadd.f32 %v6507, %v6859
    %v6861 = vpop.f32.mrb[0].mxu0
    %v6862 = vadd.f32 %v6509, %v6861
    %v6863 = vpop.f32.mrb[0].mxu0
    %v6864 = vadd.f32 %v6511, %v6863
    %v6865 = vpop.f32.mrb[0].mxu0
    %v6866 = vadd.f32 %v6513, %v6865
    %6867 = vmatprep.mubr.bf16.mxu0 %v4917
    %6868 = vmatmul.mubr.bf16.gmra.mrb[0].mxu0 %v4821
    %v6869 = vpop.f32.mrb[0].mxu0
    %v6870 = vadd.f32 %v6517, %v6869
    %v6871 = vpop.f32.mrb[0].mxu0
    %v6872 = vadd.f32 %v6519, %v6871
    %v6873 = vpop.f32.mrb[0].mxu0
    %v6874 = vadd.f32 %v6521, %v6873
    %v6875 = vpop.f32.mrb[0].mxu0
    %v6876 = vadd.f32 %v6523, %v6875
    %6877 = vmatprep.mubr.bf16.mxu0 %v4918
    %6878 = vmatmul.mubr.bf16.gmra.mrb[0].mxu0 %v4822
    %v6879 = vpop.f32.mrb[0].mxu0
    %v6880 = vadd.f32 %v6527, %v6879
    %v6881 = vpop.f32.mrb[0].mxu0
    %v6882 = vadd.f32 %v6529, %v6881
    %v6883 = vpop.f32.mrb[0].mxu0
    %v6884 = vadd.f32 %v6531, %v6883
    %v6885 = vpop.f32.mrb[0].mxu0
    %v6886 = vadd.f32 %v6533, %v6885
    %6887 = vmatprep.mubr.bf16.mxu0 %v4919
    %6888 = vmatmul.mubr.bf16.gmra.mrb[0].mxu0 %v4823
    %v6889 = vpop.f32.mrb[0].mxu0
    %v6890 = vadd.f32 %v6537, %v6889
    %v6891 = vpop.f32.mrb[0].mxu0
    %v6892 = vadd.f32 %v6539, %v6891
    %v6893 = vpop.f32.mrb[0].mxu0
    %v6894 = vadd.f32 %v6541, %v6893
    %v6895 = vpop.f32.mrb[0].mxu0
    %v6896 = vadd.f32 %v6543, %v6895
    %6897 = vmatprep.mubr.bf16.mxu0 %v4920
    %6898 = vmatmul.mubr.bf16.gmra.mrb[0].mxu0 %v4824
    %v6899 = vpop.f32.mrb[0].mxu0
    %v6900 = vadd.f32 %v6547, %v6899
    %v6901 = vpop.f32.mrb[0].mxu0
    %v6902 = vadd.f32 %v6549, %v6901
    %v6903 = vpop.f32.mrb[0].mxu0
    %v6904 = vadd.f32 %v6551, %v6903
    %v6905 = vpop.f32.mrb[0].mxu0
    %v6906 = vadd.f32 %v6553, %v6905
    %6907 = vmatprep.mubr.bf16.mxu0 %v4921
    %6908 = vmatmul.mubr.bf16.gmra.mrb[0].mxu0 %v4825
    %v6909 = vpop.f32.mrb[0].mxu0
    %v6910 = vadd.f32 %v6557, %v6909
    %v6911 = vpop.f32.mrb[0].mxu0
    %v6912 = vadd.f32 %v6559, %v6911
    %v6913 = vpop.f32.mrb[0].mxu0
    %v6914 = vadd.f32 %v6561, %v6913
    %v6915 = vpop.f32.mrb[0].mxu0
    %v6916 = vadd.f32 %v6563, %v6915
    %6917 = vmatprep.mubr.bf16.mxu0 %v4922
    %6918 = vmatmul.mubr.bf16.gmra.mrb[0].mxu0 %v4826
    %v6919 = vpop.f32.mrb[0].mxu0
    %v6920 = vadd.f32 %v6567, %v6919
    %v6921 = vpop.f32.mrb[0].mxu0
    %v6922 = vadd.f32 %v6569, %v6921
    %v6923 = vpop.f32.mrb[0].mxu0
    %v6924 = vadd.f32 %v6571, %v6923
    %v6925 = vpop.f32.mrb[0].mxu0
    %v6926 = vadd.f32 %v6573, %v6925
    %6927 = vmatprep.mubr.bf16.mxu0 %v4923
    %6928 = vmatmul.mubr.bf16.gmra.mrb[0].mxu0 %v4827
    %v6929 = vpop.f32.mrb[0].mxu0
    %v6930 = vadd.f32 %v6577, %v6929
    %v6931 = vpop.f32.mrb[0].mxu0
    %v6932 = vadd.f32 %v6579, %v6931
    %v6933 = vpop.f32.mrb[0].mxu0
    %v6934 = vadd.f32 %v6581, %v6933
    %v6935 = vpop.f32.mrb[0].mxu0
    %v6936 = vadd.f32 %v6583, %v6935
    %6937 = vmatprep.mubr.bf16.mxu0 %v4924
    %6938 = vmatmul.mubr.bf16.gmra.mrb[0].mxu0 %v4828
    %v6939 = vpop.f32.mrb[0].mxu0
    %v6940 = vadd.f32 %v6587, %v6939
    %v6941 = vpop.f32.mrb[0].mxu0
    %v6942 = vadd.f32 %v6589, %v6941
    %v6943 = vpop.f32.mrb[0].mxu0
    %v6944 = vadd.f32 %v6591, %v6943
    %v6945 = vpop.f32.mrb[0].mxu0
    %v6946 = vadd.f32 %v6593, %v6945
    %6947 = vmatprep.mubr.bf16.mxu0 %v4925
    %6948 = vmatmul.mubr.bf16.gmra.mrb[0].mxu0 %v4829
    %v6949 = vpop.f32.mrb[0].mxu0
    %v6950 = vadd.f32 %v6597, %v6949
    %v6951 = vpop.f32.mrb[0].mxu0
    %v6952 = vadd.f32 %v6599, %v6951
    %v6953 = vpop.f32.mrb[0].mxu0
    %v6954 = vadd.f32 %v6601, %v6953
    %v6955 = vpop.f32.mrb[0].mxu0
    %v6956 = vadd.f32 %v6603, %v6955
    %6957 = vmatprep.mubr.bf16.mxu0 %v4926
    %6958 = vmatmul.mubr.bf16.gmra.mrb[0].mxu0 %v4830
    %v6959 = vpop.f32.mrb[0].mxu0
    %v6960 = vadd.f32 %v6607, %v6959
    %v6961 = vpop.f32.mrb[0].mxu0
    %v6962 = vadd.f32 %v6609, %v6961
    %v6963 = vpop.f32.mrb[0].mxu0
    %v6964 = vadd.f32 %v6611, %v6963
    %v6965 = vpop.f32.mrb[0].mxu0
    %v6966 = vadd.f32 %v6613, %v6965
    %6967 = vmatprep.mubr.bf16.mxu0 %v4927
    %6968 = vmatmul.mubr.bf16.gmra.mrb[0].mxu0 %v4831
    %v6969 = vpop.f32.mrb[0].mxu0
    %v6970 = vadd.f32 %v6617, %v6969
    %v6971 = vpop.f32.mrb[0].mxu0
    %v6972 = vadd.f32 %v6619, %v6971
    %v6973 = vpop.f32.mrb[0].mxu0
    %v6974 = vadd.f32 %v6621, %v6973
    %v6975 = vpop.f32.mrb[0].mxu0
    %v6976 = vadd.f32 %v6623, %v6975
    %6977 = vmatprep.mubr.bf16.mxu0 %v4928
    %6978 = vmatmul.mubr.bf16.gmra.mrb[0].mxu0 %v4832
    %v6979 = vpop.f32.mrb[0].mxu0
    %v6980 = vadd.f32 %v6627, %v6979
    %v6981 = vpop.f32.mrb[0].mxu0
    %v6982 = vadd.f32 %v6629, %v6981
    %v6983 = vpop.f32.mrb[0].mxu0
    %v6984 = vadd.f32 %v6631, %v6983
    %v6985 = vpop.f32.mrb[0].mxu0
    %v6986 = vadd.f32 %v6633, %v6985
    %6987 = vmatprep.mubr.bf16.mxu0 %v4929
    %6988 = vmatmul.mubr.bf16.gmra.mrb[0].mxu0 %v4833
    %v6989 = vpop.f32.mrb[0].mxu0
    %v6990 = vadd.f32 %v6637, %v6989
    %v6991 = vpop.f32.mrb[0].mxu0
    %v6992 = vadd.f32 %v6639, %v6991
    %v6993 = vpop.f32.mrb[0].mxu0
    %v6994 = vadd.f32 %v6641, %v6993
    %v6995 = vpop.f32.mrb[0].mxu0
    %v6996 = vadd.f32 %v6643, %v6995
    %6997 = vmatprep.mubr.bf16.mxu0 %v4930
    %6998 = vmatmul.mubr.bf16.gmra.mrb[0].mxu0 %v4834
    %v6999 = vpop.f32.mrb[0].mxu0
    %v7000 = vadd.f32 %v6647, %v6999
    %v7001 = vpop.f32.mrb[0].mxu0
    %v7002 = vadd.f32 %v6649, %v7001
    %v7003 = vpop.f32.mrb[0].mxu0
    %v7004 = vadd.f32 %v6651, %v7003
    %v7005 = vpop.f32.mrb[0].mxu0
    %v7006 = vadd.f32 %v6653, %v7005
    %7007 = vmatprep.mubr.bf16.mxu0 %v4931
    %7008 = vmatmul.mubr.bf16.gmra.mrb[0].mxu0 %v4835
    %v7009 = vpop.f32.mrb[0].mxu0
    %v7010 = vadd.f32 %v6657, %v7009
    %v7011 = vpop.f32.mrb[0].mxu0
    %v7012 = vadd.f32 %v6659, %v7011
    %v7013 = vpop.f32.mrb[0].mxu0
    %v7014 = vadd.f32 %v6661, %v7013
    %v7015 = vpop.f32.mrb[0].mxu0
    %v7016 = vadd.f32 %v6663, %v7015
    %7017 = vmatprep.mubr.bf16.mxu0 %v4932
    %7018 = vmatmul.mubr.bf16.gmra.mrb[0].mxu0 %v4836
    %v7019 = vpop.f32.mrb[0].mxu0
    %v7020 = vadd.f32 %v6667, %v7019
    %v7021 = vpop.f32.mrb[0].mxu0
    %v7022 = vadd.f32 %v6669, %v7021
    %v7023 = vpop.f32.mrb[0].mxu0
    %v7024 = vadd.f32 %v6671, %v7023
    %v7025 = vpop.f32.mrb[0].mxu0
    %v7026 = vadd.f32 %v6673, %v7025
    %7027 = vmatprep.mubr.bf16.mxu0 %v4933
    %7028 = vmatmul.mubr.bf16.gmra.mrb[0].mxu0 %v4837
    %v7029 = vpop.f32.mrb[0].mxu0
    %v7030 = vadd.f32 %v6677, %v7029
    %v7031 = vpop.f32.mrb[0].mxu0
    %v7032 = vadd.f32 %v6679, %v7031
    %v7033 = vpop.f32.mrb[0].mxu0
    %v7034 = vadd.f32 %v6681, %v7033
    %v7035 = vpop.f32.mrb[0].mxu0
    %v7036 = vadd.f32 %v6683, %v7035
    %7037 = vmatprep.mubr.bf16.mxu0 %v4934
    %7038 = vmatmul.mubr.bf16.gmra.mrb[0].mxu0 %v4838
    %v7039 = vpop.f32.mrb[0].mxu0
    %v7040 = vadd.f32 %v6687, %v7039
    %v7041 = vpop.f32.mrb[0].mxu0
    %v7042 = vadd.f32 %v6689, %v7041
    %v7043 = vpop.f32.mrb[0].mxu0
    %v7044 = vadd.f32 %v6691, %v7043
    %v7045 = vpop.f32.mrb[0].mxu0
    %v7046 = vadd.f32 %v6693, %v7045
    %7047 = vmatprep.mubr.bf16.mxu0 %v4935
    %7048 = vmatmul.mubr.bf16.gmra.mrb[0].mxu0 %v4839
    %v7049 = vpop.f32.mrb[0].mxu0
    %v7050 = vadd.f32 %v6697, %v7049
    %v7051 = vpop.f32.mrb[0].mxu0
    %v7052 = vadd.f32 %v6699, %v7051
    %v7053 = vpop.f32.mrb[0].mxu0
    %v7054 = vadd.f32 %v6701, %v7053
    %v7055 = vpop.f32.mrb[0].mxu0
    %v7056 = vadd.f32 %v6703, %v7055
    %7057 = vmatprep.mubr.bf16.mxu0 %v4936
    %7058 = vmatmul.mubr.bf16.gmra.mrb[0].mxu0 %v4840
    %v7059 = vpop.f32.mrb[0].mxu0
    %v7060 = vadd.f32 %v6707, %v7059
    %v7061 = vpop.f32.mrb[0].mxu0
    %v7062 = vadd.f32 %v6709, %v7061
    %v7063 = vpop.f32.mrb[0].mxu0
    %v7064 = vadd.f32 %v6711, %v7063
    %v7065 = vpop.f32.mrb[0].mxu0
    %v7066 = vadd.f32 %v6713, %v7065
    %7067 = vmatprep.mubr.bf16.mxu0 %v4937
    %7068 = vmatmul.mubr.bf16.gmra.mrb[0].mxu0 %v4841
    %v7069 = vpop.f32.mrb[0].mxu0
    %v7070 = vadd.f32 %v6717, %v7069
    %v7071 = vpop.f32.mrb[0].mxu0
    %v7072 = vadd.f32 %v6719, %v7071
    %v7073 = vpop.f32.mrb[0].mxu0
    %v7074 = vadd.f32 %v6721, %v7073
    %v7075 = vpop.f32.mrb[0].mxu0
    %v7076 = vadd.f32 %v6723, %v7075
    %7077 = vmatprep.mubr.bf16.mxu0 %v4938
    %7078 = vmatmul.mubr.bf16.gmra.mrb[0].mxu0 %v4842
    %v7079 = vpop.f32.mrb[0].mxu0
    %v7080 = vadd.f32 %v6727, %v7079
    %v7081 = vpop.f32.mrb[0].mxu0
    %v7082 = vadd.f32 %v6729, %v7081
    %v7083 = vpop.f32.mrb[0].mxu0
    %v7084 = vadd.f32 %v6731, %v7083
    %v7085 = vpop.f32.mrb[0].mxu0
    %v7086 = vadd.f32 %v6733, %v7085
    %7087 = vmatprep.mubr.bf16.mxu0 %v4939
    %7088 = vmatmul.mubr.bf16.gmra.mrb[0].mxu0 %v4843
    %v7089 = vpop.f32.mrb[0].mxu0
    %v7090 = vadd.f32 %v6737, %v7089
    %v7091 = vpop.f32.mrb[0].mxu0
    %v7092 = vadd.f32 %v6739, %v7091
    %v7093 = vpop.f32.mrb[0].mxu0
    %v7094 = vadd.f32 %v6741, %v7093
    %v7095 = vpop.f32.mrb[0].mxu0
    %v7096 = vadd.f32 %v6743, %v7095
    %7097 = vmatprep.mubr.bf16.mxu0 %v4940
    %7098 = vmatmul.mubr.bf16.gmra.mrb[0].mxu0 %v4844
    %v7099 = vpop.f32.mrb[0].mxu0
    %v7100 = vadd.f32 %v6747, %v7099
    %v7101 = vpop.f32.mrb[0].mxu0
    %v7102 = vadd.f32 %v6749, %v7101
    %v7103 = vpop.f32.mrb[0].mxu0
    %v7104 = vadd.f32 %v6751, %v7103
    %v7105 = vpop.f32.mrb[0].mxu0
    %v7106 = vadd.f32 %v6753, %v7105
    %7107 = vmatprep.mubr.bf16.mxu0 %v4941
    %7108 = vmatmul.mubr.bf16.gmra.mrb[0].mxu0 %v4845
    %v7109 = vpop.f32.mrb[0].mxu0
    %v7110 = vadd.f32 %v6757, %v7109
    %v7111 = vpop.f32.mrb[0].mxu0
    %v7112 = vadd.f32 %v6759, %v7111
    %v7113 = vpop.f32.mrb[0].mxu0
    %v7114 = vadd.f32 %v6761, %v7113
    %v7115 = vpop.f32.mrb[0].mxu0
    %v7116 = vadd.f32 %v6763, %v7115
    %7117 = vmatprep.mubr.bf16.mxu0 %v4942
    %7118 = vmatmul.mubr.bf16.gmra.mrb[0].mxu0 %v4846
    %v7119 = vpop.f32.mrb[0].mxu0
    %v7120 = vadd.f32 %v6767, %v7119
    %v7121 = vpop.f32.mrb[0].mxu0
    %v7122 = vadd.f32 %v6769, %v7121
    %v7123 = vpop.f32.mrb[0].mxu0
    %v7124 = vadd.f32 %v6771, %v7123
    %v7125 = vpop.f32.mrb[0].mxu0
    %v7126 = vadd.f32 %v6773, %v7125
    %7127 = vmatprep.mubr.bf16.mxu0 %v4943
    %7128 = vmatmul.mubr.bf16.gmra.mrb[0].mxu0 %v4847
    %v7129 = vpop.f32.mrb[0].mxu0
    %v7130 = vadd.f32 %v6777, %v7129
    %v7131 = vpop.f32.mrb[0].mxu0
    %v7132 = vadd.f32 %v6779, %v7131
    %v7133 = vpop.f32.mrb[0].mxu0
    %v7134 = vadd.f32 %v6781, %v7133
    %v7135 = vpop.f32.mrb[0].mxu0
    %v7136 = vadd.f32 %v6783, %v7135
    %7137 = vmatprep.mubr.bf16.mxu0 %v4944
    %7138 = vmatmul.mubr.bf16.gmra.mrb[0].mxu0 %v4848
    %v7139 = vpop.f32.mrb[0].mxu0
    %v7140 = vadd.f32 %v6787, %v7139
    %v7141 = vpop.f32.mrb[0].mxu0
    %v7142 = vadd.f32 %v6789, %v7141
    %v7143 = vpop.f32.mrb[0].mxu0
    %v7144 = vadd.f32 %v6791, %v7143
    %v7145 = vpop.f32.mrb[0].mxu0
    %v7146 = vadd.f32 %v6793, %v7145
    %7147 = vmatprep.mubr.bf16.mxu0 %v4945
    %7148 = vmatmul.mubr.bf16.gmra.mrb[0].mxu0 %v4849
    %v7149 = vpop.f32.mrb[0].mxu0
    %v7150 = vadd.f32 %v6797, %v7149
    %v7151 = vpop.f32.mrb[0].mxu0
    %v7152 = vadd.f32 %v6799, %v7151
    %v7153 = vpop.f32.mrb[0].mxu0
    %v7154 = vadd.f32 %v6801, %v7153
    %v7155 = vpop.f32.mrb[0].mxu0
    %v7156 = vadd.f32 %v6803, %v7155
    %7157 = vdwg.mxu0
    %7158 = vmatprep.subr.bf16.mxu0 %v5908
    %7159 = vmatpush1.bf16.msra.mxu0 %v5907
    %7160 = vmatprep.subr.bf16.mxu0 %v5910
    %7161 = vmatpush1.bf16.msra.mxu0 %v5909
    %7162 = vmatprep.subr.bf16.mxu0 %v5912
    %7163 = vmatpush1.bf16.msra.mxu0 %v5911
    %7164 = vmatprep.subr.bf16.mxu0 %v5914
    %7165 = vmatpush1.bf16.msra.mxu0 %v5913
    %7166 = vmatprep.subr.bf16.mxu0 %v5916
    %7167 = vmatpush1.bf16.msra.mxu0 %v5915
    %7168 = vmatprep.subr.bf16.mxu0 %v5918
    %7169 = vmatpush1.bf16.msra.mxu0 %v5917
    %7170 = vmatprep.subr.bf16.mxu0 %v5920
    %7171 = vmatpush1.bf16.msra.mxu0 %v5919
    %7172 = vmatprep.subr.bf16.mxu0 %v5922
    %7173 = vmatpush1.bf16.msra.mxu0 %v5921
    %7174 = vmatprep.subr.bf16.mxu0 %v5924
    %7175 = vmatpush1.bf16.msra.mxu0 %v5923
    %7176 = vmatprep.subr.bf16.mxu0 %v5926
    %7177 = vmatpush1.bf16.msra.mxu0 %v5925
    %7178 = vmatprep.subr.bf16.mxu0 %v5928
    %7179 = vmatpush1.bf16.msra.mxu0 %v5927
    %7180 = vmatprep.subr.bf16.mxu0 %v5930
    %7181 = vmatpush1.bf16.msra.mxu0 %v5929
    %7182 = vmatprep.subr.bf16.mxu0 %v5932
    %7183 = vmatpush1.bf16.msra.mxu0 %v5931
    %7184 = vmatprep.subr.bf16.mxu0 %v5934
    %7185 = vmatpush1.bf16.msra.mxu0 %v5933
    %7186 = vmatprep.subr.bf16.mxu0 %v5936
    %7187 = vmatpush1.bf16.msra.mxu0 %v5935
    %7188 = vmatprep.subr.bf16.mxu0 %v5938
    %7189 = vmatpush1.bf16.msra.mxu0 %v5937
    %7190 = vmatprep.mubr.bf16.mxu0 %v5107
    %7191 = vmatmul.mubr.bf16.gmra.mrb[0].mxu0 %v5011
    %v7192 = vpop.f32.mrb[0].mxu0
    %v7193 = vadd.f32 %v6840, %v7192
    %v7194 = vpop.f32.mrb[0].mxu0
    %v7195 = vadd.f32 %v6842, %v7194
    %v7196 = vpop.f32.mrb[0].mxu0
    %v7197 = vadd.f32 %v6844, %v7196
    %v7198 = vpop.f32.mrb[0].mxu0
    %v7199 = vadd.f32 %v6846, %v7198
    %7200 = vmatprep.mubr.bf16.mxu0 %v5108
    %7201 = vmatmul.mubr.bf16.gmra.mrb[0].mxu0 %v5012
    %v7202 = vpop.f32.mrb[0].mxu0
    %v7203 = vadd.f32 %v6850, %v7202
    %v7204 = vpop.f32.mrb[0].mxu0
    %v7205 = vadd.f32 %v6852, %v7204
    %v7206 = vpop.f32.mrb[0].mxu0
    %v7207 = vadd.f32 %v6854, %v7206
    %v7208 = vpop.f32.mrb[0].mxu0
    %v7209 = vadd.f32 %v6856, %v7208
    %7210 = vmatprep.mubr.bf16.mxu0 %v5109
    %7211 = vmatmul.mubr.bf16.gmra.mrb[0].mxu0 %v5013
    %v7212 = vpop.f32.mrb[0].mxu0
    %v7213 = vadd.f32 %v6860, %v7212
    %v7214 = vpop.f32.mrb[0].mxu0
    %v7215 = vadd.f32 %v6862, %v7214
    %v7216 = vpop.f32.mrb[0].mxu0
    %v7217 = vadd.f32 %v6864, %v7216
    %v7218 = vpop.f32.mrb[0].mxu0
    %v7219 = vadd.f32 %v6866, %v7218
    %7220 = vmatprep.mubr.bf16.mxu0 %v5110
    %7221 = vmatmul.mubr.bf16.gmra.mrb[0].mxu0 %v5014
    %v7222 = vpop.f32.mrb[0].mxu0
    %v7223 = vadd.f32 %v6870, %v7222
    %v7224 = vpop.f32.mrb[0].mxu0
    %v7225 = vadd.f32 %v6872, %v7224
    %v7226 = vpop.f32.mrb[0].mxu0
    %v7227 = vadd.f32 %v6874, %v7226
    %v7228 = vpop.f32.mrb[0].mxu0
    %v7229 = vadd.f32 %v6876, %v7228
    %7230 = vmatprep.mubr.bf16.mxu0 %v5111
    %7231 = vmatmul.mubr.bf16.gmra.mrb[0].mxu0 %v5015
    %v7232 = vpop.f32.mrb[0].mxu0
    %v7233 = vadd.f32 %v6880, %v7232
    %v7234 = vpop.f32.mrb[0].mxu0
    %v7235 = vadd.f32 %v6882, %v7234
    %v7236 = vpop.f32.mrb[0].mxu0
    %v7237 = vadd.f32 %v6884, %v7236
    %v7238 = vpop.f32.mrb[0].mxu0
    %v7239 = vadd.f32 %v6886, %v7238
    %7240 = vmatprep.mubr.bf16.mxu0 %v5112
    %7241 = vmatmul.mubr.bf16.gmra.mrb[0].mxu0 %v5016
    %v7242 = vpop.f32.mrb[0].mxu0
    %v7243 = vadd.f32 %v6890, %v7242
    %v7244 = vpop.f32.mrb[0].mxu0
    %v7245 = vadd.f32 %v6892, %v7244
    %v7246 = vpop.f32.mrb[0].mxu0
    %v7247 = vadd.f32 %v6894, %v7246
    %v7248 = vpop.f32.mrb[0].mxu0
    %v7249 = vadd.f32 %v6896, %v7248
    %7250 = vmatprep.mubr.bf16.mxu0 %v5113
    %7251 = vmatmul.mubr.bf16.gmra.mrb[0].mxu0 %v5017
    %v7252 = vpop.f32.mrb[0].mxu0
    %v7253 = vadd.f32 %v6900, %v7252
    %v7254 = vpop.f32.mrb[0].mxu0
    %v7255 = vadd.f32 %v6902, %v7254
    %v7256 = vpop.f32.mrb[0].mxu0
    %v7257 = vadd.f32 %v6904, %v7256
    %v7258 = vpop.f32.mrb[0].mxu0
    %v7259 = vadd.f32 %v6906, %v7258
    %7260 = vmatprep.mubr.bf16.mxu0 %v5114
    %7261 = vmatmul.mubr.bf16.gmra.mrb[0].mxu0 %v5018
    %v7262 = vpop.f32.mrb[0].mxu0
    %v7263 = vadd.f32 %v6910, %v7262
    %v7264 = vpop.f32.mrb[0].mxu0
    %v7265 = vadd.f32 %v6912, %v7264
    %v7266 = vpop.f32.mrb[0].mxu0
    %v7267 = vadd.f32 %v6914, %v7266
    %v7268 = vpop.f32.mrb[0].mxu0
    %v7269 = vadd.f32 %v6916, %v7268
    %7270 = vmatprep.mubr.bf16.mxu0 %v5115
    %7271 = vmatmul.mubr.bf16.gmra.mrb[0].mxu0 %v5019
    %v7272 = vpop.f32.mrb[0].mxu0
    %v7273 = vadd.f32 %v6920, %v7272
    %v7274 = vpop.f32.mrb[0].mxu0
    %v7275 = vadd.f32 %v6922, %v7274
    %v7276 = vpop.f32.mrb[0].mxu0
    %v7277 = vadd.f32 %v6924, %v7276
    %v7278 = vpop.f32.mrb[0].mxu0
    %v7279 = vadd.f32 %v6926, %v7278
    %7280 = vmatprep.mubr.bf16.mxu0 %v5116
    %7281 = vmatmul.mubr.bf16.gmra.mrb[0].mxu0 %v5020
    %v7282 = vpop.f32.mrb[0].mxu0
    %v7283 = vadd.f32 %v6930, %v7282
    %v7284 = vpop.f32.mrb[0].mxu0
    %v7285 = vadd.f32 %v6932, %v7284
    %v7286 = vpop.f32.mrb[0].mxu0
    %v7287 = vadd.f32 %v6934, %v7286
    %v7288 = vpop.f32.mrb[0].mxu0
    %v7289 = vadd.f32 %v6936, %v7288
    %7290 = vmatprep.mubr.bf16.mxu0 %v5117
    %7291 = vmatmul.mubr.bf16.gmra.mrb[0].mxu0 %v5021
    %v7292 = vpop.f32.mrb[0].mxu0
    %v7293 = vadd.f32 %v6940, %v7292
    %v7294 = vpop.f32.mrb[0].mxu0
    %v7295 = vadd.f32 %v6942, %v7294
    %v7296 = vpop.f32.mrb[0].mxu0
    %v7297 = vadd.f32 %v6944, %v7296
    %v7298 = vpop.f32.mrb[0].mxu0
    %v7299 = vadd.f32 %v6946, %v7298
    %7300 = vmatprep.mubr.bf16.mxu0 %v5118
    %7301 = vmatmul.mubr.bf16.gmra.mrb[0].mxu0 %v5022
    %v7302 = vpop.f32.mrb[0].mxu0
    %v7303 = vadd.f32 %v6950, %v7302
    %v7304 = vpop.f32.mrb[0].mxu0
    %v7305 = vadd.f32 %v6952, %v7304
    %v7306 = vpop.f32.mrb[0].mxu0
    %v7307 = vadd.f32 %v6954, %v7306
    %v7308 = vpop.f32.mrb[0].mxu0
    %v7309 = vadd.f32 %v6956, %v7308
    %7310 = vmatprep.mubr.bf16.mxu0 %v5119
    %7311 = vmatmul.mubr.bf16.gmra.mrb[0].mxu0 %v5023
    %v7312 = vpop.f32.mrb[0].mxu0
    %v7313 = vadd.f32 %v6960, %v7312
    %v7314 = vpop.f32.mrb[0].mxu0
    %v7315 = vadd.f32 %v6962, %v7314
    %v7316 = vpop.f32.mrb[0].mxu0
    %v7317 = vadd.f32 %v6964, %v7316
    %v7318 = vpop.f32.mrb[0].mxu0
    %v7319 = vadd.f32 %v6966, %v7318
    %7320 = vmatprep.mubr.bf16.mxu0 %v5120
    %7321 = vmatmul.mubr.bf16.gmra.mrb[0].mxu0 %v5024
    %v7322 = vpop.f32.mrb[0].mxu0
    %v7323 = vadd.f32 %v6970, %v7322
    %v7324 = vpop.f32.mrb[0].mxu0
    %v7325 = vadd.f32 %v6972, %v7324
    %v7326 = vpop.f32.mrb[0].mxu0
    %v7327 = vadd.f32 %v6974, %v7326
    %v7328 = vpop.f32.mrb[0].mxu0
    %v7329 = vadd.f32 %v6976, %v7328
    %7330 = vmatprep.mubr.bf16.mxu0 %v5121
    %7331 = vmatmul.mubr.bf16.gmra.mrb[0].mxu0 %v5025
    %v7332 = vpop.f32.mrb[0].mxu0
    %v7333 = vadd.f32 %v6980, %v7332
    %v7334 = vpop.f32.mrb[0].mxu0
    %v7335 = vadd.f32 %v6982, %v7334
    %v7336 = vpop.f32.mrb[0].mxu0
    %v7337 = vadd.f32 %v6984, %v7336
    %v7338 = vpop.f32.mrb[0].mxu0
    %v7339 = vadd.f32 %v6986, %v7338
    %7340 = vmatprep.mubr.bf16.mxu0 %v5122
    %7341 = vmatmul.mubr.bf16.gmra.mrb[0].mxu0 %v5026
    %v7342 = vpop.f32.mrb[0].mxu0
    %v7343 = vadd.f32 %v6990, %v7342
    %v7344 = vpop.f32.mrb[0].mxu0
    %v7345 = vadd.f32 %v6992, %v7344
    %v7346 = vpop.f32.mrb[0].mxu0
    %v7347 = vadd.f32 %v6994, %v7346
    %v7348 = vpop.f32.mrb[0].mxu0
    %v7349 = vadd.f32 %v6996, %v7348
    %7350 = vmatprep.mubr.bf16.mxu0 %v5123
    %7351 = vmatmul.mubr.bf16.gmra.mrb[0].mxu0 %v5027
    %v7352 = vpop.f32.mrb[0].mxu0
    %v7353 = vadd.f32 %v7000, %v7352
    %v7354 = vpop.f32.mrb[0].mxu0
    %v7355 = vadd.f32 %v7002, %v7354
    %v7356 = vpop.f32.mrb[0].mxu0
    %v7357 = vadd.f32 %v7004, %v7356
    %v7358 = vpop.f32.mrb[0].mxu0
    %v7359 = vadd.f32 %v7006, %v7358
    %7360 = vmatprep.mubr.bf16.mxu0 %v5124
    %7361 = vmatmul.mubr.bf16.gmra.mrb[0].mxu0 %v5028
    %v7362 = vpop.f32.mrb[0].mxu0
    %v7363 = vadd.f32 %v7010, %v7362
    %v7364 = vpop.f32.mrb[0].mxu0
    %v7365 = vadd.f32 %v7012, %v7364
    %v7366 = vpop.f32.mrb[0].mxu0
    %v7367 = vadd.f32 %v7014, %v7366
    %v7368 = vpop.f32.mrb[0].mxu0
    %v7369 = vadd.f32 %v7016, %v7368
    %7370 = vmatprep.mubr.bf16.mxu0 %v5125
    %7371 = vmatmul.mubr.bf16.gmra.mrb[0].mxu0 %v5029
    %v7372 = vpop.f32.mrb[0].mxu0
    %v7373 = vadd.f32 %v7020, %v7372
    %v7374 = vpop.f32.mrb[0].mxu0
    %v7375 = vadd.f32 %v7022, %v7374
    %v7376 = vpop.f32.mrb[0].mxu0
    %v7377 = vadd.f32 %v7024, %v7376
    %v7378 = vpop.f32.mrb[0].mxu0
    %v7379 = vadd.f32 %v7026, %v7378
    %7380 = vmatprep.mubr.bf16.mxu0 %v5126
    %7381 = vmatmul.mubr.bf16.gmra.mrb[0].mxu0 %v5030
    %v7382 = vpop.f32.mrb[0].mxu0
    %v7383 = vadd.f32 %v7030, %v7382
    %v7384 = vpop.f32.mrb[0].mxu0
    %v7385 = vadd.f32 %v7032, %v7384
    %v7386 = vpop.f32.mrb[0].mxu0
    %v7387 = vadd.f32 %v7034, %v7386
    %v7388 = vpop.f32.mrb[0].mxu0
    %v7389 = vadd.f32 %v7036, %v7388
    %7390 = vmatprep.mubr.bf16.mxu0 %v5127
    %7391 = vmatmul.mubr.bf16.gmra.mrb[0].mxu0 %v5031
    %v7392 = vpop.f32.mrb[0].mxu0
    %v7393 = vadd.f32 %v7040, %v7392
    %v7394 = vpop.f32.mrb[0].mxu0
    %v7395 = vadd.f32 %v7042, %v7394
    %v7396 = vpop.f32.mrb[0].mxu0
    %v7397 = vadd.f32 %v7044, %v7396
    %v7398 = vpop.f32.mrb[0].mxu0
    %v7399 = vadd.f32 %v7046, %v7398
    %7400 = vmatprep.mubr.bf16.mxu0 %v5128
    %7401 = vmatmul.mubr.bf16.gmra.mrb[0].mxu0 %v5032
    %v7402 = vpop.f32.mrb[0].mxu0
    %v7403 = vadd.f32 %v7050, %v7402
    %v7404 = vpop.f32.mrb[0].mxu0
    %v7405 = vadd.f32 %v7052, %v7404
    %v7406 = vpop.f32.mrb[0].mxu0
    %v7407 = vadd.f32 %v7054, %v7406
    %v7408 = vpop.f32.mrb[0].mxu0
    %v7409 = vadd.f32 %v7056, %v7408
    %7410 = vmatprep.mubr.bf16.mxu0 %v5129
    %7411 = vmatmul.mubr.bf16.gmra.mrb[0].mxu0 %v5033
    %v7412 = vpop.f32.mrb[0].mxu0
    %v7413 = vadd.f32 %v7060, %v7412
    %v7414 = vpop.f32.mrb[0].mxu0
    %v7415 = vadd.f32 %v7062, %v7414
    %v7416 = vpop.f32.mrb[0].mxu0
    %v7417 = vadd.f32 %v7064, %v7416
    %v7418 = vpop.f32.mrb[0].mxu0
    %v7419 = vadd.f32 %v7066, %v7418
    %7420 = vmatprep.mubr.bf16.mxu0 %v5130
    %7421 = vmatmul.mubr.bf16.gmra.mrb[0].mxu0 %v5034
    %v7422 = vpop.f32.mrb[0].mxu0
    %v7423 = vadd.f32 %v7070, %v7422
    %v7424 = vpop.f32.mrb[0].mxu0
    %v7425 = vadd.f32 %v7072, %v7424
    %v7426 = vpop.f32.mrb[0].mxu0
    %v7427 = vadd.f32 %v7074, %v7426
    %v7428 = vpop.f32.mrb[0].mxu0
    %v7429 = vadd.f32 %v7076, %v7428
    %7430 = vmatprep.mubr.bf16.mxu0 %v5131
    %7431 = vmatmul.mubr.bf16.gmra.mrb[0].mxu0 %v5035
    %v7432 = vpop.f32.mrb[0].mxu0
    %v7433 = vadd.f32 %v7080, %v7432
    %v7434 = vpop.f32.mrb[0].mxu0
    %v7435 = vadd.f32 %v7082, %v7434
    %v7436 = vpop.f32.mrb[0].mxu0
    %v7437 = vadd.f32 %v7084, %v7436
    %v7438 = vpop.f32.mrb[0].mxu0
    %v7439 = vadd.f32 %v7086, %v7438
    %7440 = vmatprep.mubr.bf16.mxu0 %v5132
    %7441 = vmatmul.mubr.bf16.gmra.mrb[0].mxu0 %v5036
    %v7442 = vpop.f32.mrb[0].mxu0
    %v7443 = vadd.f32 %v7090, %v7442
    %v7444 = vpop.f32.mrb[0].mxu0
    %v7445 = vadd.f32 %v7092, %v7444
    %v7446 = vpop.f32.mrb[0].mxu0
    %v7447 = vadd.f32 %v7094, %v7446
    %v7448 = vpop.f32.mrb[0].mxu0
    %v7449 = vadd.f32 %v7096, %v7448
    %7450 = vmatprep.mubr.bf16.mxu0 %v5133
    %7451 = vmatmul.mubr.bf16.gmra.mrb[0].mxu0 %v5037
    %v7452 = vpop.f32.mrb[0].mxu0
    %v7453 = vadd.f32 %v7100, %v7452
    %v7454 = vpop.f32.mrb[0].mxu0
    %v7455 = vadd.f32 %v7102, %v7454
    %v7456 = vpop.f32.mrb[0].mxu0
    %v7457 = vadd.f32 %v7104, %v7456
    %v7458 = vpop.f32.mrb[0].mxu0
    %v7459 = vadd.f32 %v7106, %v7458
    %7460 = vmatprep.mubr.bf16.mxu0 %v5134
    %7461 = vmatmul.mubr.bf16.gmra.mrb[0].mxu0 %v5038
    %v7462 = vpop.f32.mrb[0].mxu0
    %v7463 = vadd.f32 %v7110, %v7462
    %v7464 = vpop.f32.mrb[0].mxu0
    %v7465 = vadd.f32 %v7112, %v7464
    %v7466 = vpop.f32.mrb[0].mxu0
    %v7467 = vadd.f32 %v7114, %v7466
    %v7468 = vpop.f32.mrb[0].mxu0
    %v7469 = vadd.f32 %v7116, %v7468
    %7470 = vmatprep.mubr.bf16.mxu0 %v5135
    %7471 = vmatmul.mubr.bf16.gmra.mrb[0].mxu0 %v5039
    %v7472 = vpop.f32.mrb[0].mxu0
    %v7473 = vadd.f32 %v7120, %v7472
    %v7474 = vpop.f32.mrb[0].mxu0
    %v7475 = vadd.f32 %v7122, %v7474
    %v7476 = vpop.f32.mrb[0].mxu0
    %v7477 = vadd.f32 %v7124, %v7476
    %v7478 = vpop.f32.mrb[0].mxu0
    %v7479 = vadd.f32 %v7126, %v7478
    %7480 = vmatprep.mubr.bf16.mxu0 %v5136
    %7481 = vmatmul.mubr.bf16.gmra.mrb[0].mxu0 %v5040
    %v7482 = vpop.f32.mrb[0].mxu0
    %v7483 = vadd.f32 %v7130, %v7482
    %v7484 = vpop.f32.mrb[0].mxu0
    %v7485 = vadd.f32 %v7132, %v7484
    %v7486 = vpop.f32.mrb[0].mxu0
    %v7487 = vadd.f32 %v7134, %v7486
    %v7488 = vpop.f32.mrb[0].mxu0
    %v7489 = vadd.f32 %v7136, %v7488
    %7490 = vmatprep.mubr.bf16.mxu0 %v5137
    %7491 = vmatmul.mubr.bf16.gmra.mrb[0].mxu0 %v5041
    %v7492 = vpop.f32.mrb[0].mxu0
    %v7493 = vadd.f32 %v7140, %v7492
    %v7494 = vpop.f32.mrb[0].mxu0
    %v7495 = vadd.f32 %v7142, %v7494
    %v7496 = vpop.f32.mrb[0].mxu0
    %v7497 = vadd.f32 %v7144, %v7496
    %v7498 = vpop.f32.mrb[0].mxu0
    %v7499 = vadd.f32 %v7146, %v7498
    %7500 = vmatprep.mubr.bf16.mxu0 %v5138
    %7501 = vmatmul.mubr.bf16.gmra.mrb[0].mxu0 %v5042
    %v7502 = vpop.f32.mrb[0].mxu0
    %v7503 = vadd.f32 %v7150, %v7502
    %v7504 = vpop.f32.mrb[0].mxu0
    %v7505 = vadd.f32 %v7152, %v7504
    %v7506 = vpop.f32.mrb[0].mxu0
    %v7507 = vadd.f32 %v7154, %v7506
    %v7508 = vpop.f32.mrb[0].mxu0
    %v7509 = vadd.f32 %v7156, %v7508
    %7510 = vdwg.mxu0
    %7511 = vmatprep.subr.bf16.mxu0 %v5940
    %7512 = vmatpush1.bf16.msra.mxu0 %v5939
    %7513 = vmatprep.subr.bf16.mxu0 %v5942
    %7514 = vmatpush1.bf16.msra.mxu0 %v5941
    %7515 = vmatprep.subr.bf16.mxu0 %v5944
    %7516 = vmatpush1.bf16.msra.mxu0 %v5943
    %7517 = vmatprep.subr.bf16.mxu0 %v5946
    %7518 = vmatpush1.bf16.msra.mxu0 %v5945
    %7519 = vmatprep.subr.bf16.mxu0 %v5948
    %7520 = vmatpush1.bf16.msra.mxu0 %v5947
    %7521 = vmatprep.subr.bf16.mxu0 %v5950
    %7522 = vmatpush1.bf16.msra.mxu0 %v5949
    %7523 = vmatprep.subr.bf16.mxu0 %v5952
    %7524 = vmatpush1.bf16.msra.mxu0 %v5951
    %7525 = vmatprep.subr.bf16.mxu0 %v5954
    %7526 = vmatpush1.bf16.msra.mxu0 %v5953
    %7527 = vmatprep.subr.bf16.mxu0 0
    %7528 = vmatpush1.bf16.msra.mxu0 0
    %7529 = vmatprep.subr.bf16.mxu0 0
    %7530 = vmatpush1.bf16.msra.mxu0 0
    %7531 = vmatprep.subr.bf16.mxu0 0
    %7532 = vmatpush1.bf16.msra.mxu0 0
    %7533 = vmatprep.subr.bf16.mxu0 0
    %7534 = vmatpush1.bf16.msra.mxu0 0
    %7535 = vmatprep.subr.bf16.mxu0 0
    %7536 = vmatpush1.bf16.msra.mxu0 0
    %7537 = vmatprep.subr.bf16.mxu0 0
    %7538 = vmatpush1.bf16.msra.mxu0 0
    %7539 = vmatprep.subr.bf16.mxu0 0
    %7540 = vmatpush1.bf16.msra.mxu0 0
    %7541 = vmatprep.subr.bf16.mxu0 0
    %7542 = vmatpush1.bf16.msra.mxu0 0
    %7543 = vmatprep.mubr.bf16.mxu0 0
    %7544 = vmatmul.mubr.bf16.gmra.mrb[0].mxu0 %v5203
    %v7545 = vpop.f32.mrb[0].mxu0
    %v7546 = vadd.f32 %v7193, %v7545
    %v7547 = vpop.f32.mrb[0].mxu0
    %v7548 = vadd.f32 %v7195, %v7547
    %v7549 = vpop.f32.mrb[0].mxu0
    %v7550 = vadd.f32 %v7197, %v7549
    %v7551 = vpop.f32.mrb[0].mxu0
    %v7552 = vadd.f32 %v7199, %v7551
    %7553 = vmatprep.mubr.bf16.mxu0 0
    %7554 = vmatmul.mubr.bf16.gmra.mrb[0].mxu0 %v5204
    %v7555 = vpop.f32.mrb[0].mxu0
    %v7556 = vadd.f32 %v7203, %v7555
    %v7557 = vpop.f32.mrb[0].mxu0
    %v7558 = vadd.f32 %v7205, %v7557
    %v7559 = vpop.f32.mrb[0].mxu0
    %v7560 = vadd.f32 %v7207, %v7559
    %v7561 = vpop.f32.mrb[0].mxu0
    %v7562 = vadd.f32 %v7209, %v7561
    %7563 = vmatprep.mubr.bf16.mxu0 0
    %7564 = vmatmul.mubr.bf16.gmra.mrb[0].mxu0 %v5205
    %v7565 = vpop.f32.mrb[0].mxu0
    %v7566 = vadd.f32 %v7213, %v7565
    %v7567 = vpop.f32.mrb[0].mxu0
    %v7568 = vadd.f32 %v7215, %v7567
    %v7569 = vpop.f32.mrb[0].mxu0
    %v7570 = vadd.f32 %v7217, %v7569
    %v7571 = vpop.f32.mrb[0].mxu0
    %v7572 = vadd.f32 %v7219, %v7571
    %7573 = vmatprep.mubr.bf16.mxu0 0
    %7574 = vmatmul.mubr.bf16.gmra.mrb[0].mxu0 %v5206
    %v7575 = vpop.f32.mrb[0].mxu0
    %v7576 = vadd.f32 %v7223, %v7575
    %v7577 = vpop.f32.mrb[0].mxu0
    %v7578 = vadd.f32 %v7225, %v7577
    %v7579 = vpop.f32.mrb[0].mxu0
    %v7580 = vadd.f32 %v7227, %v7579
    %v7581 = vpop.f32.mrb[0].mxu0
    %v7582 = vadd.f32 %v7229, %v7581
    %7583 = vmatprep.mubr.bf16.mxu0 0
    %7584 = vmatmul.mubr.bf16.gmra.mrb[0].mxu0 %v5207
    %v7585 = vpop.f32.mrb[0].mxu0
    %v7586 = vadd.f32 %v7233, %v7585
    %v7587 = vpop.f32.mrb[0].mxu0
    %v7588 = vadd.f32 %v7235, %v7587
    %v7589 = vpop.f32.mrb[0].mxu0
    %v7590 = vadd.f32 %v7237, %v7589
    %v7591 = vpop.f32.mrb[0].mxu0
    %v7592 = vadd.f32 %v7239, %v7591
    %7593 = vmatprep.mubr.bf16.mxu0 0
    %7594 = vmatmul.mubr.bf16.gmra.mrb[0].mxu0 %v5208
    %v7595 = vpop.f32.mrb[0].mxu0
    %v7596 = vadd.f32 %v7243, %v7595
    %v7597 = vpop.f32.mrb[0].mxu0
    %v7598 = vadd.f32 %v7245, %v7597
    %v7599 = vpop.f32.mrb[0].mxu0
    %v7600 = vadd.f32 %v7247, %v7599
    %v7601 = vpop.f32.mrb[0].mxu0
    %v7602 = vadd.f32 %v7249, %v7601
    %7603 = vmatprep.mubr.bf16.mxu0 0
    %7604 = vmatmul.mubr.bf16.gmra.mrb[0].mxu0 %v5209
    %v7605 = vpop.f32.mrb[0].mxu0
    %v7606 = vadd.f32 %v7253, %v7605
    %v7607 = vpop.f32.mrb[0].mxu0
    %v7608 = vadd.f32 %v7255, %v7607
    %v7609 = vpop.f32.mrb[0].mxu0
    %v7610 = vadd.f32 %v7257, %v7609
    %v7611 = vpop.f32.mrb[0].mxu0
    %v7612 = vadd.f32 %v7259, %v7611
    %7613 = vmatprep.mubr.bf16.mxu0 0
    %7614 = vmatmul.mubr.bf16.gmra.mrb[0].mxu0 %v5210
    %v7615 = vpop.f32.mrb[0].mxu0
    %v7616 = vadd.f32 %v7263, %v7615
    %v7617 = vpop.f32.mrb[0].mxu0
    %v7618 = vadd.f32 %v7265, %v7617
    %v7619 = vpop.f32.mrb[0].mxu0
    %v7620 = vadd.f32 %v7267, %v7619
    %v7621 = vpop.f32.mrb[0].mxu0
    %v7622 = vadd.f32 %v7269, %v7621
    %7623 = vmatprep.mubr.bf16.mxu0 0
    %7624 = vmatmul.mubr.bf16.gmra.mrb[0].mxu0 %v5211
    %v7625 = vpop.f32.mrb[0].mxu0
    %v7626 = vadd.f32 %v7273, %v7625
    %v7627 = vpop.f32.mrb[0].mxu0
    %v7628 = vadd.f32 %v7275, %v7627
    %v7629 = vpop.f32.mrb[0].mxu0
    %v7630 = vadd.f32 %v7277, %v7629
    %v7631 = vpop.f32.mrb[0].mxu0
    %v7632 = vadd.f32 %v7279, %v7631
    %7633 = vmatprep.mubr.bf16.mxu0 0
    %7634 = vmatmul.mubr.bf16.gmra.mrb[0].mxu0 %v5212
    %v7635 = vpop.f32.mrb[0].mxu0
    %v7636 = vadd.f32 %v7283, %v7635
    %v7637 = vpop.f32.mrb[0].mxu0
    %v7638 = vadd.f32 %v7285, %v7637
    %v7639 = vpop.f32.mrb[0].mxu0
    %v7640 = vadd.f32 %v7287, %v7639
    %v7641 = vpop.f32.mrb[0].mxu0
    %v7642 = vadd.f32 %v7289, %v7641
    %7643 = vmatprep.mubr.bf16.mxu0 0
    %7644 = vmatmul.mubr.bf16.gmra.mrb[0].mxu0 %v5213
    %v7645 = vpop.f32.mrb[0].mxu0
    %v7646 = vadd.f32 %v7293, %v7645
    %v7647 = vpop.f32.mrb[0].mxu0
    %v7648 = vadd.f32 %v7295, %v7647
    %v7649 = vpop.f32.mrb[0].mxu0
    %v7650 = vadd.f32 %v7297, %v7649
    %v7651 = vpop.f32.mrb[0].mxu0
    %v7652 = vadd.f32 %v7299, %v7651
    %7653 = vmatprep.mubr.bf16.mxu0 0
    %7654 = vmatmul.mubr.bf16.gmra.mrb[0].mxu0 %v5214
    %v7655 = vpop.f32.mrb[0].mxu0
    %v7656 = vadd.f32 %v7303, %v7655
    %v7657 = vpop.f32.mrb[0].mxu0
    %v7658 = vadd.f32 %v7305, %v7657
    %v7659 = vpop.f32.mrb[0].mxu0
    %v7660 = vadd.f32 %v7307, %v7659
    %v7661 = vpop.f32.mrb[0].mxu0
    %v7662 = vadd.f32 %v7309, %v7661
    %7663 = vmatprep.mubr.bf16.mxu0 0
    %7664 = vmatmul.mubr.bf16.gmra.mrb[0].mxu0 %v5215
    %v7665 = vpop.f32.mrb[0].mxu0
    %v7666 = vadd.f32 %v7313, %v7665
    %v7667 = vpop.f32.mrb[0].mxu0
    %v7668 = vadd.f32 %v7315, %v7667
    %v7669 = vpop.f32.mrb[0].mxu0
    %v7670 = vadd.f32 %v7317, %v7669
    %v7671 = vpop.f32.mrb[0].mxu0
    %v7672 = vadd.f32 %v7319, %v7671
    %7673 = vmatprep.mubr.bf16.mxu0 0
    %7674 = vmatmul.mubr.bf16.gmra.mrb[0].mxu0 %v5216
    %v7675 = vpop.f32.mrb[0].mxu0
    %v7676 = vadd.f32 %v7323, %v7675
    %v7677 = vpop.f32.mrb[0].mxu0
    %v7678 = vadd.f32 %v7325, %v7677
    %v7679 = vpop.f32.mrb[0].mxu0
    %v7680 = vadd.f32 %v7327, %v7679
    %v7681 = vpop.f32.mrb[0].mxu0
    %v7682 = vadd.f32 %v7329, %v7681
    %7683 = vmatprep.mubr.bf16.mxu0 0
    %7684 = vmatmul.mubr.bf16.gmra.mrb[0].mxu0 %v5217
    %v7685 = vpop.f32.mrb[0].mxu0
    %v7686 = vadd.f32 %v7333, %v7685
    %v7687 = vpop.f32.mrb[0].mxu0
    %v7688 = vadd.f32 %v7335, %v7687
    %v7689 = vpop.f32.mrb[0].mxu0
    %v7690 = vadd.f32 %v7337, %v7689
    %v7691 = vpop.f32.mrb[0].mxu0
    %v7692 = vadd.f32 %v7339, %v7691
    %7693 = vmatprep.mubr.bf16.mxu0 0
    %7694 = vmatmul.mubr.bf16.gmra.mrb[0].mxu0 %v5218
    %v7695 = vpop.f32.mrb[0].mxu0
    %v7696 = vadd.f32 %v7343, %v7695
    %v7697 = vpop.f32.mrb[0].mxu0
    %v7698 = vadd.f32 %v7345, %v7697
    %v7699 = vpop.f32.mrb[0].mxu0
    %v7700 = vadd.f32 %v7347, %v7699
    %v7701 = vpop.f32.mrb[0].mxu0
    %v7702 = vadd.f32 %v7349, %v7701
    %7703 = vmatprep.mubr.bf16.mxu0 0
    %7704 = vmatmul.mubr.bf16.gmra.mrb[0].mxu0 %v5219
    %v7705 = vpop.f32.mrb[0].mxu0
    %v7706 = vadd.f32 %v7353, %v7705
    %v7707 = vpop.f32.mrb[0].mxu0
    %v7708 = vadd.f32 %v7355, %v7707
    %v7709 = vpop.f32.mrb[0].mxu0
    %v7710 = vadd.f32 %v7357, %v7709
    %v7711 = vpop.f32.mrb[0].mxu0
    %v7712 = vadd.f32 %v7359, %v7711
    %7713 = vmatprep.mubr.bf16.mxu0 0
    %7714 = vmatmul.mubr.bf16.gmra.mrb[0].mxu0 %v5220
    %v7715 = vpop.f32.mrb[0].mxu0
    %v7716 = vadd.f32 %v7363, %v7715
    %v7717 = vpop.f32.mrb[0].mxu0
    %v7718 = vadd.f32 %v7365, %v7717
    %v7719 = vpop.f32.mrb[0].mxu0
    %v7720 = vadd.f32 %v7367, %v7719
    %v7721 = vpop.f32.mrb[0].mxu0
    %v7722 = vadd.f32 %v7369, %v7721
    %7723 = vmatprep.mubr.bf16.mxu0 0
    %7724 = vmatmul.mubr.bf16.gmra.mrb[0].mxu0 %v5221
    %v7725 = vpop.f32.mrb[0].mxu0
    %v7726 = vadd.f32 %v7373, %v7725
    %v7727 = vpop.f32.mrb[0].mxu0
    %v7728 = vadd.f32 %v7375, %v7727
    %v7729 = vpop.f32.mrb[0].mxu0
    %v7730 = vadd.f32 %v7377, %v7729
    %v7731 = vpop.f32.mrb[0].mxu0
    %v7732 = vadd.f32 %v7379, %v7731
    %7733 = vmatprep.mubr.bf16.mxu0 0
    %7734 = vmatmul.mubr.bf16.gmra.mrb[0].mxu0 %v5222
    %v7735 = vpop.f32.mrb[0].mxu0
    %v7736 = vadd.f32 %v7383, %v7735
    %v7737 = vpop.f32.mrb[0].mxu0
    %v7738 = vadd.f32 %v7385, %v7737
    %v7739 = vpop.f32.mrb[0].mxu0
    %v7740 = vadd.f32 %v7387, %v7739
    %v7741 = vpop.f32.mrb[0].mxu0
    %v7742 = vadd.f32 %v7389, %v7741
    %7743 = vmatprep.mubr.bf16.mxu0 0
    %7744 = vmatmul.mubr.bf16.gmra.mrb[0].mxu0 %v5223
    %v7745 = vpop.f32.mrb[0].mxu0
    %v7746 = vadd.f32 %v7393, %v7745
    %v7747 = vpop.f32.mrb[0].mxu0
    %v7748 = vadd.f32 %v7395, %v7747
    %v7749 = vpop.f32.mrb[0].mxu0
    %v7750 = vadd.f32 %v7397, %v7749
    %v7751 = vpop.f32.mrb[0].mxu0
    %v7752 = vadd.f32 %v7399, %v7751
    %7753 = vmatprep.mubr.bf16.mxu0 0
    %7754 = vmatmul.mubr.bf16.gmra.mrb[0].mxu0 %v5224
    %v7755 = vpop.f32.mrb[0].mxu0
    %v7756 = vadd.f32 %v7403, %v7755
    %v7757 = vpop.f32.mrb[0].mxu0
    %v7758 = vadd.f32 %v7405, %v7757
    %v7759 = vpop.f32.mrb[0].mxu0
    %v7760 = vadd.f32 %v7407, %v7759
    %v7761 = vpop.f32.mrb[0].mxu0
    %v7762 = vadd.f32 %v7409, %v7761
    %7763 = vmatprep.mubr.bf16.mxu0 0
    %7764 = vmatmul.mubr.bf16.gmra.mrb[0].mxu0 %v5225
    %v7765 = vpop.f32.mrb[0].mxu0
    %v7766 = vadd.f32 %v7413, %v7765
    %v7767 = vpop.f32.mrb[0].mxu0
    %v7768 = vadd.f32 %v7415, %v7767
    %v7769 = vpop.f32.mrb[0].mxu0
    %v7770 = vadd.f32 %v7417, %v7769
    %v7771 = vpop.f32.mrb[0].mxu0
    %v7772 = vadd.f32 %v7419, %v7771
    %7773 = vmatprep.mubr.bf16.mxu0 0
    %7774 = vmatmul.mubr.bf16.gmra.mrb[0].mxu0 %v5226
    %v7775 = vpop.f32.mrb[0].mxu0
    %v7776 = vadd.f32 %v7423, %v7775
    %v7777 = vpop.f32.mrb[0].mxu0
    %v7778 = vadd.f32 %v7425, %v7777
    %v7779 = vpop.f32.mrb[0].mxu0
    %v7780 = vadd.f32 %v7427, %v7779
    %v7781 = vpop.f32.mrb[0].mxu0
    %v7782 = vadd.f32 %v7429, %v7781
    %7783 = vmatprep.mubr.bf16.mxu0 0
    %7784 = vmatmul.mubr.bf16.gmra.mrb[0].mxu0 %v5227
    %v7785 = vpop.f32.mrb[0].mxu0
    %v7786 = vadd.f32 %v7433, %v7785
    %v7787 = vpop.f32.mrb[0].mxu0
    %v7788 = vadd.f32 %v7435, %v7787
    %v7789 = vpop.f32.mrb[0].mxu0
    %v7790 = vadd.f32 %v7437, %v7789
    %v7791 = vpop.f32.mrb[0].mxu0
    %v7792 = vadd.f32 %v7439, %v7791
    %7793 = vmatprep.mubr.bf16.mxu0 0
    %7794 = vmatmul.mubr.bf16.gmra.mrb[0].mxu0 %v5228
    %v7795 = vpop.f32.mrb[0].mxu0
    %v7796 = vadd.f32 %v7443, %v7795
    %v7797 = vpop.f32.mrb[0].mxu0
    %v7798 = vadd.f32 %v7445, %v7797
    %v7799 = vpop.f32.mrb[0].mxu0
    %v7800 = vadd.f32 %v7447, %v7799
    %v7801 = vpop.f32.mrb[0].mxu0
    %v7802 = vadd.f32 %v7449, %v7801
    %7803 = vmatprep.mubr.bf16.mxu0 0
    %7804 = vmatmul.mubr.bf16.gmra.mrb[0].mxu0 %v5229
    %v7805 = vpop.f32.mrb[0].mxu0
    %v7806 = vadd.f32 %v7453, %v7805
    %v7807 = vpop.f32.mrb[0].mxu0
    %v7808 = vadd.f32 %v7455, %v7807
    %v7809 = vpop.f32.mrb[0].mxu0
    %v7810 = vadd.f32 %v7457, %v7809
    %v7811 = vpop.f32.mrb[0].mxu0
    %v7812 = vadd.f32 %v7459, %v7811
    %7813 = vmatprep.mubr.bf16.mxu0 0
    %7814 = vmatmul.mubr.bf16.gmra.mrb[0].mxu0 %v5230
    %v7815 = vpop.f32.mrb[0].mxu0
    %v7816 = vadd.f32 %v7463, %v7815
    %v7817 = vpop.f32.mrb[0].mxu0
    %v7818 = vadd.f32 %v7465, %v7817
    %v7819 = vpop.f32.mrb[0].mxu0
    %v7820 = vadd.f32 %v7467, %v7819
    %v7821 = vpop.f32.mrb[0].mxu0
    %v7822 = vadd.f32 %v7469, %v7821
    %7823 = vmatprep.mubr.bf16.mxu0 0
    %7824 = vmatmul.mubr.bf16.gmra.mrb[0].mxu0 %v5231
    %v7825 = vpop.f32.mrb[0].mxu0
    %v7826 = vadd.f32 %v7473, %v7825
    %v7827 = vpop.f32.mrb[0].mxu0
    %v7828 = vadd.f32 %v7475, %v7827
    %v7829 = vpop.f32.mrb[0].mxu0
    %v7830 = vadd.f32 %v7477, %v7829
    %v7831 = vpop.f32.mrb[0].mxu0
    %v7832 = vadd.f32 %v7479, %v7831
    %7833 = vmatprep.mubr.bf16.mxu0 0
    %7834 = vmatmul.mubr.bf16.gmra.mrb[0].mxu0 %v5232
    %v7835 = vpop.f32.mrb[0].mxu0
    %v7836 = vadd.f32 %v7483, %v7835
    %v7837 = vpop.f32.mrb[0].mxu0
    %v7838 = vadd.f32 %v7485, %v7837
    %v7839 = vpop.f32.mrb[0].mxu0
    %v7840 = vadd.f32 %v7487, %v7839
    %v7841 = vpop.f32.mrb[0].mxu0
    %v7842 = vadd.f32 %v7489, %v7841
    %7843 = vmatprep.mubr.bf16.mxu0 0
    %7844 = vmatmul.mubr.bf16.gmra.mrb[0].mxu0 %v5233
    %v7845 = vpop.f32.mrb[0].mxu0
    %v7846 = vadd.f32 %v7493, %v7845
    %v7847 = vpop.f32.mrb[0].mxu0
    %v7848 = vadd.f32 %v7495, %v7847
    %v7849 = vpop.f32.mrb[0].mxu0
    %v7850 = vadd.f32 %v7497, %v7849
    %v7851 = vpop.f32.mrb[0].mxu0
    %v7852 = vadd.f32 %v7499, %v7851
    %7853 = vmatprep.mubr.bf16.mxu0 0
    %7854 = vmatmul.mubr.bf16.gmra.mrb[0].mxu0 %v5234
    %v7855 = vpop.f32.mrb[0].mxu0
    %v7856 = vadd.f32 %v7503, %v7855
    %v7857 = vpop.f32.mrb[0].mxu0
    %v7858 = vadd.f32 %v7505, %v7857
    %v7859 = vpop.f32.mrb[0].mxu0
    %v7860 = vadd.f32 %v7507, %v7859
    %v7861 = vpop.f32.mrb[0].mxu0
    %v7862 = vadd.f32 %v7509, %v7861
    %7863 = vdwg.mxu0
    %v7864 = vld [vmem:[%s6] sm:$0xf]
    %v7866 = vlaneseq
    %v7867 = vshrl.u32 %v7866, 7
    %v7868 = vsub.s32 0, %v7867
    %v7869 = vrot.slane %v7864, %v7868
    %v7870 = vlaneseq
    %v7871 = vshrl.u32 %v7870, 7
    %v7872 = vsub.s32 2, %v7871
    %v7873 = vrot.slane %v7864, %v7872
    %v7876 = vlaneseq
    %v7877 = vshrl.u32 %v7876, 7
    %v7878 = vsub.s32 0, %v7877
    %v7879 = vrot.slane %v7869, %v7878
    %v7880 = vlaneseq
    %v7881 = vshrl.u32 %v7880, 7
    %v7882 = vsub.s32 0, %v7881
    %v7883 = vrot.slane %v7873, %v7882
    %v7884 = vmul.f32 %v7546, %v7879
    %v7885 = vmul.f32 %v7548, %v7883
    %v7886 = vmul.f32 %v7550, %v7879
    %v7887 = vmul.f32 %v7552, %v7883
    %v7888 = vmul.f32 %v7556, %v7879
    %v7889 = vmul.f32 %v7558, %v7883
    %v7890 = vmul.f32 %v7560, %v7879
    %v7891 = vmul.f32 %v7562, %v7883
    %v7892 = vmul.f32 %v7566, %v7879
    %v7893 = vmul.f32 %v7568, %v7883
    %v7894 = vmul.f32 %v7570, %v7879
    %v7895 = vmul.f32 %v7572, %v7883
    %v7896 = vmul.f32 %v7576, %v7879
    %v7897 = vmul.f32 %v7578, %v7883
    %v7898 = vmul.f32 %v7580, %v7879
    %v7899 = vmul.f32 %v7582, %v7883
    %v7900 = vmul.f32 %v7586, %v7879
    %v7901 = vmul.f32 %v7588, %v7883
    %v7902 = vmul.f32 %v7590, %v7879
    %v7903 = vmul.f32 %v7592, %v7883
    %v7904 = vmul.f32 %v7596, %v7879
    %v7905 = vmul.f32 %v7598, %v7883
    %v7906 = vmul.f32 %v7600, %v7879
    %v7907 = vmul.f32 %v7602, %v7883
    %v7908 = vmul.f32 %v7606, %v7879
    %v7909 = vmul.f32 %v7608, %v7883
    %v7910 = vmul.f32 %v7610, %v7879
    %v7911 = vmul.f32 %v7612, %v7883
    %v7912 = vmul.f32 %v7616, %v7879
    %v7913 = vmul.f32 %v7618, %v7883
    %v7914 = vmul.f32 %v7620, %v7879
    %v7915 = vmul.f32 %v7622, %v7883
    %v7916 = vmul.f32 %v7626, %v7879
    %v7917 = vmul.f32 %v7628, %v7883
    %v7918 = vmul.f32 %v7630, %v7879
    %v7919 = vmul.f32 %v7632, %v7883
    %v7920 = vmul.f32 %v7636, %v7879
    %v7921 = vmul.f32 %v7638, %v7883
    %v7922 = vmul.f32 %v7640, %v7879
    %v7923 = vmul.f32 %v7642, %v7883
    %v7924 = vmul.f32 %v7646, %v7879
    %v7925 = vmul.f32 %v7648, %v7883
    %v7926 = vmul.f32 %v7650, %v7879
    %v7927 = vmul.f32 %v7652, %v7883
    %v7928 = vmul.f32 %v7656, %v7879
    %v7929 = vmul.f32 %v7658, %v7883
    %v7930 = vmul.f32 %v7660, %v7879
    %v7931 = vmul.f32 %v7662, %v7883
    %v7932 = vmul.f32 %v7666, %v7879
    %v7933 = vmul.f32 %v7668, %v7883
    %v7934 = vmul.f32 %v7670, %v7879
    %v7935 = vmul.f32 %v7672, %v7883
    %v7936 = vmul.f32 %v7676, %v7879
    %v7937 = vmul.f32 %v7678, %v7883
    %v7938 = vmul.f32 %v7680, %v7879
    %v7939 = vmul.f32 %v7682, %v7883
    %v7940 = vmul.f32 %v7686, %v7879
    %v7941 = vmul.f32 %v7688, %v7883
    %v7942 = vmul.f32 %v7690, %v7879
    %v7943 = vmul.f32 %v7692, %v7883
    %v7944 = vmul.f32 %v7696, %v7879
    %v7945 = vmul.f32 %v7698, %v7883
    %v7946 = vmul.f32 %v7700, %v7879
    %v7947 = vmul.f32 %v7702, %v7883
    %v7948 = vmul.f32 %v7706, %v7879
    %v7949 = vmul.f32 %v7708, %v7883
    %v7950 = vmul.f32 %v7710, %v7879
    %v7951 = vmul.f32 %v7712, %v7883
    %v7952 = vmul.f32 %v7716, %v7879
    %v7953 = vmul.f32 %v7718, %v7883
    %v7954 = vmul.f32 %v7720, %v7879
    %v7955 = vmul.f32 %v7722, %v7883
    %v7956 = vmul.f32 %v7726, %v7879
    %v7957 = vmul.f32 %v7728, %v7883
    %v7958 = vmul.f32 %v7730, %v7879
    %v7959 = vmul.f32 %v7732, %v7883
    %v7960 = vmul.f32 %v7736, %v7879
    %v7961 = vmul.f32 %v7738, %v7883
    %v7962 = vmul.f32 %v7740, %v7879
    %v7963 = vmul.f32 %v7742, %v7883
    %v7964 = vmul.f32 %v7746, %v7879
    %v7965 = vmul.f32 %v7748, %v7883
    %v7966 = vmul.f32 %v7750, %v7879
    %v7967 = vmul.f32 %v7752, %v7883
    %v7968 = vmul.f32 %v7756, %v7879
    %v7969 = vmul.f32 %v7758, %v7883
    %v7970 = vmul.f32 %v7760, %v7879
    %v7971 = vmul.f32 %v7762, %v7883
    %v7972 = vmul.f32 %v7766, %v7879
    %v7973 = vmul.f32 %v7768, %v7883
    %v7974 = vmul.f32 %v7770, %v7879
    %v7975 = vmul.f32 %v7772, %v7883
    %v7976 = vmul.f32 %v7776, %v7879
    %v7977 = vmul.f32 %v7778, %v7883
    %v7978 = vmul.f32 %v7780, %v7879
    %v7979 = vmul.f32 %v7782, %v7883
    %v7980 = vmul.f32 %v7786, %v7879
    %v7981 = vmul.f32 %v7788, %v7883
    %v7982 = vmul.f32 %v7790, %v7879
    %v7983 = vmul.f32 %v7792, %v7883
    %v7984 = vmul.f32 %v7796, %v7879
    %v7985 = vmul.f32 %v7798, %v7883
    %v7986 = vmul.f32 %v7800, %v7879
    %v7987 = vmul.f32 %v7802, %v7883
    %v7988 = vmul.f32 %v7806, %v7879
    %v7989 = vmul.f32 %v7808, %v7883
    %v7990 = vmul.f32 %v7810, %v7879
    %v7991 = vmul.f32 %v7812, %v7883
    %v7992 = vmul.f32 %v7816, %v7879
    %v7993 = vmul.f32 %v7818, %v7883
    %v7994 = vmul.f32 %v7820, %v7879
    %v7995 = vmul.f32 %v7822, %v7883
    %v7996 = vmul.f32 %v7826, %v7879
    %v7997 = vmul.f32 %v7828, %v7883
    %v7998 = vmul.f32 %v7830, %v7879
    %v7999 = vmul.f32 %v7832, %v7883
    %v8000 = vmul.f32 %v7836, %v7879
    %v8001 = vmul.f32 %v7838, %v7883
    %v8002 = vmul.f32 %v7840, %v7879
    %v8003 = vmul.f32 %v7842, %v7883
    %v8004 = vmul.f32 %v7846, %v7879
    %v8005 = vmul.f32 %v7848, %v7883
    %v8006 = vmul.f32 %v7850, %v7879
    %v8007 = vmul.f32 %v7852, %v7883
    %v8008 = vmul.f32 %v7856, %v7879
    %v8009 = vmul.f32 %v7858, %v7883
    %v8010 = vmul.f32 %v7860, %v7879
    %v8011 = vmul.f32 %v7862, %v7883
    %v8012 = vlaneseq
    %v8013 = vshrl.u32 %v8012, 7
    %v8014 = vsub.s32 1, %v8013
    %v8015 = vrot.slane %v7864, %v8014
    %v8016 = vlaneseq
    %v8017 = vshrl.u32 %v8016, 7
    %v8018 = vsub.s32 3, %v8017
    %v8019 = vrot.slane %v7864, %v8018
    %v8022 = vlaneseq
    %v8023 = vshrl.u32 %v8022, 7
    %v8024 = vsub.s32 1, %v8023
    %v8025 = vrot.slane %v8015, %v8024
    %v8026 = vlaneseq
    %v8027 = vshrl.u32 %v8026, 7
    %v8028 = vsub.s32 1, %v8027
    %v8029 = vrot.slane %v8019, %v8028
    %v8030 = vadd.f32 %v7884, %v8025
    %v8031 = vadd.f32 %v7885, %v8029
    %v8032 = vadd.f32 %v7886, %v8025
    %v8033 = vadd.f32 %v7887, %v8029
    %v8034 = vadd.f32 %v7888, %v8025
    %v8035 = vadd.f32 %v7889, %v8029
    %v8036 = vadd.f32 %v7890, %v8025
    %v8037 = vadd.f32 %v7891, %v8029
    %v8038 = vadd.f32 %v7892, %v8025
    %v8039 = vadd.f32 %v7893, %v8029
    %v8040 = vadd.f32 %v7894, %v8025
    %v8041 = vadd.f32 %v7895, %v8029
    %v8042 = vadd.f32 %v7896, %v8025
    %v8043 = vadd.f32 %v7897, %v8029
    %v8044 = vadd.f32 %v7898, %v8025
    %v8045 = vadd.f32 %v7899, %v8029
    %v8046 = vadd.f32 %v7900, %v8025
    %v8047 = vadd.f32 %v7901, %v8029
    %v8048 = vadd.f32 %v7902, %v8025
    %v8049 = vadd.f32 %v7903, %v8029
    %v8050 = vadd.f32 %v7904, %v8025
    %v8051 = vadd.f32 %v7905, %v8029
    %v8052 = vadd.f32 %v7906, %v8025
    %v8053 = vadd.f32 %v7907, %v8029
    %v8054 = vadd.f32 %v7908, %v8025
    %v8055 = vadd.f32 %v7909, %v8029
    %v8056 = vadd.f32 %v7910, %v8025
    %v8057 = vadd.f32 %v7911, %v8029
    %v8058 = vadd.f32 %v7912, %v8025
    %v8059 = vadd.f32 %v7913, %v8029
    %v8060 = vadd.f32 %v7914, %v8025
    %v8061 = vadd.f32 %v7915, %v8029
    %v8062 = vadd.f32 %v7916, %v8025
    %v8063 = vadd.f32 %v7917, %v8029
    %v8064 = vadd.f32 %v7918, %v8025
    %v8065 = vadd.f32 %v7919, %v8029
    %v8066 = vadd.f32 %v7920, %v8025
    %v8067 = vadd.f32 %v7921, %v8029
    %v8068 = vadd.f32 %v7922, %v8025
    %v8069 = vadd.f32 %v7923, %v8029
    %v8070 = vadd.f32 %v7924, %v8025
    %v8071 = vadd.f32 %v7925, %v8029
    %v8072 = vadd.f32 %v7926, %v8025
    %v8073 = vadd.f32 %v7927, %v8029
    %v8074 = vadd.f32 %v7928, %v8025
    %v8075 = vadd.f32 %v7929, %v8029
    %v8076 = vadd.f32 %v7930, %v8025
    %v8077 = vadd.f32 %v7931, %v8029
    %v8078 = vadd.f32 %v7932, %v8025
    %v8079 = vadd.f32 %v7933, %v8029
    %v8080 = vadd.f32 %v7934, %v8025
    %v8081 = vadd.f32 %v7935, %v8029
    %v8082 = vadd.f32 %v7936, %v8025
    %v8083 = vadd.f32 %v7937, %v8029
    %v8084 = vadd.f32 %v7938, %v8025
    %v8085 = vadd.f32 %v7939, %v8029
    %v8086 = vadd.f32 %v7940, %v8025
    %v8087 = vadd.f32 %v7941, %v8029
    %v8088 = vadd.f32 %v7942, %v8025
    %v8089 = vadd.f32 %v7943, %v8029
    %v8090 = vadd.f32 %v7944, %v8025
    %v8091 = vadd.f32 %v7945, %v8029
    %v8092 = vadd.f32 %v7946, %v8025
    %v8093 = vadd.f32 %v7947, %v8029
    %v8094 = vadd.f32 %v7948, %v8025
    %v8095 = vadd.f32 %v7949, %v8029
    %v8096 = vadd.f32 %v7950, %v8025
    %v8097 = vadd.f32 %v7951, %v8029
    %v8098 = vadd.f32 %v7952, %v8025
    %v8099 = vadd.f32 %v7953, %v8029
    %v8100 = vadd.f32 %v7954, %v8025
    %v8101 = vadd.f32 %v7955, %v8029
    %v8102 = vadd.f32 %v7956, %v8025
    %v8103 = vadd.f32 %v7957, %v8029
    %v8104 = vadd.f32 %v7958, %v8025
    %v8105 = vadd.f32 %v7959, %v8029
    %v8106 = vadd.f32 %v7960, %v8025
    %v8107 = vadd.f32 %v7961, %v8029
    %v8108 = vadd.f32 %v7962, %v8025
    %v8109 = vadd.f32 %v7963, %v8029
    %v8110 = vadd.f32 %v7964, %v8025
    %v8111 = vadd.f32 %v7965, %v8029
    %v8112 = vadd.f32 %v7966, %v8025
    %v8113 = vadd.f32 %v7967, %v8029
    %v8114 = vadd.f32 %v7968, %v8025
    %v8115 = vadd.f32 %v7969, %v8029
    %v8116 = vadd.f32 %v7970, %v8025
    %v8117 = vadd.f32 %v7971, %v8029
    %v8118 = vadd.f32 %v7972, %v8025
    %v8119 = vadd.f32 %v7973, %v8029
    %v8120 = vadd.f32 %v7974, %v8025
    %v8121 = vadd.f32 %v7975, %v8029
    %v8122 = vadd.f32 %v7976, %v8025
    %v8123 = vadd.f32 %v7977, %v8029
    %v8124 = vadd.f32 %v7978, %v8025
    %v8125 = vadd.f32 %v7979, %v8029
    %v8126 = vadd.f32 %v7980, %v8025
    %v8127 = vadd.f32 %v7981, %v8029
    %v8128 = vadd.f32 %v7982, %v8025
    %v8129 = vadd.f32 %v7983, %v8029
    %v8130 = vadd.f32 %v7984, %v8025
    %v8131 = vadd.f32 %v7985, %v8029
    %v8132 = vadd.f32 %v7986, %v8025
    %v8133 = vadd.f32 %v7987, %v8029
    %v8134 = vadd.f32 %v7988, %v8025
    %v8135 = vadd.f32 %v7989, %v8029
    %v8136 = vadd.f32 %v7990, %v8025
    %v8137 = vadd.f32 %v7991, %v8029
    %v8138 = vadd.f32 %v7992, %v8025
    %v8139 = vadd.f32 %v7993, %v8029
    %v8140 = vadd.f32 %v7994, %v8025
    %v8141 = vadd.f32 %v7995, %v8029
    %v8142 = vadd.f32 %v7996, %v8025
    %v8143 = vadd.f32 %v7997, %v8029
    %v8144 = vadd.f32 %v7998, %v8025
    %v8145 = vadd.f32 %v7999, %v8029
    %v8146 = vadd.f32 %v8000, %v8025
    %v8147 = vadd.f32 %v8001, %v8029
    %v8148 = vadd.f32 %v8002, %v8025
    %v8149 = vadd.f32 %v8003, %v8029
    %v8150 = vadd.f32 %v8004, %v8025
    %v8151 = vadd.f32 %v8005, %v8029
    %v8152 = vadd.f32 %v8006, %v8025
    %v8153 = vadd.f32 %v8007, %v8029
    %v8154 = vadd.f32 %v8008, %v8025
    %v8155 = vadd.f32 %v8009, %v8029
    %v8156 = vadd.f32 %v8010, %v8025
    %v8157 = vadd.f32 %v8011, %v8029
    %v8158 = vmax.f32 %v8030, 0.0
    %v8159 = vmax.f32 %v8031, 0.0
    %v8160 = vmax.f32 %v8032, 0.0
    %v8161 = vmax.f32 %v8033, 0.0
    %v8162 = vmax.f32 %v8034, 0.0
    %v8163 = vmax.f32 %v8035, 0.0
    %v8164 = vmax.f32 %v8036, 0.0
    %v8165 = vmax.f32 %v8037, 0.0
    %v8166 = vmax.f32 %v8038, 0.0
    %v8167 = vmax.f32 %v8039, 0.0
    %v8168 = vmax.f32 %v8040, 0.0
    %v8169 = vmax.f32 %v8041, 0.0
    %v8170 = vmax.f32 %v8042, 0.0
    %v8171 = vmax.f32 %v8043, 0.0
    %v8172 = vmax.f32 %v8044, 0.0
    %v8173 = vmax.f32 %v8045, 0.0
    %v8174 = vmax.f32 %v8046, 0.0
    %v8175 = vmax.f32 %v8047, 0.0
    %v8176 = vmax.f32 %v8048, 0.0
    %v8177 = vmax.f32 %v8049, 0.0
    %v8178 = vmax.f32 %v8050, 0.0
    %v8179 = vmax.f32 %v8051, 0.0
    %v8180 = vmax.f32 %v8052, 0.0
    %v8181 = vmax.f32 %v8053, 0.0
    %v8182 = vmax.f32 %v8054, 0.0
    %v8183 = vmax.f32 %v8055, 0.0
    %v8184 = vmax.f32 %v8056, 0.0
    %v8185 = vmax.f32 %v8057, 0.0
    %v8186 = vmax.f32 %v8058, 0.0
    %v8187 = vmax.f32 %v8059, 0.0
    %v8188 = vmax.f32 %v8060, 0.0
    %v8189 = vmax.f32 %v8061, 0.0
    %v8190 = vmax.f32 %v8062, 0.0
    %v8191 = vmax.f32 %v8063, 0.0
    %v8192 = vmax.f32 %v8064, 0.0
    %v8193 = vmax.f32 %v8065, 0.0
    %v8194 = vmax.f32 %v8066, 0.0
    %v8195 = vmax.f32 %v8067, 0.0
    %v8196 = vmax.f32 %v8068, 0.0
    %v8197 = vmax.f32 %v8069, 0.0
    %v8198 = vmax.f32 %v8070, 0.0
    %v8199 = vmax.f32 %v8071, 0.0
    %v8200 = vmax.f32 %v8072, 0.0
    %v8201 = vmax.f32 %v8073, 0.0
    %v8202 = vmax.f32 %v8074, 0.0
    %v8203 = vmax.f32 %v8075, 0.0
    %v8204 = vmax.f32 %v8076, 0.0
    %v8205 = vmax.f32 %v8077, 0.0
    %v8206 = vmax.f32 %v8078, 0.0
    %v8207 = vmax.f32 %v8079, 0.0
    %v8208 = vmax.f32 %v8080, 0.0
    %v8209 = vmax.f32 %v8081, 0.0
    %v8210 = vmax.f32 %v8082, 0.0
    %v8211 = vmax.f32 %v8083, 0.0
    %v8212 = vmax.f32 %v8084, 0.0
    %v8213 = vmax.f32 %v8085, 0.0
    %v8214 = vmax.f32 %v8086, 0.0
    %v8215 = vmax.f32 %v8087, 0.0
    %v8216 = vmax.f32 %v8088, 0.0
    %v8217 = vmax.f32 %v8089, 0.0
    %v8218 = vmax.f32 %v8090, 0.0
    %v8219 = vmax.f32 %v8091, 0.0
    %v8220 = vmax.f32 %v8092, 0.0
    %v8221 = vmax.f32 %v8093, 0.0
    %v8222 = vmax.f32 %v8094, 0.0
    %v8223 = vmax.f32 %v8095, 0.0
    %v8224 = vmax.f32 %v8096, 0.0
    %v8225 = vmax.f32 %v8097, 0.0
    %v8226 = vmax.f32 %v8098, 0.0
    %v8227 = vmax.f32 %v8099, 0.0
    %v8228 = vmax.f32 %v8100, 0.0
    %v8229 = vmax.f32 %v8101, 0.0
    %v8230 = vmax.f32 %v8102, 0.0
    %v8231 = vmax.f32 %v8103, 0.0
    %v8232 = vmax.f32 %v8104, 0.0
    %v8233 = vmax.f32 %v8105, 0.0
    %v8234 = vmax.f32 %v8106, 0.0
    %v8235 = vmax.f32 %v8107, 0.0
    %v8236 = vmax.f32 %v8108, 0.0
    %v8237 = vmax.f32 %v8109, 0.0
    %v8238 = vmax.f32 %v8110, 0.0
    %v8239 = vmax.f32 %v8111, 0.0
    %v8240 = vmax.f32 %v8112, 0.0
    %v8241 = vmax.f32 %v8113, 0.0
    %v8242 = vmax.f32 %v8114, 0.0
    %v8243 = vmax.f32 %v8115, 0.0
    %v8244 = vmax.f32 %v8116, 0.0
    %v8245 = vmax.f32 %v8117, 0.0
    %v8246 = vmax.f32 %v8118, 0.0
    %v8247 = vmax.f32 %v8119, 0.0
    %v8248 = vmax.f32 %v8120, 0.0
    %v8249 = vmax.f32 %v8121, 0.0
    %v8250 = vmax.f32 %v8122, 0.0
    %v8251 = vmax.f32 %v8123, 0.0
    %v8252 = vmax.f32 %v8124, 0.0
    %v8253 = vmax.f32 %v8125, 0.0
    %v8254 = vmax.f32 %v8126, 0.0
    %v8255 = vmax.f32 %v8127, 0.0
    %v8256 = vmax.f32 %v8128, 0.0
    %v8257 = vmax.f32 %v8129, 0.0
    %v8258 = vmax.f32 %v8130, 0.0
    %v8259 = vmax.f32 %v8131, 0.0
    %v8260 = vmax.f32 %v8132, 0.0
    %v8261 = vmax.f32 %v8133, 0.0
    %v8262 = vmax.f32 %v8134, 0.0
    %v8263 = vmax.f32 %v8135, 0.0
    %v8264 = vmax.f32 %v8136, 0.0
    %v8265 = vmax.f32 %v8137, 0.0
    %v8266 = vmax.f32 %v8138, 0.0
    %v8267 = vmax.f32 %v8139, 0.0
    %v8268 = vmax.f32 %v8140, 0.0
    %v8269 = vmax.f32 %v8141, 0.0
    %v8270 = vmax.f32 %v8142, 0.0
    %v8271 = vmax.f32 %v8143, 0.0
    %v8272 = vmax.f32 %v8144, 0.0
    %v8273 = vmax.f32 %v8145, 0.0
    %v8274 = vmax.f32 %v8146, 0.0
    %v8275 = vmax.f32 %v8147, 0.0
    %v8276 = vmax.f32 %v8148, 0.0
    %v8277 = vmax.f32 %v8149, 0.0
    %v8278 = vmax.f32 %v8150, 0.0
    %v8279 = vmax.f32 %v8151, 0.0
    %v8280 = vmax.f32 %v8152, 0.0
    %v8281 = vmax.f32 %v8153, 0.0
    %v8282 = vmax.f32 %v8154, 0.0
    %v8283 = vmax.f32 %v8155, 0.0
    %v8284 = vmax.f32 %v8156, 0.0
    %v8285 = vmax.f32 %v8157, 0.0
    %v8286 = vld [vmem:[%s7] sm:$0xff]
    %v8287 = vld [vmem:[%s7 + $0x8] sm:$0xff]
    %v8288 = vld [vmem:[%s7 + $0x10] sm:$0xff]
    %v8289 = vld [vmem:[%s7 + $0x18] sm:$0xff]
    %v8290 = vld [vmem:[%s7 + $0x20] sm:$0xff]
    %v8291 = vld [vmem:[%s7 + $0x28] sm:$0xff]
    %v8292 = vld [vmem:[%s7 + $0x30] sm:$0xff]
    %v8293 = vld [vmem:[%s7 + $0x38] sm:$0xff]
    %v8294 = vld [vmem:[%s7 + $0x40] sm:$0xff]
    %v8295 = vld [vmem:[%s7 + $0x48] sm:$0xff]
    %v8296 = vld [vmem:[%s7 + $0x50] sm:$0xff]
    %v8297 = vld [vmem:[%s7 + $0x58] sm:$0xff]
    %v8298 = vld [vmem:[%s7 + $0x60] sm:$0xff]
    %v8299 = vld [vmem:[%s7 + $0x68] sm:$0xff]
    %v8300 = vld [vmem:[%s7 + $0x70] sm:$0xff]
    %v8301 = vld [vmem:[%s7 + $0x78] sm:$0xff]
    %v8302 = vld [vmem:[%s7 + $0x80] sm:$0xff]
    %v8303 = vld [vmem:[%s7 + $0x88] sm:$0xff]
    %v8304 = vld [vmem:[%s7 + $0x90] sm:$0xff]
    %v8305 = vld [vmem:[%s7 + $0x98] sm:$0xff]
    %v8306 = vld [vmem:[%s7 + $0xa0] sm:$0xff]
    %v8307 = vld [vmem:[%s7 + $0xa8] sm:$0xff]
    %v8308 = vld [vmem:[%s7 + $0xb0] sm:$0xff]
    %v8309 = vld [vmem:[%s7 + $0xb8] sm:$0xff]
    %v8310 = vld [vmem:[%s7 + $0xc0] sm:$0xff]
    %v8311 = vld [vmem:[%s7 + $0xc8] sm:$0xff]
    %v8312 = vld [vmem:[%s7 + $0xd0] sm:$0xff]
    %v8313 = vld [vmem:[%s7 + $0xd8] sm:$0xff]
    %v8314 = vld [vmem:[%s7 + $0xe0] sm:$0xff]
    %v8315 = vld [vmem:[%s7 + $0xe8] sm:$0xff]
    %v8316 = vld [vmem:[%s7 + $0xf0] sm:$0xff]
    %v8317 = vld [vmem:[%s7 + $0xf8] sm:$0xff]
    %8319 = vset.pattern.permute.xlu0 0
    %8320 = vperm.xlu0 %8319, %v8286
    %v8321 = vpop.permute.xlu0 %8320
    %8324 = vset.pattern.permute.xlu0 0
    %8325 = vperm.xlu0 %8324, %v8287
    %v8326 = vpop.permute.xlu0 %8325
    %8329 = vset.pattern.permute.xlu0 0
    %8330 = vperm.xlu0 %8329, %v8288
    %v8331 = vpop.permute.xlu0 %8330
    %8334 = vset.pattern.permute.xlu0 0
    %8335 = vperm.xlu0 %8334, %v8289
    %v8336 = vpop.permute.xlu0 %8335
    %8339 = vset.pattern.permute.xlu0 0
    %8340 = vperm.xlu0 %8339, %v8290
    %v8341 = vpop.permute.xlu0 %8340
    %8344 = vset.pattern.permute.xlu0 0
    %8345 = vperm.xlu0 %8344, %v8291
    %v8346 = vpop.permute.xlu0 %8345
    %8349 = vset.pattern.permute.xlu0 0
    %8350 = vperm.xlu0 %8349, %v8292
    %v8351 = vpop.permute.xlu0 %8350
    %8354 = vset.pattern.permute.xlu0 0
    %8355 = vperm.xlu0 %8354, %v8293
    %v8356 = vpop.permute.xlu0 %8355
    %8359 = vset.pattern.permute.xlu0 0
    %8360 = vperm.xlu0 %8359, %v8294
    %v8361 = vpop.permute.xlu0 %8360
    %8364 = vset.pattern.permute.xlu0 0
    %8365 = vperm.xlu0 %8364, %v8295
    %v8366 = vpop.permute.xlu0 %8365
    %8369 = vset.pattern.permute.xlu0 0
    %8370 = vperm.xlu0 %8369, %v8296
    %v8371 = vpop.permute.xlu0 %8370
    %8374 = vset.pattern.permute.xlu0 0
    %8375 = vperm.xlu0 %8374, %v8297
    %v8376 = vpop.permute.xlu0 %8375
    %8379 = vset.pattern.permute.xlu0 0
    %8380 = vperm.xlu0 %8379, %v8298
    %v8381 = vpop.permute.xlu0 %8380
    %8384 = vset.pattern.permute.xlu0 0
    %8385 = vperm.xlu0 %8384, %v8299
    %v8386 = vpop.permute.xlu0 %8385
    %8389 = vset.pattern.permute.xlu0 0
    %8390 = vperm.xlu0 %8389, %v8300
    %v8391 = vpop.permute.xlu0 %8390
    %8394 = vset.pattern.permute.xlu0 0
    %8395 = vperm.xlu0 %8394, %v8301
    %v8396 = vpop.permute.xlu0 %8395
    %8399 = vset.pattern.permute.xlu0 0
    %8400 = vperm.xlu0 %8399, %v8302
    %v8401 = vpop.permute.xlu0 %8400
    %8404 = vset.pattern.permute.xlu0 0
    %8405 = vperm.xlu0 %8404, %v8303
    %v8406 = vpop.permute.xlu0 %8405
    %8409 = vset.pattern.permute.xlu0 0
    %8410 = vperm.xlu0 %8409, %v8304
    %v8411 = vpop.permute.xlu0 %8410
    %8414 = vset.pattern.permute.xlu0 0
    %8415 = vperm.xlu0 %8414, %v8305
    %v8416 = vpop.permute.xlu0 %8415
    %8419 = vset.pattern.permute.xlu0 0
    %8420 = vperm.xlu0 %8419, %v8306
    %v8421 = vpop.permute.xlu0 %8420
    %8424 = vset.pattern.permute.xlu0 0
    %8425 = vperm.xlu0 %8424, %v8307
    %v8426 = vpop.permute.xlu0 %8425
    %8429 = vset.pattern.permute.xlu0 0
    %8430 = vperm.xlu0 %8429, %v8308
    %v8431 = vpop.permute.xlu0 %8430
    %8434 = vset.pattern.permute.xlu0 0
    %8435 = vperm.xlu0 %8434, %v8309
    %v8436 = vpop.permute.xlu0 %8435
    %8439 = vset.pattern.permute.xlu0 0
    %8440 = vperm.xlu0 %8439, %v8310
    %v8441 = vpop.permute.xlu0 %8440
    %8444 = vset.pattern.permute.xlu0 0
    %8445 = vperm.xlu0 %8444, %v8311
    %v8446 = vpop.permute.xlu0 %8445
    %8449 = vset.pattern.permute.xlu0 0
    %8450 = vperm.xlu0 %8449, %v8312
    %v8451 = vpop.permute.xlu0 %8450
    %8454 = vset.pattern.permute.xlu0 0
    %8455 = vperm.xlu0 %8454, %v8313
    %v8456 = vpop.permute.xlu0 %8455
    %8459 = vset.pattern.permute.xlu0 0
    %8460 = vperm.xlu0 %8459, %v8314
    %v8461 = vpop.permute.xlu0 %8460
    %8464 = vset.pattern.permute.xlu0 0
    %8465 = vperm.xlu0 %8464, %v8315
    %v8466 = vpop.permute.xlu0 %8465
    %8469 = vset.pattern.permute.xlu0 0
    %8470 = vperm.xlu0 %8469, %v8316
    %v8471 = vpop.permute.xlu0 %8470
    %8474 = vset.pattern.permute.xlu0 0
    %8475 = vperm.xlu0 %8474, %v8317
    %v8476 = vpop.permute.xlu0 %8475
    %v8478 = vmul.f32 %v8158, %v8321
    %v8479 = vmul.f32 %v8159, %v8321
    %v8480 = vmul.f32 %v8160, %v8326
    %v8481 = vmul.f32 %v8161, %v8326
    %v8482 = vmul.f32 %v8162, %v8331
    %v8483 = vmul.f32 %v8163, %v8331
    %v8484 = vmul.f32 %v8164, %v8336
    %v8485 = vmul.f32 %v8165, %v8336
    %v8486 = vmul.f32 %v8166, %v8341
    %v8487 = vmul.f32 %v8167, %v8341
    %v8488 = vmul.f32 %v8168, %v8346
    %v8489 = vmul.f32 %v8169, %v8346
    %v8490 = vmul.f32 %v8170, %v8351
    %v8491 = vmul.f32 %v8171, %v8351
    %v8492 = vmul.f32 %v8172, %v8356
    %v8493 = vmul.f32 %v8173, %v8356
    %v8494 = vmul.f32 %v8174, %v8361
    %v8495 = vmul.f32 %v8175, %v8361
    %v8496 = vmul.f32 %v8176, %v8366
    %v8497 = vmul.f32 %v8177, %v8366
    %v8498 = vmul.f32 %v8178, %v8371
    %v8499 = vmul.f32 %v8179, %v8371
    %v8500 = vmul.f32 %v8180, %v8376
    %v8501 = vmul.f32 %v8181, %v8376
    %v8502 = vmul.f32 %v8182, %v8381
    %v8503 = vmul.f32 %v8183, %v8381
    %v8504 = vmul.f32 %v8184, %v8386
    %v8505 = vmul.f32 %v8185, %v8386
    %v8506 = vmul.f32 %v8186, %v8391
    %v8507 = vmul.f32 %v8187, %v8391
    %v8508 = vmul.f32 %v8188, %v8396
    %v8509 = vmul.f32 %v8189, %v8396
    %v8510 = vmul.f32 %v8190, %v8401
    %v8511 = vmul.f32 %v8191, %v8401
    %v8512 = vmul.f32 %v8192, %v8406
    %v8513 = vmul.f32 %v8193, %v8406
    %v8514 = vmul.f32 %v8194, %v8411
    %v8515 = vmul.f32 %v8195, %v8411
    %v8516 = vmul.f32 %v8196, %v8416
    %v8517 = vmul.f32 %v8197, %v8416
    %v8518 = vmul.f32 %v8198, %v8421
    %v8519 = vmul.f32 %v8199, %v8421
    %v8520 = vmul.f32 %v8200, %v8426
    %v8521 = vmul.f32 %v8201, %v8426
    %v8522 = vmul.f32 %v8202, %v8431
    %v8523 = vmul.f32 %v8203, %v8431
    %v8524 = vmul.f32 %v8204, %v8436
    %v8525 = vmul.f32 %v8205, %v8436
    %v8526 = vmul.f32 %v8206, %v8441
    %v8527 = vmul.f32 %v8207, %v8441
    %v8528 = vmul.f32 %v8208, %v8446
    %v8529 = vmul.f32 %v8209, %v8446
    %v8530 = vmul.f32 %v8210, %v8451
    %v8531 = vmul.f32 %v8211, %v8451
    %v8532 = vmul.f32 %v8212, %v8456
    %v8533 = vmul.f32 %v8213, %v8456
    %v8534 = vmul.f32 %v8214, %v8461
    %v8535 = vmul.f32 %v8215, %v8461
    %v8536 = vmul.f32 %v8216, %v8466
    %v8537 = vmul.f32 %v8217, %v8466
    %v8538 = vmul.f32 %v8218, %v8471
    %v8539 = vmul.f32 %v8219, %v8471
    %v8540 = vmul.f32 %v8220, %v8476
    %v8541 = vmul.f32 %v8221, %v8476
    %v8542 = vmul.f32 %v8222, %v8321
    %v8543 = vmul.f32 %v8223, %v8321
    %v8544 = vmul.f32 %v8224, %v8326
    %v8545 = vmul.f32 %v8225, %v8326
    %v8546 = vmul.f32 %v8226, %v8331
    %v8547 = vmul.f32 %v8227, %v8331
    %v8548 = vmul.f32 %v8228, %v8336
    %v8549 = vmul.f32 %v8229, %v8336
    %v8550 = vmul.f32 %v8230, %v8341
    %v8551 = vmul.f32 %v8231, %v8341
    %v8552 = vmul.f32 %v8232, %v8346
    %v8553 = vmul.f32 %v8233, %v8346
    %v8554 = vmul.f32 %v8234, %v8351
    %v8555 = vmul.f32 %v8235, %v8351
    %v8556 = vmul.f32 %v8236, %v8356
    %v8557 = vmul.f32 %v8237, %v8356
    %v8558 = vmul.f32 %v8238, %v8361
    %v8559 = vmul.f32 %v8239, %v8361
    %v8560 = vmul.f32 %v8240, %v8366
    %v8561 = vmul.f32 %v8241, %v8366
    %v8562 = vmul.f32 %v8242, %v8371
    %v8563 = vmul.f32 %v8243, %v8371
    %v8564 = vmul.f32 %v8244, %v8376
    %v8565 = vmul.f32 %v8245, %v8376
    %v8566 = vmul.f32 %v8246, %v8381
    %v8567 = vmul.f32 %v8247, %v8381
    %v8568 = vmul.f32 %v8248, %v8386
    %v8569 = vmul.f32 %v8249, %v8386
    %v8570 = vmul.f32 %v8250, %v8391
    %v8571 = vmul.f32 %v8251, %v8391
    %v8572 = vmul.f32 %v8252, %v8396
    %v8573 = vmul.f32 %v8253, %v8396
    %v8574 = vmul.f32 %v8254, %v8401
    %v8575 = vmul.f32 %v8255, %v8401
    %v8576 = vmul.f32 %v8256, %v8406
    %v8577 = vmul.f32 %v8257, %v8406
    %v8578 = vmul.f32 %v8258, %v8411
    %v8579 = vmul.f32 %v8259, %v8411
    %v8580 = vmul.f32 %v8260, %v8416
    %v8581 = vmul.f32 %v8261, %v8416
    %v8582 = vmul.f32 %v8262, %v8421
    %v8583 = vmul.f32 %v8263, %v8421
    %v8584 = vmul.f32 %v8264, %v8426
    %v8585 = vmul.f32 %v8265, %v8426
    %v8586 = vmul.f32 %v8266, %v8431
    %v8587 = vmul.f32 %v8267, %v8431
    %v8588 = vmul.f32 %v8268, %v8436
    %v8589 = vmul.f32 %v8269, %v8436
    %v8590 = vmul.f32 %v8270, %v8441
    %v8591 = vmul.f32 %v8271, %v8441
    %v8592 = vmul.f32 %v8272, %v8446
    %v8593 = vmul.f32 %v8273, %v8446
    %v8594 = vmul.f32 %v8274, %v8451
    %v8595 = vmul.f32 %v8275, %v8451
    %v8596 = vmul.f32 %v8276, %v8456
    %v8597 = vmul.f32 %v8277, %v8456
    %v8598 = vmul.f32 %v8278, %v8461
    %v8599 = vmul.f32 %v8279, %v8461
    %v8600 = vmul.f32 %v8280, %v8466
    %v8601 = vmul.f32 %v8281, %v8466
    %v8602 = vmul.f32 %v8282, %v8471
    %v8603 = vmul.f32 %v8283, %v8471
    %v8604 = vmul.f32 %v8284, %v8476
    %v8605 = vmul.f32 %v8285, %v8476
    %v8606 = vadd.f32 %v8478, %v8480
    %v8607 = vadd.f32 %v8606, %v8482
    %v8608 = vadd.f32 %v8607, %v8484
    %v8609 = vadd.f32 %v8608, %v8486
    %v8610 = vadd.f32 %v8609, %v8488
    %v8611 = vadd.f32 %v8610, %v8490
    %v8612 = vadd.f32 %v8611, %v8492
    %v8613 = vadd.f32 %v8612, %v8494
    %v8614 = vadd.f32 %v8613, %v8496
    %v8615 = vadd.f32 %v8614, %v8498
    %v8616 = vadd.f32 %v8615, %v8500
    %v8617 = vadd.f32 %v8616, %v8502
    %v8618 = vadd.f32 %v8617, %v8504
    %v8619 = vadd.f32 %v8618, %v8506
    %v8620 = vadd.f32 %v8619, %v8508
    %v8621 = vadd.f32 %v8620, %v8510
    %v8622 = vadd.f32 %v8621, %v8512
    %v8623 = vadd.f32 %v8622, %v8514
    %v8624 = vadd.f32 %v8623, %v8516
    %v8625 = vadd.f32 %v8624, %v8518
    %v8626 = vadd.f32 %v8625, %v8520
    %v8627 = vadd.f32 %v8626, %v8522
    %v8628 = vadd.f32 %v8627, %v8524
    %v8629 = vadd.f32 %v8628, %v8526
    %v8630 = vadd.f32 %v8629, %v8528
    %v8631 = vadd.f32 %v8630, %v8530
    %v8632 = vadd.f32 %v8631, %v8532
    %v8633 = vadd.f32 %v8632, %v8534
    %v8634 = vadd.f32 %v8633, %v8536
    %v8635 = vadd.f32 %v8634, %v8538
    %v8636 = vadd.f32 %v8635, %v8540
    %v8637 = vrot.slane %v8636, 4
    %v8638 = vadd.f32 %v8636, %v8637
    %v8639 = vrot.slane %v8638, 2
    %v8640 = vadd.f32 %v8638, %v8639
    %v8641 = vrot.slane %v8640, 1
    %v8642 = vadd.f32 %v8640, %v8641
    %v8643 = vadd.f32 %v8479, %v8481
    %v8644 = vadd.f32 %v8643, %v8483
    %v8645 = vadd.f32 %v8644, %v8485
    %v8646 = vadd.f32 %v8645, %v8487
    %v8647 = vadd.f32 %v8646, %v8489
    %v8648 = vadd.f32 %v8647, %v8491
    %v8649 = vadd.f32 %v8648, %v8493
    %v8650 = vadd.f32 %v8649, %v8495
    %v8651 = vadd.f32 %v8650, %v8497
    %v8652 = vadd.f32 %v8651, %v8499
    %v8653 = vadd.f32 %v8652, %v8501
    %v8654 = vadd.f32 %v8653, %v8503
    %v8655 = vadd.f32 %v8654, %v8505
    %v8656 = vadd.f32 %v8655, %v8507
    %v8657 = vadd.f32 %v8656, %v8509
    %v8658 = vadd.f32 %v8657, %v8511
    %v8659 = vadd.f32 %v8658, %v8513
    %v8660 = vadd.f32 %v8659, %v8515
    %v8661 = vadd.f32 %v8660, %v8517
    %v8662 = vadd.f32 %v8661, %v8519
    %v8663 = vadd.f32 %v8662, %v8521
    %v8664 = vadd.f32 %v8663, %v8523
    %v8665 = vadd.f32 %v8664, %v8525
    %v8666 = vadd.f32 %v8665, %v8527
    %v8667 = vadd.f32 %v8666, %v8529
    %v8668 = vadd.f32 %v8667, %v8531
    %v8669 = vadd.f32 %v8668, %v8533
    %v8670 = vadd.f32 %v8669, %v8535
    %v8671 = vadd.f32 %v8670, %v8537
    %v8672 = vadd.f32 %v8671, %v8539
    %v8673 = vadd.f32 %v8672, %v8541
    %v8674 = vrot.slane %v8673, 4
    %v8675 = vadd.f32 %v8673, %v8674
    %v8676 = vrot.slane %v8675, 2
    %v8677 = vadd.f32 %v8675, %v8676
    %v8678 = vrot.slane %v8677, 1
    %v8679 = vadd.f32 %v8677, %v8678
    %v8680 = vadd.f32 %v8542, %v8544
    %v8681 = vadd.f32 %v8680, %v8546
    %v8682 = vadd.f32 %v8681, %v8548
    %v8683 = vadd.f32 %v8682, %v8550
    %v8684 = vadd.f32 %v8683, %v8552
    %v8685 = vadd.f32 %v8684, %v8554
    %v8686 = vadd.f32 %v8685, %v8556
    %v8687 = vadd.f32 %v8686, %v8558
    %v8688 = vadd.f32 %v8687, %v8560
    %v8689 = vadd.f32 %v8688, %v8562
    %v8690 = vadd.f32 %v8689, %v8564
    %v8691 = vadd.f32 %v8690, %v8566
    %v8692 = vadd.f32 %v8691, %v8568
    %v8693 = vadd.f32 %v8692, %v8570
    %v8694 = vadd.f32 %v8693, %v8572
    %v8695 = vadd.f32 %v8694, %v8574
    %v8696 = vadd.f32 %v8695, %v8576
    %v8697 = vadd.f32 %v8696, %v8578
    %v8698 = vadd.f32 %v8697, %v8580
    %v8699 = vadd.f32 %v8698, %v8582
    %v8700 = vadd.f32 %v8699, %v8584
    %v8701 = vadd.f32 %v8700, %v8586
    %v8702 = vadd.f32 %v8701, %v8588
    %v8703 = vadd.f32 %v8702, %v8590
    %v8704 = vadd.f32 %v8703, %v8592
    %v8705 = vadd.f32 %v8704, %v8594
    %v8706 = vadd.f32 %v8705, %v8596
    %v8707 = vadd.f32 %v8706, %v8598
    %v8708 = vadd.f32 %v8707, %v8600
    %v8709 = vadd.f32 %v8708, %v8602
    %v8710 = vadd.f32 %v8709, %v8604
    %v8711 = vrot.slane %v8710, 4
    %v8712 = vadd.f32 %v8710, %v8711
    %v8713 = vrot.slane %v8712, 2
    %v8714 = vadd.f32 %v8712, %v8713
    %v8715 = vrot.slane %v8714, 1
    %v8716 = vadd.f32 %v8714, %v8715
    %v8717 = vadd.f32 %v8543, %v8545
    %v8718 = vadd.f32 %v8717, %v8547
    %v8719 = vadd.f32 %v8718, %v8549
    %v8720 = vadd.f32 %v8719, %v8551
    %v8721 = vadd.f32 %v8720, %v8553
    %v8722 = vadd.f32 %v8721, %v8555
    %v8723 = vadd.f32 %v8722, %v8557
    %v8724 = vadd.f32 %v8723, %v8559
    %v8725 = vadd.f32 %v8724, %v8561
    %v8726 = vadd.f32 %v8725, %v8563
    %v8727 = vadd.f32 %v8726, %v8565
    %v8728 = vadd.f32 %v8727, %v8567
    %v8729 = vadd.f32 %v8728, %v8569
    %v8730 = vadd.f32 %v8729, %v8571
    %v8731 = vadd.f32 %v8730, %v8573
    %v8732 = vadd.f32 %v8731, %v8575
    %v8733 = vadd.f32 %v8732, %v8577
    %v8734 = vadd.f32 %v8733, %v8579
    %v8735 = vadd.f32 %v8734, %v8581
    %v8736 = vadd.f32 %v8735, %v8583
    %v8737 = vadd.f32 %v8736, %v8585
    %v8738 = vadd.f32 %v8737, %v8587
    %v8739 = vadd.f32 %v8738, %v8589
    %v8740 = vadd.f32 %v8739, %v8591
    %v8741 = vadd.f32 %v8740, %v8593
    %v8742 = vadd.f32 %v8741, %v8595
    %v8743 = vadd.f32 %v8742, %v8597
    %v8744 = vadd.f32 %v8743, %v8599
    %v8745 = vadd.f32 %v8744, %v8601
    %v8746 = vadd.f32 %v8745, %v8603
    %v8747 = vadd.f32 %v8746, %v8605
    %v8748 = vrot.slane %v8747, 4
    %v8749 = vadd.f32 %v8747, %v8748
    %v8750 = vrot.slane %v8749, 2
    %v8751 = vadd.f32 %v8749, %v8750
    %v8752 = vrot.slane %v8751, 1
    %v8753 = vadd.f32 %v8751, %v8752
    %v8754 = vpack.c.bf16 %v8642, %v8642
    %v8755 = vpack.c.bf16 %v8679, %v8679
    %v8756 = vpack.c.bf16 %v8716, %v8716
    %v8757 = vpack.c.bf16 %v8753, %v8753
    %v8758 = vld [vmem:[%s8] sm:$0xf]
    %v8759 = vld [vmem:[%s8 + $0x4] sm:$0xf]
    %v8760 = vld [vmem:[%s8 + $0x8] sm:$0xf]
    %v8761 = vld [vmem:[%s8 + $0xc] sm:$0xf]
    %v8762 = vld [vmem:[%s8 + $0x10] sm:$0xf]
    %v8763 = vld [vmem:[%s8 + $0x14] sm:$0xf]
    %v8764 = vld [vmem:[%s8 + $0x18] sm:$0xf]
    %v8765 = vld [vmem:[%s8 + $0x1c] sm:$0xf]
    %v8766 = vld [vmem:[%s8 + $0x20] sm:$0xf]
    %v8767 = vld [vmem:[%s8 + $0x24] sm:$0xf]
    %v8768 = vld [vmem:[%s8 + $0x28] sm:$0xf]
    %v8769 = vld [vmem:[%s8 + $0x2c] sm:$0xf]
    %v8770 = vld [vmem:[%s8 + $0x30] sm:$0xf]
    %v8771 = vld [vmem:[%s8 + $0x34] sm:$0xf]
    %v8772 = vld [vmem:[%s8 + $0x38] sm:$0xf]
    %v8773 = vld [vmem:[%s8 + $0x3c] sm:$0xf]
    %v8774 = vld [vmem:[%s8 + $0x40] sm:$0xf]
    %v8775 = vld [vmem:[%s8 + $0x44] sm:$0xf]
    %v8776 = vld [vmem:[%s8 + $0x48] sm:$0xf]
    %v8777 = vld [vmem:[%s8 + $0x4c] sm:$0xf]
    %v8778 = vld [vmem:[%s8 + $0x50] sm:$0xf]
    %v8779 = vld [vmem:[%s8 + $0x54] sm:$0xf]
    %v8780 = vld [vmem:[%s8 + $0x58] sm:$0xf]
    %v8781 = vld [vmem:[%s8 + $0x5c] sm:$0xf]
    %v8782 = vld [vmem:[%s8 + $0x60] sm:$0xf]
    %v8783 = vld [vmem:[%s8 + $0x64] sm:$0xf]
    %v8784 = vld [vmem:[%s8 + $0x68] sm:$0xf]
    %v8785 = vld [vmem:[%s8 + $0x6c] sm:$0xf]
    %v8786 = vld [vmem:[%s8 + $0x70] sm:$0xf]
    %v8787 = vld [vmem:[%s8 + $0x74] sm:$0xf]
    %v8788 = vld [vmem:[%s8 + $0x78] sm:$0xf]
    %v8789 = vld [vmem:[%s8 + $0x7c] sm:$0xf]
    %v8790 = vld [vmem:[%s9] sm:$0x1]
    %v8792 = vlaneseq
    %v8793 = vshrl.u32 %v8792, 7
    %v8794 = vsub.s32 0, %v8793
    %v8795 = vrot.slane %v8790, %v8794
    %v8801 = vunpack.c.l.b16 %v8754
    %v8802 = vunpack.c.l.b16 %v8755
    %v8803 = vunpack.c.l.b16 %v8756
    %v8804 = vunpack.c.l.b16 %v8757
    %vm8805 = vcmask 1041409
    %v8806 = vsel %vm8805, %v8803, %v8801
    %v8807 = vsel %vm8805, %v8804, %v8802
    %v8808 = vpack.c.b16 %v8806, %v8806
    %v8809 = vpack.c.b16 %v8807, %v8807
    %v8844 = vunpack.c.l.b16 %v8758
    %v8845 = vunpack.c.l.b16 %v8759
    %v8846 = vunpack.c.l.b16 %v8760
    %v8847 = vunpack.c.l.b16 %v8761
    %v8848 = vunpack.c.l.b16 %v8762
    %v8849 = vunpack.c.l.b16 %v8763
    %v8850 = vunpack.c.l.b16 %v8764
    %v8851 = vunpack.c.l.b16 %v8765
    %v8852 = vunpack.c.l.b16 %v8766
    %v8853 = vunpack.c.l.b16 %v8767
    %v8854 = vunpack.c.l.b16 %v8768
    %v8855 = vunpack.c.l.b16 %v8769
    %v8856 = vunpack.c.l.b16 %v8770
    %v8857 = vunpack.c.l.b16 %v8771
    %v8858 = vunpack.c.l.b16 %v8772
    %v8859 = vunpack.c.l.b16 %v8773
    %v8860 = vunpack.c.l.b16 %v8774
    %v8861 = vunpack.c.l.b16 %v8775
    %v8862 = vunpack.c.l.b16 %v8776
    %v8863 = vunpack.c.l.b16 %v8777
    %v8864 = vunpack.c.l.b16 %v8778
    %v8865 = vunpack.c.l.b16 %v8779
    %v8866 = vunpack.c.l.b16 %v8780
    %v8867 = vunpack.c.l.b16 %v8781
    %v8868 = vunpack.c.l.b16 %v8782
    %v8869 = vunpack.c.l.b16 %v8783
    %v8870 = vunpack.c.l.b16 %v8784
    %v8871 = vunpack.c.l.b16 %v8785
    %v8872 = vunpack.c.l.b16 %v8786
    %v8873 = vunpack.c.l.b16 %v8787
    %v8874 = vunpack.c.l.b16 %v8788
    %v8875 = vunpack.c.l.b16 %v8789
    %v8876 = vpack.c.b16 %v8845, %v8844
    %v8877 = vpack.c.b16 %v8847, %v8846
    %v8878 = vpack.c.b16 %v8849, %v8848
    %v8879 = vpack.c.b16 %v8851, %v8850
    %v8880 = vpack.c.b16 %v8853, %v8852
    %v8881 = vpack.c.b16 %v8855, %v8854
    %v8882 = vpack.c.b16 %v8857, %v8856
    %v8883 = vpack.c.b16 %v8859, %v8858
    %v8884 = vpack.c.b16 %v8861, %v8860
    %v8885 = vpack.c.b16 %v8863, %v8862
    %v8886 = vpack.c.b16 %v8865, %v8864
    %v8887 = vpack.c.b16 %v8867, %v8866
    %v8888 = vpack.c.b16 %v8869, %v8868
    %v8889 = vpack.c.b16 %v8871, %v8870
    %v8890 = vpack.c.b16 %v8873, %v8872
    %v8891 = vpack.c.b16 %v8875, %v8874
    %8908 = vmatprep.subr.bf16.mxu0 0
    %8909 = vmatpush1.bf16.msra.mxu0 %v8876
    %8910 = vmatprep.subr.bf16.mxu0 0
    %8911 = vmatpush1.bf16.msra.mxu0 %v8877
    %8912 = vmatprep.subr.bf16.mxu0 0
    %8913 = vmatpush1.bf16.msra.mxu0 %v8878
    %8914 = vmatprep.subr.bf16.mxu0 0
    %8915 = vmatpush1.bf16.msra.mxu0 %v8879
    %8916 = vmatprep.subr.bf16.mxu0 0
    %8917 = vmatpush1.bf16.msra.mxu0 %v8880
    %8918 = vmatprep.subr.bf16.mxu0 0
    %8919 = vmatpush1.bf16.msra.mxu0 %v8881
    %8920 = vmatprep.subr.bf16.mxu0 0
    %8921 = vmatpush1.bf16.msra.mxu0 %v8882
    %8922 = vmatprep.subr.bf16.mxu0 0
    %8923 = vmatpush1.bf16.msra.mxu0 %v8883
    %8924 = vmatprep.subr.bf16.mxu0 0
    %8925 = vmatpush1.bf16.msra.mxu0 %v8884
    %8926 = vmatprep.subr.bf16.mxu0 0
    %8927 = vmatpush1.bf16.msra.mxu0 %v8885
    %8928 = vmatprep.subr.bf16.mxu0 0
    %8929 = vmatpush1.bf16.msra.mxu0 %v8886
    %8930 = vmatprep.subr.bf16.mxu0 0
    %8931 = vmatpush1.bf16.msra.mxu0 %v8887
    %8932 = vmatprep.subr.bf16.mxu0 0
    %8933 = vmatpush1.bf16.msra.mxu0 %v8888
    %8934 = vmatprep.subr.bf16.mxu0 0
    %8935 = vmatpush1.bf16.msra.mxu0 %v8889
    %8936 = vmatprep.subr.bf16.mxu0 0
    %8937 = vmatpush1.bf16.msra.mxu0 %v8890
    %8938 = vmatprep.subr.bf16.mxu0 0
    %8939 = vmatpush1.bf16.msra.mxu0 %v8891
    %8940 = vmatprep.mubr.bf16.mxu0 %v8809
    %8941 = vmatmul.mubr.bf16.gmra.mrb[0].mxu0 %v8808
    %v8942 = vpop.f32.mrb[0].mxu0
    %v8943 = vadd.f32 %v8795, %v8942
    %v8944 = vpop.f32.mrb[0].mxu0
    %v8945 = vpop.f32.mrb[0].mxu0
    %v8946 = vpop.f32.mrb[0].mxu0
    %8947 = vdwg.mxu0
    %v8948 = vmax.f32 %v8943, 0.0
    %v8949 = vpack.c.bf16 %v8948, %v8948
    %v8950 = vld [vmem:[%s10] sm:$0xf]
    %v8951 = vld [vmem:[%s10 + $0x4] sm:$0xf]
    %v8952 = vld [vmem:[%s10 + $0x8] sm:$0xf]
    %v8953 = vld [vmem:[%s10 + $0xc] sm:$0xf]
    %v8954 = vld [vmem:[%s10 + $0x10] sm:$0xf]
    %v8955 = vld [vmem:[%s10 + $0x14] sm:$0xf]
    %v8956 = vld [vmem:[%s10 + $0x18] sm:$0xf]
    %v8957 = vld [vmem:[%s10 + $0x1c] sm:$0xf]
    %v8958 = vld [vmem:[%s10 + $0x20] sm:$0xf]
    %v8959 = vld [vmem:[%s10 + $0x24] sm:$0xf]
    %v8960 = vld [vmem:[%s10 + $0x28] sm:$0xf]
    %v8961 = vld [vmem:[%s10 + $0x2c] sm:$0xf]
    %v8962 = vld [vmem:[%s10 + $0x30] sm:$0xf]
    %v8963 = vld [vmem:[%s10 + $0x34] sm:$0xf]
    %v8964 = vld [vmem:[%s10 + $0x38] sm:$0xf]
    %v8965 = vld [vmem:[%s10 + $0x3c] sm:$0xf]
    %v8966 = vld [vmem:[%s11] sm:$0x1]
    %v8968 = vlaneseq
    %v8969 = vshrl.u32 %v8968, 7
    %v8970 = vsub.s32 0, %v8969
    %v8971 = vrot.slane %v8966, %v8970
    %v8989 = vunpack.c.l.b16 %v8950
    %v8990 = vunpack.c.l.b16 %v8951
    %v8991 = vunpack.c.l.b16 %v8952
    %v8992 = vunpack.c.l.b16 %v8953
    %v8993 = vunpack.c.l.b16 %v8954
    %v8994 = vunpack.c.l.b16 %v8955
    %v8995 = vunpack.c.l.b16 %v8956
    %v8996 = vunpack.c.l.b16 %v8957
    %v8997 = vunpack.c.l.b16 %v8958
    %v8998 = vunpack.c.l.b16 %v8959
    %v8999 = vunpack.c.l.b16 %v8960
    %v9000 = vunpack.c.l.b16 %v8961
    %v9001 = vunpack.c.l.b16 %v8962
    %v9002 = vunpack.c.l.b16 %v8963
    %v9003 = vunpack.c.l.b16 %v8964
    %v9004 = vunpack.c.l.b16 %v8965
    %v9005 = vpack.c.b16 %v8990, %v8989
    %v9006 = vpack.c.b16 %v8992, %v8991
    %v9007 = vpack.c.b16 %v8994, %v8993
    %v9008 = vpack.c.b16 %v8996, %v8995
    %v9009 = vpack.c.b16 %v8998, %v8997
    %v9010 = vpack.c.b16 %v9000, %v8999
    %v9011 = vpack.c.b16 %v9002, %v9001
    %v9012 = vpack.c.b16 %v9004, %v9003
    %9021 = vmatprep.subr.bf16.mxu0 0
    %9022 = vmatpush1.bf16.msra.mxu0 %v9005
    %9023 = vmatprep.subr.bf16.mxu0 0
    %9024 = vmatpush1.bf16.msra.mxu0 %v9006
    %9025 = vmatprep.subr.bf16.mxu0 0
    %9026 = vmatpush1.bf16.msra.mxu0 %v9007
    %9027 = vmatprep.subr.bf16.mxu0 0
    %9028 = vmatpush1.bf16.msra.mxu0 %v9008
    %9029 = vmatprep.subr.bf16.mxu0 0
    %9030 = vmatpush1.bf16.msra.mxu0 %v9009
    %9031 = vmatprep.subr.bf16.mxu0 0
    %9032 = vmatpush1.bf16.msra.mxu0 %v9010
    %9033 = vmatprep.subr.bf16.mxu0 0
    %9034 = vmatpush1.bf16.msra.mxu0 %v9011
    %9035 = vmatprep.subr.bf16.mxu0 0
    %9036 = vmatpush1.bf16.msra.mxu0 %v9012
    %9037 = vmatprep.subr.bf16.mxu0 0
    %9038 = vmatpush1.bf16.msra.mxu0 0
    %9039 = vmatprep.subr.bf16.mxu0 0
    %9040 = vmatpush1.bf16.msra.mxu0 0
    %9041 = vmatprep.subr.bf16.mxu0 0
    %9042 = vmatpush1.bf16.msra.mxu0 0
    %9043 = vmatprep.subr.bf16.mxu0 0
    %9044 = vmatpush1.bf16.msra.mxu0 0
    %9045 = vmatprep.subr.bf16.mxu0 0
    %9046 = vmatpush1.bf16.msra.mxu0 0
    %9047 = vmatprep.subr.bf16.mxu0 0
    %9048 = vmatpush1.bf16.msra.mxu0 0
    %9049 = vmatprep.subr.bf16.mxu0 0
    %9050 = vmatpush1.bf16.msra.mxu0 0
    %9051 = vmatprep.subr.bf16.mxu0 0
    %9052 = vmatpush1.bf16.msra.mxu0 0
    %9053 = vmatprep.mubr.bf16.mxu0 0
    %9054 = vmatmul.mubr.bf16.gmra.mrb[0].mxu0 %v8949
    %v9055 = vpop.f32.mrb[0].mxu0
    %v9056 = vadd.f32 %v8971, %v9055
    %v9057 = vpop.f32.mrb[0].mxu0
    %v9058 = vpop.f32.mrb[0].mxu0
    %v9059 = vpop.f32.mrb[0].mxu0
    %9060 = vdwg.mxu0
    %vm9061 = vcmask 74752
    %9062 = vst.msk [vmem:[#allocation4] sm:$0x3] %vm9061, %v9056
    // Predicated region
    $region50: #{net_forward.1} parent=1 // pred_check
      _
    $region51: #{net_forward.1} parent=1 // pred_check_branch
      %9064 = sbr.rel (0) target = $region53
    $region52: #{net_forward.1} parent=1 // pred_region
      %s9066 = ssub.s32 32, 32
      %9067 = vsyncadd [#allocation5], %s9066
      %s9069 = sshll.u32 [#allocation4], 4
      %s9070 = int_to_ptr.vmem [resolvable:$true] %s9069
      %9072 = dma.vmem_to_hbm [thread:$0]  %s9070, 32, %s12, [#allocation5]
    $region53: #{net_forward.1} parent=1 // pred_fallthru
      _
    // Predicated region
    $region54: #{net_forward.1} parent=1 // pred_check
      _
    $region55: #{net_forward.1} parent=1 // pred_check_branch
      %9074 = sbr.rel (0) target = $region57
    $region56: #{net_forward.1} parent=1 // pred_region
      %9075 = dma.done [#allocation5], 32
    $region57: #{net_forward.1} parent=1 // pred_fallthru
      _
    %9076 = vsyncpa [#allocation5], 1

</llo_original>
